<compile_context>
chip_gen: v7x
topology: tpu7x:2x2x1
jax: 0.10.0
libtpu: 0.0.40
codegen_flags: <defaults>
</compile_context>

<pallas_src>
import functools

import jax
import jax.numpy as jnp
from jax import lax
from jax.experimental import pallas as pl
from jax.experimental.pallas import tpu as pltpu


# ----------------------------- fused Pallas kernel -------------------------

def _fused_vlm_kernel(img_ref, ids_ref,
                      w1_ref, b1_ref, w2_ref, b2_ref, w3_ref, b3_ref,
                      fcw_ref, fcb_ref, emb_ref,
                      wih_ref, whh_ref, bl_ref,
                      dimg_ref, dtxt_ref, db_ref,
                      out_ref,
                      pad2_ref, pad3_ref,
                      *, B, T, V, HID, H1):
    """Whole SimpleVLMSeq2Seq forward in one kernel (all activations in VMEM)."""
    f32 = jnp.float32
    H2, H3 = H1 // 2, H1 // 4

    # ---- helpers -----------------------------------------------------------
    def conv3x3_relu(src_ref, Hs, w_ref, b_ref):
        """3x3 same conv + ReLU.  src_ref: (B, Hs+2, Hs+2, Cin) padded, in VMEM.
        Accumulates 9 shifted (B*Hs*Hs, Cin) @ (Cin, Cout) matmuls on the MXU."""
        Cin = w_ref.shape[1]
        Cout = w_ref.shape[2]
        acc = jnp.zeros((B * Hs * Hs, Cout), f32)
        for di in range(3):
            for dj in range(3):
                win = src_ref[:, di:di + Hs, dj:dj + Hs, :]          # (B,Hs,Hs,Cin)
                acc = acc + jnp.dot(win.reshape(B * Hs * Hs, Cin),
                                    w_ref[di * 3 + dj],              # (Cin,Cout)
                                    preferred_element_type=f32)
        y = jnp.maximum(acc + b_ref[...], 0.0)
        return y.reshape(B, Hs, Hs, Cout)

    def maxpool2x2(x):
        """nn.MaxPool2d(2) on an NHWC value, fused as VPU max of in-VMEM slices."""
        Bx, Hs, Ws, C = x.shape
        xh = x.reshape(Bx, Hs // 2, 2, Ws, C)
        xh = jnp.maximum(xh[:, :, 0, :, :], xh[:, :, 1, :, :])       # pool H
        xw = xh.reshape(Bx, Hs // 2, Ws // 2, 2, C)
        return jnp.max(xw, axis=3)                                   # pool W

    # ---- image encoder ------------------------------------------------------
    y1 = conv3x3_relu(img_ref, H1, w1_ref, b1_ref)                   # (B,16,16,16)
    p1 = maxpool2x2(y1)                                              # (B, 8, 8,16)

    pad2_ref[...] = jnp.zeros_like(pad2_ref)                         # pad in VMEM
    pad2_ref[:, 1:H2 + 1, 1:H2 + 1, :] = p1
    y2 = conv3x3_relu(pad2_ref, H2, w2_ref, b2_ref)                  # (B, 8, 8,32)
    p2 = maxpool2x2(y2)                                              # (B, 4, 4,32)

    pad3_ref[...] = jnp.zeros_like(pad3_ref)
    pad3_ref[:, 1:H3 + 1, 1:H3 + 1, :] = p2
    y3 = conv3x3_relu(pad3_ref, H3, w3_ref, b3_ref)                  # (B, 4, 4,64)

    # AdaptiveAvgPool2d((1,1)) + flatten  ->  (B, 64)
    feat = jnp.sum(y3.reshape(B, H3 * H3, 64), axis=1) * (1.0 / (H3 * H3))
    # img_fc (no ReLU)                    ->  (B, 128)
    x_img = jnp.dot(feat, fcw_ref[...], preferred_element_type=f32) + fcb_ref[...]

    # ---- text encoder: one-hot embedding + fused-gate LSTM ------------------
    ids = ids_ref[...]                                               # (T*B,1) int32 (time-major)
    iota = lax.broadcasted_iota(jnp.int32, (T * B, V), 1)
    onehot = jnp.where(ids == iota, 1.0, 0.0).astype(f32)            # (T*B, V)
    x_text = jnp.dot(onehot, emb_ref[...], preferred_element_type=f32)   # (T*B, E)
    # Input projection for ALL timesteps hoisted out of the recurrence.
    xproj = jnp.dot(x_text, wih_ref[...], preferred_element_type=f32) + bl_ref[...]  # (T*B,4H)

    whh = whh_ref[...]                                               # (H, 4H)
    h = jnp.zeros((B, HID), f32)
    c = jnp.zeros((B, HID), f32)
    for t in range(T):                                               # static unroll (T=8)
        g = xproj[t * B:(t + 1) * B, :] + jnp.dot(h, whh, preferred_element_type=f32)
        i_g = jax.nn.sigmoid(g[:, 0:HID])                            # PyTorch gate order
        f_g = jax.nn.sigmoid(g[:, HID:2 * HID])                      # i, f, g, o
        g_g = jnp.tanh(g[:, 2 * HID:3 * HID])
        o_g = jax.nn.sigmoid(g[:, 3 * HID:4 * HID])
        c = f_g * c + i_g * g_g
        h = o_g * jnp.tanh(c)

    # ---- fusion + decoder (concat replaced by split matmul) -----------------
    out = (jnp.dot(x_img, dimg_ref[...], preferred_element_type=f32)
           + jnp.dot(h, dtxt_ref[...], preferred_element_type=f32)
           + db_ref[...])
    out_ref[...] = out


# ----------------------------- parameters ----------------------------------

def init_torch_params(key, cfg):
    """Parameters in PyTorch (nn.Module) layout."""
    ks = jax.random.split(key, 16)

    def rnd(k, shape, scale=0.1):
        return scale * jax.random.normal(k, shape, dtype=jnp.float32)

    H = cfg['text_hidden_dim']
    E = cfg['embed_dim']
    V = cfg['input_vocab_size']
    O = cfg['output_seq_len'] * cfg['output_vocab_size']
    fused = 128 + H
    return dict(
        conv1_w=rnd(ks[0], (16, 3, 3, 3)),   conv1_b=rnd(ks[1], (16,)),
        conv2_w=rnd(ks[2], (32, 16, 3, 3)),  conv2_b=rnd(ks[3], (32,)),
        conv3_w=rnd(ks[4], (64, 32, 3, 3)),  conv3_b=rnd(ks[5], (64,)),
        fc_w=rnd(ks[6], (128, 64)),          fc_b=rnd(ks[7], (128,)),
        emb=rnd(ks[8], (V, E)),
        lstm_w_ih=rnd(ks[9], (4 * H, E)),    lstm_w_hh=rnd(ks[10], (4 * H, H)),
        lstm_b_ih=rnd(ks[11], (4 * H,)),     lstm_b_hh=rnd(ks[12], (4 * H,)),
        dec_w=rnd(ks[13], (O, fused)),       dec_b=rnd(ks[14], (O,)),
    )


def prepare_kernel_params(p):
    """One-time (init-time) weight preformatting for the fused kernel."""
    f32 = jnp.float32

    def conv_taps(w):  # (Cout,Cin,3,3) -> (9, Cin, Cout), tap index = di*3+dj
        cout, cin = w.shape[0], w.shape[1]
        return jnp.transpose(w, (2, 3, 1, 0)).reshape(9, cin, cout).astype(f32)

    dec_t = jnp.transpose(p['dec_w']).astype(f32)                 # (128+H, O)
    return dict(
        w1=conv_taps(p['conv1_w']), b1=p['conv1_b'].reshape(1, -1).astype(f32),
        w2=conv_taps(p['conv2_w']), b2=p['conv2_b'].reshape(1, -1).astype(f32),
        w3=conv_taps(p['conv3_w']), b3=p['conv3_b'].reshape(1, -1).astype(f32),
        fc_w=jnp.transpose(p['fc_w']).astype(f32),                # (64,128)
        fc_b=p['fc_b'].reshape(1, -1).astype(f32),
        emb=p['emb'].astype(f32),                                 # (V, E)
        wih=jnp.transpose(p['lstm_w_ih']).astype(f32),            # (E, 4H)  cols [i|f|g|o]
        whh=jnp.transpose(p['lstm_w_hh']).astype(f32),            # (H, 4H)
        bl=(p['lstm_b_ih'] + p['lstm_b_hh']).reshape(1, -1).astype(f32),
        dec_img=dec_t[:128, :],                                   # (128, O)
        dec_txt=dec_t[128:, :],                                   # (H,   O)
        dec_b=p['dec_b'].reshape(1, -1).astype(f32),
    )


# ----------------------------- forward wrapper ------------------------------

def make_forward(cfg):
    B, T = cfg['batch'], cfg['seq_len']
    V, HID = cfg['input_vocab_size'], cfg['text_hidden_dim']
    H1 = cfg['img_size']
    assert H1 % 4 == 0
    H2, H3 = H1 // 2, H1 // 4
    out_dim = cfg['output_seq_len'] * cfg['output_vocab_size']

    kernel = functools.partial(_fused_vlm_kernel, B=B, T=T, V=V, HID=HID, H1=H1)
    call = pl.pallas_call(
        kernel,
        out_shape=jax.ShapeDtypeStruct((B, out_dim), jnp.float32),
        scratch_shapes=[
            pltpu.VMEM((B, H2 + 2, H2 + 2, 16), jnp.float32),   # padded conv2 input
            pltpu.VMEM((B, H3 + 2, H3 + 2, 32), jnp.float32),   # padded conv3 input
        ],
    )

    @jax.jit
    def forward(kp, img_nchw, text_ids):
        # Input layout glue only (raw external inputs / final output view).
        x = jnp.transpose(img_nchw, (0, 2, 3, 1)).astype(jnp.float32)   # NCHW -> NHWC
        x = jnp.pad(x, ((0, 0), (1, 1), (1, 1), (0, 0)))                # pre-pad for conv1
        ids_tm = jnp.transpose(text_ids).reshape(T * B, 1).astype(jnp.int32)  # time-major ids
        out = call(x, ids_tm,
                   kp['w1'], kp['b1'], kp['w2'], kp['b2'], kp['w3'], kp['b3'],
                   kp['fc_w'], kp['fc_b'], kp['emb'],
                   kp['wih'], kp['whh'], kp['bl'],
                   kp['dec_img'], kp['dec_txt'], kp['dec_b'])
        return out.reshape(B, cfg['output_seq_len'], cfg['output_vocab_size'])

    return forward


# ----------------------------- demo / self-check ----------------------------

if __name__ == "__main__":
    cfg = dict(batch=2, seq_len=8, img_size=16,
               input_vocab_size=20, embed_dim=16, text_hidden_dim=32,
               output_vocab_size=11, output_seq_len=5)

    key = jax.random.PRNGKey(0)
    pk, ik, tk = jax.random.split(key, 3)

    torch_params = init_torch_params(pk, cfg)
    kparams = prepare_kernel_params(torch_params)          # one-time preformat
    forward = make_forward(cfg)

    img = jax.random.normal(ik, (cfg['batch'], 3, cfg['img_size'], cfg['img_size']),
                            dtype=jnp.float32)             # NCHW, like the PyTorch module
    text = jax.random.randint(tk, (cfg['batch'], cfg['seq_len']),
                              0, cfg['input_vocab_size'], dtype=jnp.int32)

    out = forward(kparams, img, text)
    out = jax.block_until_ready(out)
    assert out.shape == (cfg['batch'], cfg['output_seq_len'], cfg['output_vocab_size']), out.shape
    assert bool(jnp.all(jnp.isfinite(out)))
    print("KERNEL_OK")
</pallas_src>

<mosaic_0001>
module attributes {stable_mosaic.version = 11 : i64} {
  func.func @_fused_vlm_kernel(%arg0: memref<2x18x18x3xf32, #tpu.memory_space<vmem>>, %arg1: memref<16x1xi32, #tpu.memory_space<vmem>>, %arg2: memref<9x3x16xf32, #tpu.memory_space<vmem>>, %arg3: memref<1x16xf32, #tpu.memory_space<vmem>>, %arg4: memref<9x16x32xf32, #tpu.memory_space<vmem>>, %arg5: memref<1x32xf32, #tpu.memory_space<vmem>>, %arg6: memref<9x32x64xf32, #tpu.memory_space<vmem>>, %arg7: memref<1x64xf32, #tpu.memory_space<vmem>>, %arg8: memref<64x128xf32, #tpu.memory_space<vmem>>, %arg9: memref<1x128xf32, #tpu.memory_space<vmem>>, %arg10: memref<20x16xf32, #tpu.memory_space<vmem>>, %arg11: memref<16x128xf32, #tpu.memory_space<vmem>>, %arg12: memref<32x128xf32, #tpu.memory_space<vmem>>, %arg13: memref<1x128xf32, #tpu.memory_space<vmem>>, %arg14: memref<128x55xf32, #tpu.memory_space<vmem>>, %arg15: memref<32x55xf32, #tpu.memory_space<vmem>>, %arg16: memref<1x55xf32, #tpu.memory_space<vmem>>, %arg17: memref<2x55xf32, #tpu.memory_space<vmem>>, %arg18: memref<2x10x10x16xf32, #tpu.memory_space<vmem>>, %arg19: memref<2x6x6x32xf32, #tpu.memory_space<vmem>>) attributes {dimension_semantics = [], scalar_prefetch = 0 : i64, scratch_operands = 2 : i64, tpu.core_type = #tpu.core_type<tc>} {
    %cst = arith.constant 0.000000e+00 : f32
    %0 = vector.broadcast %cst : f32 to vector<512x16xf32>
    %c0 = arith.constant 0 : index
    %c0_0 = arith.constant 0 : index
    %c0_1 = arith.constant 0 : index
    %c0_2 = arith.constant 0 : index
    %1 = vector.load %arg0[%c0, %c0_0, %c0_1, %c0_2] : memref<2x18x18x3xf32, #tpu.memory_space<vmem>>, vector<2x16x16x3xf32>
    %2 = vector.shape_cast %1 : vector<2x16x16x3xf32> to vector<512x3xf32>
    %c0_3 = arith.constant 0 : index
    %c0_4 = arith.constant 0 : index
    %c0_5 = arith.constant 0 : index
    %3 = vector.load %arg2[%c0_3, %c0_4, %c0_5] : memref<9x3x16xf32, #tpu.memory_space<vmem>>, vector<1x3x16xf32>
    %4 = vector.shape_cast %3 : vector<1x3x16xf32> to vector<3x16xf32>
    %cst_6 = arith.constant dense<0.000000e+00> : vector<512x16xf32>
    %5 = tpu.matmul %2, %4, %cst_6 {dimension_numbers = #tpu.dot_dimension_numbers<[1], [0], [0], [1], [0, 0, 1, 1], [], []>} : vector<512x3xf32>, vector<3x16xf32>, vector<512x16xf32> -> vector<512x16xf32>
    %6 = arith.addf %0, %5 : vector<512x16xf32>
    %c0_7 = arith.constant 0 : index
    %c0_8 = arith.constant 0 : index
    %c1 = arith.constant 1 : index
    %c0_9 = arith.constant 0 : index
    %7 = vector.load %arg0[%c0_7, %c0_8, %c1, %c0_9] : memref<2x18x18x3xf32, #tpu.memory_space<vmem>>, vector<2x16x16x3xf32>
    %8 = vector.shape_cast %7 : vector<2x16x16x3xf32> to vector<512x3xf32>
    %c1_10 = arith.constant 1 : index
    %c0_11 = arith.constant 0 : index
    %c0_12 = arith.constant 0 : index
    %9 = vector.load %arg2[%c1_10, %c0_11, %c0_12] : memref<9x3x16xf32, #tpu.memory_space<vmem>>, vector<1x3x16xf32>
    %10 = vector.shape_cast %9 : vector<1x3x16xf32> to vector<3x16xf32>
    %cst_13 = arith.constant dense<0.000000e+00> : vector<512x16xf32>
    %11 = tpu.matmul %8, %10, %cst_13 {dimension_numbers = #tpu.dot_dimension_numbers<[1], [0], [0], [1], [0, 0, 1, 1], [], []>} : vector<512x3xf32>, vector<3x16xf32>, vector<512x16xf32> -> vector<512x16xf32>
    %12 = arith.addf %6, %11 : vector<512x16xf32>
    %c0_14 = arith.constant 0 : index
    %c0_15 = arith.constant 0 : index
    %c2 = arith.constant 2 : index
    %c0_16 = arith.constant 0 : index
    %13 = vector.load %arg0[%c0_14, %c0_15, %c2, %c0_16] : memref<2x18x18x3xf32, #tpu.memory_space<vmem>>, vector<2x16x16x3xf32>
    %14 = vector.shape_cast %13 : vector<2x16x16x3xf32> to vector<512x3xf32>
    %c2_17 = arith.constant 2 : index
    %c0_18 = arith.constant 0 : index
    %c0_19 = arith.constant 0 : index
    %15 = vector.load %arg2[%c2_17, %c0_18, %c0_19] : memref<9x3x16xf32, #tpu.memory_space<vmem>>, vector<1x3x16xf32>
    %16 = vector.shape_cast %15 : vector<1x3x16xf32> to vector<3x16xf32>
    %cst_20 = arith.constant dense<0.000000e+00> : vector<512x16xf32>
    %17 = tpu.matmul %14, %16, %cst_20 {dimension_numbers = #tpu.dot_dimension_numbers<[1], [0], [0], [1], [0, 0, 1, 1], [], []>} : vector<512x3xf32>, vector<3x16xf32>, vector<512x16xf32> -> vector<512x16xf32>
    %18 = arith.addf %12, %17 : vector<512x16xf32>
    %c0_21 = arith.constant 0 : index
    %c1_22 = arith.constant 1 : index
    %c0_23 = arith.constant 0 : index
    %c0_24 = arith.constant 0 : index
    %19 = vector.load %arg0[%c0_21, %c1_22, %c0_23, %c0_24] : memref<2x18x18x3xf32, #tpu.memory_space<vmem>>, vector<2x16x16x3xf32>
    %20 = vector.shape_cast %19 : vector<2x16x16x3xf32> to vector<512x3xf32>
    %c3 = arith.constant 3 : index
    %c0_25 = arith.constant 0 : index
    %c0_26 = arith.constant 0 : index
    %21 = vector.load %arg2[%c3, %c0_25, %c0_26] : memref<9x3x16xf32, #tpu.memory_space<vmem>>, vector<1x3x16xf32>
    %22 = vector.shape_cast %21 : vector<1x3x16xf32> to vector<3x16xf32>
    %cst_27 = arith.constant dense<0.000000e+00> : vector<512x16xf32>
    %23 = tpu.matmul %20, %22, %cst_27 {dimension_numbers = #tpu.dot_dimension_numbers<[1], [0], [0], [1], [0, 0, 1, 1], [], []>} : vector<512x3xf32>, vector<3x16xf32>, vector<512x16xf32> -> vector<512x16xf32>
    %24 = arith.addf %18, %23 : vector<512x16xf32>
    %c0_28 = arith.constant 0 : index
    %c1_29 = arith.constant 1 : index
    %c1_30 = arith.constant 1 : index
    %c0_31 = arith.constant 0 : index
    %25 = vector.load %arg0[%c0_28, %c1_29, %c1_30, %c0_31] : memref<2x18x18x3xf32, #tpu.memory_space<vmem>>, vector<2x16x16x3xf32>
    %26 = vector.shape_cast %25 : vector<2x16x16x3xf32> to vector<512x3xf32>
    %c4 = arith.constant 4 : index
    %c0_32 = arith.constant 0 : index
    %c0_33 = arith.constant 0 : index
    %27 = vector.load %arg2[%c4, %c0_32, %c0_33] : memref<9x3x16xf32, #tpu.memory_space<vmem>>, vector<1x3x16xf32>
    %28 = vector.shape_cast %27 : vector<1x3x16xf32> to vector<3x16xf32>
    %cst_34 = arith.constant dense<0.000000e+00> : vector<512x16xf32>
    %29 = tpu.matmul %26, %28, %cst_34 {dimension_numbers = #tpu.dot_dimension_numbers<[1], [0], [0], [1], [0, 0, 1, 1], [], []>} : vector<512x3xf32>, vector<3x16xf32>, vector<512x16xf32> -> vector<512x16xf32>
    %30 = arith.addf %24, %29 : vector<512x16xf32>
    %c0_35 = arith.constant 0 : index
    %c1_36 = arith.constant 1 : index
    %c2_37 = arith.constant 2 : index
    %c0_38 = arith.constant 0 : index
    %31 = vector.load %arg0[%c0_35, %c1_36, %c2_37, %c0_38] : memref<2x18x18x3xf32, #tpu.memory_space<vmem>>, vector<2x16x16x3xf32>
    %32 = vector.shape_cast %31 : vector<2x16x16x3xf32> to vector<512x3xf32>
    %c5 = arith.constant 5 : index
    %c0_39 = arith.constant 0 : index
    %c0_40 = arith.constant 0 : index
    %33 = vector.load %arg2[%c5, %c0_39, %c0_40] : memref<9x3x16xf32, #tpu.memory_space<vmem>>, vector<1x3x16xf32>
    %34 = vector.shape_cast %33 : vector<1x3x16xf32> to vector<3x16xf32>
    %cst_41 = arith.constant dense<0.000000e+00> : vector<512x16xf32>
    %35 = tpu.matmul %32, %34, %cst_41 {dimension_numbers = #tpu.dot_dimension_numbers<[1], [0], [0], [1], [0, 0, 1, 1], [], []>} : vector<512x3xf32>, vector<3x16xf32>, vector<512x16xf32> -> vector<512x16xf32>
    %36 = arith.addf %30, %35 : vector<512x16xf32>
    %c0_42 = arith.constant 0 : index
    %c2_43 = arith.constant 2 : index
    %c0_44 = arith.constant 0 : index
    %c0_45 = arith.constant 0 : index
    %37 = vector.load %arg0[%c0_42, %c2_43, %c0_44, %c0_45] : memref<2x18x18x3xf32, #tpu.memory_space<vmem>>, vector<2x16x16x3xf32>
    %38 = vector.shape_cast %37 : vector<2x16x16x3xf32> to vector<512x3xf32>
    %c6 = arith.constant 6 : index
    %c0_46 = arith.constant 0 : index
    %c0_47 = arith.constant 0 : index
    %39 = vector.load %arg2[%c6, %c0_46, %c0_47] : memref<9x3x16xf32, #tpu.memory_space<vmem>>, vector<1x3x16xf32>
    %40 = vector.shape_cast %39 : vector<1x3x16xf32> to vector<3x16xf32>
    %cst_48 = arith.constant dense<0.000000e+00> : vector<512x16xf32>
    %41 = tpu.matmul %38, %40, %cst_48 {dimension_numbers = #tpu.dot_dimension_numbers<[1], [0], [0], [1], [0, 0, 1, 1], [], []>} : vector<512x3xf32>, vector<3x16xf32>, vector<512x16xf32> -> vector<512x16xf32>
    %42 = arith.addf %36, %41 : vector<512x16xf32>
    %c0_49 = arith.constant 0 : index
    %c2_50 = arith.constant 2 : index
    %c1_51 = arith.constant 1 : index
    %c0_52 = arith.constant 0 : index
    %43 = vector.load %arg0[%c0_49, %c2_50, %c1_51, %c0_52] : memref<2x18x18x3xf32, #tpu.memory_space<vmem>>, vector<2x16x16x3xf32>
    %44 = vector.shape_cast %43 : vector<2x16x16x3xf32> to vector<512x3xf32>
    %c7 = arith.constant 7 : index
    %c0_53 = arith.constant 0 : index
    %c0_54 = arith.constant 0 : index
    %45 = vector.load %arg2[%c7, %c0_53, %c0_54] : memref<9x3x16xf32, #tpu.memory_space<vmem>>, vector<1x3x16xf32>
    %46 = vector.shape_cast %45 : vector<1x3x16xf32> to vector<3x16xf32>
    %cst_55 = arith.constant dense<0.000000e+00> : vector<512x16xf32>
    %47 = tpu.matmul %44, %46, %cst_55 {dimension_numbers = #tpu.dot_dimension_numbers<[1], [0], [0], [1], [0, 0, 1, 1], [], []>} : vector<512x3xf32>, vector<3x16xf32>, vector<512x16xf32> -> vector<512x16xf32>
    %48 = arith.addf %42, %47 : vector<512x16xf32>
    %c0_56 = arith.constant 0 : index
    %c2_57 = arith.constant 2 : index
    %c2_58 = arith.constant 2 : index
    %c0_59 = arith.constant 0 : index
    %49 = vector.load %arg0[%c0_56, %c2_57, %c2_58, %c0_59] : memref<2x18x18x3xf32, #tpu.memory_space<vmem>>, vector<2x16x16x3xf32>
    %50 = vector.shape_cast %49 : vector<2x16x16x3xf32> to vector<512x3xf32>
    %c8 = arith.constant 8 : index
    %c0_60 = arith.constant 0 : index
    %c0_61 = arith.constant 0 : index
    %51 = vector.load %arg2[%c8, %c0_60, %c0_61] : memref<9x3x16xf32, #tpu.memory_space<vmem>>, vector<1x3x16xf32>
    %52 = vector.shape_cast %51 : vector<1x3x16xf32> to vector<3x16xf32>
    %cst_62 = arith.constant dense<0.000000e+00> : vector<512x16xf32>
    %53 = tpu.matmul %50, %52, %cst_62 {dimension_numbers = #tpu.dot_dimension_numbers<[1], [0], [0], [1], [0, 0, 1, 1], [], []>} : vector<512x3xf32>, vector<3x16xf32>, vector<512x16xf32> -> vector<512x16xf32>
    %54 = arith.addf %48, %53 : vector<512x16xf32>
    %c0_63 = arith.constant 0 : index
    %c0_64 = arith.constant 0 : index
    %55 = vector.load %arg3[%c0_63, %c0_64] : memref<1x16xf32, #tpu.memory_space<vmem>>, vector<1x16xf32>
    %56 = vector.broadcast %55 : vector<1x16xf32> to vector<512x16xf32>
    %57 = arith.addf %54, %56 : vector<512x16xf32>
    %cst_65 = arith.constant 0.000000e+00 : f32
    %58 = vector.broadcast %cst_65 : f32 to vector<512x16xf32>
    %59 = arith.maximumf %57, %58 : vector<512x16xf32>
    %60 = vector.shape_cast %59 : vector<512x16xf32> to vector<2x16x16x16xf32>
    %61 = vector.shape_cast %60 : vector<2x16x16x16xf32> to vector<2x8x2x16x16xf32>
    %62 = vector.extract_strided_slice %61 {offsets = [0, 0, 0, 0, 0], sizes = [2, 8, 1, 16, 16], strides = [1, 1, 1, 1, 1]} : vector<2x8x2x16x16xf32> to vector<2x8x1x16x16xf32>
    %63 = vector.shape_cast %62 : vector<2x8x1x16x16xf32> to vector<2x8x16x16xf32>
    %64 = vector.extract_strided_slice %61 {offsets = [0, 0, 1, 0, 0], sizes = [2, 8, 1, 16, 16], strides = [1, 1, 1, 1, 1]} : vector<2x8x2x16x16xf32> to vector<2x8x1x16x16xf32>
    %65 = vector.shape_cast %64 : vector<2x8x1x16x16xf32> to vector<2x8x16x16xf32>
    %66 = arith.maximumf %63, %65 : vector<2x8x16x16xf32>
    %67 = vector.shape_cast %66 : vector<2x8x16x16xf32> to vector<2x8x8x2x16xf32>
    %cst_66 = arith.constant dense<0xFF800000> : vector<2x8x8x16xf32>
    %68 = vector.multi_reduction <maximumf>, %67, %cst_66 [3] : vector<2x8x8x2x16xf32> to vector<2x8x8x16xf32>
    %cst_67 = arith.constant 0.000000e+00 : f32
    %69 = vector.broadcast %cst_67 : f32 to vector<2x10x10x16xf32>
    %c0_68 = arith.constant 0 : index
    %c0_69 = arith.constant 0 : index
    %c0_70 = arith.constant 0 : index
    %c0_71 = arith.constant 0 : index
    %70 = vector.load %arg18[%c0_68, %c0_69, %c0_70, %c0_71] : memref<2x10x10x16xf32, #tpu.memory_space<vmem>>, vector<2x10x10x16xf32>
    tpu.vector_store %arg18[%c0_68, %c0_69, %c0_70, %c0_71], %69 {strides = array<i32>} : memref<2x10x10x16xf32, #tpu.memory_space<vmem>>, vector<2x10x10x16xf32>,
    %c0_72 = arith.constant 0 : index
    %c1_73 = arith.constant 1 : index
    %c1_74 = arith.constant 1 : index
    %c0_75 = arith.constant 0 : index
    %71 = vector.load %arg18[%c0_72, %c1_73, %c1_74, %c0_75] : memref<2x10x10x16xf32, #tpu.memory_space<vmem>>, vector<2x8x8x16xf32>
    tpu.vector_store %arg18[%c0_72, %c1_73, %c1_74, %c0_75], %68 {strides = array<i32>} : memref<2x10x10x16xf32, #tpu.memory_space<vmem>>, vector<2x8x8x16xf32>,
    %cst_76 = arith.constant 0.000000e+00 : f32
    %72 = vector.broadcast %cst_76 : f32 to vector<128x32xf32>
    %c0_77 = arith.constant 0 : index
    %c0_78 = arith.constant 0 : index
    %c0_79 = arith.constant 0 : index
    %c0_80 = arith.constant 0 : index
    %73 = vector.load %arg18[%c0_77, %c0_78, %c0_79, %c0_80] : memref<2x10x10x16xf32, #tpu.memory_space<vmem>>, vector<2x8x8x16xf32>
    %74 = vector.shape_cast %73 : vector<2x8x8x16xf32> to vector<128x16xf32>
    %c0_81 = arith.constant 0 : index
    %c0_82 = arith.constant 0 : index
    %c0_83 = arith.constant 0 : index
    %75 = vector.load %arg4[%c0_81, %c0_82, %c0_83] : memref<9x16x32xf32, #tpu.memory_space<vmem>>, vector<1x16x32xf32>
    %76 = vector.shape_cast %75 : vector<1x16x32xf32> to vector<16x32xf32>
    %cst_84 = arith.constant dense<0.000000e+00> : vector<128x32xf32>
    %77 = tpu.matmul %74, %76, %cst_84 {dimension_numbers = #tpu.dot_dimension_numbers<[1], [0], [0], [1], [0, 0, 1, 1], [], []>} : vector<128x16xf32>, vector<16x32xf32>, vector<128x32xf32> -> vector<128x32xf32>
    %78 = arith.addf %72, %77 : vector<128x32xf32>
    %c0_85 = arith.constant 0 : index
    %c0_86 = arith.constant 0 : index
    %c1_87 = arith.constant 1 : index
    %c0_88 = arith.constant 0 : index
    %79 = vector.load %arg18[%c0_85, %c0_86, %c1_87, %c0_88] : memref<2x10x10x16xf32, #tpu.memory_space<vmem>>, vector<2x8x8x16xf32>
    %80 = vector.shape_cast %79 : vector<2x8x8x16xf32> to vector<128x16xf32>
    %c1_89 = arith.constant 1 : index
    %c0_90 = arith.constant 0 : index
    %c0_91 = arith.constant 0 : index
    %81 = vector.load %arg4[%c1_89, %c0_90, %c0_91] : memref<9x16x32xf32, #tpu.memory_space<vmem>>, vector<1x16x32xf32>
    %82 = vector.shape_cast %81 : vector<1x16x32xf32> to vector<16x32xf32>
    %cst_92 = arith.constant dense<0.000000e+00> : vector<128x32xf32>
    %83 = tpu.matmul %80, %82, %cst_92 {dimension_numbers = #tpu.dot_dimension_numbers<[1], [0], [0], [1], [0, 0, 1, 1], [], []>} : vector<128x16xf32>, vector<16x32xf32>, vector<128x32xf32> -> vector<128x32xf32>
    %84 = arith.addf %78, %83 : vector<128x32xf32>
    %c0_93 = arith.constant 0 : index
    %c0_94 = arith.constant 0 : index
    %c2_95 = arith.constant 2 : index
    %c0_96 = arith.constant 0 : index
    %85 = vector.load %arg18[%c0_93, %c0_94, %c2_95, %c0_96] : memref<2x10x10x16xf32, #tpu.memory_space<vmem>>, vector<2x8x8x16xf32>
    %86 = vector.shape_cast %85 : vector<2x8x8x16xf32> to vector<128x16xf32>
    %c2_97 = arith.constant 2 : index
    %c0_98 = arith.constant 0 : index
    %c0_99 = arith.constant 0 : index
    %87 = vector.load %arg4[%c2_97, %c0_98, %c0_99] : memref<9x16x32xf32, #tpu.memory_space<vmem>>, vector<1x16x32xf32>
    %88 = vector.shape_cast %87 : vector<1x16x32xf32> to vector<16x32xf32>
    %cst_100 = arith.constant dense<0.000000e+00> : vector<128x32xf32>
    %89 = tpu.matmul %86, %88, %cst_100 {dimension_numbers = #tpu.dot_dimension_numbers<[1], [0], [0], [1], [0, 0, 1, 1], [], []>} : vector<128x16xf32>, vector<16x32xf32>, vector<128x32xf32> -> vector<128x32xf32>
    %90 = arith.addf %84, %89 : vector<128x32xf32>
    %c0_101 = arith.constant 0 : index
    %c1_102 = arith.constant 1 : index
    %c0_103 = arith.constant 0 : index
    %c0_104 = arith.constant 0 : index
    %91 = vector.load %arg18[%c0_101, %c1_102, %c0_103, %c0_104] : memref<2x10x10x16xf32, #tpu.memory_space<vmem>>, vector<2x8x8x16xf32>
    %92 = vector.shape_cast %91 : vector<2x8x8x16xf32> to vector<128x16xf32>
    %c3_105 = arith.constant 3 : index
    %c0_106 = arith.constant 0 : index
    %c0_107 = arith.constant 0 : index
    %93 = vector.load %arg4[%c3_105, %c0_106, %c0_107] : memref<9x16x32xf32, #tpu.memory_space<vmem>>, vector<1x16x32xf32>
    %94 = vector.shape_cast %93 : vector<1x16x32xf32> to vector<16x32xf32>
    %cst_108 = arith.constant dense<0.000000e+00> : vector<128x32xf32>
    %95 = tpu.matmul %92, %94, %cst_108 {dimension_numbers = #tpu.dot_dimension_numbers<[1], [0], [0], [1], [0, 0, 1, 1], [], []>} : vector<128x16xf32>, vector<16x32xf32>, vector<128x32xf32> -> vector<128x32xf32>
    %96 = arith.addf %90, %95 : vector<128x32xf32>
    %c0_109 = arith.constant 0 : index
    %c1_110 = arith.constant 1 : index
    %c1_111 = arith.constant 1 : index
    %c0_112 = arith.constant 0 : index
    %97 = vector.load %arg18[%c0_109, %c1_110, %c1_111, %c0_112] : memref<2x10x10x16xf32, #tpu.memory_space<vmem>>, vector<2x8x8x16xf32>
    %98 = vector.shape_cast %97 : vector<2x8x8x16xf32> to vector<128x16xf32>
    %c4_113 = arith.constant 4 : index
    %c0_114 = arith.constant 0 : index
    %c0_115 = arith.constant 0 : index
    %99 = vector.load %arg4[%c4_113, %c0_114, %c0_115] : memref<9x16x32xf32, #tpu.memory_space<vmem>>, vector<1x16x32xf32>
    %100 = vector.shape_cast %99 : vector<1x16x32xf32> to vector<16x32xf32>
    %cst_116 = arith.constant dense<0.000000e+00> : vector<128x32xf32>
    %101 = tpu.matmul %98, %100, %cst_116 {dimension_numbers = #tpu.dot_dimension_numbers<[1], [0], [0], [1], [0, 0, 1, 1], [], []>} : vector<128x16xf32>, vector<16x32xf32>, vector<128x32xf32> -> vector<128x32xf32>
    %102 = arith.addf %96, %101 : vector<128x32xf32>
    %c0_117 = arith.constant 0 : index
    %c1_118 = arith.constant 1 : index
    %c2_119 = arith.constant 2 : index
    %c0_120 = arith.constant 0 : index
    %103 = vector.load %arg18[%c0_117, %c1_118, %c2_119, %c0_120] : memref<2x10x10x16xf32, #tpu.memory_space<vmem>>, vector<2x8x8x16xf32>
    %104 = vector.shape_cast %103 : vector<2x8x8x16xf32> to vector<128x16xf32>
    %c5_121 = arith.constant 5 : index
    %c0_122 = arith.constant 0 : index
    %c0_123 = arith.constant 0 : index
    %105 = vector.load %arg4[%c5_121, %c0_122, %c0_123] : memref<9x16x32xf32, #tpu.memory_space<vmem>>, vector<1x16x32xf32>
    %106 = vector.shape_cast %105 : vector<1x16x32xf32> to vector<16x32xf32>
    %cst_124 = arith.constant dense<0.000000e+00> : vector<128x32xf32>
    %107 = tpu.matmul %104, %106, %cst_124 {dimension_numbers = #tpu.dot_dimension_numbers<[1], [0], [0], [1], [0, 0, 1, 1], [], []>} : vector<128x16xf32>, vector<16x32xf32>, vector<128x32xf32> -> vector<128x32xf32>
    %108 = arith.addf %102, %107 : vector<128x32xf32>
    %c0_125 = arith.constant 0 : index
    %c2_126 = arith.constant 2 : index
    %c0_127 = arith.constant 0 : index
    %c0_128 = arith.constant 0 : index
    %109 = vector.load %arg18[%c0_125, %c2_126, %c0_127, %c0_128] : memref<2x10x10x16xf32, #tpu.memory_space<vmem>>, vector<2x8x8x16xf32>
    %110 = vector.shape_cast %109 : vector<2x8x8x16xf32> to vector<128x16xf32>
    %c6_129 = arith.constant 6 : index
    %c0_130 = arith.constant 0 : index
    %c0_131 = arith.constant 0 : index
    %111 = vector.load %arg4[%c6_129, %c0_130, %c0_131] : memref<9x16x32xf32, #tpu.memory_space<vmem>>, vector<1x16x32xf32>
    %112 = vector.shape_cast %111 : vector<1x16x32xf32> to vector<16x32xf32>
    %cst_132 = arith.constant dense<0.000000e+00> : vector<128x32xf32>
    %113 = tpu.matmul %110, %112, %cst_132 {dimension_numbers = #tpu.dot_dimension_numbers<[1], [0], [0], [1], [0, 0, 1, 1], [], []>} : vector<128x16xf32>, vector<16x32xf32>, vector<128x32xf32> -> vector<128x32xf32>
    %114 = arith.addf %108, %113 : vector<128x32xf32>
    %c0_133 = arith.constant 0 : index
    %c2_134 = arith.constant 2 : index
    %c1_135 = arith.constant 1 : index
    %c0_136 = arith.constant 0 : index
    %115 = vector.load %arg18[%c0_133, %c2_134, %c1_135, %c0_136] : memref<2x10x10x16xf32, #tpu.memory_space<vmem>>, vector<2x8x8x16xf32>
    %116 = vector.shape_cast %115 : vector<2x8x8x16xf32> to vector<128x16xf32>
    %c7_137 = arith.constant 7 : index
    %c0_138 = arith.constant 0 : index
    %c0_139 = arith.constant 0 : index
    %117 = vector.load %arg4[%c7_137, %c0_138, %c0_139] : memref<9x16x32xf32, #tpu.memory_space<vmem>>, vector<1x16x32xf32>
    %118 = vector.shape_cast %117 : vector<1x16x32xf32> to vector<16x32xf32>
    %cst_140 = arith.constant dense<0.000000e+00> : vector<128x32xf32>
    %119 = tpu.matmul %116, %118, %cst_140 {dimension_numbers = #tpu.dot_dimension_numbers<[1], [0], [0], [1], [0, 0, 1, 1], [], []>} : vector<128x16xf32>, vector<16x32xf32>, vector<128x32xf32> -> vector<128x32xf32>
    %120 = arith.addf %114, %119 : vector<128x32xf32>
    %c0_141 = arith.constant 0 : index
    %c2_142 = arith.constant 2 : index
    %c2_143 = arith.constant 2 : index
    %c0_144 = arith.constant 0 : index
    %121 = vector.load %arg18[%c0_141, %c2_142, %c2_143, %c0_144] : memref<2x10x10x16xf32, #tpu.memory_space<vmem>>, vector<2x8x8x16xf32>
    %122 = vector.shape_cast %121 : vector<2x8x8x16xf32> to vector<128x16xf32>
    %c8_145 = arith.constant 8 : index
    %c0_146 = arith.constant 0 : index
    %c0_147 = arith.constant 0 : index
    %123 = vector.load %arg4[%c8_145, %c0_146, %c0_147] : memref<9x16x32xf32, #tpu.memory_space<vmem>>, vector<1x16x32xf32>
    %124 = vector.shape_cast %123 : vector<1x16x32xf32> to vector<16x32xf32>
    %cst_148 = arith.constant dense<0.000000e+00> : vector<128x32xf32>
    %125 = tpu.matmul %122, %124, %cst_148 {dimension_numbers = #tpu.dot_dimension_numbers<[1], [0], [0], [1], [0, 0, 1, 1], [], []>} : vector<128x16xf32>, vector<16x32xf32>, vector<128x32xf32> -> vector<128x32xf32>
    %126 = arith.addf %120, %125 : vector<128x32xf32>
    %c0_149 = arith.constant 0 : index
    %c0_150 = arith.constant 0 : index
    %127 = vector.load %arg5[%c0_149, %c0_150] : memref<1x32xf32, #tpu.memory_space<vmem>>, vector<1x32xf32>
    %128 = vector.broadcast %127 : vector<1x32xf32> to vector<128x32xf32>
    %129 = arith.addf %126, %128 : vector<128x32xf32>
    %cst_151 = arith.constant 0.000000e+00 : f32
    %130 = vector.broadcast %cst_151 : f32 to vector<128x32xf32>
    %131 = arith.maximumf %129, %130 : vector<128x32xf32>
    %132 = vector.shape_cast %131 : vector<128x32xf32> to vector<2x8x8x32xf32>
    %133 = vector.shape_cast %132 : vector<2x8x8x32xf32> to vector<2x4x2x8x32xf32>
    %134 = vector.extract_strided_slice %133 {offsets = [0, 0, 0, 0, 0], sizes = [2, 4, 1, 8, 32], strides = [1, 1, 1, 1, 1]} : vector<2x4x2x8x32xf32> to vector<2x4x1x8x32xf32>
    %135 = vector.shape_cast %134 : vector<2x4x1x8x32xf32> to vector<2x4x8x32xf32>
    %136 = vector.extract_strided_slice %133 {offsets = [0, 0, 1, 0, 0], sizes = [2, 4, 1, 8, 32], strides = [1, 1, 1, 1, 1]} : vector<2x4x2x8x32xf32> to vector<2x4x1x8x32xf32>
    %137 = vector.shape_cast %136 : vector<2x4x1x8x32xf32> to vector<2x4x8x32xf32>
    %138 = arith.maximumf %135, %137 : vector<2x4x8x32xf32>
    %139 = vector.shape_cast %138 : vector<2x4x8x32xf32> to vector<2x4x4x2x32xf32>
    %cst_152 = arith.constant dense<0xFF800000> : vector<2x4x4x32xf32>
    %140 = vector.multi_reduction <maximumf>, %139, %cst_152 [3] : vector<2x4x4x2x32xf32> to vector<2x4x4x32xf32>
    %cst_153 = arith.constant 0.000000e+00 : f32
    %141 = vector.broadcast %cst_153 : f32 to vector<2x6x6x32xf32>
    %c0_154 = arith.constant 0 : index
    %c0_155 = arith.constant 0 : index
    %c0_156 = arith.constant 0 : index
    %c0_157 = arith.constant 0 : index
    %142 = vector.load %arg19[%c0_154, %c0_155, %c0_156, %c0_157] : memref<2x6x6x32xf32, #tpu.memory_space<vmem>>, vector<2x6x6x32xf32>
    tpu.vector_store %arg19[%c0_154, %c0_155, %c0_156, %c0_157], %141 {strides = array<i32>} : memref<2x6x6x32xf32, #tpu.memory_space<vmem>>, vector<2x6x6x32xf32>,
    %c0_158 = arith.constant 0 : index
    %c1_159 = arith.constant 1 : index
    %c1_160 = arith.constant 1 : index
    %c0_161 = arith.constant 0 : index
    %143 = vector.load %arg19[%c0_158, %c1_159, %c1_160, %c0_161] : memref<2x6x6x32xf32, #tpu.memory_space<vmem>>, vector<2x4x4x32xf32>
    tpu.vector_store %arg19[%c0_158, %c1_159, %c1_160, %c0_161], %140 {strides = array<i32>} : memref<2x6x6x32xf32, #tpu.memory_space<vmem>>, vector<2x4x4x32xf32>,
    %cst_162 = arith.constant 0.000000e+00 : f32
    %144 = vector.broadcast %cst_162 : f32 to vector<32x64xf32>
    %c0_163 = arith.constant 0 : index
    %c0_164 = arith.constant 0 : index
    %c0_165 = arith.constant 0 : index
    %c0_166 = arith.constant 0 : index
    %145 = vector.load %arg19[%c0_163, %c0_164, %c0_165, %c0_166] : memref<2x6x6x32xf32, #tpu.memory_space<vmem>>, vector<2x4x4x32xf32>
    %146 = vector.shape_cast %145 : vector<2x4x4x32xf32> to vector<32x32xf32>
    %c0_167 = arith.constant 0 : index
    %c0_168 = arith.constant 0 : index
    %c0_169 = arith.constant 0 : index
    %147 = vector.load %arg6[%c0_167, %c0_168, %c0_169] : memref<9x32x64xf32, #tpu.memory_space<vmem>>, vector<1x32x64xf32>
    %148 = vector.shape_cast %147 : vector<1x32x64xf32> to vector<32x64xf32>
    %cst_170 = arith.constant dense<0.000000e+00> : vector<32x64xf32>
    %149 = tpu.matmul %146, %148, %cst_170 {dimension_numbers = #tpu.dot_dimension_numbers<[1], [0], [0], [1], [0, 0, 1, 1], [], []>} : vector<32x32xf32>, vector<32x64xf32>, vector<32x64xf32> -> vector<32x64xf32>
    %150 = arith.addf %144, %149 : vector<32x64xf32>
    %c0_171 = arith.constant 0 : index
    %c0_172 = arith.constant 0 : index
    %c1_173 = arith.constant 1 : index
    %c0_174 = arith.constant 0 : index
    %151 = vector.load %arg19[%c0_171, %c0_172, %c1_173, %c0_174] : memref<2x6x6x32xf32, #tpu.memory_space<vmem>>, vector<2x4x4x32xf32>
    %152 = vector.shape_cast %151 : vector<2x4x4x32xf32> to vector<32x32xf32>
    %c1_175 = arith.constant 1 : index
    %c0_176 = arith.constant 0 : index
    %c0_177 = arith.constant 0 : index
    %153 = vector.load %arg6[%c1_175, %c0_176, %c0_177] : memref<9x32x64xf32, #tpu.memory_space<vmem>>, vector<1x32x64xf32>
    %154 = vector.shape_cast %153 : vector<1x32x64xf32> to vector<32x64xf32>
    %cst_178 = arith.constant dense<0.000000e+00> : vector<32x64xf32>
    %155 = tpu.matmul %152, %154, %cst_178 {dimension_numbers = #tpu.dot_dimension_numbers<[1], [0], [0], [1], [0, 0, 1, 1], [], []>} : vector<32x32xf32>, vector<32x64xf32>, vector<32x64xf32> -> vector<32x64xf32>
    %156 = arith.addf %150, %155 : vector<32x64xf32>
    %c0_179 = arith.constant 0 : index
    %c0_180 = arith.constant 0 : index
    %c2_181 = arith.constant 2 : index
    %c0_182 = arith.constant 0 : index
    %157 = vector.load %arg19[%c0_179, %c0_180, %c2_181, %c0_182] : memref<2x6x6x32xf32, #tpu.memory_space<vmem>>, vector<2x4x4x32xf32>
    %158 = vector.shape_cast %157 : vector<2x4x4x32xf32> to vector<32x32xf32>
    %c2_183 = arith.constant 2 : index
    %c0_184 = arith.constant 0 : index
    %c0_185 = arith.constant 0 : index
    %159 = vector.load %arg6[%c2_183, %c0_184, %c0_185] : memref<9x32x64xf32, #tpu.memory_space<vmem>>, vector<1x32x64xf32>
    %160 = vector.shape_cast %159 : vector<1x32x64xf32> to vector<32x64xf32>
    %cst_186 = arith.constant dense<0.000000e+00> : vector<32x64xf32>
    %161 = tpu.matmul %158, %160, %cst_186 {dimension_numbers = #tpu.dot_dimension_numbers<[1], [0], [0], [1], [0, 0, 1, 1], [], []>} : vector<32x32xf32>, vector<32x64xf32>, vector<32x64xf32> -> vector<32x64xf32>
    %162 = arith.addf %156, %161 : vector<32x64xf32>
    %c0_187 = arith.constant 0 : index
    %c1_188 = arith.constant 1 : index
    %c0_189 = arith.constant 0 : index
    %c0_190 = arith.constant 0 : index
    %163 = vector.load %arg19[%c0_187, %c1_188, %c0_189, %c0_190] : memref<2x6x6x32xf32, #tpu.memory_space<vmem>>, vector<2x4x4x32xf32>
    %164 = vector.shape_cast %163 : vector<2x4x4x32xf32> to vector<32x32xf32>
    %c3_191 = arith.constant 3 : index
    %c0_192 = arith.constant 0 : index
    %c0_193 = arith.constant 0 : index
    %165 = vector.load %arg6[%c3_191, %c0_192, %c0_193] : memref<9x32x64xf32, #tpu.memory_space<vmem>>, vector<1x32x64xf32>
    %166 = vector.shape_cast %165 : vector<1x32x64xf32> to vector<32x64xf32>
    %cst_194 = arith.constant dense<0.000000e+00> : vector<32x64xf32>
    %167 = tpu.matmul %164, %166, %cst_194 {dimension_numbers = #tpu.dot_dimension_numbers<[1], [0], [0], [1], [0, 0, 1, 1], [], []>} : vector<32x32xf32>, vector<32x64xf32>, vector<32x64xf32> -> vector<32x64xf32>
    %168 = arith.addf %162, %167 : vector<32x64xf32>
    %c0_195 = arith.constant 0 : index
    %c1_196 = arith.constant 1 : index
    %c1_197 = arith.constant 1 : index
    %c0_198 = arith.constant 0 : index
    %169 = vector.load %arg19[%c0_195, %c1_196, %c1_197, %c0_198] : memref<2x6x6x32xf32, #tpu.memory_space<vmem>>, vector<2x4x4x32xf32>
    %170 = vector.shape_cast %169 : vector<2x4x4x32xf32> to vector<32x32xf32>
    %c4_199 = arith.constant 4 : index
    %c0_200 = arith.constant 0 : index
    %c0_201 = arith.constant 0 : index
    %171 = vector.load %arg6[%c4_199, %c0_200, %c0_201] : memref<9x32x64xf32, #tpu.memory_space<vmem>>, vector<1x32x64xf32>
    %172 = vector.shape_cast %171 : vector<1x32x64xf32> to vector<32x64xf32>
    %cst_202 = arith.constant dense<0.000000e+00> : vector<32x64xf32>
    %173 = tpu.matmul %170, %172, %cst_202 {dimension_numbers = #tpu.dot_dimension_numbers<[1], [0], [0], [1], [0, 0, 1, 1], [], []>} : vector<32x32xf32>, vector<32x64xf32>, vector<32x64xf32> -> vector<32x64xf32>
    %174 = arith.addf %168, %173 : vector<32x64xf32>
    %c0_203 = arith.constant 0 : index
    %c1_204 = arith.constant 1 : index
    %c2_205 = arith.constant 2 : index
    %c0_206 = arith.constant 0 : index
    %175 = vector.load %arg19[%c0_203, %c1_204, %c2_205, %c0_206] : memref<2x6x6x32xf32, #tpu.memory_space<vmem>>, vector<2x4x4x32xf32>
    %176 = vector.shape_cast %175 : vector<2x4x4x32xf32> to vector<32x32xf32>
    %c5_207 = arith.constant 5 : index
    %c0_208 = arith.constant 0 : index
    %c0_209 = arith.constant 0 : index
    %177 = vector.load %arg6[%c5_207, %c0_208, %c0_209] : memref<9x32x64xf32, #tpu.memory_space<vmem>>, vector<1x32x64xf32>
    %178 = vector.shape_cast %177 : vector<1x32x64xf32> to vector<32x64xf32>
    %cst_210 = arith.constant dense<0.000000e+00> : vector<32x64xf32>
    %179 = tpu.matmul %176, %178, %cst_210 {dimension_numbers = #tpu.dot_dimension_numbers<[1], [0], [0], [1], [0, 0, 1, 1], [], []>} : vector<32x32xf32>, vector<32x64xf32>, vector<32x64xf32> -> vector<32x64xf32>
    %180 = arith.addf %174, %179 : vector<32x64xf32>
    %c0_211 = arith.constant 0 : index
    %c2_212 = arith.constant 2 : index
    %c0_213 = arith.constant 0 : index
    %c0_214 = arith.constant 0 : index
    %181 = vector.load %arg19[%c0_211, %c2_212, %c0_213, %c0_214] : memref<2x6x6x32xf32, #tpu.memory_space<vmem>>, vector<2x4x4x32xf32>
    %182 = vector.shape_cast %181 : vector<2x4x4x32xf32> to vector<32x32xf32>
    %c6_215 = arith.constant 6 : index
    %c0_216 = arith.constant 0 : index
    %c0_217 = arith.constant 0 : index
    %183 = vector.load %arg6[%c6_215, %c0_216, %c0_217] : memref<9x32x64xf32, #tpu.memory_space<vmem>>, vector<1x32x64xf32>
    %184 = vector.shape_cast %183 : vector<1x32x64xf32> to vector<32x64xf32>
    %cst_218 = arith.constant dense<0.000000e+00> : vector<32x64xf32>
    %185 = tpu.matmul %182, %184, %cst_218 {dimension_numbers = #tpu.dot_dimension_numbers<[1], [0], [0], [1], [0, 0, 1, 1], [], []>} : vector<32x32xf32>, vector<32x64xf32>, vector<32x64xf32> -> vector<32x64xf32>
    %186 = arith.addf %180, %185 : vector<32x64xf32>
    %c0_219 = arith.constant 0 : index
    %c2_220 = arith.constant 2 : index
    %c1_221 = arith.constant 1 : index
    %c0_222 = arith.constant 0 : index
    %187 = vector.load %arg19[%c0_219, %c2_220, %c1_221, %c0_222] : memref<2x6x6x32xf32, #tpu.memory_space<vmem>>, vector<2x4x4x32xf32>
    %188 = vector.shape_cast %187 : vector<2x4x4x32xf32> to vector<32x32xf32>
    %c7_223 = arith.constant 7 : index
    %c0_224 = arith.constant 0 : index
    %c0_225 = arith.constant 0 : index
    %189 = vector.load %arg6[%c7_223, %c0_224, %c0_225] : memref<9x32x64xf32, #tpu.memory_space<vmem>>, vector<1x32x64xf32>
    %190 = vector.shape_cast %189 : vector<1x32x64xf32> to vector<32x64xf32>
    %cst_226 = arith.constant dense<0.000000e+00> : vector<32x64xf32>
    %191 = tpu.matmul %188, %190, %cst_226 {dimension_numbers = #tpu.dot_dimension_numbers<[1], [0], [0], [1], [0, 0, 1, 1], [], []>} : vector<32x32xf32>, vector<32x64xf32>, vector<32x64xf32> -> vector<32x64xf32>
    %192 = arith.addf %186, %191 : vector<32x64xf32>
    %c0_227 = arith.constant 0 : index
    %c2_228 = arith.constant 2 : index
    %c2_229 = arith.constant 2 : index
    %c0_230 = arith.constant 0 : index
    %193 = vector.load %arg19[%c0_227, %c2_228, %c2_229, %c0_230] : memref<2x6x6x32xf32, #tpu.memory_space<vmem>>, vector<2x4x4x32xf32>
    %194 = vector.shape_cast %193 : vector<2x4x4x32xf32> to vector<32x32xf32>
    %c8_231 = arith.constant 8 : index
    %c0_232 = arith.constant 0 : index
    %c0_233 = arith.constant 0 : index
    %195 = vector.load %arg6[%c8_231, %c0_232, %c0_233] : memref<9x32x64xf32, #tpu.memory_space<vmem>>, vector<1x32x64xf32>
    %196 = vector.shape_cast %195 : vector<1x32x64xf32> to vector<32x64xf32>
    %cst_234 = arith.constant dense<0.000000e+00> : vector<32x64xf32>
    %197 = tpu.matmul %194, %196, %cst_234 {dimension_numbers = #tpu.dot_dimension_numbers<[1], [0], [0], [1], [0, 0, 1, 1], [], []>} : vector<32x32xf32>, vector<32x64xf32>, vector<32x64xf32> -> vector<32x64xf32>
    %198 = arith.addf %192, %197 : vector<32x64xf32>
    %c0_235 = arith.constant 0 : index
    %c0_236 = arith.constant 0 : index
    %199 = vector.load %arg7[%c0_235, %c0_236] : memref<1x64xf32, #tpu.memory_space<vmem>>, vector<1x64xf32>
    %200 = vector.broadcast %199 : vector<1x64xf32> to vector<32x64xf32>
    %201 = arith.addf %198, %200 : vector<32x64xf32>
    %cst_237 = arith.constant 0.000000e+00 : f32
    %202 = vector.broadcast %cst_237 : f32 to vector<32x64xf32>
    %203 = arith.maximumf %201, %202 : vector<32x64xf32>
    %204 = vector.shape_cast %203 : vector<32x64xf32> to vector<2x4x4x64xf32>
    %205 = vector.shape_cast %204 : vector<2x4x4x64xf32> to vector<2x16x64xf32>
    %cst_238 = arith.constant dense<0.000000e+00> : vector<2x64xf32>
    %206 = vector.multi_reduction <add>, %205, %cst_238 [1] : vector<2x16x64xf32> to vector<2x64xf32>
    %cst_239 = arith.constant 6.250000e-02 : f32
    %207 = vector.broadcast %cst_239 : f32 to vector<2x64xf32>
    %208 = arith.mulf %206, %207 : vector<2x64xf32>
    %c0_240 = arith.constant 0 : index
    %c0_241 = arith.constant 0 : index
    %209 = vector.load %arg8[%c0_240, %c0_241] : memref<64x128xf32, #tpu.memory_space<vmem>>, vector<64x128xf32>
    %cst_242 = arith.constant dense<0.000000e+00> : vector<2x128xf32>
    %210 = tpu.matmul %208, %209, %cst_242 {dimension_numbers = #tpu.dot_dimension_numbers<[1], [0], [0], [1], [0, 0, 1, 1], [], []>} : vector<2x64xf32>, vector<64x128xf32>, vector<2x128xf32> -> vector<2x128xf32>
    %c0_243 = arith.constant 0 : index
    %c0_244 = arith.constant 0 : index
    %211 = vector.load %arg9[%c0_243, %c0_244] : memref<1x128xf32, #tpu.memory_space<vmem>>, vector<1x128xf32>
    %212 = vector.broadcast %211 : vector<1x128xf32> to vector<2x128xf32>
    %213 = arith.addf %210, %212 : vector<2x128xf32>
    %c0_245 = arith.constant 0 : index
    %c0_246 = arith.constant 0 : index
    %214 = vector.load %arg1[%c0_245, %c0_246] : memref<16x1xi32, #tpu.memory_space<vmem>>, vector<16x1xi32>
    %215 = tpu.iota {dimensions = array<i32: 1>} : vector<16x20xi32>
    %216 = vector.broadcast %214 : vector<16x1xi32> to vector<16x20xi32>
    %217 = arith.cmpi eq, %216, %215 : vector<16x20xi32>
    %cst_247 = arith.constant 1.000000e+00 : f32
    %cst_248 = arith.constant 0.000000e+00 : f32
    %218 = vector.broadcast %cst_247 : f32 to vector<16x20xf32>
    %219 = vector.broadcast %cst_248 : f32 to vector<16x20xf32>
    %220 = arith.select %217, %218, %219 : vector<16x20xi1>, vector<16x20xf32>
    %c0_249 = arith.constant 0 : index
    %c0_250 = arith.constant 0 : index
    %221 = vector.load %arg10[%c0_249, %c0_250] : memref<20x16xf32, #tpu.memory_space<vmem>>, vector<20x16xf32>
    %cst_251 = arith.constant dense<0.000000e+00> : vector<16x16xf32>
    %222 = tpu.matmul %220, %221, %cst_251 {dimension_numbers = #tpu.dot_dimension_numbers<[1], [0], [0], [1], [0, 0, 1, 1], [], []>} : vector<16x20xf32>, vector<20x16xf32>, vector<16x16xf32> -> vector<16x16xf32>
    %c0_252 = arith.constant 0 : index
    %c0_253 = arith.constant 0 : index
    %223 = vector.load %arg11[%c0_252, %c0_253] : memref<16x128xf32, #tpu.memory_space<vmem>>, vector<16x128xf32>
    %cst_254 = arith.constant dense<0.000000e+00> : vector<16x128xf32>
    %224 = tpu.matmul %222, %223, %cst_254 {dimension_numbers = #tpu.dot_dimension_numbers<[1], [0], [0], [1], [0, 0, 1, 1], [], []>} : vector<16x16xf32>, vector<16x128xf32>, vector<16x128xf32> -> vector<16x128xf32>
    %c0_255 = arith.constant 0 : index
    %c0_256 = arith.constant 0 : index
    %225 = vector.load %arg13[%c0_255, %c0_256] : memref<1x128xf32, #tpu.memory_space<vmem>>, vector<1x128xf32>
    %226 = vector.broadcast %225 : vector<1x128xf32> to vector<16x128xf32>
    %227 = arith.addf %224, %226 : vector<16x128xf32>
    %c0_257 = arith.constant 0 : index
    %c0_258 = arith.constant 0 : index
    %228 = vector.load %arg12[%c0_257, %c0_258] : memref<32x128xf32, #tpu.memory_space<vmem>>, vector<32x128xf32>
    %cst_259 = arith.constant 0.000000e+00 : f32
    %229 = vector.broadcast %cst_259 : f32 to vector<2x32xf32>
    %cst_260 = arith.constant 0.000000e+00 : f32
    %230 = vector.broadcast %cst_260 : f32 to vector<2x32xf32>
    %231 = vector.extract_strided_slice %227 {offsets = [0, 0], sizes = [2, 128], strides = [1, 1]} : vector<16x128xf32> to vector<2x128xf32>
    %cst_261 = arith.constant dense<0.000000e+00> : vector<2x128xf32>
    %232 = tpu.matmul %229, %228, %cst_261 {dimension_numbers = #tpu.dot_dimension_numbers<[1], [0], [0], [1], [0, 0, 1, 1], [], []>} : vector<2x32xf32>, vector<32x128xf32>, vector<2x128xf32> -> vector<2x128xf32>
    %233 = arith.addf %231, %232 : vector<2x128xf32>
    %234 = vector.extract_strided_slice %233 {offsets = [0, 0], sizes = [2, 32], strides = [1, 1]} : vector<2x128xf32> to vector<2x32xf32>
    %235 = arith.negf %234 : vector<2x32xf32>
    %236 = math.exp %235 : vector<2x32xf32>
    %cst_262 = arith.constant 1.000000e+00 : f32
    %237 = vector.broadcast %cst_262 : f32 to vector<2x32xf32>
    %238 = arith.addf %237, %236 : vector<2x32xf32>
    %239 = arith.divf %237, %238 : vector<2x32xf32>
    %240 = vector.extract_strided_slice %233 {offsets = [0, 32], sizes = [2, 32], strides = [1, 1]} : vector<2x128xf32> to vector<2x32xf32>
    %241 = arith.negf %240 : vector<2x32xf32>
    %242 = math.exp %241 : vector<2x32xf32>
    %cst_263 = arith.constant 1.000000e+00 : f32
    %243 = vector.broadcast %cst_263 : f32 to vector<2x32xf32>
    %244 = arith.addf %243, %242 : vector<2x32xf32>
    %245 = arith.divf %243, %244 : vector<2x32xf32>
    %246 = vector.extract_strided_slice %233 {offsets = [0, 64], sizes = [2, 32], strides = [1, 1]} : vector<2x128xf32> to vector<2x32xf32>
    %247 = math.tanh %246 : vector<2x32xf32>
    %248 = vector.extract_strided_slice %233 {offsets = [0, 96], sizes = [2, 32], strides = [1, 1]} : vector<2x128xf32> to vector<2x32xf32>
    %249 = arith.negf %248 : vector<2x32xf32>
    %250 = math.exp %249 : vector<2x32xf32>
    %cst_264 = arith.constant 1.000000e+00 : f32
    %251 = vector.broadcast %cst_264 : f32 to vector<2x32xf32>
    %252 = arith.addf %251, %250 : vector<2x32xf32>
    %253 = arith.divf %251, %252 : vector<2x32xf32>
    %254 = arith.mulf %245, %230 : vector<2x32xf32>
    %255 = arith.mulf %239, %247 : vector<2x32xf32>
    %256 = arith.addf %254, %255 : vector<2x32xf32>
    %257 = math.tanh %256 : vector<2x32xf32>
    %258 = arith.mulf %253, %257 : vector<2x32xf32>
    %259 = vector.extract_strided_slice %227 {offsets = [2, 0], sizes = [2, 128], strides = [1, 1]} : vector<16x128xf32> to vector<2x128xf32>
    %cst_265 = arith.constant dense<0.000000e+00> : vector<2x128xf32>
    %260 = tpu.matmul %258, %228, %cst_265 {dimension_numbers = #tpu.dot_dimension_numbers<[1], [0], [0], [1], [0, 0, 1, 1], [], []>} : vector<2x32xf32>, vector<32x128xf32>, vector<2x128xf32> -> vector<2x128xf32>
    %261 = arith.addf %259, %260 : vector<2x128xf32>
    %262 = vector.extract_strided_slice %261 {offsets = [0, 0], sizes = [2, 32], strides = [1, 1]} : vector<2x128xf32> to vector<2x32xf32>
    %263 = arith.negf %262 : vector<2x32xf32>
    %264 = math.exp %263 : vector<2x32xf32>
    %cst_266 = arith.constant 1.000000e+00 : f32
    %265 = vector.broadcast %cst_266 : f32 to vector<2x32xf32>
    %266 = arith.addf %265, %264 : vector<2x32xf32>
    %267 = arith.divf %265, %266 : vector<2x32xf32>
    %268 = vector.extract_strided_slice %261 {offsets = [0, 32], sizes = [2, 32], strides = [1, 1]} : vector<2x128xf32> to vector<2x32xf32>
    %269 = arith.negf %268 : vector<2x32xf32>
    %270 = math.exp %269 : vector<2x32xf32>
    %cst_267 = arith.constant 1.000000e+00 : f32
    %271 = vector.broadcast %cst_267 : f32 to vector<2x32xf32>
    %272 = arith.addf %271, %270 : vector<2x32xf32>
    %273 = arith.divf %271, %272 : vector<2x32xf32>
    %274 = vector.extract_strided_slice %261 {offsets = [0, 64], sizes = [2, 32], strides = [1, 1]} : vector<2x128xf32> to vector<2x32xf32>
    %275 = math.tanh %274 : vector<2x32xf32>
    %276 = vector.extract_strided_slice %261 {offsets = [0, 96], sizes = [2, 32], strides = [1, 1]} : vector<2x128xf32> to vector<2x32xf32>
    %277 = arith.negf %276 : vector<2x32xf32>
    %278 = math.exp %277 : vector<2x32xf32>
    %cst_268 = arith.constant 1.000000e+00 : f32
    %279 = vector.broadcast %cst_268 : f32 to vector<2x32xf32>
    %280 = arith.addf %279, %278 : vector<2x32xf32>
    %281 = arith.divf %279, %280 : vector<2x32xf32>
    %282 = arith.mulf %273, %256 : vector<2x32xf32>
    %283 = arith.mulf %267, %275 : vector<2x32xf32>
    %284 = arith.addf %282, %283 : vector<2x32xf32>
    %285 = math.tanh %284 : vector<2x32xf32>
    %286 = arith.mulf %281, %285 : vector<2x32xf32>
    %287 = vector.extract_strided_slice %227 {offsets = [4, 0], sizes = [2, 128], strides = [1, 1]} : vector<16x128xf32> to vector<2x128xf32>
    %cst_269 = arith.constant dense<0.000000e+00> : vector<2x128xf32>
    %288 = tpu.matmul %286, %228, %cst_269 {dimension_numbers = #tpu.dot_dimension_numbers<[1], [0], [0], [1], [0, 0, 1, 1], [], []>} : vector<2x32xf32>, vector<32x128xf32>, vector<2x128xf32> -> vector<2x128xf32>
    %289 = arith.addf %287, %288 : vector<2x128xf32>
    %290 = vector.extract_strided_slice %289 {offsets = [0, 0], sizes = [2, 32], strides = [1, 1]} : vector<2x128xf32> to vector<2x32xf32>
    %291 = arith.negf %290 : vector<2x32xf32>
    %292 = math.exp %291 : vector<2x32xf32>
    %cst_270 = arith.constant 1.000000e+00 : f32
    %293 = vector.broadcast %cst_270 : f32 to vector<2x32xf32>
    %294 = arith.addf %293, %292 : vector<2x32xf32>
    %295 = arith.divf %293, %294 : vector<2x32xf32>
    %296 = vector.extract_strided_slice %289 {offsets = [0, 32], sizes = [2, 32], strides = [1, 1]} : vector<2x128xf32> to vector<2x32xf32>
    %297 = arith.negf %296 : vector<2x32xf32>
    %298 = math.exp %297 : vector<2x32xf32>
    %cst_271 = arith.constant 1.000000e+00 : f32
    %299 = vector.broadcast %cst_271 : f32 to vector<2x32xf32>
    %300 = arith.addf %299, %298 : vector<2x32xf32>
    %301 = arith.divf %299, %300 : vector<2x32xf32>
    %302 = vector.extract_strided_slice %289 {offsets = [0, 64], sizes = [2, 32], strides = [1, 1]} : vector<2x128xf32> to vector<2x32xf32>
    %303 = math.tanh %302 : vector<2x32xf32>
    %304 = vector.extract_strided_slice %289 {offsets = [0, 96], sizes = [2, 32], strides = [1, 1]} : vector<2x128xf32> to vector<2x32xf32>
    %305 = arith.negf %304 : vector<2x32xf32>
    %306 = math.exp %305 : vector<2x32xf32>
    %cst_272 = arith.constant 1.000000e+00 : f32
    %307 = vector.broadcast %cst_272 : f32 to vector<2x32xf32>
    %308 = arith.addf %307, %306 : vector<2x32xf32>
    %309 = arith.divf %307, %308 : vector<2x32xf32>
    %310 = arith.mulf %301, %284 : vector<2x32xf32>
    %311 = arith.mulf %295, %303 : vector<2x32xf32>
    %312 = arith.addf %310, %311 : vector<2x32xf32>
    %313 = math.tanh %312 : vector<2x32xf32>
    %314 = arith.mulf %309, %313 : vector<2x32xf32>
    %315 = vector.extract_strided_slice %227 {offsets = [6, 0], sizes = [2, 128], strides = [1, 1]} : vector<16x128xf32> to vector<2x128xf32>
    %cst_273 = arith.constant dense<0.000000e+00> : vector<2x128xf32>
    %316 = tpu.matmul %314, %228, %cst_273 {dimension_numbers = #tpu.dot_dimension_numbers<[1], [0], [0], [1], [0, 0, 1, 1], [], []>} : vector<2x32xf32>, vector<32x128xf32>, vector<2x128xf32> -> vector<2x128xf32>
    %317 = arith.addf %315, %316 : vector<2x128xf32>
    %318 = vector.extract_strided_slice %317 {offsets = [0, 0], sizes = [2, 32], strides = [1, 1]} : vector<2x128xf32> to vector<2x32xf32>
    %319 = arith.negf %318 : vector<2x32xf32>
    %320 = math.exp %319 : vector<2x32xf32>
    %cst_274 = arith.constant 1.000000e+00 : f32
    %321 = vector.broadcast %cst_274 : f32 to vector<2x32xf32>
    %322 = arith.addf %321, %320 : vector<2x32xf32>
    %323 = arith.divf %321, %322 : vector<2x32xf32>
    %324 = vector.extract_strided_slice %317 {offsets = [0, 32], sizes = [2, 32], strides = [1, 1]} : vector<2x128xf32> to vector<2x32xf32>
    %325 = arith.negf %324 : vector<2x32xf32>
    %326 = math.exp %325 : vector<2x32xf32>
    %cst_275 = arith.constant 1.000000e+00 : f32
    %327 = vector.broadcast %cst_275 : f32 to vector<2x32xf32>
    %328 = arith.addf %327, %326 : vector<2x32xf32>
    %329 = arith.divf %327, %328 : vector<2x32xf32>
    %330 = vector.extract_strided_slice %317 {offsets = [0, 64], sizes = [2, 32], strides = [1, 1]} : vector<2x128xf32> to vector<2x32xf32>
    %331 = math.tanh %330 : vector<2x32xf32>
    %332 = vector.extract_strided_slice %317 {offsets = [0, 96], sizes = [2, 32], strides = [1, 1]} : vector<2x128xf32> to vector<2x32xf32>
    %333 = arith.negf %332 : vector<2x32xf32>
    %334 = math.exp %333 : vector<2x32xf32>
    %cst_276 = arith.constant 1.000000e+00 : f32
    %335 = vector.broadcast %cst_276 : f32 to vector<2x32xf32>
    %336 = arith.addf %335, %334 : vector<2x32xf32>
    %337 = arith.divf %335, %336 : vector<2x32xf32>
    %338 = arith.mulf %329, %312 : vector<2x32xf32>
    %339 = arith.mulf %323, %331 : vector<2x32xf32>
    %340 = arith.addf %338, %339 : vector<2x32xf32>
    %341 = math.tanh %340 : vector<2x32xf32>
    %342 = arith.mulf %337, %341 : vector<2x32xf32>
    %343 = vector.extract_strided_slice %227 {offsets = [8, 0], sizes = [2, 128], strides = [1, 1]} : vector<16x128xf32> to vector<2x128xf32>
    %cst_277 = arith.constant dense<0.000000e+00> : vector<2x128xf32>
    %344 = tpu.matmul %342, %228, %cst_277 {dimension_numbers = #tpu.dot_dimension_numbers<[1], [0], [0], [1], [0, 0, 1, 1], [], []>} : vector<2x32xf32>, vector<32x128xf32>, vector<2x128xf32> -> vector<2x128xf32>
    %345 = arith.addf %343, %344 : vector<2x128xf32>
    %346 = vector.extract_strided_slice %345 {offsets = [0, 0], sizes = [2, 32], strides = [1, 1]} : vector<2x128xf32> to vector<2x32xf32>
    %347 = arith.negf %346 : vector<2x32xf32>
    %348 = math.exp %347 : vector<2x32xf32>
    %cst_278 = arith.constant 1.000000e+00 : f32
    %349 = vector.broadcast %cst_278 : f32 to vector<2x32xf32>
    %350 = arith.addf %349, %348 : vector<2x32xf32>
    %351 = arith.divf %349, %350 : vector<2x32xf32>
    %352 = vector.extract_strided_slice %345 {offsets = [0, 32], sizes = [2, 32], strides = [1, 1]} : vector<2x128xf32> to vector<2x32xf32>
    %353 = arith.negf %352 : vector<2x32xf32>
    %354 = math.exp %353 : vector<2x32xf32>
    %cst_279 = arith.constant 1.000000e+00 : f32
    %355 = vector.broadcast %cst_279 : f32 to vector<2x32xf32>
    %356 = arith.addf %355, %354 : vector<2x32xf32>
    %357 = arith.divf %355, %356 : vector<2x32xf32>
    %358 = vector.extract_strided_slice %345 {offsets = [0, 64], sizes = [2, 32], strides = [1, 1]} : vector<2x128xf32> to vector<2x32xf32>
    %359 = math.tanh %358 : vector<2x32xf32>
    %360 = vector.extract_strided_slice %345 {offsets = [0, 96], sizes = [2, 32], strides = [1, 1]} : vector<2x128xf32> to vector<2x32xf32>
    %361 = arith.negf %360 : vector<2x32xf32>
    %362 = math.exp %361 : vector<2x32xf32>
    %cst_280 = arith.constant 1.000000e+00 : f32
    %363 = vector.broadcast %cst_280 : f32 to vector<2x32xf32>
    %364 = arith.addf %363, %362 : vector<2x32xf32>
    %365 = arith.divf %363, %364 : vector<2x32xf32>
    %366 = arith.mulf %357, %340 : vector<2x32xf32>
    %367 = arith.mulf %351, %359 : vector<2x32xf32>
    %368 = arith.addf %366, %367 : vector<2x32xf32>
    %369 = math.tanh %368 : vector<2x32xf32>
    %370 = arith.mulf %365, %369 : vector<2x32xf32>
    %371 = vector.extract_strided_slice %227 {offsets = [10, 0], sizes = [2, 128], strides = [1, 1]} : vector<16x128xf32> to vector<2x128xf32>
    %cst_281 = arith.constant dense<0.000000e+00> : vector<2x128xf32>
    %372 = tpu.matmul %370, %228, %cst_281 {dimension_numbers = #tpu.dot_dimension_numbers<[1], [0], [0], [1], [0, 0, 1, 1], [], []>} : vector<2x32xf32>, vector<32x128xf32>, vector<2x128xf32> -> vector<2x128xf32>
    %373 = arith.addf %371, %372 : vector<2x128xf32>
    %374 = vector.extract_strided_slice %373 {offsets = [0, 0], sizes = [2, 32], strides = [1, 1]} : vector<2x128xf32> to vector<2x32xf32>
    %375 = arith.negf %374 : vector<2x32xf32>
    %376 = math.exp %375 : vector<2x32xf32>
    %cst_282 = arith.constant 1.000000e+00 : f32
    %377 = vector.broadcast %cst_282 : f32 to vector<2x32xf32>
    %378 = arith.addf %377, %376 : vector<2x32xf32>
    %379 = arith.divf %377, %378 : vector<2x32xf32>
    %380 = vector.extract_strided_slice %373 {offsets = [0, 32], sizes = [2, 32], strides = [1, 1]} : vector<2x128xf32> to vector<2x32xf32>
    %381 = arith.negf %380 : vector<2x32xf32>
    %382 = math.exp %381 : vector<2x32xf32>
    %cst_283 = arith.constant 1.000000e+00 : f32
    %383 = vector.broadcast %cst_283 : f32 to vector<2x32xf32>
    %384 = arith.addf %383, %382 : vector<2x32xf32>
    %385 = arith.divf %383, %384 : vector<2x32xf32>
    %386 = vector.extract_strided_slice %373 {offsets = [0, 64], sizes = [2, 32], strides = [1, 1]} : vector<2x128xf32> to vector<2x32xf32>
    %387 = math.tanh %386 : vector<2x32xf32>
    %388 = vector.extract_strided_slice %373 {offsets = [0, 96], sizes = [2, 32], strides = [1, 1]} : vector<2x128xf32> to vector<2x32xf32>
    %389 = arith.negf %388 : vector<2x32xf32>
    %390 = math.exp %389 : vector<2x32xf32>
    %cst_284 = arith.constant 1.000000e+00 : f32
    %391 = vector.broadcast %cst_284 : f32 to vector<2x32xf32>
    %392 = arith.addf %391, %390 : vector<2x32xf32>
    %393 = arith.divf %391, %392 : vector<2x32xf32>
    %394 = arith.mulf %385, %368 : vector<2x32xf32>
    %395 = arith.mulf %379, %387 : vector<2x32xf32>
    %396 = arith.addf %394, %395 : vector<2x32xf32>
    %397 = math.tanh %396 : vector<2x32xf32>
    %398 = arith.mulf %393, %397 : vector<2x32xf32>
    %399 = vector.extract_strided_slice %227 {offsets = [12, 0], sizes = [2, 128], strides = [1, 1]} : vector<16x128xf32> to vector<2x128xf32>
    %cst_285 = arith.constant dense<0.000000e+00> : vector<2x128xf32>
    %400 = tpu.matmul %398, %228, %cst_285 {dimension_numbers = #tpu.dot_dimension_numbers<[1], [0], [0], [1], [0, 0, 1, 1], [], []>} : vector<2x32xf32>, vector<32x128xf32>, vector<2x128xf32> -> vector<2x128xf32>
    %401 = arith.addf %399, %400 : vector<2x128xf32>
    %402 = vector.extract_strided_slice %401 {offsets = [0, 0], sizes = [2, 32], strides = [1, 1]} : vector<2x128xf32> to vector<2x32xf32>
    %403 = arith.negf %402 : vector<2x32xf32>
    %404 = math.exp %403 : vector<2x32xf32>
    %cst_286 = arith.constant 1.000000e+00 : f32
    %405 = vector.broadcast %cst_286 : f32 to vector<2x32xf32>
    %406 = arith.addf %405, %404 : vector<2x32xf32>
    %407 = arith.divf %405, %406 : vector<2x32xf32>
    %408 = vector.extract_strided_slice %401 {offsets = [0, 32], sizes = [2, 32], strides = [1, 1]} : vector<2x128xf32> to vector<2x32xf32>
    %409 = arith.negf %408 : vector<2x32xf32>
    %410 = math.exp %409 : vector<2x32xf32>
    %cst_287 = arith.constant 1.000000e+00 : f32
    %411 = vector.broadcast %cst_287 : f32 to vector<2x32xf32>
    %412 = arith.addf %411, %410 : vector<2x32xf32>
    %413 = arith.divf %411, %412 : vector<2x32xf32>
    %414 = vector.extract_strided_slice %401 {offsets = [0, 64], sizes = [2, 32], strides = [1, 1]} : vector<2x128xf32> to vector<2x32xf32>
    %415 = math.tanh %414 : vector<2x32xf32>
    %416 = vector.extract_strided_slice %401 {offsets = [0, 96], sizes = [2, 32], strides = [1, 1]} : vector<2x128xf32> to vector<2x32xf32>
    %417 = arith.negf %416 : vector<2x32xf32>
    %418 = math.exp %417 : vector<2x32xf32>
    %cst_288 = arith.constant 1.000000e+00 : f32
    %419 = vector.broadcast %cst_288 : f32 to vector<2x32xf32>
    %420 = arith.addf %419, %418 : vector<2x32xf32>
    %421 = arith.divf %419, %420 : vector<2x32xf32>
    %422 = arith.mulf %413, %396 : vector<2x32xf32>
    %423 = arith.mulf %407, %415 : vector<2x32xf32>
    %424 = arith.addf %422, %423 : vector<2x32xf32>
    %425 = math.tanh %424 : vector<2x32xf32>
    %426 = arith.mulf %421, %425 : vector<2x32xf32>
    %427 = vector.extract_strided_slice %227 {offsets = [14, 0], sizes = [2, 128], strides = [1, 1]} : vector<16x128xf32> to vector<2x128xf32>
    %cst_289 = arith.constant dense<0.000000e+00> : vector<2x128xf32>
    %428 = tpu.matmul %426, %228, %cst_289 {dimension_numbers = #tpu.dot_dimension_numbers<[1], [0], [0], [1], [0, 0, 1, 1], [], []>} : vector<2x32xf32>, vector<32x128xf32>, vector<2x128xf32> -> vector<2x128xf32>
    %429 = arith.addf %427, %428 : vector<2x128xf32>
    %430 = vector.extract_strided_slice %429 {offsets = [0, 0], sizes = [2, 32], strides = [1, 1]} : vector<2x128xf32> to vector<2x32xf32>
    %431 = arith.negf %430 : vector<2x32xf32>
    %432 = math.exp %431 : vector<2x32xf32>
    %cst_290 = arith.constant 1.000000e+00 : f32
    %433 = vector.broadcast %cst_290 : f32 to vector<2x32xf32>
    %434 = arith.addf %433, %432 : vector<2x32xf32>
    %435 = arith.divf %433, %434 : vector<2x32xf32>
    %436 = vector.extract_strided_slice %429 {offsets = [0, 32], sizes = [2, 32], strides = [1, 1]} : vector<2x128xf32> to vector<2x32xf32>
    %437 = arith.negf %436 : vector<2x32xf32>
    %438 = math.exp %437 : vector<2x32xf32>
    %cst_291 = arith.constant 1.000000e+00 : f32
    %439 = vector.broadcast %cst_291 : f32 to vector<2x32xf32>
    %440 = arith.addf %439, %438 : vector<2x32xf32>
    %441 = arith.divf %439, %440 : vector<2x32xf32>
    %442 = vector.extract_strided_slice %429 {offsets = [0, 64], sizes = [2, 32], strides = [1, 1]} : vector<2x128xf32> to vector<2x32xf32>
    %443 = math.tanh %442 : vector<2x32xf32>
    %444 = vector.extract_strided_slice %429 {offsets = [0, 96], sizes = [2, 32], strides = [1, 1]} : vector<2x128xf32> to vector<2x32xf32>
    %445 = arith.negf %444 : vector<2x32xf32>
    %446 = math.exp %445 : vector<2x32xf32>
    %cst_292 = arith.constant 1.000000e+00 : f32
    %447 = vector.broadcast %cst_292 : f32 to vector<2x32xf32>
    %448 = arith.addf %447, %446 : vector<2x32xf32>
    %449 = arith.divf %447, %448 : vector<2x32xf32>
    %450 = arith.mulf %441, %424 : vector<2x32xf32>
    %451 = arith.mulf %435, %443 : vector<2x32xf32>
    %452 = arith.addf %450, %451 : vector<2x32xf32>
    %453 = math.tanh %452 : vector<2x32xf32>
    %454 = arith.mulf %449, %453 : vector<2x32xf32>
    %c0_293 = arith.constant 0 : index
    %c0_294 = arith.constant 0 : index
    %455 = vector.load %arg14[%c0_293, %c0_294] : memref<128x55xf32, #tpu.memory_space<vmem>>, vector<128x55xf32>
    %cst_295 = arith.constant dense<0.000000e+00> : vector<2x55xf32>
    %456 = tpu.matmul %213, %455, %cst_295 {dimension_numbers = #tpu.dot_dimension_numbers<[1], [0], [0], [1], [0, 0, 1, 1], [], []>} : vector<2x128xf32>, vector<128x55xf32>, vector<2x55xf32> -> vector<2x55xf32>
    %c0_296 = arith.constant 0 : index
    %c0_297 = arith.constant 0 : index
    %457 = vector.load %arg15[%c0_296, %c0_297] : memref<32x55xf32, #tpu.memory_space<vmem>>, vector<32x55xf32>
    %cst_298 = arith.constant dense<0.000000e+00> : vector<2x55xf32>
    %458 = tpu.matmul %454, %457, %cst_298 {dimension_numbers = #tpu.dot_dimension_numbers<[1], [0], [0], [1], [0, 0, 1, 1], [], []>} : vector<2x32xf32>, vector<32x55xf32>, vector<2x55xf32> -> vector<2x55xf32>
    %459 = arith.addf %456, %458 : vector<2x55xf32>
    %c0_299 = arith.constant 0 : index
    %c0_300 = arith.constant 0 : index
    %460 = vector.load %arg16[%c0_299, %c0_300] : memref<1x55xf32, #tpu.memory_space<vmem>>, vector<1x55xf32>
    %461 = vector.broadcast %460 : vector<1x55xf32> to vector<2x55xf32>
    %462 = arith.addf %459, %461 : vector<2x55xf32>
    %c0_301 = arith.constant 0 : index
    %c0_302 = arith.constant 0 : index
    %463 = vector.load %arg17[%c0_301, %c0_302] : memref<2x55xf32, #tpu.memory_space<vmem>>, vector<2x55xf32>
    tpu.vector_store %arg17[%c0_301, %c0_302], %462 {strides = array<i32>} : memref<2x55xf32, #tpu.memory_space<vmem>>, vector<2x55xf32>,
    return
  }
}

</mosaic_0001>

<llo_original>
// kernel: forward.1
$region0: #{forward.1}
  #allocation0 [shape = 'u32[]', space=smem, size = 0x4, offset = 0x4, fixed_abs, tag = 'smem constant byte address 0x4 - core index']
  #allocation1 [shape = 'u32[144,128]{1,0:T(1,128)}', space=vmem, size = 0x12000, scoped, tag = 'internal scratch']
  #allocation2 [shape = 'f32[2,10,10,16]{3,2,1,0:T(8,128)}', space=vmem, size = 0x28000, scoped, tag = 'scratch operand']
  #allocation3 [shape = 'f32[2,6,6,32]{3,2,1,0:T(8,128)}', space=vmem, size = 0xc000, scoped, tag = 'scratch operand']
  %s0 = inlined_call_operand.vmem [shape: f32[2,18,18,3], index: 0, kind: input, shape index: {}]
  %s1 = inlined_call_operand.vmem [shape: s32[16,1], index: 1, kind: input, shape index: {}]
  %s2 = inlined_call_operand.vmem [shape: f32[9,3,16], index: 2, kind: input, shape index: {}]
  %s3 = inlined_call_operand.vmem [shape: f32[1,16], index: 3, kind: input, shape index: {}]
  %s4 = inlined_call_operand.vmem [shape: f32[9,16,32], index: 4, kind: input, shape index: {}]
  %s5 = inlined_call_operand.vmem [shape: f32[1,32], index: 5, kind: input, shape index: {}]
  %s6 = inlined_call_operand.vmem [shape: f32[9,32,64], index: 6, kind: input, shape index: {}]
  %s7 = inlined_call_operand.vmem [shape: f32[1,64], index: 7, kind: input, shape index: {}]
  %s8 = inlined_call_operand.vmem [shape: f32[64,128], index: 8, kind: input, shape index: {}]
  %s9 = inlined_call_operand.vmem [shape: f32[1,128], index: 9, kind: input, shape index: {}]
  %s10 = inlined_call_operand.vmem [shape: f32[20,16], index: 10, kind: input, shape index: {}]
  %s11 = inlined_call_operand.vmem [shape: f32[16,128], index: 11, kind: input, shape index: {}]
  %s12 = inlined_call_operand.vmem [shape: f32[32,128], index: 12, kind: input, shape index: {}]
  %s13 = inlined_call_operand.vmem [shape: f32[1,128], index: 13, kind: input, shape index: {}]
  %s14 = inlined_call_operand.vmem [shape: f32[128,55], index: 14, kind: input, shape index: {}]
  %s15 = inlined_call_operand.vmem [shape: f32[32,55], index: 15, kind: input, shape index: {}]
  %s16 = inlined_call_operand.vmem [shape: f32[1,55], index: 16, kind: input, shape index: {}]
  %s17 = inlined_call_operand.vmem [shape: f32[2,55], index: 17, kind: output, shape index: {}]
  %s18 = sld [smem:[#allocation0]]
  $region78: #{forward.1} parent=0
    _
  %s20 = ssub.s32 1, %s18
  %s21 = scalar_select 0, %s20, %s18
  // Predicated region
  $region2: #{forward.1} parent=0 // pred_check
    _
  $region3: #{forward.1} parent=0 // pred_check_branch
    %23 = sbr.rel (0) target = $region5
  $region4: #{forward.1} parent=0 // pred_region
    _
  $region5: #{forward.1} parent=0 // pred_fallthru
    _
  // Predicated region
  $region6: #{forward.1} parent=0 // pred_check
    _
  $region7: #{forward.1} parent=0 // pred_check_branch
    %25 = sbr.rel (0) target = $region9
  $region8: #{forward.1} parent=0 // pred_region
    _
  $region9: #{forward.1} parent=0 // pred_fallthru
    _
  // Predicated region
  $region10: #{forward.1} parent=0 // pred_check
    _
  $region11: #{forward.1} parent=0 // pred_check_branch
    %27 = sbr.rel (0) target = $region13
  $region12: #{forward.1} parent=0 // pred_region
    _
  $region13: #{forward.1} parent=0 // pred_fallthru
    _
  // Predicated region
  $region14: #{forward.1} parent=0 // pred_check
    _
  $region15: #{forward.1} parent=0 // pred_check_branch
    %29 = sbr.rel (0) target = $region17
  $region16: #{forward.1} parent=0 // pred_region
    _
  $region17: #{forward.1} parent=0 // pred_fallthru
    _
  // Predicated region
  $region18: #{forward.1} parent=0 // pred_check
    _
  $region19: #{forward.1} parent=0 // pred_check_branch
    %31 = sbr.rel (0) target = $region21
  $region20: #{forward.1} parent=0 // pred_region
    _
  $region21: #{forward.1} parent=0 // pred_fallthru
    _
  // Predicated region
  $region22: #{forward.1} parent=0 // pred_check
    _
  $region23: #{forward.1} parent=0 // pred_check_branch
    %33 = sbr.rel (0) target = $region25
  $region24: #{forward.1} parent=0 // pred_region
    _
  $region25: #{forward.1} parent=0 // pred_fallthru
    _
  // Predicated region
  $region26: #{forward.1} parent=0 // pred_check
    _
  $region27: #{forward.1} parent=0 // pred_check_branch
    %35 = sbr.rel (0) target = $region29
  $region28: #{forward.1} parent=0 // pred_region
    _
  $region29: #{forward.1} parent=0 // pred_fallthru
    _
  // Predicated region
  $region30: #{forward.1} parent=0 // pred_check
    _
  $region31: #{forward.1} parent=0 // pred_check_branch
    %37 = sbr.rel (0) target = $region33
  $region32: #{forward.1} parent=0 // pred_region
    _
  $region33: #{forward.1} parent=0 // pred_fallthru
    _
  // Predicated region
  $region34: #{forward.1} parent=0 // pred_check
    _
  $region35: #{forward.1} parent=0 // pred_check_branch
    %39 = sbr.rel (0) target = $region37
  $region36: #{forward.1} parent=0 // pred_region
    _
  $region37: #{forward.1} parent=0 // pred_fallthru
    _
  // Predicated region
  $region38: #{forward.1} parent=0 // pred_check
    _
  $region39: #{forward.1} parent=0 // pred_check_branch
    %41 = sbr.rel (0) target = $region41
  $region40: #{forward.1} parent=0 // pred_region
    _
  $region41: #{forward.1} parent=0 // pred_fallthru
    _
  // Predicated region
  $region42: #{forward.1} parent=0 // pred_check
    _
  $region43: #{forward.1} parent=0 // pred_check_branch
    %43 = sbr.rel (0) target = $region45
  $region44: #{forward.1} parent=0 // pred_region
    _
  $region45: #{forward.1} parent=0 // pred_fallthru
    _
  // Predicated region
  $region46: #{forward.1} parent=0 // pred_check
    _
  $region47: #{forward.1} parent=0 // pred_check_branch
    %45 = sbr.rel (0) target = $region49
  $region48: #{forward.1} parent=0 // pred_region
    _
  $region49: #{forward.1} parent=0 // pred_fallthru
    _
  // Predicated region
  $region50: #{forward.1} parent=0 // pred_check
    _
  $region51: #{forward.1} parent=0 // pred_check_branch
    %47 = sbr.rel (0) target = $region53
  $region52: #{forward.1} parent=0 // pred_region
    _
  $region53: #{forward.1} parent=0 // pred_fallthru
    _
  // Predicated region
  $region54: #{forward.1} parent=0 // pred_check
    _
  $region55: #{forward.1} parent=0 // pred_check_branch
    %49 = sbr.rel (0) target = $region57
  $region56: #{forward.1} parent=0 // pred_region
    _
  $region57: #{forward.1} parent=0 // pred_fallthru
    _
  // Predicated region
  $region58: #{forward.1} parent=0 // pred_check
    _
  $region59: #{forward.1} parent=0 // pred_check_branch
    %51 = sbr.rel (0) target = $region61
  $region60: #{forward.1} parent=0 // pred_region
    _
  $region61: #{forward.1} parent=0 // pred_fallthru
    _
  // Predicated region
  $region62: #{forward.1} parent=0 // pred_check
    _
  $region63: #{forward.1} parent=0 // pred_check_branch
    %53 = sbr.rel (0) target = $region65
  $region64: #{forward.1} parent=0 // pred_region
    _
  $region65: #{forward.1} parent=0 // pred_fallthru
    _
  // Predicated region
  $region66: #{forward.1} parent=0 // pred_check
    _
  $region67: #{forward.1} parent=0 // pred_check_branch
    %55 = sbr.rel (0) target = $region69
  $region68: #{forward.1} parent=0 // pred_region
    _
  $region69: #{forward.1} parent=0 // pred_fallthru
    _
  %v56 = vld [vmem:[%s0] sm:$0xff]
  %v57 = vld [vmem:[%s0 + $0x8] sm:$0xff]
  %v58 = vld [vmem:[%s0 + $0x18] sm:$0xff]
  %v59 = vld [vmem:[%s0 + $0x20] sm:$0xff]
  %v60 = vld [vmem:[%s0 + $0x30] sm:$0xff]
  %v61 = vld [vmem:[%s0 + $0x38] sm:$0xff]
  %v62 = vld [vmem:[%s0 + $0x48] sm:$0xff]
  %v63 = vld [vmem:[%s0 + $0x50] sm:$0xff]
  %v64 = vld [vmem:[%s0 + $0x60] sm:$0xff]
  %v65 = vld [vmem:[%s0 + $0x68] sm:$0xff]
  %v66 = vld [vmem:[%s0 + $0x78] sm:$0xff]
  %v67 = vld [vmem:[%s0 + $0x80] sm:$0xff]
  %v68 = vld [vmem:[%s0 + $0x90] sm:$0xff]
  %v69 = vld [vmem:[%s0 + $0x98] sm:$0xff]
  %v70 = vld [vmem:[%s0 + $0xa8] sm:$0xff]
  %v71 = vld [vmem:[%s0 + $0xb0] sm:$0xff]
  %v72 = vld [vmem:[%s0 + $0xc0] sm:$0xff]
  %v73 = vld [vmem:[%s0 + $0xc8] sm:$0xff]
  %v74 = vld [vmem:[%s0 + $0xd8] sm:$0xff]
  %v75 = vld [vmem:[%s0 + $0xe0] sm:$0xff]
  %v76 = vld [vmem:[%s0 + $0xf0] sm:$0xff]
  %v77 = vld [vmem:[%s0 + $0xf8] sm:$0xff]
  %v78 = vld [vmem:[%s0 + $0x108] sm:$0xff]
  %v79 = vld [vmem:[%s0 + $0x110] sm:$0xff]
  %v80 = vld [vmem:[%s0 + $0x120] sm:$0xff]
  %v81 = vld [vmem:[%s0 + $0x128] sm:$0xff]
  %v82 = vld [vmem:[%s0 + $0x138] sm:$0xff]
  %v83 = vld [vmem:[%s0 + $0x140] sm:$0xff]
  %v84 = vld [vmem:[%s0 + $0x150] sm:$0xff]
  %v85 = vld [vmem:[%s0 + $0x158] sm:$0xff]
  %v86 = vld [vmem:[%s0 + $0x168] sm:$0xff]
  %v87 = vld [vmem:[%s0 + $0x170] sm:$0xff]
  %v88 = vld [vmem:[%s0 + $0x1b0] sm:$0xff]
  %v89 = vld [vmem:[%s0 + $0x1b8] sm:$0xff]
  %v90 = vld [vmem:[%s0 + $0x1c8] sm:$0xff]
  %v91 = vld [vmem:[%s0 + $0x1d0] sm:$0xff]
  %v92 = vld [vmem:[%s0 + $0x1e0] sm:$0xff]
  %v93 = vld [vmem:[%s0 + $0x1e8] sm:$0xff]
  %v94 = vld [vmem:[%s0 + $0x1f8] sm:$0xff]
  %v95 = vld [vmem:[%s0 + $0x200] sm:$0xff]
  %v96 = vld [vmem:[%s0 + $0x210] sm:$0xff]
  %v97 = vld [vmem:[%s0 + $0x218] sm:$0xff]
  %v98 = vld [vmem:[%s0 + $0x228] sm:$0xff]
  %v99 = vld [vmem:[%s0 + $0x230] sm:$0xff]
  %v100 = vld [vmem:[%s0 + $0x240] sm:$0xff]
  %v101 = vld [vmem:[%s0 + $0x248] sm:$0xff]
  %v102 = vld [vmem:[%s0 + $0x258] sm:$0xff]
  %v103 = vld [vmem:[%s0 + $0x260] sm:$0xff]
  %v104 = vld [vmem:[%s0 + $0x270] sm:$0xff]
  %v105 = vld [vmem:[%s0 + $0x278] sm:$0xff]
  %v106 = vld [vmem:[%s0 + $0x288] sm:$0xff]
  %v107 = vld [vmem:[%s0 + $0x290] sm:$0xff]
  %v108 = vld [vmem:[%s0 + $0x2a0] sm:$0xff]
  %v109 = vld [vmem:[%s0 + $0x2a8] sm:$0xff]
  %v110 = vld [vmem:[%s0 + $0x2b8] sm:$0xff]
  %v111 = vld [vmem:[%s0 + $0x2c0] sm:$0xff]
  %v112 = vld [vmem:[%s0 + $0x2d0] sm:$0xff]
  %v113 = vld [vmem:[%s0 + $0x2d8] sm:$0xff]
  %v114 = vld [vmem:[%s0 + $0x2e8] sm:$0xff]
  %v115 = vld [vmem:[%s0 + $0x2f0] sm:$0xff]
  %v116 = vld [vmem:[%s0 + $0x300] sm:$0xff]
  %v117 = vld [vmem:[%s0 + $0x308] sm:$0xff]
  %v118 = vld [vmem:[%s0 + $0x318] sm:$0xff]
  %v119 = vld [vmem:[%s0 + $0x320] sm:$0xff]
  %v120 = vld [vmem:[%s2] sm:$0x7]
  %v121 = vld [vmem:[%s0 + $0x1] sm:$0xff]
  %v122 = vld [vmem:[%s0 + $0x9] sm:$0xff]
  %v123 = vld [vmem:[%s0 + $0x19] sm:$0xff]
  %v124 = vld [vmem:[%s0 + $0x21] sm:$0xff]
  %v125 = vld [vmem:[%s0 + $0x31] sm:$0xff]
  %v126 = vld [vmem:[%s0 + $0x39] sm:$0xff]
  %v127 = vld [vmem:[%s0 + $0x49] sm:$0xff]
  %v128 = vld [vmem:[%s0 + $0x51] sm:$0xff]
  %v129 = vld [vmem:[%s0 + $0x61] sm:$0xff]
  %v130 = vld [vmem:[%s0 + $0x69] sm:$0xff]
  %v131 = vld [vmem:[%s0 + $0x79] sm:$0xff]
  %v132 = vld [vmem:[%s0 + $0x81] sm:$0xff]
  %v133 = vld [vmem:[%s0 + $0x91] sm:$0xff]
  %v134 = vld [vmem:[%s0 + $0x99] sm:$0xff]
  %v135 = vld [vmem:[%s0 + $0xa9] sm:$0xff]
  %v136 = vld [vmem:[%s0 + $0xb1] sm:$0xff]
  %v137 = vld [vmem:[%s0 + $0xc1] sm:$0xff]
  %v138 = vld [vmem:[%s0 + $0xc9] sm:$0xff]
  %v139 = vld [vmem:[%s0 + $0xd9] sm:$0xff]
  %v140 = vld [vmem:[%s0 + $0xe1] sm:$0xff]
  %v141 = vld [vmem:[%s0 + $0xf1] sm:$0xff]
  %v142 = vld [vmem:[%s0 + $0xf9] sm:$0xff]
  %v143 = vld [vmem:[%s0 + $0x109] sm:$0xff]
  %v144 = vld [vmem:[%s0 + $0x111] sm:$0xff]
  %v145 = vld [vmem:[%s0 + $0x121] sm:$0xff]
  %v146 = vld [vmem:[%s0 + $0x129] sm:$0xff]
  %v147 = vld [vmem:[%s0 + $0x139] sm:$0xff]
  %v148 = vld [vmem:[%s0 + $0x141] sm:$0xff]
  %v149 = vld [vmem:[%s0 + $0x151] sm:$0xff]
  %v150 = vld [vmem:[%s0 + $0x159] sm:$0xff]
  %v151 = vld [vmem:[%s0 + $0x169] sm:$0xff]
  %v152 = vld [vmem:[%s0 + $0x171] sm:$0xff]
  %v153 = vld [vmem:[%s0 + $0x1b1] sm:$0xff]
  %v154 = vld [vmem:[%s0 + $0x1b9] sm:$0xff]
  %v155 = vld [vmem:[%s0 + $0x1c9] sm:$0xff]
  %v156 = vld [vmem:[%s0 + $0x1d1] sm:$0xff]
  %v157 = vld [vmem:[%s0 + $0x1e1] sm:$0xff]
  %v158 = vld [vmem:[%s0 + $0x1e9] sm:$0xff]
  %v159 = vld [vmem:[%s0 + $0x1f9] sm:$0xff]
  %v160 = vld [vmem:[%s0 + $0x201] sm:$0xff]
  %v161 = vld [vmem:[%s0 + $0x211] sm:$0xff]
  %v162 = vld [vmem:[%s0 + $0x219] sm:$0xff]
  %v163 = vld [vmem:[%s0 + $0x229] sm:$0xff]
  %v164 = vld [vmem:[%s0 + $0x231] sm:$0xff]
  %v165 = vld [vmem:[%s0 + $0x241] sm:$0xff]
  %v166 = vld [vmem:[%s0 + $0x249] sm:$0xff]
  %v167 = vld [vmem:[%s0 + $0x259] sm:$0xff]
  %v168 = vld [vmem:[%s0 + $0x261] sm:$0xff]
  %v169 = vld [vmem:[%s0 + $0x271] sm:$0xff]
  %v170 = vld [vmem:[%s0 + $0x279] sm:$0xff]
  %v171 = vld [vmem:[%s0 + $0x289] sm:$0xff]
  %v172 = vld [vmem:[%s0 + $0x291] sm:$0xff]
  %v173 = vld [vmem:[%s0 + $0x2a1] sm:$0xff]
  %v174 = vld [vmem:[%s0 + $0x2a9] sm:$0xff]
  %v175 = vld [vmem:[%s0 + $0x2b9] sm:$0xff]
  %v176 = vld [vmem:[%s0 + $0x2c1] sm:$0xff]
  %v177 = vld [vmem:[%s0 + $0x2d1] sm:$0xff]
  %v178 = vld [vmem:[%s0 + $0x2d9] sm:$0xff]
  %v179 = vld [vmem:[%s0 + $0x2e9] sm:$0xff]
  %v180 = vld [vmem:[%s0 + $0x2f1] sm:$0xff]
  %v181 = vld [vmem:[%s0 + $0x301] sm:$0xff]
  %v182 = vld [vmem:[%s0 + $0x309] sm:$0xff]
  %v183 = vld [vmem:[%s0 + $0x319] sm:$0xff]
  %v184 = vld [vmem:[%s0 + $0x321] sm:$0xff]
  %s185 = scalar_lea.vmem %s2, 4
  %v186 = vld [vmem:[%s185] sm:$0x7]
  %vm187 = vcmask 23552
  %v189 = vsel %vm187, %v121, 0
  %v192 = vsel %vm187, %v122, 0
  %v195 = vsel %vm187, %v123, 0
  %v198 = vsel %vm187, %v124, 0
  %v201 = vsel %vm187, %v125, 0
  %v204 = vsel %vm187, %v126, 0
  %v207 = vsel %vm187, %v127, 0
  %v210 = vsel %vm187, %v128, 0
  %v213 = vsel %vm187, %v129, 0
  %v216 = vsel %vm187, %v130, 0
  %v219 = vsel %vm187, %v131, 0
  %v222 = vsel %vm187, %v132, 0
  %v225 = vsel %vm187, %v133, 0
  %v228 = vsel %vm187, %v134, 0
  %v231 = vsel %vm187, %v135, 0
  %v234 = vsel %vm187, %v136, 0
  %v237 = vsel %vm187, %v137, 0
  %v240 = vsel %vm187, %v138, 0
  %v243 = vsel %vm187, %v139, 0
  %v246 = vsel %vm187, %v140, 0
  %v249 = vsel %vm187, %v141, 0
  %v252 = vsel %vm187, %v142, 0
  %v255 = vsel %vm187, %v143, 0
  %v258 = vsel %vm187, %v144, 0
  %v261 = vsel %vm187, %v145, 0
  %v264 = vsel %vm187, %v146, 0
  %v267 = vsel %vm187, %v147, 0
  %v270 = vsel %vm187, %v148, 0
  %v273 = vsel %vm187, %v149, 0
  %v276 = vsel %vm187, %v150, 0
  %v279 = vsel %vm187, %v151, 0
  %v282 = vsel %vm187, %v152, 0
  %v285 = vsel %vm187, %v153, 0
  %v288 = vsel %vm187, %v154, 0
  %v291 = vsel %vm187, %v155, 0
  %v294 = vsel %vm187, %v156, 0
  %v297 = vsel %vm187, %v157, 0
  %v300 = vsel %vm187, %v158, 0
  %v303 = vsel %vm187, %v159, 0
  %v306 = vsel %vm187, %v160, 0
  %v309 = vsel %vm187, %v161, 0
  %v312 = vsel %vm187, %v162, 0
  %v315 = vsel %vm187, %v163, 0
  %v318 = vsel %vm187, %v164, 0
  %v321 = vsel %vm187, %v165, 0
  %v324 = vsel %vm187, %v166, 0
  %v327 = vsel %vm187, %v167, 0
  %v330 = vsel %vm187, %v168, 0
  %v333 = vsel %vm187, %v169, 0
  %v336 = vsel %vm187, %v170, 0
  %v339 = vsel %vm187, %v171, 0
  %v342 = vsel %vm187, %v172, 0
  %v345 = vsel %vm187, %v173, 0
  %v348 = vsel %vm187, %v174, 0
  %v351 = vsel %vm187, %v175, 0
  %v354 = vsel %vm187, %v176, 0
  %v357 = vsel %vm187, %v177, 0
  %v360 = vsel %vm187, %v178, 0
  %v363 = vsel %vm187, %v179, 0
  %v366 = vsel %vm187, %v180, 0
  %v369 = vsel %vm187, %v181, 0
  %v372 = vsel %vm187, %v182, 0
  %v375 = vsel %vm187, %v183, 0
  %v378 = vsel %vm187, %v184, 0
  %vm380 = vcmask 1042432
  %v382 = vsel %vm380, %v186, 0
  %384 = vmatprep.subr.mxu0 0.0
  %385 = vmatpush1.msra.mxu0 %v382
  %386 = vmatprep.subr.mxu0 0.0
  %387 = vmatpush1.msra.mxu0 0.0
  %388 = vmatprep.subr.mxu0 0.0
  %389 = vmatpush1.msra.mxu0 0.0
  %390 = vmatprep.subr.mxu0 0.0
  %391 = vmatpush1.msra.mxu0 0.0
  %392 = vmatprep.subr.mxu0 0.0
  %393 = vmatpush1.msra.mxu0 0.0
  %394 = vmatprep.subr.mxu0 0.0
  %395 = vmatpush1.msra.mxu0 0.0
  %396 = vmatprep.subr.mxu0 0.0
  %397 = vmatpush1.msra.mxu0 0.0
  %398 = vmatprep.subr.mxu0 0.0
  %399 = vmatpush1.msra.mxu0 0.0
  %400 = vmatprep.subr.mxu0 0.0
  %401 = vmatpush1.msra.mxu0 0.0
  %402 = vmatprep.subr.mxu0 0.0
  %403 = vmatpush1.msra.mxu0 0.0
  %404 = vmatprep.subr.mxu0 0.0
  %405 = vmatpush1.msra.mxu0 0.0
  %406 = vmatprep.subr.mxu0 0.0
  %407 = vmatpush1.msra.mxu0 0.0
  %408 = vmatprep.subr.mxu0 0.0
  %409 = vmatpush1.msra.mxu0 0.0
  %410 = vmatprep.subr.mxu0 0.0
  %411 = vmatpush1.msra.mxu0 0.0
  %412 = vmatprep.subr.mxu0 0.0
  %413 = vmatpush1.msra.mxu0 0.0
  %414 = vmatprep.subr.mxu0 0.0
  %415 = vmatpush1.msra.mxu0 0.0
  %416 = vmatprep.subr.mxu0 0.0
  %417 = vmatpush1.msra.mxu0 0.0
  %418 = vmatprep.subr.mxu0 0.0
  %419 = vmatpush1.msra.mxu0 0.0
  %420 = vmatprep.subr.mxu0 0.0
  %421 = vmatpush1.msra.mxu0 0.0
  %422 = vmatprep.subr.mxu0 0.0
  %423 = vmatpush1.msra.mxu0 0.0
  %424 = vmatprep.subr.mxu0 0.0
  %425 = vmatpush1.msra.mxu0 0.0
  %426 = vmatprep.subr.mxu0 0.0
  %427 = vmatpush1.msra.mxu0 0.0
  %428 = vmatprep.subr.mxu0 0.0
  %429 = vmatpush1.msra.mxu0 0.0
  %430 = vmatprep.subr.mxu0 0.0
  %431 = vmatpush1.msra.mxu0 0.0
  %432 = vmatprep.subr.mxu0 0.0
  %433 = vmatpush1.msra.mxu0 0.0
  %434 = vmatprep.subr.mxu0 0.0
  %435 = vmatpush1.msra.mxu0 0.0
  %436 = vmatprep.subr.mxu0 0.0
  %437 = vmatpush1.msra.mxu0 0.0
  %438 = vmatprep.subr.mxu0 0.0
  %439 = vmatpush1.msra.mxu0 0.0
  %440 = vmatprep.subr.mxu0 0.0
  %441 = vmatpush1.msra.mxu0 0.0
  %442 = vmatprep.subr.mxu0 0.0
  %443 = vmatpush1.msra.mxu0 0.0
  %444 = vmatprep.subr.mxu0 0.0
  %445 = vmatpush1.msra.mxu0 0.0
  %446 = vmatprep.subr.mxu0 0.0
  %447 = vmatpush1.msra.mxu0 0.0
  %448 = vmatprep.mubr.f32.mxu0 0.0
  %449 = vmatmul.mubr.f32.gmra.mrb[0].mxu0 %v189
  %v450 = vpop.f32.mrb[0].mxu0
  %v451 = vadd.f32 0.0, %v450
  %v452 = vpop.f32.mrb[0].mxu0
  %453 = vmatprep.mubr.f32.mxu0 0.0
  %454 = vmatmul.mubr.f32.gmra.mrb[0].mxu0 %v192
  %v455 = vpop.f32.mrb[0].mxu0
  %v456 = vadd.f32 0.0, %v455
  %v457 = vpop.f32.mrb[0].mxu0
  %458 = vmatprep.mubr.f32.mxu0 0.0
  %459 = vmatmul.mubr.f32.gmra.mrb[0].mxu0 %v195
  %v460 = vpop.f32.mrb[0].mxu0
  %v461 = vadd.f32 0.0, %v460
  %v462 = vpop.f32.mrb[0].mxu0
  %463 = vmatprep.mubr.f32.mxu0 0.0
  %464 = vmatmul.mubr.f32.gmra.mrb[0].mxu0 %v198
  %v465 = vpop.f32.mrb[0].mxu0
  %v466 = vadd.f32 0.0, %v465
  %v467 = vpop.f32.mrb[0].mxu0
  %468 = vmatprep.mubr.f32.mxu0 0.0
  %469 = vmatmul.mubr.f32.gmra.mrb[0].mxu0 %v201
  %v470 = vpop.f32.mrb[0].mxu0
  %v471 = vadd.f32 0.0, %v470
  %v472 = vpop.f32.mrb[0].mxu0
  %473 = vmatprep.mubr.f32.mxu0 0.0
  %474 = vmatmul.mubr.f32.gmra.mrb[0].mxu0 %v204
  %v475 = vpop.f32.mrb[0].mxu0
  %v476 = vadd.f32 0.0, %v475
  %v477 = vpop.f32.mrb[0].mxu0
  %478 = vmatprep.mubr.f32.mxu0 0.0
  %479 = vmatmul.mubr.f32.gmra.mrb[0].mxu0 %v207
  %v480 = vpop.f32.mrb[0].mxu0
  %v481 = vadd.f32 0.0, %v480
  %v482 = vpop.f32.mrb[0].mxu0
  %483 = vmatprep.mubr.f32.mxu0 0.0
  %484 = vmatmul.mubr.f32.gmra.mrb[0].mxu0 %v210
  %v485 = vpop.f32.mrb[0].mxu0
  %v486 = vadd.f32 0.0, %v485
  %v487 = vpop.f32.mrb[0].mxu0
  %488 = vmatprep.mubr.f32.mxu0 0.0
  %489 = vmatmul.mubr.f32.gmra.mrb[0].mxu0 %v213
  %v490 = vpop.f32.mrb[0].mxu0
  %v491 = vadd.f32 0.0, %v490
  %v492 = vpop.f32.mrb[0].mxu0
  %493 = vmatprep.mubr.f32.mxu0 0.0
  %494 = vmatmul.mubr.f32.gmra.mrb[0].mxu0 %v216
  %v495 = vpop.f32.mrb[0].mxu0
  %v496 = vadd.f32 0.0, %v495
  %v497 = vpop.f32.mrb[0].mxu0
  %498 = vmatprep.mubr.f32.mxu0 0.0
  %499 = vmatmul.mubr.f32.gmra.mrb[0].mxu0 %v219
  %v500 = vpop.f32.mrb[0].mxu0
  %v501 = vadd.f32 0.0, %v500
  %v502 = vpop.f32.mrb[0].mxu0
  %503 = vmatprep.mubr.f32.mxu0 0.0
  %504 = vmatmul.mubr.f32.gmra.mrb[0].mxu0 %v222
  %v505 = vpop.f32.mrb[0].mxu0
  %v506 = vadd.f32 0.0, %v505
  %v507 = vpop.f32.mrb[0].mxu0
  %508 = vmatprep.mubr.f32.mxu0 0.0
  %509 = vmatmul.mubr.f32.gmra.mrb[0].mxu0 %v225
  %v510 = vpop.f32.mrb[0].mxu0
  %v511 = vadd.f32 0.0, %v510
  %v512 = vpop.f32.mrb[0].mxu0
  %513 = vmatprep.mubr.f32.mxu0 0.0
  %514 = vmatmul.mubr.f32.gmra.mrb[0].mxu0 %v228
  %v515 = vpop.f32.mrb[0].mxu0
  %v516 = vadd.f32 0.0, %v515
  %v517 = vpop.f32.mrb[0].mxu0
  %518 = vmatprep.mubr.f32.mxu0 0.0
  %519 = vmatmul.mubr.f32.gmra.mrb[0].mxu0 %v231
  %v520 = vpop.f32.mrb[0].mxu0
  %v521 = vadd.f32 0.0, %v520
  %v522 = vpop.f32.mrb[0].mxu0
  %523 = vmatprep.mubr.f32.mxu0 0.0
  %524 = vmatmul.mubr.f32.gmra.mrb[0].mxu0 %v234
  %v525 = vpop.f32.mrb[0].mxu0
  %v526 = vadd.f32 0.0, %v525
  %v527 = vpop.f32.mrb[0].mxu0
  %528 = vmatprep.mubr.f32.mxu0 0.0
  %529 = vmatmul.mubr.f32.gmra.mrb[0].mxu0 %v237
  %v530 = vpop.f32.mrb[0].mxu0
  %v531 = vadd.f32 0.0, %v530
  %v532 = vpop.f32.mrb[0].mxu0
  %533 = vmatprep.mubr.f32.mxu0 0.0
  %534 = vmatmul.mubr.f32.gmra.mrb[0].mxu0 %v240
  %v535 = vpop.f32.mrb[0].mxu0
  %v536 = vadd.f32 0.0, %v535
  %v537 = vpop.f32.mrb[0].mxu0
  %538 = vmatprep.mubr.f32.mxu0 0.0
  %539 = vmatmul.mubr.f32.gmra.mrb[0].mxu0 %v243
  %v540 = vpop.f32.mrb[0].mxu0
  %v541 = vadd.f32 0.0, %v540
  %v542 = vpop.f32.mrb[0].mxu0
  %543 = vmatprep.mubr.f32.mxu0 0.0
  %544 = vmatmul.mubr.f32.gmra.mrb[0].mxu0 %v246
  %v545 = vpop.f32.mrb[0].mxu0
  %v546 = vadd.f32 0.0, %v545
  %v547 = vpop.f32.mrb[0].mxu0
  %548 = vmatprep.mubr.f32.mxu0 0.0
  %549 = vmatmul.mubr.f32.gmra.mrb[0].mxu0 %v249
  %v550 = vpop.f32.mrb[0].mxu0
  %v551 = vadd.f32 0.0, %v550
  %v552 = vpop.f32.mrb[0].mxu0
  %553 = vmatprep.mubr.f32.mxu0 0.0
  %554 = vmatmul.mubr.f32.gmra.mrb[0].mxu0 %v252
  %v555 = vpop.f32.mrb[0].mxu0
  %v556 = vadd.f32 0.0, %v555
  %v557 = vpop.f32.mrb[0].mxu0
  %558 = vmatprep.mubr.f32.mxu0 0.0
  %559 = vmatmul.mubr.f32.gmra.mrb[0].mxu0 %v255
  %v560 = vpop.f32.mrb[0].mxu0
  %v561 = vadd.f32 0.0, %v560
  %v562 = vpop.f32.mrb[0].mxu0
  %563 = vmatprep.mubr.f32.mxu0 0.0
  %564 = vmatmul.mubr.f32.gmra.mrb[0].mxu0 %v258
  %v565 = vpop.f32.mrb[0].mxu0
  %v566 = vadd.f32 0.0, %v565
  %v567 = vpop.f32.mrb[0].mxu0
  %568 = vmatprep.mubr.f32.mxu0 0.0
  %569 = vmatmul.mubr.f32.gmra.mrb[0].mxu0 %v261
  %v570 = vpop.f32.mrb[0].mxu0
  %v571 = vadd.f32 0.0, %v570
  %v572 = vpop.f32.mrb[0].mxu0
  %573 = vmatprep.mubr.f32.mxu0 0.0
  %574 = vmatmul.mubr.f32.gmra.mrb[0].mxu0 %v264
  %v575 = vpop.f32.mrb[0].mxu0
  %v576 = vadd.f32 0.0, %v575
  %v577 = vpop.f32.mrb[0].mxu0
  %578 = vmatprep.mubr.f32.mxu0 0.0
  %579 = vmatmul.mubr.f32.gmra.mrb[0].mxu0 %v267
  %v580 = vpop.f32.mrb[0].mxu0
  %v581 = vadd.f32 0.0, %v580
  %v582 = vpop.f32.mrb[0].mxu0
  %583 = vmatprep.mubr.f32.mxu0 0.0
  %584 = vmatmul.mubr.f32.gmra.mrb[0].mxu0 %v270
  %v585 = vpop.f32.mrb[0].mxu0
  %v586 = vadd.f32 0.0, %v585
  %v587 = vpop.f32.mrb[0].mxu0
  %588 = vmatprep.mubr.f32.mxu0 0.0
  %589 = vmatmul.mubr.f32.gmra.mrb[0].mxu0 %v273
  %v590 = vpop.f32.mrb[0].mxu0
  %v591 = vadd.f32 0.0, %v590
  %v592 = vpop.f32.mrb[0].mxu0
  %593 = vmatprep.mubr.f32.mxu0 0.0
  %594 = vmatmul.mubr.f32.gmra.mrb[0].mxu0 %v276
  %v595 = vpop.f32.mrb[0].mxu0
  %v596 = vadd.f32 0.0, %v595
  %v597 = vpop.f32.mrb[0].mxu0
  %598 = vmatprep.mubr.f32.mxu0 0.0
  %599 = vmatmul.mubr.f32.gmra.mrb[0].mxu0 %v279
  %v600 = vpop.f32.mrb[0].mxu0
  %v601 = vadd.f32 0.0, %v600
  %v602 = vpop.f32.mrb[0].mxu0
  %603 = vmatprep.mubr.f32.mxu0 0.0
  %604 = vmatmul.mubr.f32.gmra.mrb[0].mxu0 %v282
  %v605 = vpop.f32.mrb[0].mxu0
  %v606 = vadd.f32 0.0, %v605
  %v607 = vpop.f32.mrb[0].mxu0
  %608 = vmatprep.mubr.f32.mxu0 0.0
  %609 = vmatmul.mubr.f32.gmra.mrb[0].mxu0 %v285
  %v610 = vpop.f32.mrb[0].mxu0
  %v611 = vadd.f32 0.0, %v610
  %v612 = vpop.f32.mrb[0].mxu0
  %613 = vmatprep.mubr.f32.mxu0 0.0
  %614 = vmatmul.mubr.f32.gmra.mrb[0].mxu0 %v288
  %v615 = vpop.f32.mrb[0].mxu0
  %v616 = vadd.f32 0.0, %v615
  %v617 = vpop.f32.mrb[0].mxu0
  %618 = vmatprep.mubr.f32.mxu0 0.0
  %619 = vmatmul.mubr.f32.gmra.mrb[0].mxu0 %v291
  %v620 = vpop.f32.mrb[0].mxu0
  %v621 = vadd.f32 0.0, %v620
  %v622 = vpop.f32.mrb[0].mxu0
  %623 = vmatprep.mubr.f32.mxu0 0.0
  %624 = vmatmul.mubr.f32.gmra.mrb[0].mxu0 %v294
  %v625 = vpop.f32.mrb[0].mxu0
  %v626 = vadd.f32 0.0, %v625
  %v627 = vpop.f32.mrb[0].mxu0
  %628 = vmatprep.mubr.f32.mxu0 0.0
  %629 = vmatmul.mubr.f32.gmra.mrb[0].mxu0 %v297
  %v630 = vpop.f32.mrb[0].mxu0
  %v631 = vadd.f32 0.0, %v630
  %v632 = vpop.f32.mrb[0].mxu0
  %633 = vmatprep.mubr.f32.mxu0 0.0
  %634 = vmatmul.mubr.f32.gmra.mrb[0].mxu0 %v300
  %v635 = vpop.f32.mrb[0].mxu0
  %v636 = vadd.f32 0.0, %v635
  %v637 = vpop.f32.mrb[0].mxu0
  %638 = vmatprep.mubr.f32.mxu0 0.0
  %639 = vmatmul.mubr.f32.gmra.mrb[0].mxu0 %v303
  %v640 = vpop.f32.mrb[0].mxu0
  %v641 = vadd.f32 0.0, %v640
  %v642 = vpop.f32.mrb[0].mxu0
  %643 = vmatprep.mubr.f32.mxu0 0.0
  %644 = vmatmul.mubr.f32.gmra.mrb[0].mxu0 %v306
  %v645 = vpop.f32.mrb[0].mxu0
  %v646 = vadd.f32 0.0, %v645
  %v647 = vpop.f32.mrb[0].mxu0
  %648 = vmatprep.mubr.f32.mxu0 0.0
  %649 = vmatmul.mubr.f32.gmra.mrb[0].mxu0 %v309
  %v650 = vpop.f32.mrb[0].mxu0
  %v651 = vadd.f32 0.0, %v650
  %v652 = vpop.f32.mrb[0].mxu0
  %653 = vmatprep.mubr.f32.mxu0 0.0
  %654 = vmatmul.mubr.f32.gmra.mrb[0].mxu0 %v312
  %v655 = vpop.f32.mrb[0].mxu0
  %v656 = vadd.f32 0.0, %v655
  %v657 = vpop.f32.mrb[0].mxu0
  %658 = vmatprep.mubr.f32.mxu0 0.0
  %659 = vmatmul.mubr.f32.gmra.mrb[0].mxu0 %v315
  %v660 = vpop.f32.mrb[0].mxu0
  %v661 = vadd.f32 0.0, %v660
  %v662 = vpop.f32.mrb[0].mxu0
  %663 = vmatprep.mubr.f32.mxu0 0.0
  %664 = vmatmul.mubr.f32.gmra.mrb[0].mxu0 %v318
  %v665 = vpop.f32.mrb[0].mxu0
  %v666 = vadd.f32 0.0, %v665
  %v667 = vpop.f32.mrb[0].mxu0
  %668 = vmatprep.mubr.f32.mxu0 0.0
  %669 = vmatmul.mubr.f32.gmra.mrb[0].mxu0 %v321
  %v670 = vpop.f32.mrb[0].mxu0
  %v671 = vadd.f32 0.0, %v670
  %v672 = vpop.f32.mrb[0].mxu0
  %673 = vmatprep.mubr.f32.mxu0 0.0
  %674 = vmatmul.mubr.f32.gmra.mrb[0].mxu0 %v324
  %v675 = vpop.f32.mrb[0].mxu0
  %v676 = vadd.f32 0.0, %v675
  %v677 = vpop.f32.mrb[0].mxu0
  %678 = vmatprep.mubr.f32.mxu0 0.0
  %679 = vmatmul.mubr.f32.gmra.mrb[0].mxu0 %v327
  %v680 = vpop.f32.mrb[0].mxu0
  %v681 = vadd.f32 0.0, %v680
  %v682 = vpop.f32.mrb[0].mxu0
  %683 = vmatprep.mubr.f32.mxu0 0.0
  %684 = vmatmul.mubr.f32.gmra.mrb[0].mxu0 %v330
  %v685 = vpop.f32.mrb[0].mxu0
  %v686 = vadd.f32 0.0, %v685
  %v687 = vpop.f32.mrb[0].mxu0
  %688 = vmatprep.mubr.f32.mxu0 0.0
  %689 = vmatmul.mubr.f32.gmra.mrb[0].mxu0 %v333
  %v690 = vpop.f32.mrb[0].mxu0
  %v691 = vadd.f32 0.0, %v690
  %v692 = vpop.f32.mrb[0].mxu0
  %693 = vmatprep.mubr.f32.mxu0 0.0
  %694 = vmatmul.mubr.f32.gmra.mrb[0].mxu0 %v336
  %v695 = vpop.f32.mrb[0].mxu0
  %v696 = vadd.f32 0.0, %v695
  %v697 = vpop.f32.mrb[0].mxu0
  %698 = vmatprep.mubr.f32.mxu0 0.0
  %699 = vmatmul.mubr.f32.gmra.mrb[0].mxu0 %v339
  %v700 = vpop.f32.mrb[0].mxu0
  %v701 = vadd.f32 0.0, %v700
  %v702 = vpop.f32.mrb[0].mxu0
  %703 = vmatprep.mubr.f32.mxu0 0.0
  %704 = vmatmul.mubr.f32.gmra.mrb[0].mxu0 %v342
  %v705 = vpop.f32.mrb[0].mxu0
  %v706 = vadd.f32 0.0, %v705
  %v707 = vpop.f32.mrb[0].mxu0
  %708 = vmatprep.mubr.f32.mxu0 0.0
  %709 = vmatmul.mubr.f32.gmra.mrb[0].mxu0 %v345
  %v710 = vpop.f32.mrb[0].mxu0
  %v711 = vadd.f32 0.0, %v710
  %v712 = vpop.f32.mrb[0].mxu0
  %713 = vmatprep.mubr.f32.mxu0 0.0
  %714 = vmatmul.mubr.f32.gmra.mrb[0].mxu0 %v348
  %v715 = vpop.f32.mrb[0].mxu0
  %v716 = vadd.f32 0.0, %v715
  %v717 = vpop.f32.mrb[0].mxu0
  %718 = vmatprep.mubr.f32.mxu0 0.0
  %719 = vmatmul.mubr.f32.gmra.mrb[0].mxu0 %v351
  %v720 = vpop.f32.mrb[0].mxu0
  %v721 = vadd.f32 0.0, %v720
  %v722 = vpop.f32.mrb[0].mxu0
  %723 = vmatprep.mubr.f32.mxu0 0.0
  %724 = vmatmul.mubr.f32.gmra.mrb[0].mxu0 %v354
  %v725 = vpop.f32.mrb[0].mxu0
  %v726 = vadd.f32 0.0, %v725
  %v727 = vpop.f32.mrb[0].mxu0
  %728 = vmatprep.mubr.f32.mxu0 0.0
  %729 = vmatmul.mubr.f32.gmra.mrb[0].mxu0 %v357
  %v730 = vpop.f32.mrb[0].mxu0
  %v731 = vadd.f32 0.0, %v730
  %v732 = vpop.f32.mrb[0].mxu0
  %733 = vmatprep.mubr.f32.mxu0 0.0
  %734 = vmatmul.mubr.f32.gmra.mrb[0].mxu0 %v360
  %v735 = vpop.f32.mrb[0].mxu0
  %v736 = vadd.f32 0.0, %v735
  %v737 = vpop.f32.mrb[0].mxu0
  %738 = vmatprep.mubr.f32.mxu0 0.0
  %739 = vmatmul.mubr.f32.gmra.mrb[0].mxu0 %v363
  %v740 = vpop.f32.mrb[0].mxu0
  %v741 = vadd.f32 0.0, %v740
  %v742 = vpop.f32.mrb[0].mxu0
  %743 = vmatprep.mubr.f32.mxu0 0.0
  %744 = vmatmul.mubr.f32.gmra.mrb[0].mxu0 %v366
  %v745 = vpop.f32.mrb[0].mxu0
  %v746 = vadd.f32 0.0, %v745
  %v747 = vpop.f32.mrb[0].mxu0
  %748 = vmatprep.mubr.f32.mxu0 0.0
  %749 = vmatmul.mubr.f32.gmra.mrb[0].mxu0 %v369
  %v750 = vpop.f32.mrb[0].mxu0
  %v751 = vadd.f32 0.0, %v750
  %v752 = vpop.f32.mrb[0].mxu0
  %753 = vmatprep.mubr.f32.mxu0 0.0
  %754 = vmatmul.mubr.f32.gmra.mrb[0].mxu0 %v372
  %v755 = vpop.f32.mrb[0].mxu0
  %v756 = vadd.f32 0.0, %v755
  %v757 = vpop.f32.mrb[0].mxu0
  %758 = vmatprep.mubr.f32.mxu0 0.0
  %759 = vmatmul.mubr.f32.gmra.mrb[0].mxu0 %v375
  %v760 = vpop.f32.mrb[0].mxu0
  %v761 = vadd.f32 0.0, %v760
  %v762 = vpop.f32.mrb[0].mxu0
  %763 = vmatprep.mubr.f32.mxu0 0.0
  %764 = vmatmul.mubr.f32.gmra.mrb[0].mxu0 %v378
  %v765 = vpop.f32.mrb[0].mxu0
  %v766 = vadd.f32 0.0, %v765
  %v767 = vpop.f32.mrb[0].mxu0
  %768 = vdwg.mxu0
  %v770 = vsel %vm187, %v56, 0
  %v773 = vsel %vm187, %v57, 0
  %v776 = vsel %vm187, %v58, 0
  %v779 = vsel %vm187, %v59, 0
  %v782 = vsel %vm187, %v60, 0
  %v785 = vsel %vm187, %v61, 0
  %v788 = vsel %vm187, %v62, 0
  %v791 = vsel %vm187, %v63, 0
  %v794 = vsel %vm187, %v64, 0
  %v797 = vsel %vm187, %v65, 0
  %v800 = vsel %vm187, %v66, 0
  %v803 = vsel %vm187, %v67, 0
  %v806 = vsel %vm187, %v68, 0
  %v809 = vsel %vm187, %v69, 0
  %v812 = vsel %vm187, %v70, 0
  %v815 = vsel %vm187, %v71, 0
  %v818 = vsel %vm187, %v72, 0
  %v821 = vsel %vm187, %v73, 0
  %v824 = vsel %vm187, %v74, 0
  %v827 = vsel %vm187, %v75, 0
  %v830 = vsel %vm187, %v76, 0
  %v833 = vsel %vm187, %v77, 0
  %v836 = vsel %vm187, %v78, 0
  %v839 = vsel %vm187, %v79, 0
  %v842 = vsel %vm187, %v80, 0
  %v845 = vsel %vm187, %v81, 0
  %v848 = vsel %vm187, %v82, 0
  %v851 = vsel %vm187, %v83, 0
  %v854 = vsel %vm187, %v84, 0
  %v857 = vsel %vm187, %v85, 0
  %v860 = vsel %vm187, %v86, 0
  %v863 = vsel %vm187, %v87, 0
  %v866 = vsel %vm187, %v88, 0
  %v869 = vsel %vm187, %v89, 0
  %v872 = vsel %vm187, %v90, 0
  %v875 = vsel %vm187, %v91, 0
  %v878 = vsel %vm187, %v92, 0
  %v881 = vsel %vm187, %v93, 0
  %v884 = vsel %vm187, %v94, 0
  %v887 = vsel %vm187, %v95, 0
  %v890 = vsel %vm187, %v96, 0
  %v893 = vsel %vm187, %v97, 0
  %v896 = vsel %vm187, %v98, 0
  %v899 = vsel %vm187, %v99, 0
  %v902 = vsel %vm187, %v100, 0
  %v905 = vsel %vm187, %v101, 0
  %v908 = vsel %vm187, %v102, 0
  %v911 = vsel %vm187, %v103, 0
  %v914 = vsel %vm187, %v104, 0
  %v917 = vsel %vm187, %v105, 0
  %v920 = vsel %vm187, %v106, 0
  %v923 = vsel %vm187, %v107, 0
  %v926 = vsel %vm187, %v108, 0
  %v929 = vsel %vm187, %v109, 0
  %v932 = vsel %vm187, %v110, 0
  %v935 = vsel %vm187, %v111, 0
  %v938 = vsel %vm187, %v112, 0
  %v941 = vsel %vm187, %v113, 0
  %v944 = vsel %vm187, %v114, 0
  %v947 = vsel %vm187, %v115, 0
  %v950 = vsel %vm187, %v116, 0
  %v953 = vsel %vm187, %v117, 0
  %v956 = vsel %vm187, %v118, 0
  %v959 = vsel %vm187, %v119, 0
  %v962 = vsel %vm380, %v120, 0
  %964 = vmatprep.subr.mxu0 0.0
  %965 = vmatpush1.msra.mxu0 %v962
  %966 = vmatprep.subr.mxu0 0.0
  %967 = vmatpush1.msra.mxu0 0.0
  %968 = vmatprep.subr.mxu0 0.0
  %969 = vmatpush1.msra.mxu0 0.0
  %970 = vmatprep.subr.mxu0 0.0
  %971 = vmatpush1.msra.mxu0 0.0
  %972 = vmatprep.subr.mxu0 0.0
  %973 = vmatpush1.msra.mxu0 0.0
  %974 = vmatprep.subr.mxu0 0.0
  %975 = vmatpush1.msra.mxu0 0.0
  %976 = vmatprep.subr.mxu0 0.0
  %977 = vmatpush1.msra.mxu0 0.0
  %978 = vmatprep.subr.mxu0 0.0
  %979 = vmatpush1.msra.mxu0 0.0
  %980 = vmatprep.subr.mxu0 0.0
  %981 = vmatpush1.msra.mxu0 0.0
  %982 = vmatprep.subr.mxu0 0.0
  %983 = vmatpush1.msra.mxu0 0.0
  %984 = vmatprep.subr.mxu0 0.0
  %985 = vmatpush1.msra.mxu0 0.0
  %986 = vmatprep.subr.mxu0 0.0
  %987 = vmatpush1.msra.mxu0 0.0
  %988 = vmatprep.subr.mxu0 0.0
  %989 = vmatpush1.msra.mxu0 0.0
  %990 = vmatprep.subr.mxu0 0.0
  %991 = vmatpush1.msra.mxu0 0.0
  %992 = vmatprep.subr.mxu0 0.0
  %993 = vmatpush1.msra.mxu0 0.0
  %994 = vmatprep.subr.mxu0 0.0
  %995 = vmatpush1.msra.mxu0 0.0
  %996 = vmatprep.subr.mxu0 0.0
  %997 = vmatpush1.msra.mxu0 0.0
  %998 = vmatprep.subr.mxu0 0.0
  %999 = vmatpush1.msra.mxu0 0.0
  %1000 = vmatprep.subr.mxu0 0.0
  %1001 = vmatpush1.msra.mxu0 0.0
  %1002 = vmatprep.subr.mxu0 0.0
  %1003 = vmatpush1.msra.mxu0 0.0
  %1004 = vmatprep.subr.mxu0 0.0
  %1005 = vmatpush1.msra.mxu0 0.0
  %1006 = vmatprep.subr.mxu0 0.0
  %1007 = vmatpush1.msra.mxu0 0.0
  %1008 = vmatprep.subr.mxu0 0.0
  %1009 = vmatpush1.msra.mxu0 0.0
  %1010 = vmatprep.subr.mxu0 0.0
  %1011 = vmatpush1.msra.mxu0 0.0
  %1012 = vmatprep.subr.mxu0 0.0
  %1013 = vmatpush1.msra.mxu0 0.0
  %1014 = vmatprep.subr.mxu0 0.0
  %1015 = vmatpush1.msra.mxu0 0.0
  %1016 = vmatprep.subr.mxu0 0.0
  %1017 = vmatpush1.msra.mxu0 0.0
  %1018 = vmatprep.subr.mxu0 0.0
  %1019 = vmatpush1.msra.mxu0 0.0
  %1020 = vmatprep.subr.mxu0 0.0
  %1021 = vmatpush1.msra.mxu0 0.0
  %1022 = vmatprep.subr.mxu0 0.0
  %1023 = vmatpush1.msra.mxu0 0.0
  %1024 = vmatprep.subr.mxu0 0.0
  %1025 = vmatpush1.msra.mxu0 0.0
  %1026 = vmatprep.subr.mxu0 0.0
  %1027 = vmatpush1.msra.mxu0 0.0
  %1028 = vmatprep.mubr.f32.mxu0 0.0
  %1029 = vmatmul.mubr.f32.gmra.mrb[0].mxu0 %v770
  %v1030 = vpop.f32.mrb[0].mxu0
  %v1031 = vadd.f32 %v451, %v1030
  %v1032 = vpop.f32.mrb[0].mxu0
  %1033 = vmatprep.mubr.f32.mxu0 0.0
  %1034 = vmatmul.mubr.f32.gmra.mrb[0].mxu0 %v773
  %v1035 = vpop.f32.mrb[0].mxu0
  %v1036 = vadd.f32 %v456, %v1035
  %v1037 = vpop.f32.mrb[0].mxu0
  %1038 = vmatprep.mubr.f32.mxu0 0.0
  %1039 = vmatmul.mubr.f32.gmra.mrb[0].mxu0 %v776
  %v1040 = vpop.f32.mrb[0].mxu0
  %v1041 = vadd.f32 %v461, %v1040
  %v1042 = vpop.f32.mrb[0].mxu0
  %1043 = vmatprep.mubr.f32.mxu0 0.0
  %1044 = vmatmul.mubr.f32.gmra.mrb[0].mxu0 %v779
  %v1045 = vpop.f32.mrb[0].mxu0
  %v1046 = vadd.f32 %v466, %v1045
  %v1047 = vpop.f32.mrb[0].mxu0
  %1048 = vmatprep.mubr.f32.mxu0 0.0
  %1049 = vmatmul.mubr.f32.gmra.mrb[0].mxu0 %v782
  %v1050 = vpop.f32.mrb[0].mxu0
  %v1051 = vadd.f32 %v471, %v1050
  %v1052 = vpop.f32.mrb[0].mxu0
  %1053 = vmatprep.mubr.f32.mxu0 0.0
  %1054 = vmatmul.mubr.f32.gmra.mrb[0].mxu0 %v785
  %v1055 = vpop.f32.mrb[0].mxu0
  %v1056 = vadd.f32 %v476, %v1055
  %v1057 = vpop.f32.mrb[0].mxu0
  %1058 = vmatprep.mubr.f32.mxu0 0.0
  %1059 = vmatmul.mubr.f32.gmra.mrb[0].mxu0 %v788
  %v1060 = vpop.f32.mrb[0].mxu0
  %v1061 = vadd.f32 %v481, %v1060
  %v1062 = vpop.f32.mrb[0].mxu0
  %1063 = vmatprep.mubr.f32.mxu0 0.0
  %1064 = vmatmul.mubr.f32.gmra.mrb[0].mxu0 %v791
  %v1065 = vpop.f32.mrb[0].mxu0
  %v1066 = vadd.f32 %v486, %v1065
  %v1067 = vpop.f32.mrb[0].mxu0
  %1068 = vmatprep.mubr.f32.mxu0 0.0
  %1069 = vmatmul.mubr.f32.gmra.mrb[0].mxu0 %v794
  %v1070 = vpop.f32.mrb[0].mxu0
  %v1071 = vadd.f32 %v491, %v1070
  %v1072 = vpop.f32.mrb[0].mxu0
  %1073 = vmatprep.mubr.f32.mxu0 0.0
  %1074 = vmatmul.mubr.f32.gmra.mrb[0].mxu0 %v797
  %v1075 = vpop.f32.mrb[0].mxu0
  %v1076 = vadd.f32 %v496, %v1075
  %v1077 = vpop.f32.mrb[0].mxu0
  %1078 = vmatprep.mubr.f32.mxu0 0.0
  %1079 = vmatmul.mubr.f32.gmra.mrb[0].mxu0 %v800
  %v1080 = vpop.f32.mrb[0].mxu0
  %v1081 = vadd.f32 %v501, %v1080
  %v1082 = vpop.f32.mrb[0].mxu0
  %1083 = vmatprep.mubr.f32.mxu0 0.0
  %1084 = vmatmul.mubr.f32.gmra.mrb[0].mxu0 %v803
  %v1085 = vpop.f32.mrb[0].mxu0
  %v1086 = vadd.f32 %v506, %v1085
  %v1087 = vpop.f32.mrb[0].mxu0
  %1088 = vmatprep.mubr.f32.mxu0 0.0
  %1089 = vmatmul.mubr.f32.gmra.mrb[0].mxu0 %v806
  %v1090 = vpop.f32.mrb[0].mxu0
  %v1091 = vadd.f32 %v511, %v1090
  %v1092 = vpop.f32.mrb[0].mxu0
  %1093 = vmatprep.mubr.f32.mxu0 0.0
  %1094 = vmatmul.mubr.f32.gmra.mrb[0].mxu0 %v809
  %v1095 = vpop.f32.mrb[0].mxu0
  %v1096 = vadd.f32 %v516, %v1095
  %v1097 = vpop.f32.mrb[0].mxu0
  %1098 = vmatprep.mubr.f32.mxu0 0.0
  %1099 = vmatmul.mubr.f32.gmra.mrb[0].mxu0 %v812
  %v1100 = vpop.f32.mrb[0].mxu0
  %v1101 = vadd.f32 %v521, %v1100
  %v1102 = vpop.f32.mrb[0].mxu0
  %1103 = vmatprep.mubr.f32.mxu0 0.0
  %1104 = vmatmul.mubr.f32.gmra.mrb[0].mxu0 %v815
  %v1105 = vpop.f32.mrb[0].mxu0
  %v1106 = vadd.f32 %v526, %v1105
  %v1107 = vpop.f32.mrb[0].mxu0
  %1108 = vmatprep.mubr.f32.mxu0 0.0
  %1109 = vmatmul.mubr.f32.gmra.mrb[0].mxu0 %v818
  %v1110 = vpop.f32.mrb[0].mxu0
  %v1111 = vadd.f32 %v531, %v1110
  %v1112 = vpop.f32.mrb[0].mxu0
  %1113 = vmatprep.mubr.f32.mxu0 0.0
  %1114 = vmatmul.mubr.f32.gmra.mrb[0].mxu0 %v821
  %v1115 = vpop.f32.mrb[0].mxu0
  %v1116 = vadd.f32 %v536, %v1115
  %v1117 = vpop.f32.mrb[0].mxu0
  %1118 = vmatprep.mubr.f32.mxu0 0.0
  %1119 = vmatmul.mubr.f32.gmra.mrb[0].mxu0 %v824
  %v1120 = vpop.f32.mrb[0].mxu0
  %v1121 = vadd.f32 %v541, %v1120
  %v1122 = vpop.f32.mrb[0].mxu0
  %1123 = vmatprep.mubr.f32.mxu0 0.0
  %1124 = vmatmul.mubr.f32.gmra.mrb[0].mxu0 %v827
  %v1125 = vpop.f32.mrb[0].mxu0
  %v1126 = vadd.f32 %v546, %v1125
  %v1127 = vpop.f32.mrb[0].mxu0
  %1128 = vmatprep.mubr.f32.mxu0 0.0
  %1129 = vmatmul.mubr.f32.gmra.mrb[0].mxu0 %v830
  %v1130 = vpop.f32.mrb[0].mxu0
  %v1131 = vadd.f32 %v551, %v1130
  %v1132 = vpop.f32.mrb[0].mxu0
  %1133 = vmatprep.mubr.f32.mxu0 0.0
  %1134 = vmatmul.mubr.f32.gmra.mrb[0].mxu0 %v833
  %v1135 = vpop.f32.mrb[0].mxu0
  %v1136 = vadd.f32 %v556, %v1135
  %v1137 = vpop.f32.mrb[0].mxu0
  %1138 = vmatprep.mubr.f32.mxu0 0.0
  %1139 = vmatmul.mubr.f32.gmra.mrb[0].mxu0 %v836
  %v1140 = vpop.f32.mrb[0].mxu0
  %v1141 = vadd.f32 %v561, %v1140
  %v1142 = vpop.f32.mrb[0].mxu0
  %1143 = vmatprep.mubr.f32.mxu0 0.0
  %1144 = vmatmul.mubr.f32.gmra.mrb[0].mxu0 %v839
  %v1145 = vpop.f32.mrb[0].mxu0
  %v1146 = vadd.f32 %v566, %v1145
  %v1147 = vpop.f32.mrb[0].mxu0
  %1148 = vmatprep.mubr.f32.mxu0 0.0
  %1149 = vmatmul.mubr.f32.gmra.mrb[0].mxu0 %v842
  %v1150 = vpop.f32.mrb[0].mxu0
  %v1151 = vadd.f32 %v571, %v1150
  %v1152 = vpop.f32.mrb[0].mxu0
  %1153 = vmatprep.mubr.f32.mxu0 0.0
  %1154 = vmatmul.mubr.f32.gmra.mrb[0].mxu0 %v845
  %v1155 = vpop.f32.mrb[0].mxu0
  %v1156 = vadd.f32 %v576, %v1155
  %v1157 = vpop.f32.mrb[0].mxu0
  %1158 = vmatprep.mubr.f32.mxu0 0.0
  %1159 = vmatmul.mubr.f32.gmra.mrb[0].mxu0 %v848
  %v1160 = vpop.f32.mrb[0].mxu0
  %v1161 = vadd.f32 %v581, %v1160
  %v1162 = vpop.f32.mrb[0].mxu0
  %1163 = vmatprep.mubr.f32.mxu0 0.0
  %1164 = vmatmul.mubr.f32.gmra.mrb[0].mxu0 %v851
  %v1165 = vpop.f32.mrb[0].mxu0
  %v1166 = vadd.f32 %v586, %v1165
  %v1167 = vpop.f32.mrb[0].mxu0
  %1168 = vmatprep.mubr.f32.mxu0 0.0
  %1169 = vmatmul.mubr.f32.gmra.mrb[0].mxu0 %v854
  %v1170 = vpop.f32.mrb[0].mxu0
  %v1171 = vadd.f32 %v591, %v1170
  %v1172 = vpop.f32.mrb[0].mxu0
  %1173 = vmatprep.mubr.f32.mxu0 0.0
  %1174 = vmatmul.mubr.f32.gmra.mrb[0].mxu0 %v857
  %v1175 = vpop.f32.mrb[0].mxu0
  %v1176 = vadd.f32 %v596, %v1175
  %v1177 = vpop.f32.mrb[0].mxu0
  %1178 = vmatprep.mubr.f32.mxu0 0.0
  %1179 = vmatmul.mubr.f32.gmra.mrb[0].mxu0 %v860
  %v1180 = vpop.f32.mrb[0].mxu0
  %v1181 = vadd.f32 %v601, %v1180
  %v1182 = vpop.f32.mrb[0].mxu0
  %1183 = vmatprep.mubr.f32.mxu0 0.0
  %1184 = vmatmul.mubr.f32.gmra.mrb[0].mxu0 %v863
  %v1185 = vpop.f32.mrb[0].mxu0
  %v1186 = vadd.f32 %v606, %v1185
  %v1187 = vpop.f32.mrb[0].mxu0
  %1188 = vmatprep.mubr.f32.mxu0 0.0
  %1189 = vmatmul.mubr.f32.gmra.mrb[0].mxu0 %v866
  %v1190 = vpop.f32.mrb[0].mxu0
  %v1191 = vadd.f32 %v611, %v1190
  %v1192 = vpop.f32.mrb[0].mxu0
  %1193 = vmatprep.mubr.f32.mxu0 0.0
  %1194 = vmatmul.mubr.f32.gmra.mrb[0].mxu0 %v869
  %v1195 = vpop.f32.mrb[0].mxu0
  %v1196 = vadd.f32 %v616, %v1195
  %v1197 = vpop.f32.mrb[0].mxu0
  %1198 = vmatprep.mubr.f32.mxu0 0.0
  %1199 = vmatmul.mubr.f32.gmra.mrb[0].mxu0 %v872
  %v1200 = vpop.f32.mrb[0].mxu0
  %v1201 = vadd.f32 %v621, %v1200
  %v1202 = vpop.f32.mrb[0].mxu0
  %1203 = vmatprep.mubr.f32.mxu0 0.0
  %1204 = vmatmul.mubr.f32.gmra.mrb[0].mxu0 %v875
  %v1205 = vpop.f32.mrb[0].mxu0
  %v1206 = vadd.f32 %v626, %v1205
  %v1207 = vpop.f32.mrb[0].mxu0
  %1208 = vmatprep.mubr.f32.mxu0 0.0
  %1209 = vmatmul.mubr.f32.gmra.mrb[0].mxu0 %v878
  %v1210 = vpop.f32.mrb[0].mxu0
  %v1211 = vadd.f32 %v631, %v1210
  %v1212 = vpop.f32.mrb[0].mxu0
  %1213 = vmatprep.mubr.f32.mxu0 0.0
  %1214 = vmatmul.mubr.f32.gmra.mrb[0].mxu0 %v881
  %v1215 = vpop.f32.mrb[0].mxu0
  %v1216 = vadd.f32 %v636, %v1215
  %v1217 = vpop.f32.mrb[0].mxu0
  %1218 = vmatprep.mubr.f32.mxu0 0.0
  %1219 = vmatmul.mubr.f32.gmra.mrb[0].mxu0 %v884
  %v1220 = vpop.f32.mrb[0].mxu0
  %v1221 = vadd.f32 %v641, %v1220
  %v1222 = vpop.f32.mrb[0].mxu0
  %1223 = vmatprep.mubr.f32.mxu0 0.0
  %1224 = vmatmul.mubr.f32.gmra.mrb[0].mxu0 %v887
  %v1225 = vpop.f32.mrb[0].mxu0
  %v1226 = vadd.f32 %v646, %v1225
  %v1227 = vpop.f32.mrb[0].mxu0
  %1228 = vmatprep.mubr.f32.mxu0 0.0
  %1229 = vmatmul.mubr.f32.gmra.mrb[0].mxu0 %v890
  %v1230 = vpop.f32.mrb[0].mxu0
  %v1231 = vadd.f32 %v651, %v1230
  %v1232 = vpop.f32.mrb[0].mxu0
  %1233 = vmatprep.mubr.f32.mxu0 0.0
  %1234 = vmatmul.mubr.f32.gmra.mrb[0].mxu0 %v893
  %v1235 = vpop.f32.mrb[0].mxu0
  %v1236 = vadd.f32 %v656, %v1235
  %v1237 = vpop.f32.mrb[0].mxu0
  %1238 = vmatprep.mubr.f32.mxu0 0.0
  %1239 = vmatmul.mubr.f32.gmra.mrb[0].mxu0 %v896
  %v1240 = vpop.f32.mrb[0].mxu0
  %v1241 = vadd.f32 %v661, %v1240
  %v1242 = vpop.f32.mrb[0].mxu0
  %1243 = vmatprep.mubr.f32.mxu0 0.0
  %1244 = vmatmul.mubr.f32.gmra.mrb[0].mxu0 %v899
  %v1245 = vpop.f32.mrb[0].mxu0
  %v1246 = vadd.f32 %v666, %v1245
  %v1247 = vpop.f32.mrb[0].mxu0
  %1248 = vmatprep.mubr.f32.mxu0 0.0
  %1249 = vmatmul.mubr.f32.gmra.mrb[0].mxu0 %v902
  %v1250 = vpop.f32.mrb[0].mxu0
  %v1251 = vadd.f32 %v671, %v1250
  %v1252 = vpop.f32.mrb[0].mxu0
  %1253 = vmatprep.mubr.f32.mxu0 0.0
  %1254 = vmatmul.mubr.f32.gmra.mrb[0].mxu0 %v905
  %v1255 = vpop.f32.mrb[0].mxu0
  %v1256 = vadd.f32 %v676, %v1255
  %v1257 = vpop.f32.mrb[0].mxu0
  %1258 = vmatprep.mubr.f32.mxu0 0.0
  %1259 = vmatmul.mubr.f32.gmra.mrb[0].mxu0 %v908
  %v1260 = vpop.f32.mrb[0].mxu0
  %v1261 = vadd.f32 %v681, %v1260
  %v1262 = vpop.f32.mrb[0].mxu0
  %1263 = vmatprep.mubr.f32.mxu0 0.0
  %1264 = vmatmul.mubr.f32.gmra.mrb[0].mxu0 %v911
  %v1265 = vpop.f32.mrb[0].mxu0
  %v1266 = vadd.f32 %v686, %v1265
  %v1267 = vpop.f32.mrb[0].mxu0
  %1268 = vmatprep.mubr.f32.mxu0 0.0
  %1269 = vmatmul.mubr.f32.gmra.mrb[0].mxu0 %v914
  %v1270 = vpop.f32.mrb[0].mxu0
  %v1271 = vadd.f32 %v691, %v1270
  %v1272 = vpop.f32.mrb[0].mxu0
  %1273 = vmatprep.mubr.f32.mxu0 0.0
  %1274 = vmatmul.mubr.f32.gmra.mrb[0].mxu0 %v917
  %v1275 = vpop.f32.mrb[0].mxu0
  %v1276 = vadd.f32 %v696, %v1275
  %v1277 = vpop.f32.mrb[0].mxu0
  %1278 = vmatprep.mubr.f32.mxu0 0.0
  %1279 = vmatmul.mubr.f32.gmra.mrb[0].mxu0 %v920
  %v1280 = vpop.f32.mrb[0].mxu0
  %v1281 = vadd.f32 %v701, %v1280
  %v1282 = vpop.f32.mrb[0].mxu0
  %1283 = vmatprep.mubr.f32.mxu0 0.0
  %1284 = vmatmul.mubr.f32.gmra.mrb[0].mxu0 %v923
  %v1285 = vpop.f32.mrb[0].mxu0
  %v1286 = vadd.f32 %v706, %v1285
  %v1287 = vpop.f32.mrb[0].mxu0
  %1288 = vmatprep.mubr.f32.mxu0 0.0
  %1289 = vmatmul.mubr.f32.gmra.mrb[0].mxu0 %v926
  %v1290 = vpop.f32.mrb[0].mxu0
  %v1291 = vadd.f32 %v711, %v1290
  %v1292 = vpop.f32.mrb[0].mxu0
  %1293 = vmatprep.mubr.f32.mxu0 0.0
  %1294 = vmatmul.mubr.f32.gmra.mrb[0].mxu0 %v929
  %v1295 = vpop.f32.mrb[0].mxu0
  %v1296 = vadd.f32 %v716, %v1295
  %v1297 = vpop.f32.mrb[0].mxu0
  %1298 = vmatprep.mubr.f32.mxu0 0.0
  %1299 = vmatmul.mubr.f32.gmra.mrb[0].mxu0 %v932
  %v1300 = vpop.f32.mrb[0].mxu0
  %v1301 = vadd.f32 %v721, %v1300
  %v1302 = vpop.f32.mrb[0].mxu0
  %1303 = vmatprep.mubr.f32.mxu0 0.0
  %1304 = vmatmul.mubr.f32.gmra.mrb[0].mxu0 %v935
  %v1305 = vpop.f32.mrb[0].mxu0
  %v1306 = vadd.f32 %v726, %v1305
  %v1307 = vpop.f32.mrb[0].mxu0
  %1308 = vmatprep.mubr.f32.mxu0 0.0
  %1309 = vmatmul.mubr.f32.gmra.mrb[0].mxu0 %v938
  %v1310 = vpop.f32.mrb[0].mxu0
  %v1311 = vadd.f32 %v731, %v1310
  %v1312 = vpop.f32.mrb[0].mxu0
  %1313 = vmatprep.mubr.f32.mxu0 0.0
  %1314 = vmatmul.mubr.f32.gmra.mrb[0].mxu0 %v941
  %v1315 = vpop.f32.mrb[0].mxu0
  %v1316 = vadd.f32 %v736, %v1315
  %v1317 = vpop.f32.mrb[0].mxu0
  %1318 = vmatprep.mubr.f32.mxu0 0.0
  %1319 = vmatmul.mubr.f32.gmra.mrb[0].mxu0 %v944
  %v1320 = vpop.f32.mrb[0].mxu0
  %v1321 = vadd.f32 %v741, %v1320
  %v1322 = vpop.f32.mrb[0].mxu0
  %1323 = vmatprep.mubr.f32.mxu0 0.0
  %1324 = vmatmul.mubr.f32.gmra.mrb[0].mxu0 %v947
  %v1325 = vpop.f32.mrb[0].mxu0
  %v1326 = vadd.f32 %v746, %v1325
  %v1327 = vpop.f32.mrb[0].mxu0
  %1328 = vmatprep.mubr.f32.mxu0 0.0
  %1329 = vmatmul.mubr.f32.gmra.mrb[0].mxu0 %v950
  %v1330 = vpop.f32.mrb[0].mxu0
  %v1331 = vadd.f32 %v751, %v1330
  %v1332 = vpop.f32.mrb[0].mxu0
  %1333 = vmatprep.mubr.f32.mxu0 0.0
  %1334 = vmatmul.mubr.f32.gmra.mrb[0].mxu0 %v953
  %v1335 = vpop.f32.mrb[0].mxu0
  %v1336 = vadd.f32 %v756, %v1335
  %v1337 = vpop.f32.mrb[0].mxu0
  %1338 = vmatprep.mubr.f32.mxu0 0.0
  %1339 = vmatmul.mubr.f32.gmra.mrb[0].mxu0 %v956
  %v1340 = vpop.f32.mrb[0].mxu0
  %v1341 = vadd.f32 %v761, %v1340
  %v1342 = vpop.f32.mrb[0].mxu0
  %1343 = vmatprep.mubr.f32.mxu0 0.0
  %1344 = vmatmul.mubr.f32.gmra.mrb[0].mxu0 %v959
  %v1345 = vpop.f32.mrb[0].mxu0
  %v1346 = vadd.f32 %v766, %v1345
  %v1347 = vpop.f32.mrb[0].mxu0
  %1348 = vdwg.mxu0
  %v1349 = vld [vmem:[%s0 + $0x2] sm:$0xff]
  %v1350 = vld [vmem:[%s0 + $0xa] sm:$0xff]
  %v1351 = vld [vmem:[%s0 + $0x1a] sm:$0xff]
  %v1352 = vld [vmem:[%s0 + $0x22] sm:$0xff]
  %v1353 = vld [vmem:[%s0 + $0x32] sm:$0xff]
  %v1354 = vld [vmem:[%s0 + $0x3a] sm:$0xff]
  %v1355 = vld [vmem:[%s0 + $0x4a] sm:$0xff]
  %v1356 = vld [vmem:[%s0 + $0x52] sm:$0xff]
  %v1357 = vld [vmem:[%s0 + $0x62] sm:$0xff]
  %v1358 = vld [vmem:[%s0 + $0x6a] sm:$0xff]
  %v1359 = vld [vmem:[%s0 + $0x7a] sm:$0xff]
  %v1360 = vld [vmem:[%s0 + $0x82] sm:$0xff]
  %v1361 = vld [vmem:[%s0 + $0x92] sm:$0xff]
  %v1362 = vld [vmem:[%s0 + $0x9a] sm:$0xff]
  %v1363 = vld [vmem:[%s0 + $0xaa] sm:$0xff]
  %v1364 = vld [vmem:[%s0 + $0xb2] sm:$0xff]
  %v1365 = vld [vmem:[%s0 + $0xc2] sm:$0xff]
  %v1366 = vld [vmem:[%s0 + $0xca] sm:$0xff]
  %v1367 = vld [vmem:[%s0 + $0xda] sm:$0xff]
  %v1368 = vld [vmem:[%s0 + $0xe2] sm:$0xff]
  %v1369 = vld [vmem:[%s0 + $0xf2] sm:$0xff]
  %v1370 = vld [vmem:[%s0 + $0xfa] sm:$0xff]
  %v1371 = vld [vmem:[%s0 + $0x10a] sm:$0xff]
  %v1372 = vld [vmem:[%s0 + $0x112] sm:$0xff]
  %v1373 = vld [vmem:[%s0 + $0x122] sm:$0xff]
  %v1374 = vld [vmem:[%s0 + $0x12a] sm:$0xff]
  %v1375 = vld [vmem:[%s0 + $0x13a] sm:$0xff]
  %v1376 = vld [vmem:[%s0 + $0x142] sm:$0xff]
  %v1377 = vld [vmem:[%s0 + $0x152] sm:$0xff]
  %v1378 = vld [vmem:[%s0 + $0x15a] sm:$0xff]
  %v1379 = vld [vmem:[%s0 + $0x16a] sm:$0xff]
  %v1380 = vld [vmem:[%s0 + $0x172] sm:$0xff]
  %v1381 = vld [vmem:[%s0 + $0x1b2] sm:$0xff]
  %v1382 = vld [vmem:[%s0 + $0x1ba] sm:$0xff]
  %v1383 = vld [vmem:[%s0 + $0x1ca] sm:$0xff]
  %v1384 = vld [vmem:[%s0 + $0x1d2] sm:$0xff]
  %v1385 = vld [vmem:[%s0 + $0x1e2] sm:$0xff]
  %v1386 = vld [vmem:[%s0 + $0x1ea] sm:$0xff]
  %v1387 = vld [vmem:[%s0 + $0x1fa] sm:$0xff]
  %v1388 = vld [vmem:[%s0 + $0x202] sm:$0xff]
  %v1389 = vld [vmem:[%s0 + $0x212] sm:$0xff]
  %v1390 = vld [vmem:[%s0 + $0x21a] sm:$0xff]
  %v1391 = vld [vmem:[%s0 + $0x22a] sm:$0xff]
  %v1392 = vld [vmem:[%s0 + $0x232] sm:$0xff]
  %v1393 = vld [vmem:[%s0 + $0x242] sm:$0xff]
  %v1394 = vld [vmem:[%s0 + $0x24a] sm:$0xff]
  %v1395 = vld [vmem:[%s0 + $0x25a] sm:$0xff]
  %v1396 = vld [vmem:[%s0 + $0x262] sm:$0xff]
  %v1397 = vld [vmem:[%s0 + $0x272] sm:$0xff]
  %v1398 = vld [vmem:[%s0 + $0x27a] sm:$0xff]
  %v1399 = vld [vmem:[%s0 + $0x28a] sm:$0xff]
  %v1400 = vld [vmem:[%s0 + $0x292] sm:$0xff]
  %v1401 = vld [vmem:[%s0 + $0x2a2] sm:$0xff]
  %v1402 = vld [vmem:[%s0 + $0x2aa] sm:$0xff]
  %v1403 = vld [vmem:[%s0 + $0x2ba] sm:$0xff]
  %v1404 = vld [vmem:[%s0 + $0x2c2] sm:$0xff]
  %v1405 = vld [vmem:[%s0 + $0x2d2] sm:$0xff]
  %v1406 = vld [vmem:[%s0 + $0x2da] sm:$0xff]
  %v1407 = vld [vmem:[%s0 + $0x2ea] sm:$0xff]
  %v1408 = vld [vmem:[%s0 + $0x2f2] sm:$0xff]
  %v1409 = vld [vmem:[%s0 + $0x302] sm:$0xff]
  %v1410 = vld [vmem:[%s0 + $0x30a] sm:$0xff]
  %v1411 = vld [vmem:[%s0 + $0x31a] sm:$0xff]
  %v1412 = vld [vmem:[%s0 + $0x322] sm:$0xff]
  %s1413 = scalar_lea.vmem %s2, 8
  %v1414 = vld [vmem:[%s1413] sm:$0x7]
  %v1416 = vsel %vm187, %v1349, 0
  %v1419 = vsel %vm187, %v1350, 0
  %v1422 = vsel %vm187, %v1351, 0
  %v1425 = vsel %vm187, %v1352, 0
  %v1428 = vsel %vm187, %v1353, 0
  %v1431 = vsel %vm187, %v1354, 0
  %v1434 = vsel %vm187, %v1355, 0
  %v1437 = vsel %vm187, %v1356, 0
  %v1440 = vsel %vm187, %v1357, 0
  %v1443 = vsel %vm187, %v1358, 0
  %v1446 = vsel %vm187, %v1359, 0
  %v1449 = vsel %vm187, %v1360, 0
  %v1452 = vsel %vm187, %v1361, 0
  %v1455 = vsel %vm187, %v1362, 0
  %v1458 = vsel %vm187, %v1363, 0
  %v1461 = vsel %vm187, %v1364, 0
  %v1464 = vsel %vm187, %v1365, 0
  %v1467 = vsel %vm187, %v1366, 0
  %v1470 = vsel %vm187, %v1367, 0
  %v1473 = vsel %vm187, %v1368, 0
  %v1476 = vsel %vm187, %v1369, 0
  %v1479 = vsel %vm187, %v1370, 0
  %v1482 = vsel %vm187, %v1371, 0
  %v1485 = vsel %vm187, %v1372, 0
  %v1488 = vsel %vm187, %v1373, 0
  %v1491 = vsel %vm187, %v1374, 0
  %v1494 = vsel %vm187, %v1375, 0
  %v1497 = vsel %vm187, %v1376, 0
  %v1500 = vsel %vm187, %v1377, 0
  %v1503 = vsel %vm187, %v1378, 0
  %v1506 = vsel %vm187, %v1379, 0
  %v1509 = vsel %vm187, %v1380, 0
  %v1512 = vsel %vm187, %v1381, 0
  %v1515 = vsel %vm187, %v1382, 0
  %v1518 = vsel %vm187, %v1383, 0
  %v1521 = vsel %vm187, %v1384, 0
  %v1524 = vsel %vm187, %v1385, 0
  %v1527 = vsel %vm187, %v1386, 0
  %v1530 = vsel %vm187, %v1387, 0
  %v1533 = vsel %vm187, %v1388, 0
  %v1536 = vsel %vm187, %v1389, 0
  %v1539 = vsel %vm187, %v1390, 0
  %v1542 = vsel %vm187, %v1391, 0
  %v1545 = vsel %vm187, %v1392, 0
  %v1548 = vsel %vm187, %v1393, 0
  %v1551 = vsel %vm187, %v1394, 0
  %v1554 = vsel %vm187, %v1395, 0
  %v1557 = vsel %vm187, %v1396, 0
  %v1560 = vsel %vm187, %v1397, 0
  %v1563 = vsel %vm187, %v1398, 0
  %v1566 = vsel %vm187, %v1399, 0
  %v1569 = vsel %vm187, %v1400, 0
  %v1572 = vsel %vm187, %v1401, 0
  %v1575 = vsel %vm187, %v1402, 0
  %v1578 = vsel %vm187, %v1403, 0
  %v1581 = vsel %vm187, %v1404, 0
  %v1584 = vsel %vm187, %v1405, 0
  %v1587 = vsel %vm187, %v1406, 0
  %v1590 = vsel %vm187, %v1407, 0
  %v1593 = vsel %vm187, %v1408, 0
  %v1596 = vsel %vm187, %v1409, 0
  %v1599 = vsel %vm187, %v1410, 0
  %v1602 = vsel %vm187, %v1411, 0
  %v1605 = vsel %vm187, %v1412, 0
  %v1608 = vsel %vm380, %v1414, 0
  %1610 = vmatprep.subr.mxu0 0.0
  %1611 = vmatpush1.msra.mxu0 %v1608
  %1612 = vmatprep.subr.mxu0 0.0
  %1613 = vmatpush1.msra.mxu0 0.0
  %1614 = vmatprep.subr.mxu0 0.0
  %1615 = vmatpush1.msra.mxu0 0.0
  %1616 = vmatprep.subr.mxu0 0.0
  %1617 = vmatpush1.msra.mxu0 0.0
  %1618 = vmatprep.subr.mxu0 0.0
  %1619 = vmatpush1.msra.mxu0 0.0
  %1620 = vmatprep.subr.mxu0 0.0
  %1621 = vmatpush1.msra.mxu0 0.0
  %1622 = vmatprep.subr.mxu0 0.0
  %1623 = vmatpush1.msra.mxu0 0.0
  %1624 = vmatprep.subr.mxu0 0.0
  %1625 = vmatpush1.msra.mxu0 0.0
  %1626 = vmatprep.subr.mxu0 0.0
  %1627 = vmatpush1.msra.mxu0 0.0
  %1628 = vmatprep.subr.mxu0 0.0
  %1629 = vmatpush1.msra.mxu0 0.0
  %1630 = vmatprep.subr.mxu0 0.0
  %1631 = vmatpush1.msra.mxu0 0.0
  %1632 = vmatprep.subr.mxu0 0.0
  %1633 = vmatpush1.msra.mxu0 0.0
  %1634 = vmatprep.subr.mxu0 0.0
  %1635 = vmatpush1.msra.mxu0 0.0
  %1636 = vmatprep.subr.mxu0 0.0
  %1637 = vmatpush1.msra.mxu0 0.0
  %1638 = vmatprep.subr.mxu0 0.0
  %1639 = vmatpush1.msra.mxu0 0.0
  %1640 = vmatprep.subr.mxu0 0.0
  %1641 = vmatpush1.msra.mxu0 0.0
  %1642 = vmatprep.subr.mxu0 0.0
  %1643 = vmatpush1.msra.mxu0 0.0
  %1644 = vmatprep.subr.mxu0 0.0
  %1645 = vmatpush1.msra.mxu0 0.0
  %1646 = vmatprep.subr.mxu0 0.0
  %1647 = vmatpush1.msra.mxu0 0.0
  %1648 = vmatprep.subr.mxu0 0.0
  %1649 = vmatpush1.msra.mxu0 0.0
  %1650 = vmatprep.subr.mxu0 0.0
  %1651 = vmatpush1.msra.mxu0 0.0
  %1652 = vmatprep.subr.mxu0 0.0
  %1653 = vmatpush1.msra.mxu0 0.0
  %1654 = vmatprep.subr.mxu0 0.0
  %1655 = vmatpush1.msra.mxu0 0.0
  %1656 = vmatprep.subr.mxu0 0.0
  %1657 = vmatpush1.msra.mxu0 0.0
  %1658 = vmatprep.subr.mxu0 0.0
  %1659 = vmatpush1.msra.mxu0 0.0
  %1660 = vmatprep.subr.mxu0 0.0
  %1661 = vmatpush1.msra.mxu0 0.0
  %1662 = vmatprep.subr.mxu0 0.0
  %1663 = vmatpush1.msra.mxu0 0.0
  %1664 = vmatprep.subr.mxu0 0.0
  %1665 = vmatpush1.msra.mxu0 0.0
  %1666 = vmatprep.subr.mxu0 0.0
  %1667 = vmatpush1.msra.mxu0 0.0
  %1668 = vmatprep.subr.mxu0 0.0
  %1669 = vmatpush1.msra.mxu0 0.0
  %1670 = vmatprep.subr.mxu0 0.0
  %1671 = vmatpush1.msra.mxu0 0.0
  %1672 = vmatprep.subr.mxu0 0.0
  %1673 = vmatpush1.msra.mxu0 0.0
  %1674 = vmatprep.mubr.f32.mxu0 0.0
  %1675 = vmatmul.mubr.f32.gmra.mrb[0].mxu0 %v1416
  %v1676 = vpop.f32.mrb[0].mxu0
  %v1677 = vadd.f32 0.0, %v1676
  %v1678 = vpop.f32.mrb[0].mxu0
  %1679 = vmatprep.mubr.f32.mxu0 0.0
  %1680 = vmatmul.mubr.f32.gmra.mrb[0].mxu0 %v1419
  %v1681 = vpop.f32.mrb[0].mxu0
  %v1682 = vadd.f32 0.0, %v1681
  %v1683 = vpop.f32.mrb[0].mxu0
  %1684 = vmatprep.mubr.f32.mxu0 0.0
  %1685 = vmatmul.mubr.f32.gmra.mrb[0].mxu0 %v1422
  %v1686 = vpop.f32.mrb[0].mxu0
  %v1687 = vadd.f32 0.0, %v1686
  %v1688 = vpop.f32.mrb[0].mxu0
  %1689 = vmatprep.mubr.f32.mxu0 0.0
  %1690 = vmatmul.mubr.f32.gmra.mrb[0].mxu0 %v1425
  %v1691 = vpop.f32.mrb[0].mxu0
  %v1692 = vadd.f32 0.0, %v1691
  %v1693 = vpop.f32.mrb[0].mxu0
  %1694 = vmatprep.mubr.f32.mxu0 0.0
  %1695 = vmatmul.mubr.f32.gmra.mrb[0].mxu0 %v1428
  %v1696 = vpop.f32.mrb[0].mxu0
  %v1697 = vadd.f32 0.0, %v1696
  %v1698 = vpop.f32.mrb[0].mxu0
  %1699 = vmatprep.mubr.f32.mxu0 0.0
  %1700 = vmatmul.mubr.f32.gmra.mrb[0].mxu0 %v1431
  %v1701 = vpop.f32.mrb[0].mxu0
  %v1702 = vadd.f32 0.0, %v1701
  %v1703 = vpop.f32.mrb[0].mxu0
  %1704 = vmatprep.mubr.f32.mxu0 0.0
  %1705 = vmatmul.mubr.f32.gmra.mrb[0].mxu0 %v1434
  %v1706 = vpop.f32.mrb[0].mxu0
  %v1707 = vadd.f32 0.0, %v1706
  %v1708 = vpop.f32.mrb[0].mxu0
  %1709 = vmatprep.mubr.f32.mxu0 0.0
  %1710 = vmatmul.mubr.f32.gmra.mrb[0].mxu0 %v1437
  %v1711 = vpop.f32.mrb[0].mxu0
  %v1712 = vadd.f32 0.0, %v1711
  %v1713 = vpop.f32.mrb[0].mxu0
  %1714 = vmatprep.mubr.f32.mxu0 0.0
  %1715 = vmatmul.mubr.f32.gmra.mrb[0].mxu0 %v1440
  %v1716 = vpop.f32.mrb[0].mxu0
  %v1717 = vadd.f32 0.0, %v1716
  %v1718 = vpop.f32.mrb[0].mxu0
  %1719 = vmatprep.mubr.f32.mxu0 0.0
  %1720 = vmatmul.mubr.f32.gmra.mrb[0].mxu0 %v1443
  %v1721 = vpop.f32.mrb[0].mxu0
  %v1722 = vadd.f32 0.0, %v1721
  %v1723 = vpop.f32.mrb[0].mxu0
  %1724 = vmatprep.mubr.f32.mxu0 0.0
  %1725 = vmatmul.mubr.f32.gmra.mrb[0].mxu0 %v1446
  %v1726 = vpop.f32.mrb[0].mxu0
  %v1727 = vadd.f32 0.0, %v1726
  %v1728 = vpop.f32.mrb[0].mxu0
  %1729 = vmatprep.mubr.f32.mxu0 0.0
  %1730 = vmatmul.mubr.f32.gmra.mrb[0].mxu0 %v1449
  %v1731 = vpop.f32.mrb[0].mxu0
  %v1732 = vadd.f32 0.0, %v1731
  %v1733 = vpop.f32.mrb[0].mxu0
  %1734 = vmatprep.mubr.f32.mxu0 0.0
  %1735 = vmatmul.mubr.f32.gmra.mrb[0].mxu0 %v1452
  %v1736 = vpop.f32.mrb[0].mxu0
  %v1737 = vadd.f32 0.0, %v1736
  %v1738 = vpop.f32.mrb[0].mxu0
  %1739 = vmatprep.mubr.f32.mxu0 0.0
  %1740 = vmatmul.mubr.f32.gmra.mrb[0].mxu0 %v1455
  %v1741 = vpop.f32.mrb[0].mxu0
  %v1742 = vadd.f32 0.0, %v1741
  %v1743 = vpop.f32.mrb[0].mxu0
  %1744 = vmatprep.mubr.f32.mxu0 0.0
  %1745 = vmatmul.mubr.f32.gmra.mrb[0].mxu0 %v1458
  %v1746 = vpop.f32.mrb[0].mxu0
  %v1747 = vadd.f32 0.0, %v1746
  %v1748 = vpop.f32.mrb[0].mxu0
  %1749 = vmatprep.mubr.f32.mxu0 0.0
  %1750 = vmatmul.mubr.f32.gmra.mrb[0].mxu0 %v1461
  %v1751 = vpop.f32.mrb[0].mxu0
  %v1752 = vadd.f32 0.0, %v1751
  %v1753 = vpop.f32.mrb[0].mxu0
  %1754 = vmatprep.mubr.f32.mxu0 0.0
  %1755 = vmatmul.mubr.f32.gmra.mrb[0].mxu0 %v1464
  %v1756 = vpop.f32.mrb[0].mxu0
  %v1757 = vadd.f32 0.0, %v1756
  %v1758 = vpop.f32.mrb[0].mxu0
  %1759 = vmatprep.mubr.f32.mxu0 0.0
  %1760 = vmatmul.mubr.f32.gmra.mrb[0].mxu0 %v1467
  %v1761 = vpop.f32.mrb[0].mxu0
  %v1762 = vadd.f32 0.0, %v1761
  %v1763 = vpop.f32.mrb[0].mxu0
  %1764 = vmatprep.mubr.f32.mxu0 0.0
  %1765 = vmatmul.mubr.f32.gmra.mrb[0].mxu0 %v1470
  %v1766 = vpop.f32.mrb[0].mxu0
  %v1767 = vadd.f32 0.0, %v1766
  %v1768 = vpop.f32.mrb[0].mxu0
  %1769 = vmatprep.mubr.f32.mxu0 0.0
  %1770 = vmatmul.mubr.f32.gmra.mrb[0].mxu0 %v1473
  %v1771 = vpop.f32.mrb[0].mxu0
  %v1772 = vadd.f32 0.0, %v1771
  %v1773 = vpop.f32.mrb[0].mxu0
  %1774 = vmatprep.mubr.f32.mxu0 0.0
  %1775 = vmatmul.mubr.f32.gmra.mrb[0].mxu0 %v1476
  %v1776 = vpop.f32.mrb[0].mxu0
  %v1777 = vadd.f32 0.0, %v1776
  %v1778 = vpop.f32.mrb[0].mxu0
  %1779 = vmatprep.mubr.f32.mxu0 0.0
  %1780 = vmatmul.mubr.f32.gmra.mrb[0].mxu0 %v1479
  %v1781 = vpop.f32.mrb[0].mxu0
  %v1782 = vadd.f32 0.0, %v1781
  %v1783 = vpop.f32.mrb[0].mxu0
  %1784 = vmatprep.mubr.f32.mxu0 0.0
  %1785 = vmatmul.mubr.f32.gmra.mrb[0].mxu0 %v1482
  %v1786 = vpop.f32.mrb[0].mxu0
  %v1787 = vadd.f32 0.0, %v1786
  %v1788 = vpop.f32.mrb[0].mxu0
  %1789 = vmatprep.mubr.f32.mxu0 0.0
  %1790 = vmatmul.mubr.f32.gmra.mrb[0].mxu0 %v1485
  %v1791 = vpop.f32.mrb[0].mxu0
  %v1792 = vadd.f32 0.0, %v1791
  %v1793 = vpop.f32.mrb[0].mxu0
  %1794 = vmatprep.mubr.f32.mxu0 0.0
  %1795 = vmatmul.mubr.f32.gmra.mrb[0].mxu0 %v1488
  %v1796 = vpop.f32.mrb[0].mxu0
  %v1797 = vadd.f32 0.0, %v1796
  %v1798 = vpop.f32.mrb[0].mxu0
  %1799 = vmatprep.mubr.f32.mxu0 0.0
  %1800 = vmatmul.mubr.f32.gmra.mrb[0].mxu0 %v1491
  %v1801 = vpop.f32.mrb[0].mxu0
  %v1802 = vadd.f32 0.0, %v1801
  %v1803 = vpop.f32.mrb[0].mxu0
  %1804 = vmatprep.mubr.f32.mxu0 0.0
  %1805 = vmatmul.mubr.f32.gmra.mrb[0].mxu0 %v1494
  %v1806 = vpop.f32.mrb[0].mxu0
  %v1807 = vadd.f32 0.0, %v1806
  %v1808 = vpop.f32.mrb[0].mxu0
  %1809 = vmatprep.mubr.f32.mxu0 0.0
  %1810 = vmatmul.mubr.f32.gmra.mrb[0].mxu0 %v1497
  %v1811 = vpop.f32.mrb[0].mxu0
  %v1812 = vadd.f32 0.0, %v1811
  %v1813 = vpop.f32.mrb[0].mxu0
  %1814 = vmatprep.mubr.f32.mxu0 0.0
  %1815 = vmatmul.mubr.f32.gmra.mrb[0].mxu0 %v1500
  %v1816 = vpop.f32.mrb[0].mxu0
  %v1817 = vadd.f32 0.0, %v1816
  %v1818 = vpop.f32.mrb[0].mxu0
  %1819 = vmatprep.mubr.f32.mxu0 0.0
  %1820 = vmatmul.mubr.f32.gmra.mrb[0].mxu0 %v1503
  %v1821 = vpop.f32.mrb[0].mxu0
  %v1822 = vadd.f32 0.0, %v1821
  %v1823 = vpop.f32.mrb[0].mxu0
  %1824 = vmatprep.mubr.f32.mxu0 0.0
  %1825 = vmatmul.mubr.f32.gmra.mrb[0].mxu0 %v1506
  %v1826 = vpop.f32.mrb[0].mxu0
  %v1827 = vadd.f32 0.0, %v1826
  %v1828 = vpop.f32.mrb[0].mxu0
  %1829 = vmatprep.mubr.f32.mxu0 0.0
  %1830 = vmatmul.mubr.f32.gmra.mrb[0].mxu0 %v1509
  %v1831 = vpop.f32.mrb[0].mxu0
  %v1832 = vadd.f32 0.0, %v1831
  %v1833 = vpop.f32.mrb[0].mxu0
  %1834 = vmatprep.mubr.f32.mxu0 0.0
  %1835 = vmatmul.mubr.f32.gmra.mrb[0].mxu0 %v1512
  %v1836 = vpop.f32.mrb[0].mxu0
  %v1837 = vadd.f32 0.0, %v1836
  %v1838 = vpop.f32.mrb[0].mxu0
  %1839 = vmatprep.mubr.f32.mxu0 0.0
  %1840 = vmatmul.mubr.f32.gmra.mrb[0].mxu0 %v1515
  %v1841 = vpop.f32.mrb[0].mxu0
  %v1842 = vadd.f32 0.0, %v1841
  %v1843 = vpop.f32.mrb[0].mxu0
  %1844 = vmatprep.mubr.f32.mxu0 0.0
  %1845 = vmatmul.mubr.f32.gmra.mrb[0].mxu0 %v1518
  %v1846 = vpop.f32.mrb[0].mxu0
  %v1847 = vadd.f32 0.0, %v1846
  %v1848 = vpop.f32.mrb[0].mxu0
  %1849 = vmatprep.mubr.f32.mxu0 0.0
  %1850 = vmatmul.mubr.f32.gmra.mrb[0].mxu0 %v1521
  %v1851 = vpop.f32.mrb[0].mxu0
  %v1852 = vadd.f32 0.0, %v1851
  %v1853 = vpop.f32.mrb[0].mxu0
  %1854 = vmatprep.mubr.f32.mxu0 0.0
  %1855 = vmatmul.mubr.f32.gmra.mrb[0].mxu0 %v1524
  %v1856 = vpop.f32.mrb[0].mxu0
  %v1857 = vadd.f32 0.0, %v1856
  %v1858 = vpop.f32.mrb[0].mxu0
  %1859 = vmatprep.mubr.f32.mxu0 0.0
  %1860 = vmatmul.mubr.f32.gmra.mrb[0].mxu0 %v1527
  %v1861 = vpop.f32.mrb[0].mxu0
  %v1862 = vadd.f32 0.0, %v1861
  %v1863 = vpop.f32.mrb[0].mxu0
  %1864 = vmatprep.mubr.f32.mxu0 0.0
  %1865 = vmatmul.mubr.f32.gmra.mrb[0].mxu0 %v1530
  %v1866 = vpop.f32.mrb[0].mxu0
  %v1867 = vadd.f32 0.0, %v1866
  %v1868 = vpop.f32.mrb[0].mxu0
  %1869 = vmatprep.mubr.f32.mxu0 0.0
  %1870 = vmatmul.mubr.f32.gmra.mrb[0].mxu0 %v1533
  %v1871 = vpop.f32.mrb[0].mxu0
  %v1872 = vadd.f32 0.0, %v1871
  %v1873 = vpop.f32.mrb[0].mxu0
  %1874 = vmatprep.mubr.f32.mxu0 0.0
  %1875 = vmatmul.mubr.f32.gmra.mrb[0].mxu0 %v1536
  %v1876 = vpop.f32.mrb[0].mxu0
  %v1877 = vadd.f32 0.0, %v1876
  %v1878 = vpop.f32.mrb[0].mxu0
  %1879 = vmatprep.mubr.f32.mxu0 0.0
  %1880 = vmatmul.mubr.f32.gmra.mrb[0].mxu0 %v1539
  %v1881 = vpop.f32.mrb[0].mxu0
  %v1882 = vadd.f32 0.0, %v1881
  %v1883 = vpop.f32.mrb[0].mxu0
  %1884 = vmatprep.mubr.f32.mxu0 0.0
  %1885 = vmatmul.mubr.f32.gmra.mrb[0].mxu0 %v1542
  %v1886 = vpop.f32.mrb[0].mxu0
  %v1887 = vadd.f32 0.0, %v1886
  %v1888 = vpop.f32.mrb[0].mxu0
  %1889 = vmatprep.mubr.f32.mxu0 0.0
  %1890 = vmatmul.mubr.f32.gmra.mrb[0].mxu0 %v1545
  %v1891 = vpop.f32.mrb[0].mxu0
  %v1892 = vadd.f32 0.0, %v1891
  %v1893 = vpop.f32.mrb[0].mxu0
  %1894 = vmatprep.mubr.f32.mxu0 0.0
  %1895 = vmatmul.mubr.f32.gmra.mrb[0].mxu0 %v1548
  %v1896 = vpop.f32.mrb[0].mxu0
  %v1897 = vadd.f32 0.0, %v1896
  %v1898 = vpop.f32.mrb[0].mxu0
  %1899 = vmatprep.mubr.f32.mxu0 0.0
  %1900 = vmatmul.mubr.f32.gmra.mrb[0].mxu0 %v1551
  %v1901 = vpop.f32.mrb[0].mxu0
  %v1902 = vadd.f32 0.0, %v1901
  %v1903 = vpop.f32.mrb[0].mxu0
  %1904 = vmatprep.mubr.f32.mxu0 0.0
  %1905 = vmatmul.mubr.f32.gmra.mrb[0].mxu0 %v1554
  %v1906 = vpop.f32.mrb[0].mxu0
  %v1907 = vadd.f32 0.0, %v1906
  %v1908 = vpop.f32.mrb[0].mxu0
  %1909 = vmatprep.mubr.f32.mxu0 0.0
  %1910 = vmatmul.mubr.f32.gmra.mrb[0].mxu0 %v1557
  %v1911 = vpop.f32.mrb[0].mxu0
  %v1912 = vadd.f32 0.0, %v1911
  %v1913 = vpop.f32.mrb[0].mxu0
  %1914 = vmatprep.mubr.f32.mxu0 0.0
  %1915 = vmatmul.mubr.f32.gmra.mrb[0].mxu0 %v1560
  %v1916 = vpop.f32.mrb[0].mxu0
  %v1917 = vadd.f32 0.0, %v1916
  %v1918 = vpop.f32.mrb[0].mxu0
  %1919 = vmatprep.mubr.f32.mxu0 0.0
  %1920 = vmatmul.mubr.f32.gmra.mrb[0].mxu0 %v1563
  %v1921 = vpop.f32.mrb[0].mxu0
  %v1922 = vadd.f32 0.0, %v1921
  %v1923 = vpop.f32.mrb[0].mxu0
  %1924 = vmatprep.mubr.f32.mxu0 0.0
  %1925 = vmatmul.mubr.f32.gmra.mrb[0].mxu0 %v1566
  %v1926 = vpop.f32.mrb[0].mxu0
  %v1927 = vadd.f32 0.0, %v1926
  %v1928 = vpop.f32.mrb[0].mxu0
  %1929 = vmatprep.mubr.f32.mxu0 0.0
  %1930 = vmatmul.mubr.f32.gmra.mrb[0].mxu0 %v1569
  %v1931 = vpop.f32.mrb[0].mxu0
  %v1932 = vadd.f32 0.0, %v1931
  %v1933 = vpop.f32.mrb[0].mxu0
  %1934 = vmatprep.mubr.f32.mxu0 0.0
  %1935 = vmatmul.mubr.f32.gmra.mrb[0].mxu0 %v1572
  %v1936 = vpop.f32.mrb[0].mxu0
  %v1937 = vadd.f32 0.0, %v1936
  %v1938 = vpop.f32.mrb[0].mxu0
  %1939 = vmatprep.mubr.f32.mxu0 0.0
  %1940 = vmatmul.mubr.f32.gmra.mrb[0].mxu0 %v1575
  %v1941 = vpop.f32.mrb[0].mxu0
  %v1942 = vadd.f32 0.0, %v1941
  %v1943 = vpop.f32.mrb[0].mxu0
  %1944 = vmatprep.mubr.f32.mxu0 0.0
  %1945 = vmatmul.mubr.f32.gmra.mrb[0].mxu0 %v1578
  %v1946 = vpop.f32.mrb[0].mxu0
  %v1947 = vadd.f32 0.0, %v1946
  %v1948 = vpop.f32.mrb[0].mxu0
  %1949 = vmatprep.mubr.f32.mxu0 0.0
  %1950 = vmatmul.mubr.f32.gmra.mrb[0].mxu0 %v1581
  %v1951 = vpop.f32.mrb[0].mxu0
  %v1952 = vadd.f32 0.0, %v1951
  %v1953 = vpop.f32.mrb[0].mxu0
  %1954 = vmatprep.mubr.f32.mxu0 0.0
  %1955 = vmatmul.mubr.f32.gmra.mrb[0].mxu0 %v1584
  %v1956 = vpop.f32.mrb[0].mxu0
  %v1957 = vadd.f32 0.0, %v1956
  %v1958 = vpop.f32.mrb[0].mxu0
  %1959 = vmatprep.mubr.f32.mxu0 0.0
  %1960 = vmatmul.mubr.f32.gmra.mrb[0].mxu0 %v1587
  %v1961 = vpop.f32.mrb[0].mxu0
  %v1962 = vadd.f32 0.0, %v1961
  %v1963 = vpop.f32.mrb[0].mxu0
  %1964 = vmatprep.mubr.f32.mxu0 0.0
  %1965 = vmatmul.mubr.f32.gmra.mrb[0].mxu0 %v1590
  %v1966 = vpop.f32.mrb[0].mxu0
  %v1967 = vadd.f32 0.0, %v1966
  %v1968 = vpop.f32.mrb[0].mxu0
  %1969 = vmatprep.mubr.f32.mxu0 0.0
  %1970 = vmatmul.mubr.f32.gmra.mrb[0].mxu0 %v1593
  %v1971 = vpop.f32.mrb[0].mxu0
  %v1972 = vadd.f32 0.0, %v1971
  %v1973 = vpop.f32.mrb[0].mxu0
  %1974 = vmatprep.mubr.f32.mxu0 0.0
  %1975 = vmatmul.mubr.f32.gmra.mrb[0].mxu0 %v1596
  %v1976 = vpop.f32.mrb[0].mxu0
  %v1977 = vadd.f32 0.0, %v1976
  %v1978 = vpop.f32.mrb[0].mxu0
  %1979 = vmatprep.mubr.f32.mxu0 0.0
  %1980 = vmatmul.mubr.f32.gmra.mrb[0].mxu0 %v1599
  %v1981 = vpop.f32.mrb[0].mxu0
  %v1982 = vadd.f32 0.0, %v1981
  %v1983 = vpop.f32.mrb[0].mxu0
  %1984 = vmatprep.mubr.f32.mxu0 0.0
  %1985 = vmatmul.mubr.f32.gmra.mrb[0].mxu0 %v1602
  %v1986 = vpop.f32.mrb[0].mxu0
  %v1987 = vadd.f32 0.0, %v1986
  %v1988 = vpop.f32.mrb[0].mxu0
  %1989 = vmatprep.mubr.f32.mxu0 0.0
  %1990 = vmatmul.mubr.f32.gmra.mrb[0].mxu0 %v1605
  %v1991 = vpop.f32.mrb[0].mxu0
  %v1992 = vadd.f32 0.0, %v1991
  %v1993 = vpop.f32.mrb[0].mxu0
  %1994 = vdwg.mxu0
  %v1995 = vadd.f32 %v1031, %v1677
  %v1996 = vadd.f32 %v1036, %v1682
  %v1997 = vadd.f32 %v1041, %v1687
  %v1998 = vadd.f32 %v1046, %v1692
  %v1999 = vadd.f32 %v1051, %v1697
  %v2000 = vadd.f32 %v1056, %v1702
  %v2001 = vadd.f32 %v1061, %v1707
  %v2002 = vadd.f32 %v1066, %v1712
  %v2003 = vadd.f32 %v1071, %v1717
  %v2004 = vadd.f32 %v1076, %v1722
  %v2005 = vadd.f32 %v1081, %v1727
  %v2006 = vadd.f32 %v1086, %v1732
  %v2007 = vadd.f32 %v1091, %v1737
  %v2008 = vadd.f32 %v1096, %v1742
  %v2009 = vadd.f32 %v1101, %v1747
  %v2010 = vadd.f32 %v1106, %v1752
  %v2011 = vadd.f32 %v1111, %v1757
  %v2012 = vadd.f32 %v1116, %v1762
  %v2013 = vadd.f32 %v1121, %v1767
  %v2014 = vadd.f32 %v1126, %v1772
  %v2015 = vadd.f32 %v1131, %v1777
  %v2016 = vadd.f32 %v1136, %v1782
  %v2017 = vadd.f32 %v1141, %v1787
  %v2018 = vadd.f32 %v1146, %v1792
  %v2019 = vadd.f32 %v1151, %v1797
  %v2020 = vadd.f32 %v1156, %v1802
  %v2021 = vadd.f32 %v1161, %v1807
  %v2022 = vadd.f32 %v1166, %v1812
  %v2023 = vadd.f32 %v1171, %v1817
  %v2024 = vadd.f32 %v1176, %v1822
  %v2025 = vadd.f32 %v1181, %v1827
  %v2026 = vadd.f32 %v1186, %v1832
  %v2027 = vadd.f32 %v1191, %v1837
  %v2028 = vadd.f32 %v1196, %v1842
  %v2029 = vadd.f32 %v1201, %v1847
  %v2030 = vadd.f32 %v1206, %v1852
  %v2031 = vadd.f32 %v1211, %v1857
  %v2032 = vadd.f32 %v1216, %v1862
  %v2033 = vadd.f32 %v1221, %v1867
  %v2034 = vadd.f32 %v1226, %v1872
  %v2035 = vadd.f32 %v1231, %v1877
  %v2036 = vadd.f32 %v1236, %v1882
  %v2037 = vadd.f32 %v1241, %v1887
  %v2038 = vadd.f32 %v1246, %v1892
  %v2039 = vadd.f32 %v1251, %v1897
  %v2040 = vadd.f32 %v1256, %v1902
  %v2041 = vadd.f32 %v1261, %v1907
  %v2042 = vadd.f32 %v1266, %v1912
  %v2043 = vadd.f32 %v1271, %v1917
  %v2044 = vadd.f32 %v1276, %v1922
  %v2045 = vadd.f32 %v1281, %v1927
  %v2046 = vadd.f32 %v1286, %v1932
  %v2047 = vadd.f32 %v1291, %v1937
  %v2048 = vadd.f32 %v1296, %v1942
  %v2049 = vadd.f32 %v1301, %v1947
  %v2050 = vadd.f32 %v1306, %v1952
  %v2051 = vadd.f32 %v1311, %v1957
  %v2052 = vadd.f32 %v1316, %v1962
  %v2053 = vadd.f32 %v1321, %v1967
  %v2054 = vadd.f32 %v1326, %v1972
  %v2055 = vadd.f32 %v1331, %v1977
  %v2056 = vadd.f32 %v1336, %v1982
  %v2057 = vadd.f32 %v1341, %v1987
  %v2058 = vadd.f32 %v1346, %v1992
  %s2059 = scalar_lea.vmem %s0, 24
  %v2060 = vld [vmem:[%s2059] sm:$0xff]
  %v2061 = vld [vmem:[%s2059 + $0x8] sm:$0xff]
  %v2062 = vld [vmem:[%s2059 + $0x18] sm:$0xff]
  %v2063 = vld [vmem:[%s2059 + $0x20] sm:$0xff]
  %v2064 = vld [vmem:[%s2059 + $0x30] sm:$0xff]
  %v2065 = vld [vmem:[%s2059 + $0x38] sm:$0xff]
  %v2066 = vld [vmem:[%s2059 + $0x48] sm:$0xff]
  %v2067 = vld [vmem:[%s2059 + $0x50] sm:$0xff]
  %v2068 = vld [vmem:[%s2059 + $0x60] sm:$0xff]
  %v2069 = vld [vmem:[%s2059 + $0x68] sm:$0xff]
  %v2070 = vld [vmem:[%s2059 + $0x78] sm:$0xff]
  %v2071 = vld [vmem:[%s2059 + $0x80] sm:$0xff]
  %v2072 = vld [vmem:[%s2059 + $0x90] sm:$0xff]
  %v2073 = vld [vmem:[%s2059 + $0x98] sm:$0xff]
  %v2074 = vld [vmem:[%s2059 + $0xa8] sm:$0xff]
  %v2075 = vld [vmem:[%s2059 + $0xb0] sm:$0xff]
  %v2076 = vld [vmem:[%s2059 + $0xc0] sm:$0xff]
  %v2077 = vld [vmem:[%s2059 + $0xc8] sm:$0xff]
  %v2078 = vld [vmem:[%s2059 + $0xd8] sm:$0xff]
  %v2079 = vld [vmem:[%s2059 + $0xe0] sm:$0xff]
  %v2080 = vld [vmem:[%s2059 + $0xf0] sm:$0xff]
  %v2081 = vld [vmem:[%s2059 + $0xf8] sm:$0xff]
  %v2082 = vld [vmem:[%s2059 + $0x108] sm:$0xff]
  %v2083 = vld [vmem:[%s2059 + $0x110] sm:$0xff]
  %v2084 = vld [vmem:[%s2059 + $0x120] sm:$0xff]
  %v2085 = vld [vmem:[%s2059 + $0x128] sm:$0xff]
  %v2086 = vld [vmem:[%s2059 + $0x138] sm:$0xff]
  %v2087 = vld [vmem:[%s2059 + $0x140] sm:$0xff]
  %v2088 = vld [vmem:[%s2059 + $0x150] sm:$0xff]
  %v2089 = vld [vmem:[%s2059 + $0x158] sm:$0xff]
  %v2090 = vld [vmem:[%s2059 + $0x168] sm:$0xff]
  %v2091 = vld [vmem:[%s2059 + $0x170] sm:$0xff]
  %v2092 = vld [vmem:[%s2059 + $0x1b0] sm:$0xff]
  %v2093 = vld [vmem:[%s2059 + $0x1b8] sm:$0xff]
  %v2094 = vld [vmem:[%s2059 + $0x1c8] sm:$0xff]
  %v2095 = vld [vmem:[%s2059 + $0x1d0] sm:$0xff]
  %v2096 = vld [vmem:[%s2059 + $0x1e0] sm:$0xff]
  %v2097 = vld [vmem:[%s2059 + $0x1e8] sm:$0xff]
  %v2098 = vld [vmem:[%s2059 + $0x1f8] sm:$0xff]
  %v2099 = vld [vmem:[%s2059 + $0x200] sm:$0xff]
  %v2100 = vld [vmem:[%s2059 + $0x210] sm:$0xff]
  %v2101 = vld [vmem:[%s2059 + $0x218] sm:$0xff]
  %v2102 = vld [vmem:[%s2059 + $0x228] sm:$0xff]
  %v2103 = vld [vmem:[%s2059 + $0x230] sm:$0xff]
  %v2104 = vld [vmem:[%s2059 + $0x240] sm:$0xff]
  %v2105 = vld [vmem:[%s2059 + $0x248] sm:$0xff]
  %v2106 = vld [vmem:[%s2059 + $0x258] sm:$0xff]
  %v2107 = vld [vmem:[%s2059 + $0x260] sm:$0xff]
  %v2108 = vld [vmem:[%s2059 + $0x270] sm:$0xff]
  %v2109 = vld [vmem:[%s2059 + $0x278] sm:$0xff]
  %v2110 = vld [vmem:[%s2059 + $0x288] sm:$0xff]
  %v2111 = vld [vmem:[%s2059 + $0x290] sm:$0xff]
  %v2112 = vld [vmem:[%s2059 + $0x2a0] sm:$0xff]
  %v2113 = vld [vmem:[%s2059 + $0x2a8] sm:$0xff]
  %v2114 = vld [vmem:[%s2059 + $0x2b8] sm:$0xff]
  %v2115 = vld [vmem:[%s2059 + $0x2c0] sm:$0xff]
  %v2116 = vld [vmem:[%s2059 + $0x2d0] sm:$0xff]
  %v2117 = vld [vmem:[%s2059 + $0x2d8] sm:$0xff]
  %v2118 = vld [vmem:[%s2059 + $0x2e8] sm:$0xff]
  %v2119 = vld [vmem:[%s2059 + $0x2f0] sm:$0xff]
  %v2120 = vld [vmem:[%s2059 + $0x300] sm:$0xff]
  %v2121 = vld [vmem:[%s2059 + $0x308] sm:$0xff]
  %v2122 = vld [vmem:[%s2059 + $0x318] sm:$0xff]
  %v2123 = vld [vmem:[%s2059 + $0x320] sm:$0xff]
  %s2124 = scalar_lea.vmem %s2, 12
  %v2125 = vld [vmem:[%s2124] sm:$0x7]
  %v2127 = vsel %vm187, %v2060, 0
  %v2130 = vsel %vm187, %v2061, 0
  %v2133 = vsel %vm187, %v2062, 0
  %v2136 = vsel %vm187, %v2063, 0
  %v2139 = vsel %vm187, %v2064, 0
  %v2142 = vsel %vm187, %v2065, 0
  %v2145 = vsel %vm187, %v2066, 0
  %v2148 = vsel %vm187, %v2067, 0
  %v2151 = vsel %vm187, %v2068, 0
  %v2154 = vsel %vm187, %v2069, 0
  %v2157 = vsel %vm187, %v2070, 0
  %v2160 = vsel %vm187, %v2071, 0
  %v2163 = vsel %vm187, %v2072, 0
  %v2166 = vsel %vm187, %v2073, 0
  %v2169 = vsel %vm187, %v2074, 0
  %v2172 = vsel %vm187, %v2075, 0
  %v2175 = vsel %vm187, %v2076, 0
  %v2178 = vsel %vm187, %v2077, 0
  %v2181 = vsel %vm187, %v2078, 0
  %v2184 = vsel %vm187, %v2079, 0
  %v2187 = vsel %vm187, %v2080, 0
  %v2190 = vsel %vm187, %v2081, 0
  %v2193 = vsel %vm187, %v2082, 0
  %v2196 = vsel %vm187, %v2083, 0
  %v2199 = vsel %vm187, %v2084, 0
  %v2202 = vsel %vm187, %v2085, 0
  %v2205 = vsel %vm187, %v2086, 0
  %v2208 = vsel %vm187, %v2087, 0
  %v2211 = vsel %vm187, %v2088, 0
  %v2214 = vsel %vm187, %v2089, 0
  %v2217 = vsel %vm187, %v2090, 0
  %v2220 = vsel %vm187, %v2091, 0
  %v2223 = vsel %vm187, %v2092, 0
  %v2226 = vsel %vm187, %v2093, 0
  %v2229 = vsel %vm187, %v2094, 0
  %v2232 = vsel %vm187, %v2095, 0
  %v2235 = vsel %vm187, %v2096, 0
  %v2238 = vsel %vm187, %v2097, 0
  %v2241 = vsel %vm187, %v2098, 0
  %v2244 = vsel %vm187, %v2099, 0
  %v2247 = vsel %vm187, %v2100, 0
  %v2250 = vsel %vm187, %v2101, 0
  %v2253 = vsel %vm187, %v2102, 0
  %v2256 = vsel %vm187, %v2103, 0
  %v2259 = vsel %vm187, %v2104, 0
  %v2262 = vsel %vm187, %v2105, 0
  %v2265 = vsel %vm187, %v2106, 0
  %v2268 = vsel %vm187, %v2107, 0
  %v2271 = vsel %vm187, %v2108, 0
  %v2274 = vsel %vm187, %v2109, 0
  %v2277 = vsel %vm187, %v2110, 0
  %v2280 = vsel %vm187, %v2111, 0
  %v2283 = vsel %vm187, %v2112, 0
  %v2286 = vsel %vm187, %v2113, 0
  %v2289 = vsel %vm187, %v2114, 0
  %v2292 = vsel %vm187, %v2115, 0
  %v2295 = vsel %vm187, %v2116, 0
  %v2298 = vsel %vm187, %v2117, 0
  %v2301 = vsel %vm187, %v2118, 0
  %v2304 = vsel %vm187, %v2119, 0
  %v2307 = vsel %vm187, %v2120, 0
  %v2310 = vsel %vm187, %v2121, 0
  %v2313 = vsel %vm187, %v2122, 0
  %v2316 = vsel %vm187, %v2123, 0
  %v2319 = vsel %vm380, %v2125, 0
  %2321 = vmatprep.subr.mxu0 0.0
  %2322 = vmatpush1.msra.mxu0 %v2319
  %2323 = vmatprep.subr.mxu0 0.0
  %2324 = vmatpush1.msra.mxu0 0.0
  %2325 = vmatprep.subr.mxu0 0.0
  %2326 = vmatpush1.msra.mxu0 0.0
  %2327 = vmatprep.subr.mxu0 0.0
  %2328 = vmatpush1.msra.mxu0 0.0
  %2329 = vmatprep.subr.mxu0 0.0
  %2330 = vmatpush1.msra.mxu0 0.0
  %2331 = vmatprep.subr.mxu0 0.0
  %2332 = vmatpush1.msra.mxu0 0.0
  %2333 = vmatprep.subr.mxu0 0.0
  %2334 = vmatpush1.msra.mxu0 0.0
  %2335 = vmatprep.subr.mxu0 0.0
  %2336 = vmatpush1.msra.mxu0 0.0
  %2337 = vmatprep.subr.mxu0 0.0
  %2338 = vmatpush1.msra.mxu0 0.0
  %2339 = vmatprep.subr.mxu0 0.0
  %2340 = vmatpush1.msra.mxu0 0.0
  %2341 = vmatprep.subr.mxu0 0.0
  %2342 = vmatpush1.msra.mxu0 0.0
  %2343 = vmatprep.subr.mxu0 0.0
  %2344 = vmatpush1.msra.mxu0 0.0
  %2345 = vmatprep.subr.mxu0 0.0
  %2346 = vmatpush1.msra.mxu0 0.0
  %2347 = vmatprep.subr.mxu0 0.0
  %2348 = vmatpush1.msra.mxu0 0.0
  %2349 = vmatprep.subr.mxu0 0.0
  %2350 = vmatpush1.msra.mxu0 0.0
  %2351 = vmatprep.subr.mxu0 0.0
  %2352 = vmatpush1.msra.mxu0 0.0
  %2353 = vmatprep.subr.mxu0 0.0
  %2354 = vmatpush1.msra.mxu0 0.0
  %2355 = vmatprep.subr.mxu0 0.0
  %2356 = vmatpush1.msra.mxu0 0.0
  %2357 = vmatprep.subr.mxu0 0.0
  %2358 = vmatpush1.msra.mxu0 0.0
  %2359 = vmatprep.subr.mxu0 0.0
  %2360 = vmatpush1.msra.mxu0 0.0
  %2361 = vmatprep.subr.mxu0 0.0
  %2362 = vmatpush1.msra.mxu0 0.0
  %2363 = vmatprep.subr.mxu0 0.0
  %2364 = vmatpush1.msra.mxu0 0.0
  %2365 = vmatprep.subr.mxu0 0.0
  %2366 = vmatpush1.msra.mxu0 0.0
  %2367 = vmatprep.subr.mxu0 0.0
  %2368 = vmatpush1.msra.mxu0 0.0
  %2369 = vmatprep.subr.mxu0 0.0
  %2370 = vmatpush1.msra.mxu0 0.0
  %2371 = vmatprep.subr.mxu0 0.0
  %2372 = vmatpush1.msra.mxu0 0.0
  %2373 = vmatprep.subr.mxu0 0.0
  %2374 = vmatpush1.msra.mxu0 0.0
  %2375 = vmatprep.subr.mxu0 0.0
  %2376 = vmatpush1.msra.mxu0 0.0
  %2377 = vmatprep.subr.mxu0 0.0
  %2378 = vmatpush1.msra.mxu0 0.0
  %2379 = vmatprep.subr.mxu0 0.0
  %2380 = vmatpush1.msra.mxu0 0.0
  %2381 = vmatprep.subr.mxu0 0.0
  %2382 = vmatpush1.msra.mxu0 0.0
  %2383 = vmatprep.subr.mxu0 0.0
  %2384 = vmatpush1.msra.mxu0 0.0
  %2385 = vmatprep.mubr.f32.mxu0 0.0
  %2386 = vmatmul.mubr.f32.gmra.mrb[0].mxu0 %v2127
  %v2387 = vpop.f32.mrb[0].mxu0
  %v2388 = vadd.f32 0.0, %v2387
  %v2389 = vpop.f32.mrb[0].mxu0
  %2390 = vmatprep.mubr.f32.mxu0 0.0
  %2391 = vmatmul.mubr.f32.gmra.mrb[0].mxu0 %v2130
  %v2392 = vpop.f32.mrb[0].mxu0
  %v2393 = vadd.f32 0.0, %v2392
  %v2394 = vpop.f32.mrb[0].mxu0
  %2395 = vmatprep.mubr.f32.mxu0 0.0
  %2396 = vmatmul.mubr.f32.gmra.mrb[0].mxu0 %v2133
  %v2397 = vpop.f32.mrb[0].mxu0
  %v2398 = vadd.f32 0.0, %v2397
  %v2399 = vpop.f32.mrb[0].mxu0
  %2400 = vmatprep.mubr.f32.mxu0 0.0
  %2401 = vmatmul.mubr.f32.gmra.mrb[0].mxu0 %v2136
  %v2402 = vpop.f32.mrb[0].mxu0
  %v2403 = vadd.f32 0.0, %v2402
  %v2404 = vpop.f32.mrb[0].mxu0
  %2405 = vmatprep.mubr.f32.mxu0 0.0
  %2406 = vmatmul.mubr.f32.gmra.mrb[0].mxu0 %v2139
  %v2407 = vpop.f32.mrb[0].mxu0
  %v2408 = vadd.f32 0.0, %v2407
  %v2409 = vpop.f32.mrb[0].mxu0
  %2410 = vmatprep.mubr.f32.mxu0 0.0
  %2411 = vmatmul.mubr.f32.gmra.mrb[0].mxu0 %v2142
  %v2412 = vpop.f32.mrb[0].mxu0
  %v2413 = vadd.f32 0.0, %v2412
  %v2414 = vpop.f32.mrb[0].mxu0
  %2415 = vmatprep.mubr.f32.mxu0 0.0
  %2416 = vmatmul.mubr.f32.gmra.mrb[0].mxu0 %v2145
  %v2417 = vpop.f32.mrb[0].mxu0
  %v2418 = vadd.f32 0.0, %v2417
  %v2419 = vpop.f32.mrb[0].mxu0
  %2420 = vmatprep.mubr.f32.mxu0 0.0
  %2421 = vmatmul.mubr.f32.gmra.mrb[0].mxu0 %v2148
  %v2422 = vpop.f32.mrb[0].mxu0
  %v2423 = vadd.f32 0.0, %v2422
  %v2424 = vpop.f32.mrb[0].mxu0
  %2425 = vmatprep.mubr.f32.mxu0 0.0
  %2426 = vmatmul.mubr.f32.gmra.mrb[0].mxu0 %v2151
  %v2427 = vpop.f32.mrb[0].mxu0
  %v2428 = vadd.f32 0.0, %v2427
  %v2429 = vpop.f32.mrb[0].mxu0
  %2430 = vmatprep.mubr.f32.mxu0 0.0
  %2431 = vmatmul.mubr.f32.gmra.mrb[0].mxu0 %v2154
  %v2432 = vpop.f32.mrb[0].mxu0
  %v2433 = vadd.f32 0.0, %v2432
  %v2434 = vpop.f32.mrb[0].mxu0
  %2435 = vmatprep.mubr.f32.mxu0 0.0
  %2436 = vmatmul.mubr.f32.gmra.mrb[0].mxu0 %v2157
  %v2437 = vpop.f32.mrb[0].mxu0
  %v2438 = vadd.f32 0.0, %v2437
  %v2439 = vpop.f32.mrb[0].mxu0
  %2440 = vmatprep.mubr.f32.mxu0 0.0
  %2441 = vmatmul.mubr.f32.gmra.mrb[0].mxu0 %v2160
  %v2442 = vpop.f32.mrb[0].mxu0
  %v2443 = vadd.f32 0.0, %v2442
  %v2444 = vpop.f32.mrb[0].mxu0
  %2445 = vmatprep.mubr.f32.mxu0 0.0
  %2446 = vmatmul.mubr.f32.gmra.mrb[0].mxu0 %v2163
  %v2447 = vpop.f32.mrb[0].mxu0
  %v2448 = vadd.f32 0.0, %v2447
  %v2449 = vpop.f32.mrb[0].mxu0
  %2450 = vmatprep.mubr.f32.mxu0 0.0
  %2451 = vmatmul.mubr.f32.gmra.mrb[0].mxu0 %v2166
  %v2452 = vpop.f32.mrb[0].mxu0
  %v2453 = vadd.f32 0.0, %v2452
  %v2454 = vpop.f32.mrb[0].mxu0
  %2455 = vmatprep.mubr.f32.mxu0 0.0
  %2456 = vmatmul.mubr.f32.gmra.mrb[0].mxu0 %v2169
  %v2457 = vpop.f32.mrb[0].mxu0
  %v2458 = vadd.f32 0.0, %v2457
  %v2459 = vpop.f32.mrb[0].mxu0
  %2460 = vmatprep.mubr.f32.mxu0 0.0
  %2461 = vmatmul.mubr.f32.gmra.mrb[0].mxu0 %v2172
  %v2462 = vpop.f32.mrb[0].mxu0
  %v2463 = vadd.f32 0.0, %v2462
  %v2464 = vpop.f32.mrb[0].mxu0
  %2465 = vmatprep.mubr.f32.mxu0 0.0
  %2466 = vmatmul.mubr.f32.gmra.mrb[0].mxu0 %v2175
  %v2467 = vpop.f32.mrb[0].mxu0
  %v2468 = vadd.f32 0.0, %v2467
  %v2469 = vpop.f32.mrb[0].mxu0
  %2470 = vmatprep.mubr.f32.mxu0 0.0
  %2471 = vmatmul.mubr.f32.gmra.mrb[0].mxu0 %v2178
  %v2472 = vpop.f32.mrb[0].mxu0
  %v2473 = vadd.f32 0.0, %v2472
  %v2474 = vpop.f32.mrb[0].mxu0
  %2475 = vmatprep.mubr.f32.mxu0 0.0
  %2476 = vmatmul.mubr.f32.gmra.mrb[0].mxu0 %v2181
  %v2477 = vpop.f32.mrb[0].mxu0
  %v2478 = vadd.f32 0.0, %v2477
  %v2479 = vpop.f32.mrb[0].mxu0
  %2480 = vmatprep.mubr.f32.mxu0 0.0
  %2481 = vmatmul.mubr.f32.gmra.mrb[0].mxu0 %v2184
  %v2482 = vpop.f32.mrb[0].mxu0
  %v2483 = vadd.f32 0.0, %v2482
  %v2484 = vpop.f32.mrb[0].mxu0
  %2485 = vmatprep.mubr.f32.mxu0 0.0
  %2486 = vmatmul.mubr.f32.gmra.mrb[0].mxu0 %v2187
  %v2487 = vpop.f32.mrb[0].mxu0
  %v2488 = vadd.f32 0.0, %v2487
  %v2489 = vpop.f32.mrb[0].mxu0
  %2490 = vmatprep.mubr.f32.mxu0 0.0
  %2491 = vmatmul.mubr.f32.gmra.mrb[0].mxu0 %v2190
  %v2492 = vpop.f32.mrb[0].mxu0
  %v2493 = vadd.f32 0.0, %v2492
  %v2494 = vpop.f32.mrb[0].mxu0
  %2495 = vmatprep.mubr.f32.mxu0 0.0
  %2496 = vmatmul.mubr.f32.gmra.mrb[0].mxu0 %v2193
  %v2497 = vpop.f32.mrb[0].mxu0
  %v2498 = vadd.f32 0.0, %v2497
  %v2499 = vpop.f32.mrb[0].mxu0
  %2500 = vmatprep.mubr.f32.mxu0 0.0
  %2501 = vmatmul.mubr.f32.gmra.mrb[0].mxu0 %v2196
  %v2502 = vpop.f32.mrb[0].mxu0
  %v2503 = vadd.f32 0.0, %v2502
  %v2504 = vpop.f32.mrb[0].mxu0
  %2505 = vmatprep.mubr.f32.mxu0 0.0
  %2506 = vmatmul.mubr.f32.gmra.mrb[0].mxu0 %v2199
  %v2507 = vpop.f32.mrb[0].mxu0
  %v2508 = vadd.f32 0.0, %v2507
  %v2509 = vpop.f32.mrb[0].mxu0
  %2510 = vmatprep.mubr.f32.mxu0 0.0
  %2511 = vmatmul.mubr.f32.gmra.mrb[0].mxu0 %v2202
  %v2512 = vpop.f32.mrb[0].mxu0
  %v2513 = vadd.f32 0.0, %v2512
  %v2514 = vpop.f32.mrb[0].mxu0
  %2515 = vmatprep.mubr.f32.mxu0 0.0
  %2516 = vmatmul.mubr.f32.gmra.mrb[0].mxu0 %v2205
  %v2517 = vpop.f32.mrb[0].mxu0
  %v2518 = vadd.f32 0.0, %v2517
  %v2519 = vpop.f32.mrb[0].mxu0
  %2520 = vmatprep.mubr.f32.mxu0 0.0
  %2521 = vmatmul.mubr.f32.gmra.mrb[0].mxu0 %v2208
  %v2522 = vpop.f32.mrb[0].mxu0
  %v2523 = vadd.f32 0.0, %v2522
  %v2524 = vpop.f32.mrb[0].mxu0
  %2525 = vmatprep.mubr.f32.mxu0 0.0
  %2526 = vmatmul.mubr.f32.gmra.mrb[0].mxu0 %v2211
  %v2527 = vpop.f32.mrb[0].mxu0
  %v2528 = vadd.f32 0.0, %v2527
  %v2529 = vpop.f32.mrb[0].mxu0
  %2530 = vmatprep.mubr.f32.mxu0 0.0
  %2531 = vmatmul.mubr.f32.gmra.mrb[0].mxu0 %v2214
  %v2532 = vpop.f32.mrb[0].mxu0
  %v2533 = vadd.f32 0.0, %v2532
  %v2534 = vpop.f32.mrb[0].mxu0
  %2535 = vmatprep.mubr.f32.mxu0 0.0
  %2536 = vmatmul.mubr.f32.gmra.mrb[0].mxu0 %v2217
  %v2537 = vpop.f32.mrb[0].mxu0
  %v2538 = vadd.f32 0.0, %v2537
  %v2539 = vpop.f32.mrb[0].mxu0
  %2540 = vmatprep.mubr.f32.mxu0 0.0
  %2541 = vmatmul.mubr.f32.gmra.mrb[0].mxu0 %v2220
  %v2542 = vpop.f32.mrb[0].mxu0
  %v2543 = vadd.f32 0.0, %v2542
  %v2544 = vpop.f32.mrb[0].mxu0
  %2545 = vmatprep.mubr.f32.mxu0 0.0
  %2546 = vmatmul.mubr.f32.gmra.mrb[0].mxu0 %v2223
  %v2547 = vpop.f32.mrb[0].mxu0
  %v2548 = vadd.f32 0.0, %v2547
  %v2549 = vpop.f32.mrb[0].mxu0
  %2550 = vmatprep.mubr.f32.mxu0 0.0
  %2551 = vmatmul.mubr.f32.gmra.mrb[0].mxu0 %v2226
  %v2552 = vpop.f32.mrb[0].mxu0
  %v2553 = vadd.f32 0.0, %v2552
  %v2554 = vpop.f32.mrb[0].mxu0
  %2555 = vmatprep.mubr.f32.mxu0 0.0
  %2556 = vmatmul.mubr.f32.gmra.mrb[0].mxu0 %v2229
  %v2557 = vpop.f32.mrb[0].mxu0
  %v2558 = vadd.f32 0.0, %v2557
  %v2559 = vpop.f32.mrb[0].mxu0
  %2560 = vmatprep.mubr.f32.mxu0 0.0
  %2561 = vmatmul.mubr.f32.gmra.mrb[0].mxu0 %v2232
  %v2562 = vpop.f32.mrb[0].mxu0
  %v2563 = vadd.f32 0.0, %v2562
  %v2564 = vpop.f32.mrb[0].mxu0
  %2565 = vmatprep.mubr.f32.mxu0 0.0
  %2566 = vmatmul.mubr.f32.gmra.mrb[0].mxu0 %v2235
  %v2567 = vpop.f32.mrb[0].mxu0
  %v2568 = vadd.f32 0.0, %v2567
  %v2569 = vpop.f32.mrb[0].mxu0
  %2570 = vmatprep.mubr.f32.mxu0 0.0
  %2571 = vmatmul.mubr.f32.gmra.mrb[0].mxu0 %v2238
  %v2572 = vpop.f32.mrb[0].mxu0
  %v2573 = vadd.f32 0.0, %v2572
  %v2574 = vpop.f32.mrb[0].mxu0
  %2575 = vmatprep.mubr.f32.mxu0 0.0
  %2576 = vmatmul.mubr.f32.gmra.mrb[0].mxu0 %v2241
  %v2577 = vpop.f32.mrb[0].mxu0
  %v2578 = vadd.f32 0.0, %v2577
  %v2579 = vpop.f32.mrb[0].mxu0
  %2580 = vmatprep.mubr.f32.mxu0 0.0
  %2581 = vmatmul.mubr.f32.gmra.mrb[0].mxu0 %v2244
  %v2582 = vpop.f32.mrb[0].mxu0
  %v2583 = vadd.f32 0.0, %v2582
  %v2584 = vpop.f32.mrb[0].mxu0
  %2585 = vmatprep.mubr.f32.mxu0 0.0
  %2586 = vmatmul.mubr.f32.gmra.mrb[0].mxu0 %v2247
  %v2587 = vpop.f32.mrb[0].mxu0
  %v2588 = vadd.f32 0.0, %v2587
  %v2589 = vpop.f32.mrb[0].mxu0
  %2590 = vmatprep.mubr.f32.mxu0 0.0
  %2591 = vmatmul.mubr.f32.gmra.mrb[0].mxu0 %v2250
  %v2592 = vpop.f32.mrb[0].mxu0
  %v2593 = vadd.f32 0.0, %v2592
  %v2594 = vpop.f32.mrb[0].mxu0
  %2595 = vmatprep.mubr.f32.mxu0 0.0
  %2596 = vmatmul.mubr.f32.gmra.mrb[0].mxu0 %v2253
  %v2597 = vpop.f32.mrb[0].mxu0
  %v2598 = vadd.f32 0.0, %v2597
  %v2599 = vpop.f32.mrb[0].mxu0
  %2600 = vmatprep.mubr.f32.mxu0 0.0
  %2601 = vmatmul.mubr.f32.gmra.mrb[0].mxu0 %v2256
  %v2602 = vpop.f32.mrb[0].mxu0
  %v2603 = vadd.f32 0.0, %v2602
  %v2604 = vpop.f32.mrb[0].mxu0
  %2605 = vmatprep.mubr.f32.mxu0 0.0
  %2606 = vmatmul.mubr.f32.gmra.mrb[0].mxu0 %v2259
  %v2607 = vpop.f32.mrb[0].mxu0
  %v2608 = vadd.f32 0.0, %v2607
  %v2609 = vpop.f32.mrb[0].mxu0
  %2610 = vmatprep.mubr.f32.mxu0 0.0
  %2611 = vmatmul.mubr.f32.gmra.mrb[0].mxu0 %v2262
  %v2612 = vpop.f32.mrb[0].mxu0
  %v2613 = vadd.f32 0.0, %v2612
  %v2614 = vpop.f32.mrb[0].mxu0
  %2615 = vmatprep.mubr.f32.mxu0 0.0
  %2616 = vmatmul.mubr.f32.gmra.mrb[0].mxu0 %v2265
  %v2617 = vpop.f32.mrb[0].mxu0
  %v2618 = vadd.f32 0.0, %v2617
  %v2619 = vpop.f32.mrb[0].mxu0
  %2620 = vmatprep.mubr.f32.mxu0 0.0
  %2621 = vmatmul.mubr.f32.gmra.mrb[0].mxu0 %v2268
  %v2622 = vpop.f32.mrb[0].mxu0
  %v2623 = vadd.f32 0.0, %v2622
  %v2624 = vpop.f32.mrb[0].mxu0
  %2625 = vmatprep.mubr.f32.mxu0 0.0
  %2626 = vmatmul.mubr.f32.gmra.mrb[0].mxu0 %v2271
  %v2627 = vpop.f32.mrb[0].mxu0
  %v2628 = vadd.f32 0.0, %v2627
  %v2629 = vpop.f32.mrb[0].mxu0
  %2630 = vmatprep.mubr.f32.mxu0 0.0
  %2631 = vmatmul.mubr.f32.gmra.mrb[0].mxu0 %v2274
  %v2632 = vpop.f32.mrb[0].mxu0
  %v2633 = vadd.f32 0.0, %v2632
  %v2634 = vpop.f32.mrb[0].mxu0
  %2635 = vmatprep.mubr.f32.mxu0 0.0
  %2636 = vmatmul.mubr.f32.gmra.mrb[0].mxu0 %v2277
  %v2637 = vpop.f32.mrb[0].mxu0
  %v2638 = vadd.f32 0.0, %v2637
  %v2639 = vpop.f32.mrb[0].mxu0
  %2640 = vmatprep.mubr.f32.mxu0 0.0
  %2641 = vmatmul.mubr.f32.gmra.mrb[0].mxu0 %v2280
  %v2642 = vpop.f32.mrb[0].mxu0
  %v2643 = vadd.f32 0.0, %v2642
  %v2644 = vpop.f32.mrb[0].mxu0
  %2645 = vmatprep.mubr.f32.mxu0 0.0
  %2646 = vmatmul.mubr.f32.gmra.mrb[0].mxu0 %v2283
  %v2647 = vpop.f32.mrb[0].mxu0
  %v2648 = vadd.f32 0.0, %v2647
  %v2649 = vpop.f32.mrb[0].mxu0
  %2650 = vmatprep.mubr.f32.mxu0 0.0
  %2651 = vmatmul.mubr.f32.gmra.mrb[0].mxu0 %v2286
  %v2652 = vpop.f32.mrb[0].mxu0
  %v2653 = vadd.f32 0.0, %v2652
  %v2654 = vpop.f32.mrb[0].mxu0
  %2655 = vmatprep.mubr.f32.mxu0 0.0
  %2656 = vmatmul.mubr.f32.gmra.mrb[0].mxu0 %v2289
  %v2657 = vpop.f32.mrb[0].mxu0
  %v2658 = vadd.f32 0.0, %v2657
  %v2659 = vpop.f32.mrb[0].mxu0
  %2660 = vmatprep.mubr.f32.mxu0 0.0
  %2661 = vmatmul.mubr.f32.gmra.mrb[0].mxu0 %v2292
  %v2662 = vpop.f32.mrb[0].mxu0
  %v2663 = vadd.f32 0.0, %v2662
  %v2664 = vpop.f32.mrb[0].mxu0
  %2665 = vmatprep.mubr.f32.mxu0 0.0
  %2666 = vmatmul.mubr.f32.gmra.mrb[0].mxu0 %v2295
  %v2667 = vpop.f32.mrb[0].mxu0
  %v2668 = vadd.f32 0.0, %v2667
  %v2669 = vpop.f32.mrb[0].mxu0
  %2670 = vmatprep.mubr.f32.mxu0 0.0
  %2671 = vmatmul.mubr.f32.gmra.mrb[0].mxu0 %v2298
  %v2672 = vpop.f32.mrb[0].mxu0
  %v2673 = vadd.f32 0.0, %v2672
  %v2674 = vpop.f32.mrb[0].mxu0
  %2675 = vmatprep.mubr.f32.mxu0 0.0
  %2676 = vmatmul.mubr.f32.gmra.mrb[0].mxu0 %v2301
  %v2677 = vpop.f32.mrb[0].mxu0
  %v2678 = vadd.f32 0.0, %v2677
  %v2679 = vpop.f32.mrb[0].mxu0
  %2680 = vmatprep.mubr.f32.mxu0 0.0
  %2681 = vmatmul.mubr.f32.gmra.mrb[0].mxu0 %v2304
  %v2682 = vpop.f32.mrb[0].mxu0
  %v2683 = vadd.f32 0.0, %v2682
  %v2684 = vpop.f32.mrb[0].mxu0
  %2685 = vmatprep.mubr.f32.mxu0 0.0
  %2686 = vmatmul.mubr.f32.gmra.mrb[0].mxu0 %v2307
  %v2687 = vpop.f32.mrb[0].mxu0
  %v2688 = vadd.f32 0.0, %v2687
  %v2689 = vpop.f32.mrb[0].mxu0
  %2690 = vmatprep.mubr.f32.mxu0 0.0
  %2691 = vmatmul.mubr.f32.gmra.mrb[0].mxu0 %v2310
  %v2692 = vpop.f32.mrb[0].mxu0
  %v2693 = vadd.f32 0.0, %v2692
  %v2694 = vpop.f32.mrb[0].mxu0
  %2695 = vmatprep.mubr.f32.mxu0 0.0
  %2696 = vmatmul.mubr.f32.gmra.mrb[0].mxu0 %v2313
  %v2697 = vpop.f32.mrb[0].mxu0
  %v2698 = vadd.f32 0.0, %v2697
  %v2699 = vpop.f32.mrb[0].mxu0
  %2700 = vmatprep.mubr.f32.mxu0 0.0
  %2701 = vmatmul.mubr.f32.gmra.mrb[0].mxu0 %v2316
  %v2702 = vpop.f32.mrb[0].mxu0
  %v2703 = vadd.f32 0.0, %v2702
  %v2704 = vpop.f32.mrb[0].mxu0
  %2705 = vdwg.mxu0
  %v2706 = vadd.f32 %v1995, %v2388
  %v2707 = vadd.f32 %v1996, %v2393
  %v2708 = vadd.f32 %v1997, %v2398
  %v2709 = vadd.f32 %v1998, %v2403
  %v2710 = vadd.f32 %v1999, %v2408
  %v2711 = vadd.f32 %v2000, %v2413
  %v2712 = vadd.f32 %v2001, %v2418
  %v2713 = vadd.f32 %v2002, %v2423
  %v2714 = vadd.f32 %v2003, %v2428
  %v2715 = vadd.f32 %v2004, %v2433
  %v2716 = vadd.f32 %v2005, %v2438
  %v2717 = vadd.f32 %v2006, %v2443
  %v2718 = vadd.f32 %v2007, %v2448
  %v2719 = vadd.f32 %v2008, %v2453
  %v2720 = vadd.f32 %v2009, %v2458
  %v2721 = vadd.f32 %v2010, %v2463
  %v2722 = vadd.f32 %v2011, %v2468
  %v2723 = vadd.f32 %v2012, %v2473
  %v2724 = vadd.f32 %v2013, %v2478
  %v2725 = vadd.f32 %v2014, %v2483
  %v2726 = vadd.f32 %v2015, %v2488
  %v2727 = vadd.f32 %v2016, %v2493
  %v2728 = vadd.f32 %v2017, %v2498
  %v2729 = vadd.f32 %v2018, %v2503
  %v2730 = vadd.f32 %v2019, %v2508
  %v2731 = vadd.f32 %v2020, %v2513
  %v2732 = vadd.f32 %v2021, %v2518
  %v2733 = vadd.f32 %v2022, %v2523
  %v2734 = vadd.f32 %v2023, %v2528
  %v2735 = vadd.f32 %v2024, %v2533
  %v2736 = vadd.f32 %v2025, %v2538
  %v2737 = vadd.f32 %v2026, %v2543
  %v2738 = vadd.f32 %v2027, %v2548
  %v2739 = vadd.f32 %v2028, %v2553
  %v2740 = vadd.f32 %v2029, %v2558
  %v2741 = vadd.f32 %v2030, %v2563
  %v2742 = vadd.f32 %v2031, %v2568
  %v2743 = vadd.f32 %v2032, %v2573
  %v2744 = vadd.f32 %v2033, %v2578
  %v2745 = vadd.f32 %v2034, %v2583
  %v2746 = vadd.f32 %v2035, %v2588
  %v2747 = vadd.f32 %v2036, %v2593
  %v2748 = vadd.f32 %v2037, %v2598
  %v2749 = vadd.f32 %v2038, %v2603
  %v2750 = vadd.f32 %v2039, %v2608
  %v2751 = vadd.f32 %v2040, %v2613
  %v2752 = vadd.f32 %v2041, %v2618
  %v2753 = vadd.f32 %v2042, %v2623
  %v2754 = vadd.f32 %v2043, %v2628
  %v2755 = vadd.f32 %v2044, %v2633
  %v2756 = vadd.f32 %v2045, %v2638
  %v2757 = vadd.f32 %v2046, %v2643
  %v2758 = vadd.f32 %v2047, %v2648
  %v2759 = vadd.f32 %v2048, %v2653
  %v2760 = vadd.f32 %v2049, %v2658
  %v2761 = vadd.f32 %v2050, %v2663
  %v2762 = vadd.f32 %v2051, %v2668
  %v2763 = vadd.f32 %v2052, %v2673
  %v2764 = vadd.f32 %v2053, %v2678
  %v2765 = vadd.f32 %v2054, %v2683
  %v2766 = vadd.f32 %v2055, %v2688
  %v2767 = vadd.f32 %v2056, %v2693
  %v2768 = vadd.f32 %v2057, %v2698
  %v2769 = vadd.f32 %v2058, %v2703
  %v2770 = vld [vmem:[%s2059 + $0x1] sm:$0xff]
  %v2771 = vld [vmem:[%s2059 + $0x9] sm:$0xff]
  %v2772 = vld [vmem:[%s2059 + $0x19] sm:$0xff]
  %v2773 = vld [vmem:[%s2059 + $0x21] sm:$0xff]
  %v2774 = vld [vmem:[%s2059 + $0x31] sm:$0xff]
  %v2775 = vld [vmem:[%s2059 + $0x39] sm:$0xff]
  %v2776 = vld [vmem:[%s2059 + $0x49] sm:$0xff]
  %v2777 = vld [vmem:[%s2059 + $0x51] sm:$0xff]
  %v2778 = vld [vmem:[%s2059 + $0x61] sm:$0xff]
  %v2779 = vld [vmem:[%s2059 + $0x69] sm:$0xff]
  %v2780 = vld [vmem:[%s2059 + $0x79] sm:$0xff]
  %v2781 = vld [vmem:[%s2059 + $0x81] sm:$0xff]
  %v2782 = vld [vmem:[%s2059 + $0x91] sm:$0xff]
  %v2783 = vld [vmem:[%s2059 + $0x99] sm:$0xff]
  %v2784 = vld [vmem:[%s2059 + $0xa9] sm:$0xff]
  %v2785 = vld [vmem:[%s2059 + $0xb1] sm:$0xff]
  %v2786 = vld [vmem:[%s2059 + $0xc1] sm:$0xff]
  %v2787 = vld [vmem:[%s2059 + $0xc9] sm:$0xff]
  %v2788 = vld [vmem:[%s2059 + $0xd9] sm:$0xff]
  %v2789 = vld [vmem:[%s2059 + $0xe1] sm:$0xff]
  %v2790 = vld [vmem:[%s2059 + $0xf1] sm:$0xff]
  %v2791 = vld [vmem:[%s2059 + $0xf9] sm:$0xff]
  %v2792 = vld [vmem:[%s2059 + $0x109] sm:$0xff]
  %v2793 = vld [vmem:[%s2059 + $0x111] sm:$0xff]
  %v2794 = vld [vmem:[%s2059 + $0x121] sm:$0xff]
  %v2795 = vld [vmem:[%s2059 + $0x129] sm:$0xff]
  %v2796 = vld [vmem:[%s2059 + $0x139] sm:$0xff]
  %v2797 = vld [vmem:[%s2059 + $0x141] sm:$0xff]
  %v2798 = vld [vmem:[%s2059 + $0x151] sm:$0xff]
  %v2799 = vld [vmem:[%s2059 + $0x159] sm:$0xff]
  %v2800 = vld [vmem:[%s2059 + $0x169] sm:$0xff]
  %v2801 = vld [vmem:[%s2059 + $0x171] sm:$0xff]
  %v2802 = vld [vmem:[%s2059 + $0x1b1] sm:$0xff]
  %v2803 = vld [vmem:[%s2059 + $0x1b9] sm:$0xff]
  %v2804 = vld [vmem:[%s2059 + $0x1c9] sm:$0xff]
  %v2805 = vld [vmem:[%s2059 + $0x1d1] sm:$0xff]
  %v2806 = vld [vmem:[%s2059 + $0x1e1] sm:$0xff]
  %v2807 = vld [vmem:[%s2059 + $0x1e9] sm:$0xff]
  %v2808 = vld [vmem:[%s2059 + $0x1f9] sm:$0xff]
  %v2809 = vld [vmem:[%s2059 + $0x201] sm:$0xff]
  %v2810 = vld [vmem:[%s2059 + $0x211] sm:$0xff]
  %v2811 = vld [vmem:[%s2059 + $0x219] sm:$0xff]
  %v2812 = vld [vmem:[%s2059 + $0x229] sm:$0xff]
  %v2813 = vld [vmem:[%s2059 + $0x231] sm:$0xff]
  %v2814 = vld [vmem:[%s2059 + $0x241] sm:$0xff]
  %v2815 = vld [vmem:[%s2059 + $0x249] sm:$0xff]
  %v2816 = vld [vmem:[%s2059 + $0x259] sm:$0xff]
  %v2817 = vld [vmem:[%s2059 + $0x261] sm:$0xff]
  %v2818 = vld [vmem:[%s2059 + $0x271] sm:$0xff]
  %v2819 = vld [vmem:[%s2059 + $0x279] sm:$0xff]
  %v2820 = vld [vmem:[%s2059 + $0x289] sm:$0xff]
  %v2821 = vld [vmem:[%s2059 + $0x291] sm:$0xff]
  %v2822 = vld [vmem:[%s2059 + $0x2a1] sm:$0xff]
  %v2823 = vld [vmem:[%s2059 + $0x2a9] sm:$0xff]
  %v2824 = vld [vmem:[%s2059 + $0x2b9] sm:$0xff]
  %v2825 = vld [vmem:[%s2059 + $0x2c1] sm:$0xff]
  %v2826 = vld [vmem:[%s2059 + $0x2d1] sm:$0xff]
  %v2827 = vld [vmem:[%s2059 + $0x2d9] sm:$0xff]
  %v2828 = vld [vmem:[%s2059 + $0x2e9] sm:$0xff]
  %v2829 = vld [vmem:[%s2059 + $0x2f1] sm:$0xff]
  %v2830 = vld [vmem:[%s2059 + $0x301] sm:$0xff]
  %v2831 = vld [vmem:[%s2059 + $0x309] sm:$0xff]
  %v2832 = vld [vmem:[%s2059 + $0x319] sm:$0xff]
  %v2833 = vld [vmem:[%s2059 + $0x321] sm:$0xff]
  %s2834 = scalar_lea.vmem %s2, 16
  %v2835 = vld [vmem:[%s2834] sm:$0x7]
  %v2837 = vsel %vm187, %v2770, 0
  %v2840 = vsel %vm187, %v2771, 0
  %v2843 = vsel %vm187, %v2772, 0
  %v2846 = vsel %vm187, %v2773, 0
  %v2849 = vsel %vm187, %v2774, 0
  %v2852 = vsel %vm187, %v2775, 0
  %v2855 = vsel %vm187, %v2776, 0
  %v2858 = vsel %vm187, %v2777, 0
  %v2861 = vsel %vm187, %v2778, 0
  %v2864 = vsel %vm187, %v2779, 0
  %v2867 = vsel %vm187, %v2780, 0
  %v2870 = vsel %vm187, %v2781, 0
  %v2873 = vsel %vm187, %v2782, 0
  %v2876 = vsel %vm187, %v2783, 0
  %v2879 = vsel %vm187, %v2784, 0
  %v2882 = vsel %vm187, %v2785, 0
  %v2885 = vsel %vm187, %v2786, 0
  %v2888 = vsel %vm187, %v2787, 0
  %v2891 = vsel %vm187, %v2788, 0
  %v2894 = vsel %vm187, %v2789, 0
  %v2897 = vsel %vm187, %v2790, 0
  %v2900 = vsel %vm187, %v2791, 0
  %v2903 = vsel %vm187, %v2792, 0
  %v2906 = vsel %vm187, %v2793, 0
  %v2909 = vsel %vm187, %v2794, 0
  %v2912 = vsel %vm187, %v2795, 0
  %v2915 = vsel %vm187, %v2796, 0
  %v2918 = vsel %vm187, %v2797, 0
  %v2921 = vsel %vm187, %v2798, 0
  %v2924 = vsel %vm187, %v2799, 0
  %v2927 = vsel %vm187, %v2800, 0
  %v2930 = vsel %vm187, %v2801, 0
  %v2933 = vsel %vm187, %v2802, 0
  %v2936 = vsel %vm187, %v2803, 0
  %v2939 = vsel %vm187, %v2804, 0
  %v2942 = vsel %vm187, %v2805, 0
  %v2945 = vsel %vm187, %v2806, 0
  %v2948 = vsel %vm187, %v2807, 0
  %v2951 = vsel %vm187, %v2808, 0
  %v2954 = vsel %vm187, %v2809, 0
  %v2957 = vsel %vm187, %v2810, 0
  %v2960 = vsel %vm187, %v2811, 0
  %v2963 = vsel %vm187, %v2812, 0
  %v2966 = vsel %vm187, %v2813, 0
  %v2969 = vsel %vm187, %v2814, 0
  %v2972 = vsel %vm187, %v2815, 0
  %v2975 = vsel %vm187, %v2816, 0
  %v2978 = vsel %vm187, %v2817, 0
  %v2981 = vsel %vm187, %v2818, 0
  %v2984 = vsel %vm187, %v2819, 0
  %v2987 = vsel %vm187, %v2820, 0
  %v2990 = vsel %vm187, %v2821, 0
  %v2993 = vsel %vm187, %v2822, 0
  %v2996 = vsel %vm187, %v2823, 0
  %v2999 = vsel %vm187, %v2824, 0
  %v3002 = vsel %vm187, %v2825, 0
  %v3005 = vsel %vm187, %v2826, 0
  %v3008 = vsel %vm187, %v2827, 0
  %v3011 = vsel %vm187, %v2828, 0
  %v3014 = vsel %vm187, %v2829, 0
  %v3017 = vsel %vm187, %v2830, 0
  %v3020 = vsel %vm187, %v2831, 0
  %v3023 = vsel %vm187, %v2832, 0
  %v3026 = vsel %vm187, %v2833, 0
  %v3029 = vsel %vm380, %v2835, 0
  %3031 = vmatprep.subr.mxu0 0.0
  %3032 = vmatpush1.msra.mxu0 %v3029
  %3033 = vmatprep.subr.mxu0 0.0
  %3034 = vmatpush1.msra.mxu0 0.0
  %3035 = vmatprep.subr.mxu0 0.0
  %3036 = vmatpush1.msra.mxu0 0.0
  %3037 = vmatprep.subr.mxu0 0.0
  %3038 = vmatpush1.msra.mxu0 0.0
  %3039 = vmatprep.subr.mxu0 0.0
  %3040 = vmatpush1.msra.mxu0 0.0
  %3041 = vmatprep.subr.mxu0 0.0
  %3042 = vmatpush1.msra.mxu0 0.0
  %3043 = vmatprep.subr.mxu0 0.0
  %3044 = vmatpush1.msra.mxu0 0.0
  %3045 = vmatprep.subr.mxu0 0.0
  %3046 = vmatpush1.msra.mxu0 0.0
  %3047 = vmatprep.subr.mxu0 0.0
  %3048 = vmatpush1.msra.mxu0 0.0
  %3049 = vmatprep.subr.mxu0 0.0
  %3050 = vmatpush1.msra.mxu0 0.0
  %3051 = vmatprep.subr.mxu0 0.0
  %3052 = vmatpush1.msra.mxu0 0.0
  %3053 = vmatprep.subr.mxu0 0.0
  %3054 = vmatpush1.msra.mxu0 0.0
  %3055 = vmatprep.subr.mxu0 0.0
  %3056 = vmatpush1.msra.mxu0 0.0
  %3057 = vmatprep.subr.mxu0 0.0
  %3058 = vmatpush1.msra.mxu0 0.0
  %3059 = vmatprep.subr.mxu0 0.0
  %3060 = vmatpush1.msra.mxu0 0.0
  %3061 = vmatprep.subr.mxu0 0.0
  %3062 = vmatpush1.msra.mxu0 0.0
  %3063 = vmatprep.subr.mxu0 0.0
  %3064 = vmatpush1.msra.mxu0 0.0
  %3065 = vmatprep.subr.mxu0 0.0
  %3066 = vmatpush1.msra.mxu0 0.0
  %3067 = vmatprep.subr.mxu0 0.0
  %3068 = vmatpush1.msra.mxu0 0.0
  %3069 = vmatprep.subr.mxu0 0.0
  %3070 = vmatpush1.msra.mxu0 0.0
  %3071 = vmatprep.subr.mxu0 0.0
  %3072 = vmatpush1.msra.mxu0 0.0
  %3073 = vmatprep.subr.mxu0 0.0
  %3074 = vmatpush1.msra.mxu0 0.0
  %3075 = vmatprep.subr.mxu0 0.0
  %3076 = vmatpush1.msra.mxu0 0.0
  %3077 = vmatprep.subr.mxu0 0.0
  %3078 = vmatpush1.msra.mxu0 0.0
  %3079 = vmatprep.subr.mxu0 0.0
  %3080 = vmatpush1.msra.mxu0 0.0
  %3081 = vmatprep.subr.mxu0 0.0
  %3082 = vmatpush1.msra.mxu0 0.0
  %3083 = vmatprep.subr.mxu0 0.0
  %3084 = vmatpush1.msra.mxu0 0.0
  %3085 = vmatprep.subr.mxu0 0.0
  %3086 = vmatpush1.msra.mxu0 0.0
  %3087 = vmatprep.subr.mxu0 0.0
  %3088 = vmatpush1.msra.mxu0 0.0
  %3089 = vmatprep.subr.mxu0 0.0
  %3090 = vmatpush1.msra.mxu0 0.0
  %3091 = vmatprep.subr.mxu0 0.0
  %3092 = vmatpush1.msra.mxu0 0.0
  %3093 = vmatprep.subr.mxu0 0.0
  %3094 = vmatpush1.msra.mxu0 0.0
  %3095 = vmatprep.mubr.f32.mxu0 0.0
  %3096 = vmatmul.mubr.f32.gmra.mrb[0].mxu0 %v2837
  %v3097 = vpop.f32.mrb[0].mxu0
  %v3098 = vadd.f32 0.0, %v3097
  %v3099 = vpop.f32.mrb[0].mxu0
  %3100 = vmatprep.mubr.f32.mxu0 0.0
  %3101 = vmatmul.mubr.f32.gmra.mrb[0].mxu0 %v2840
  %v3102 = vpop.f32.mrb[0].mxu0
  %v3103 = vadd.f32 0.0, %v3102
  %v3104 = vpop.f32.mrb[0].mxu0
  %3105 = vmatprep.mubr.f32.mxu0 0.0
  %3106 = vmatmul.mubr.f32.gmra.mrb[0].mxu0 %v2843
  %v3107 = vpop.f32.mrb[0].mxu0
  %v3108 = vadd.f32 0.0, %v3107
  %v3109 = vpop.f32.mrb[0].mxu0
  %3110 = vmatprep.mubr.f32.mxu0 0.0
  %3111 = vmatmul.mubr.f32.gmra.mrb[0].mxu0 %v2846
  %v3112 = vpop.f32.mrb[0].mxu0
  %v3113 = vadd.f32 0.0, %v3112
  %v3114 = vpop.f32.mrb[0].mxu0
  %3115 = vmatprep.mubr.f32.mxu0 0.0
  %3116 = vmatmul.mubr.f32.gmra.mrb[0].mxu0 %v2849
  %v3117 = vpop.f32.mrb[0].mxu0
  %v3118 = vadd.f32 0.0, %v3117
  %v3119 = vpop.f32.mrb[0].mxu0
  %3120 = vmatprep.mubr.f32.mxu0 0.0
  %3121 = vmatmul.mubr.f32.gmra.mrb[0].mxu0 %v2852
  %v3122 = vpop.f32.mrb[0].mxu0
  %v3123 = vadd.f32 0.0, %v3122
  %v3124 = vpop.f32.mrb[0].mxu0
  %3125 = vmatprep.mubr.f32.mxu0 0.0
  %3126 = vmatmul.mubr.f32.gmra.mrb[0].mxu0 %v2855
  %v3127 = vpop.f32.mrb[0].mxu0
  %v3128 = vadd.f32 0.0, %v3127
  %v3129 = vpop.f32.mrb[0].mxu0
  %3130 = vmatprep.mubr.f32.mxu0 0.0
  %3131 = vmatmul.mubr.f32.gmra.mrb[0].mxu0 %v2858
  %v3132 = vpop.f32.mrb[0].mxu0
  %v3133 = vadd.f32 0.0, %v3132
  %v3134 = vpop.f32.mrb[0].mxu0
  %3135 = vmatprep.mubr.f32.mxu0 0.0
  %3136 = vmatmul.mubr.f32.gmra.mrb[0].mxu0 %v2861
  %v3137 = vpop.f32.mrb[0].mxu0
  %v3138 = vadd.f32 0.0, %v3137
  %v3139 = vpop.f32.mrb[0].mxu0
  %3140 = vmatprep.mubr.f32.mxu0 0.0
  %3141 = vmatmul.mubr.f32.gmra.mrb[0].mxu0 %v2864
  %v3142 = vpop.f32.mrb[0].mxu0
  %v3143 = vadd.f32 0.0, %v3142
  %v3144 = vpop.f32.mrb[0].mxu0
  %3145 = vmatprep.mubr.f32.mxu0 0.0
  %3146 = vmatmul.mubr.f32.gmra.mrb[0].mxu0 %v2867
  %v3147 = vpop.f32.mrb[0].mxu0
  %v3148 = vadd.f32 0.0, %v3147
  %v3149 = vpop.f32.mrb[0].mxu0
  %3150 = vmatprep.mubr.f32.mxu0 0.0
  %3151 = vmatmul.mubr.f32.gmra.mrb[0].mxu0 %v2870
  %v3152 = vpop.f32.mrb[0].mxu0
  %v3153 = vadd.f32 0.0, %v3152
  %v3154 = vpop.f32.mrb[0].mxu0
  %3155 = vmatprep.mubr.f32.mxu0 0.0
  %3156 = vmatmul.mubr.f32.gmra.mrb[0].mxu0 %v2873
  %v3157 = vpop.f32.mrb[0].mxu0
  %v3158 = vadd.f32 0.0, %v3157
  %v3159 = vpop.f32.mrb[0].mxu0
  %3160 = vmatprep.mubr.f32.mxu0 0.0
  %3161 = vmatmul.mubr.f32.gmra.mrb[0].mxu0 %v2876
  %v3162 = vpop.f32.mrb[0].mxu0
  %v3163 = vadd.f32 0.0, %v3162
  %v3164 = vpop.f32.mrb[0].mxu0
  %3165 = vmatprep.mubr.f32.mxu0 0.0
  %3166 = vmatmul.mubr.f32.gmra.mrb[0].mxu0 %v2879
  %v3167 = vpop.f32.mrb[0].mxu0
  %v3168 = vadd.f32 0.0, %v3167
  %v3169 = vpop.f32.mrb[0].mxu0
  %3170 = vmatprep.mubr.f32.mxu0 0.0
  %3171 = vmatmul.mubr.f32.gmra.mrb[0].mxu0 %v2882
  %v3172 = vpop.f32.mrb[0].mxu0
  %v3173 = vadd.f32 0.0, %v3172
  %v3174 = vpop.f32.mrb[0].mxu0
  %3175 = vmatprep.mubr.f32.mxu0 0.0
  %3176 = vmatmul.mubr.f32.gmra.mrb[0].mxu0 %v2885
  %v3177 = vpop.f32.mrb[0].mxu0
  %v3178 = vadd.f32 0.0, %v3177
  %v3179 = vpop.f32.mrb[0].mxu0
  %3180 = vmatprep.mubr.f32.mxu0 0.0
  %3181 = vmatmul.mubr.f32.gmra.mrb[0].mxu0 %v2888
  %v3182 = vpop.f32.mrb[0].mxu0
  %v3183 = vadd.f32 0.0, %v3182
  %v3184 = vpop.f32.mrb[0].mxu0
  %3185 = vmatprep.mubr.f32.mxu0 0.0
  %3186 = vmatmul.mubr.f32.gmra.mrb[0].mxu0 %v2891
  %v3187 = vpop.f32.mrb[0].mxu0
  %v3188 = vadd.f32 0.0, %v3187
  %v3189 = vpop.f32.mrb[0].mxu0
  %3190 = vmatprep.mubr.f32.mxu0 0.0
  %3191 = vmatmul.mubr.f32.gmra.mrb[0].mxu0 %v2894
  %v3192 = vpop.f32.mrb[0].mxu0
  %v3193 = vadd.f32 0.0, %v3192
  %v3194 = vpop.f32.mrb[0].mxu0
  %3195 = vmatprep.mubr.f32.mxu0 0.0
  %3196 = vmatmul.mubr.f32.gmra.mrb[0].mxu0 %v2897
  %v3197 = vpop.f32.mrb[0].mxu0
  %v3198 = vadd.f32 0.0, %v3197
  %v3199 = vpop.f32.mrb[0].mxu0
  %3200 = vmatprep.mubr.f32.mxu0 0.0
  %3201 = vmatmul.mubr.f32.gmra.mrb[0].mxu0 %v2900
  %v3202 = vpop.f32.mrb[0].mxu0
  %v3203 = vadd.f32 0.0, %v3202
  %v3204 = vpop.f32.mrb[0].mxu0
  %3205 = vmatprep.mubr.f32.mxu0 0.0
  %3206 = vmatmul.mubr.f32.gmra.mrb[0].mxu0 %v2903
  %v3207 = vpop.f32.mrb[0].mxu0
  %v3208 = vadd.f32 0.0, %v3207
  %v3209 = vpop.f32.mrb[0].mxu0
  %3210 = vmatprep.mubr.f32.mxu0 0.0
  %3211 = vmatmul.mubr.f32.gmra.mrb[0].mxu0 %v2906
  %v3212 = vpop.f32.mrb[0].mxu0
  %v3213 = vadd.f32 0.0, %v3212
  %v3214 = vpop.f32.mrb[0].mxu0
  %3215 = vmatprep.mubr.f32.mxu0 0.0
  %3216 = vmatmul.mubr.f32.gmra.mrb[0].mxu0 %v2909
  %v3217 = vpop.f32.mrb[0].mxu0
  %v3218 = vadd.f32 0.0, %v3217
  %v3219 = vpop.f32.mrb[0].mxu0
  %3220 = vmatprep.mubr.f32.mxu0 0.0
  %3221 = vmatmul.mubr.f32.gmra.mrb[0].mxu0 %v2912
  %v3222 = vpop.f32.mrb[0].mxu0
  %v3223 = vadd.f32 0.0, %v3222
  %v3224 = vpop.f32.mrb[0].mxu0
  %3225 = vmatprep.mubr.f32.mxu0 0.0
  %3226 = vmatmul.mubr.f32.gmra.mrb[0].mxu0 %v2915
  %v3227 = vpop.f32.mrb[0].mxu0
  %v3228 = vadd.f32 0.0, %v3227
  %v3229 = vpop.f32.mrb[0].mxu0
  %3230 = vmatprep.mubr.f32.mxu0 0.0
  %3231 = vmatmul.mubr.f32.gmra.mrb[0].mxu0 %v2918
  %v3232 = vpop.f32.mrb[0].mxu0
  %v3233 = vadd.f32 0.0, %v3232
  %v3234 = vpop.f32.mrb[0].mxu0
  %3235 = vmatprep.mubr.f32.mxu0 0.0
  %3236 = vmatmul.mubr.f32.gmra.mrb[0].mxu0 %v2921
  %v3237 = vpop.f32.mrb[0].mxu0
  %v3238 = vadd.f32 0.0, %v3237
  %v3239 = vpop.f32.mrb[0].mxu0
  %3240 = vmatprep.mubr.f32.mxu0 0.0
  %3241 = vmatmul.mubr.f32.gmra.mrb[0].mxu0 %v2924
  %v3242 = vpop.f32.mrb[0].mxu0
  %v3243 = vadd.f32 0.0, %v3242
  %v3244 = vpop.f32.mrb[0].mxu0
  %3245 = vmatprep.mubr.f32.mxu0 0.0
  %3246 = vmatmul.mubr.f32.gmra.mrb[0].mxu0 %v2927
  %v3247 = vpop.f32.mrb[0].mxu0
  %v3248 = vadd.f32 0.0, %v3247
  %v3249 = vpop.f32.mrb[0].mxu0
  %3250 = vmatprep.mubr.f32.mxu0 0.0
  %3251 = vmatmul.mubr.f32.gmra.mrb[0].mxu0 %v2930
  %v3252 = vpop.f32.mrb[0].mxu0
  %v3253 = vadd.f32 0.0, %v3252
  %v3254 = vpop.f32.mrb[0].mxu0
  %3255 = vmatprep.mubr.f32.mxu0 0.0
  %3256 = vmatmul.mubr.f32.gmra.mrb[0].mxu0 %v2933
  %v3257 = vpop.f32.mrb[0].mxu0
  %v3258 = vadd.f32 0.0, %v3257
  %v3259 = vpop.f32.mrb[0].mxu0
  %3260 = vmatprep.mubr.f32.mxu0 0.0
  %3261 = vmatmul.mubr.f32.gmra.mrb[0].mxu0 %v2936
  %v3262 = vpop.f32.mrb[0].mxu0
  %v3263 = vadd.f32 0.0, %v3262
  %v3264 = vpop.f32.mrb[0].mxu0
  %3265 = vmatprep.mubr.f32.mxu0 0.0
  %3266 = vmatmul.mubr.f32.gmra.mrb[0].mxu0 %v2939
  %v3267 = vpop.f32.mrb[0].mxu0
  %v3268 = vadd.f32 0.0, %v3267
  %v3269 = vpop.f32.mrb[0].mxu0
  %3270 = vmatprep.mubr.f32.mxu0 0.0
  %3271 = vmatmul.mubr.f32.gmra.mrb[0].mxu0 %v2942
  %v3272 = vpop.f32.mrb[0].mxu0
  %v3273 = vadd.f32 0.0, %v3272
  %v3274 = vpop.f32.mrb[0].mxu0
  %3275 = vmatprep.mubr.f32.mxu0 0.0
  %3276 = vmatmul.mubr.f32.gmra.mrb[0].mxu0 %v2945
  %v3277 = vpop.f32.mrb[0].mxu0
  %v3278 = vadd.f32 0.0, %v3277
  %v3279 = vpop.f32.mrb[0].mxu0
  %3280 = vmatprep.mubr.f32.mxu0 0.0
  %3281 = vmatmul.mubr.f32.gmra.mrb[0].mxu0 %v2948
  %v3282 = vpop.f32.mrb[0].mxu0
  %v3283 = vadd.f32 0.0, %v3282
  %v3284 = vpop.f32.mrb[0].mxu0
  %3285 = vmatprep.mubr.f32.mxu0 0.0
  %3286 = vmatmul.mubr.f32.gmra.mrb[0].mxu0 %v2951
  %v3287 = vpop.f32.mrb[0].mxu0
  %v3288 = vadd.f32 0.0, %v3287
  %v3289 = vpop.f32.mrb[0].mxu0
  %3290 = vmatprep.mubr.f32.mxu0 0.0
  %3291 = vmatmul.mubr.f32.gmra.mrb[0].mxu0 %v2954
  %v3292 = vpop.f32.mrb[0].mxu0
  %v3293 = vadd.f32 0.0, %v3292
  %v3294 = vpop.f32.mrb[0].mxu0
  %3295 = vmatprep.mubr.f32.mxu0 0.0
  %3296 = vmatmul.mubr.f32.gmra.mrb[0].mxu0 %v2957
  %v3297 = vpop.f32.mrb[0].mxu0
  %v3298 = vadd.f32 0.0, %v3297
  %v3299 = vpop.f32.mrb[0].mxu0
  %3300 = vmatprep.mubr.f32.mxu0 0.0
  %3301 = vmatmul.mubr.f32.gmra.mrb[0].mxu0 %v2960
  %v3302 = vpop.f32.mrb[0].mxu0
  %v3303 = vadd.f32 0.0, %v3302
  %v3304 = vpop.f32.mrb[0].mxu0
  %3305 = vmatprep.mubr.f32.mxu0 0.0
  %3306 = vmatmul.mubr.f32.gmra.mrb[0].mxu0 %v2963
  %v3307 = vpop.f32.mrb[0].mxu0
  %v3308 = vadd.f32 0.0, %v3307
  %v3309 = vpop.f32.mrb[0].mxu0
  %3310 = vmatprep.mubr.f32.mxu0 0.0
  %3311 = vmatmul.mubr.f32.gmra.mrb[0].mxu0 %v2966
  %v3312 = vpop.f32.mrb[0].mxu0
  %v3313 = vadd.f32 0.0, %v3312
  %v3314 = vpop.f32.mrb[0].mxu0
  %3315 = vmatprep.mubr.f32.mxu0 0.0
  %3316 = vmatmul.mubr.f32.gmra.mrb[0].mxu0 %v2969
  %v3317 = vpop.f32.mrb[0].mxu0
  %v3318 = vadd.f32 0.0, %v3317
  %v3319 = vpop.f32.mrb[0].mxu0
  %3320 = vmatprep.mubr.f32.mxu0 0.0
  %3321 = vmatmul.mubr.f32.gmra.mrb[0].mxu0 %v2972
  %v3322 = vpop.f32.mrb[0].mxu0
  %v3323 = vadd.f32 0.0, %v3322
  %v3324 = vpop.f32.mrb[0].mxu0
  %3325 = vmatprep.mubr.f32.mxu0 0.0
  %3326 = vmatmul.mubr.f32.gmra.mrb[0].mxu0 %v2975
  %v3327 = vpop.f32.mrb[0].mxu0
  %v3328 = vadd.f32 0.0, %v3327
  %v3329 = vpop.f32.mrb[0].mxu0
  %3330 = vmatprep.mubr.f32.mxu0 0.0
  %3331 = vmatmul.mubr.f32.gmra.mrb[0].mxu0 %v2978
  %v3332 = vpop.f32.mrb[0].mxu0
  %v3333 = vadd.f32 0.0, %v3332
  %v3334 = vpop.f32.mrb[0].mxu0
  %3335 = vmatprep.mubr.f32.mxu0 0.0
  %3336 = vmatmul.mubr.f32.gmra.mrb[0].mxu0 %v2981
  %v3337 = vpop.f32.mrb[0].mxu0
  %v3338 = vadd.f32 0.0, %v3337
  %v3339 = vpop.f32.mrb[0].mxu0
  %3340 = vmatprep.mubr.f32.mxu0 0.0
  %3341 = vmatmul.mubr.f32.gmra.mrb[0].mxu0 %v2984
  %v3342 = vpop.f32.mrb[0].mxu0
  %v3343 = vadd.f32 0.0, %v3342
  %v3344 = vpop.f32.mrb[0].mxu0
  %3345 = vmatprep.mubr.f32.mxu0 0.0
  %3346 = vmatmul.mubr.f32.gmra.mrb[0].mxu0 %v2987
  %v3347 = vpop.f32.mrb[0].mxu0
  %v3348 = vadd.f32 0.0, %v3347
  %v3349 = vpop.f32.mrb[0].mxu0
  %3350 = vmatprep.mubr.f32.mxu0 0.0
  %3351 = vmatmul.mubr.f32.gmra.mrb[0].mxu0 %v2990
  %v3352 = vpop.f32.mrb[0].mxu0
  %v3353 = vadd.f32 0.0, %v3352
  %v3354 = vpop.f32.mrb[0].mxu0
  %3355 = vmatprep.mubr.f32.mxu0 0.0
  %3356 = vmatmul.mubr.f32.gmra.mrb[0].mxu0 %v2993
  %v3357 = vpop.f32.mrb[0].mxu0
  %v3358 = vadd.f32 0.0, %v3357
  %v3359 = vpop.f32.mrb[0].mxu0
  %3360 = vmatprep.mubr.f32.mxu0 0.0
  %3361 = vmatmul.mubr.f32.gmra.mrb[0].mxu0 %v2996
  %v3362 = vpop.f32.mrb[0].mxu0
  %v3363 = vadd.f32 0.0, %v3362
  %v3364 = vpop.f32.mrb[0].mxu0
  %3365 = vmatprep.mubr.f32.mxu0 0.0
  %3366 = vmatmul.mubr.f32.gmra.mrb[0].mxu0 %v2999
  %v3367 = vpop.f32.mrb[0].mxu0
  %v3368 = vadd.f32 0.0, %v3367
  %v3369 = vpop.f32.mrb[0].mxu0
  %3370 = vmatprep.mubr.f32.mxu0 0.0
  %3371 = vmatmul.mubr.f32.gmra.mrb[0].mxu0 %v3002
  %v3372 = vpop.f32.mrb[0].mxu0
  %v3373 = vadd.f32 0.0, %v3372
  %v3374 = vpop.f32.mrb[0].mxu0
  %3375 = vmatprep.mubr.f32.mxu0 0.0
  %3376 = vmatmul.mubr.f32.gmra.mrb[0].mxu0 %v3005
  %v3377 = vpop.f32.mrb[0].mxu0
  %v3378 = vadd.f32 0.0, %v3377
  %v3379 = vpop.f32.mrb[0].mxu0
  %3380 = vmatprep.mubr.f32.mxu0 0.0
  %3381 = vmatmul.mubr.f32.gmra.mrb[0].mxu0 %v3008
  %v3382 = vpop.f32.mrb[0].mxu0
  %v3383 = vadd.f32 0.0, %v3382
  %v3384 = vpop.f32.mrb[0].mxu0
  %3385 = vmatprep.mubr.f32.mxu0 0.0
  %3386 = vmatmul.mubr.f32.gmra.mrb[0].mxu0 %v3011
  %v3387 = vpop.f32.mrb[0].mxu0
  %v3388 = vadd.f32 0.0, %v3387
  %v3389 = vpop.f32.mrb[0].mxu0
  %3390 = vmatprep.mubr.f32.mxu0 0.0
  %3391 = vmatmul.mubr.f32.gmra.mrb[0].mxu0 %v3014
  %v3392 = vpop.f32.mrb[0].mxu0
  %v3393 = vadd.f32 0.0, %v3392
  %v3394 = vpop.f32.mrb[0].mxu0
  %3395 = vmatprep.mubr.f32.mxu0 0.0
  %3396 = vmatmul.mubr.f32.gmra.mrb[0].mxu0 %v3017
  %v3397 = vpop.f32.mrb[0].mxu0
  %v3398 = vadd.f32 0.0, %v3397
  %v3399 = vpop.f32.mrb[0].mxu0
  %3400 = vmatprep.mubr.f32.mxu0 0.0
  %3401 = vmatmul.mubr.f32.gmra.mrb[0].mxu0 %v3020
  %v3402 = vpop.f32.mrb[0].mxu0
  %v3403 = vadd.f32 0.0, %v3402
  %v3404 = vpop.f32.mrb[0].mxu0
  %3405 = vmatprep.mubr.f32.mxu0 0.0
  %3406 = vmatmul.mubr.f32.gmra.mrb[0].mxu0 %v3023
  %v3407 = vpop.f32.mrb[0].mxu0
  %v3408 = vadd.f32 0.0, %v3407
  %v3409 = vpop.f32.mrb[0].mxu0
  %3410 = vmatprep.mubr.f32.mxu0 0.0
  %3411 = vmatmul.mubr.f32.gmra.mrb[0].mxu0 %v3026
  %v3412 = vpop.f32.mrb[0].mxu0
  %v3413 = vadd.f32 0.0, %v3412
  %v3414 = vpop.f32.mrb[0].mxu0
  %3415 = vdwg.mxu0
  %v3416 = vadd.f32 %v2706, %v3098
  %v3417 = vadd.f32 %v2707, %v3103
  %v3418 = vadd.f32 %v2708, %v3108
  %v3419 = vadd.f32 %v2709, %v3113
  %v3420 = vadd.f32 %v2710, %v3118
  %v3421 = vadd.f32 %v2711, %v3123
  %v3422 = vadd.f32 %v2712, %v3128
  %v3423 = vadd.f32 %v2713, %v3133
  %v3424 = vadd.f32 %v2714, %v3138
  %v3425 = vadd.f32 %v2715, %v3143
  %v3426 = vadd.f32 %v2716, %v3148
  %v3427 = vadd.f32 %v2717, %v3153
  %v3428 = vadd.f32 %v2718, %v3158
  %v3429 = vadd.f32 %v2719, %v3163
  %v3430 = vadd.f32 %v2720, %v3168
  %v3431 = vadd.f32 %v2721, %v3173
  %v3432 = vadd.f32 %v2722, %v3178
  %v3433 = vadd.f32 %v2723, %v3183
  %v3434 = vadd.f32 %v2724, %v3188
  %v3435 = vadd.f32 %v2725, %v3193
  %v3436 = vadd.f32 %v2726, %v3198
  %v3437 = vadd.f32 %v2727, %v3203
  %v3438 = vadd.f32 %v2728, %v3208
  %v3439 = vadd.f32 %v2729, %v3213
  %v3440 = vadd.f32 %v2730, %v3218
  %v3441 = vadd.f32 %v2731, %v3223
  %v3442 = vadd.f32 %v2732, %v3228
  %v3443 = vadd.f32 %v2733, %v3233
  %v3444 = vadd.f32 %v2734, %v3238
  %v3445 = vadd.f32 %v2735, %v3243
  %v3446 = vadd.f32 %v2736, %v3248
  %v3447 = vadd.f32 %v2737, %v3253
  %v3448 = vadd.f32 %v2738, %v3258
  %v3449 = vadd.f32 %v2739, %v3263
  %v3450 = vadd.f32 %v2740, %v3268
  %v3451 = vadd.f32 %v2741, %v3273
  %v3452 = vadd.f32 %v2742, %v3278
  %v3453 = vadd.f32 %v2743, %v3283
  %v3454 = vadd.f32 %v2744, %v3288
  %v3455 = vadd.f32 %v2745, %v3293
  %v3456 = vadd.f32 %v2746, %v3298
  %v3457 = vadd.f32 %v2747, %v3303
  %v3458 = vadd.f32 %v2748, %v3308
  %v3459 = vadd.f32 %v2749, %v3313
  %v3460 = vadd.f32 %v2750, %v3318
  %v3461 = vadd.f32 %v2751, %v3323
  %v3462 = vadd.f32 %v2752, %v3328
  %v3463 = vadd.f32 %v2753, %v3333
  %v3464 = vadd.f32 %v2754, %v3338
  %v3465 = vadd.f32 %v2755, %v3343
  %v3466 = vadd.f32 %v2756, %v3348
  %v3467 = vadd.f32 %v2757, %v3353
  %v3468 = vadd.f32 %v2758, %v3358
  %v3469 = vadd.f32 %v2759, %v3363
  %v3470 = vadd.f32 %v2760, %v3368
  %v3471 = vadd.f32 %v2761, %v3373
  %v3472 = vadd.f32 %v2762, %v3378
  %v3473 = vadd.f32 %v2763, %v3383
  %v3474 = vadd.f32 %v2764, %v3388
  %v3475 = vadd.f32 %v2765, %v3393
  %v3476 = vadd.f32 %v2766, %v3398
  %v3477 = vadd.f32 %v2767, %v3403
  %v3478 = vadd.f32 %v2768, %v3408
  %v3479 = vadd.f32 %v2769, %v3413
  %v3480 = vld [vmem:[%s2059 + $0x2] sm:$0xff]
  %v3481 = vld [vmem:[%s2059 + $0xa] sm:$0xff]
  %v3482 = vld [vmem:[%s2059 + $0x1a] sm:$0xff]
  %v3483 = vld [vmem:[%s2059 + $0x22] sm:$0xff]
  %v3484 = vld [vmem:[%s2059 + $0x32] sm:$0xff]
  %v3485 = vld [vmem:[%s2059 + $0x3a] sm:$0xff]
  %v3486 = vld [vmem:[%s2059 + $0x4a] sm:$0xff]
  %v3487 = vld [vmem:[%s2059 + $0x52] sm:$0xff]
  %v3488 = vld [vmem:[%s2059 + $0x62] sm:$0xff]
  %v3489 = vld [vmem:[%s2059 + $0x6a] sm:$0xff]
  %v3490 = vld [vmem:[%s2059 + $0x7a] sm:$0xff]
  %v3491 = vld [vmem:[%s2059 + $0x82] sm:$0xff]
  %v3492 = vld [vmem:[%s2059 + $0x92] sm:$0xff]
  %v3493 = vld [vmem:[%s2059 + $0x9a] sm:$0xff]
  %v3494 = vld [vmem:[%s2059 + $0xaa] sm:$0xff]
  %v3495 = vld [vmem:[%s2059 + $0xb2] sm:$0xff]
  %v3496 = vld [vmem:[%s2059 + $0xc2] sm:$0xff]
  %v3497 = vld [vmem:[%s2059 + $0xca] sm:$0xff]
  %v3498 = vld [vmem:[%s2059 + $0xda] sm:$0xff]
  %v3499 = vld [vmem:[%s2059 + $0xe2] sm:$0xff]
  %v3500 = vld [vmem:[%s2059 + $0xf2] sm:$0xff]
  %v3501 = vld [vmem:[%s2059 + $0xfa] sm:$0xff]
  %v3502 = vld [vmem:[%s2059 + $0x10a] sm:$0xff]
  %v3503 = vld [vmem:[%s2059 + $0x112] sm:$0xff]
  %v3504 = vld [vmem:[%s2059 + $0x122] sm:$0xff]
  %v3505 = vld [vmem:[%s2059 + $0x12a] sm:$0xff]
  %v3506 = vld [vmem:[%s2059 + $0x13a] sm:$0xff]
  %v3507 = vld [vmem:[%s2059 + $0x142] sm:$0xff]
  %v3508 = vld [vmem:[%s2059 + $0x152] sm:$0xff]
  %v3509 = vld [vmem:[%s2059 + $0x15a] sm:$0xff]
  %v3510 = vld [vmem:[%s2059 + $0x16a] sm:$0xff]
  %v3511 = vld [vmem:[%s2059 + $0x172] sm:$0xff]
  %v3512 = vld [vmem:[%s2059 + $0x1b2] sm:$0xff]
  %v3513 = vld [vmem:[%s2059 + $0x1ba] sm:$0xff]
  %v3514 = vld [vmem:[%s2059 + $0x1ca] sm:$0xff]
  %v3515 = vld [vmem:[%s2059 + $0x1d2] sm:$0xff]
  %v3516 = vld [vmem:[%s2059 + $0x1e2] sm:$0xff]
  %v3517 = vld [vmem:[%s2059 + $0x1ea] sm:$0xff]
  %v3518 = vld [vmem:[%s2059 + $0x1fa] sm:$0xff]
  %v3519 = vld [vmem:[%s2059 + $0x202] sm:$0xff]
  %v3520 = vld [vmem:[%s2059 + $0x212] sm:$0xff]
  %v3521 = vld [vmem:[%s2059 + $0x21a] sm:$0xff]
  %v3522 = vld [vmem:[%s2059 + $0x22a] sm:$0xff]
  %v3523 = vld [vmem:[%s2059 + $0x232] sm:$0xff]
  %v3524 = vld [vmem:[%s2059 + $0x242] sm:$0xff]
  %v3525 = vld [vmem:[%s2059 + $0x24a] sm:$0xff]
  %v3526 = vld [vmem:[%s2059 + $0x25a] sm:$0xff]
  %v3527 = vld [vmem:[%s2059 + $0x262] sm:$0xff]
  %v3528 = vld [vmem:[%s2059 + $0x272] sm:$0xff]
  %v3529 = vld [vmem:[%s2059 + $0x27a] sm:$0xff]
  %v3530 = vld [vmem:[%s2059 + $0x28a] sm:$0xff]
  %v3531 = vld [vmem:[%s2059 + $0x292] sm:$0xff]
  %v3532 = vld [vmem:[%s2059 + $0x2a2] sm:$0xff]
  %v3533 = vld [vmem:[%s2059 + $0x2aa] sm:$0xff]
  %v3534 = vld [vmem:[%s2059 + $0x2ba] sm:$0xff]
  %v3535 = vld [vmem:[%s2059 + $0x2c2] sm:$0xff]
  %v3536 = vld [vmem:[%s2059 + $0x2d2] sm:$0xff]
  %v3537 = vld [vmem:[%s2059 + $0x2da] sm:$0xff]
  %v3538 = vld [vmem:[%s2059 + $0x2ea] sm:$0xff]
  %v3539 = vld [vmem:[%s2059 + $0x2f2] sm:$0xff]
  %v3540 = vld [vmem:[%s2059 + $0x302] sm:$0xff]
  %v3541 = vld [vmem:[%s2059 + $0x30a] sm:$0xff]
  %v3542 = vld [vmem:[%s2059 + $0x31a] sm:$0xff]
  %v3543 = vld [vmem:[%s2059 + $0x322] sm:$0xff]
  %s3544 = scalar_lea.vmem %s2, 20
  %v3545 = vld [vmem:[%s3544] sm:$0x7]
  %v3547 = vsel %vm187, %v3480, 0
  %v3550 = vsel %vm187, %v3481, 0
  %v3553 = vsel %vm187, %v3482, 0
  %v3556 = vsel %vm187, %v3483, 0
  %v3559 = vsel %vm187, %v3484, 0
  %v3562 = vsel %vm187, %v3485, 0
  %v3565 = vsel %vm187, %v3486, 0
  %v3568 = vsel %vm187, %v3487, 0
  %v3571 = vsel %vm187, %v3488, 0
  %v3574 = vsel %vm187, %v3489, 0
  %v3577 = vsel %vm187, %v3490, 0
  %v3580 = vsel %vm187, %v3491, 0
  %v3583 = vsel %vm187, %v3492, 0
  %v3586 = vsel %vm187, %v3493, 0
  %v3589 = vsel %vm187, %v3494, 0
  %v3592 = vsel %vm187, %v3495, 0
  %v3595 = vsel %vm187, %v3496, 0
  %v3598 = vsel %vm187, %v3497, 0
  %v3601 = vsel %vm187, %v3498, 0
  %v3604 = vsel %vm187, %v3499, 0
  %v3607 = vsel %vm187, %v3500, 0
  %v3610 = vsel %vm187, %v3501, 0
  %v3613 = vsel %vm187, %v3502, 0
  %v3616 = vsel %vm187, %v3503, 0
  %v3619 = vsel %vm187, %v3504, 0
  %v3622 = vsel %vm187, %v3505, 0
  %v3625 = vsel %vm187, %v3506, 0
  %v3628 = vsel %vm187, %v3507, 0
  %v3631 = vsel %vm187, %v3508, 0
  %v3634 = vsel %vm187, %v3509, 0
  %v3637 = vsel %vm187, %v3510, 0
  %v3640 = vsel %vm187, %v3511, 0
  %v3643 = vsel %vm187, %v3512, 0
  %v3646 = vsel %vm187, %v3513, 0
  %v3649 = vsel %vm187, %v3514, 0
  %v3652 = vsel %vm187, %v3515, 0
  %v3655 = vsel %vm187, %v3516, 0
  %v3658 = vsel %vm187, %v3517, 0
  %v3661 = vsel %vm187, %v3518, 0
  %v3664 = vsel %vm187, %v3519, 0
  %v3667 = vsel %vm187, %v3520, 0
  %v3670 = vsel %vm187, %v3521, 0
  %v3673 = vsel %vm187, %v3522, 0
  %v3676 = vsel %vm187, %v3523, 0
  %v3679 = vsel %vm187, %v3524, 0
  %v3682 = vsel %vm187, %v3525, 0
  %v3685 = vsel %vm187, %v3526, 0
  %v3688 = vsel %vm187, %v3527, 0
  %v3691 = vsel %vm187, %v3528, 0
  %v3694 = vsel %vm187, %v3529, 0
  %v3697 = vsel %vm187, %v3530, 0
  %v3700 = vsel %vm187, %v3531, 0
  %v3703 = vsel %vm187, %v3532, 0
  %v3706 = vsel %vm187, %v3533, 0
  %v3709 = vsel %vm187, %v3534, 0
  %v3712 = vsel %vm187, %v3535, 0
  %v3715 = vsel %vm187, %v3536, 0
  %v3718 = vsel %vm187, %v3537, 0
  %v3721 = vsel %vm187, %v3538, 0
  %v3724 = vsel %vm187, %v3539, 0
  %v3727 = vsel %vm187, %v3540, 0
  %v3730 = vsel %vm187, %v3541, 0
  %v3733 = vsel %vm187, %v3542, 0
  %v3736 = vsel %vm187, %v3543, 0
  %v3739 = vsel %vm380, %v3545, 0
  %3741 = vmatprep.subr.mxu0 0.0
  %3742 = vmatpush1.msra.mxu0 %v3739
  %3743 = vmatprep.subr.mxu0 0.0
  %3744 = vmatpush1.msra.mxu0 0.0
  %3745 = vmatprep.subr.mxu0 0.0
  %3746 = vmatpush1.msra.mxu0 0.0
  %3747 = vmatprep.subr.mxu0 0.0
  %3748 = vmatpush1.msra.mxu0 0.0
  %3749 = vmatprep.subr.mxu0 0.0
  %3750 = vmatpush1.msra.mxu0 0.0
  %3751 = vmatprep.subr.mxu0 0.0
  %3752 = vmatpush1.msra.mxu0 0.0
  %3753 = vmatprep.subr.mxu0 0.0
  %3754 = vmatpush1.msra.mxu0 0.0
  %3755 = vmatprep.subr.mxu0 0.0
  %3756 = vmatpush1.msra.mxu0 0.0
  %3757 = vmatprep.subr.mxu0 0.0
  %3758 = vmatpush1.msra.mxu0 0.0
  %3759 = vmatprep.subr.mxu0 0.0
  %3760 = vmatpush1.msra.mxu0 0.0
  %3761 = vmatprep.subr.mxu0 0.0
  %3762 = vmatpush1.msra.mxu0 0.0
  %3763 = vmatprep.subr.mxu0 0.0
  %3764 = vmatpush1.msra.mxu0 0.0
  %3765 = vmatprep.subr.mxu0 0.0
  %3766 = vmatpush1.msra.mxu0 0.0
  %3767 = vmatprep.subr.mxu0 0.0
  %3768 = vmatpush1.msra.mxu0 0.0
  %3769 = vmatprep.subr.mxu0 0.0
  %3770 = vmatpush1.msra.mxu0 0.0
  %3771 = vmatprep.subr.mxu0 0.0
  %3772 = vmatpush1.msra.mxu0 0.0
  %3773 = vmatprep.subr.mxu0 0.0
  %3774 = vmatpush1.msra.mxu0 0.0
  %3775 = vmatprep.subr.mxu0 0.0
  %3776 = vmatpush1.msra.mxu0 0.0
  %3777 = vmatprep.subr.mxu0 0.0
  %3778 = vmatpush1.msra.mxu0 0.0
  %3779 = vmatprep.subr.mxu0 0.0
  %3780 = vmatpush1.msra.mxu0 0.0
  %3781 = vmatprep.subr.mxu0 0.0
  %3782 = vmatpush1.msra.mxu0 0.0
  %3783 = vmatprep.subr.mxu0 0.0
  %3784 = vmatpush1.msra.mxu0 0.0
  %3785 = vmatprep.subr.mxu0 0.0
  %3786 = vmatpush1.msra.mxu0 0.0
  %3787 = vmatprep.subr.mxu0 0.0
  %3788 = vmatpush1.msra.mxu0 0.0
  %3789 = vmatprep.subr.mxu0 0.0
  %3790 = vmatpush1.msra.mxu0 0.0
  %3791 = vmatprep.subr.mxu0 0.0
  %3792 = vmatpush1.msra.mxu0 0.0
  %3793 = vmatprep.subr.mxu0 0.0
  %3794 = vmatpush1.msra.mxu0 0.0
  %3795 = vmatprep.subr.mxu0 0.0
  %3796 = vmatpush1.msra.mxu0 0.0
  %3797 = vmatprep.subr.mxu0 0.0
  %3798 = vmatpush1.msra.mxu0 0.0
  %3799 = vmatprep.subr.mxu0 0.0
  %3800 = vmatpush1.msra.mxu0 0.0
  %3801 = vmatprep.subr.mxu0 0.0
  %3802 = vmatpush1.msra.mxu0 0.0
  %3803 = vmatprep.subr.mxu0 0.0
  %3804 = vmatpush1.msra.mxu0 0.0
  %3805 = vmatprep.mubr.f32.mxu0 0.0
  %3806 = vmatmul.mubr.f32.gmra.mrb[0].mxu0 %v3547
  %v3807 = vpop.f32.mrb[0].mxu0
  %v3808 = vadd.f32 0.0, %v3807
  %v3809 = vpop.f32.mrb[0].mxu0
  %3810 = vmatprep.mubr.f32.mxu0 0.0
  %3811 = vmatmul.mubr.f32.gmra.mrb[0].mxu0 %v3550
  %v3812 = vpop.f32.mrb[0].mxu0
  %v3813 = vadd.f32 0.0, %v3812
  %v3814 = vpop.f32.mrb[0].mxu0
  %3815 = vmatprep.mubr.f32.mxu0 0.0
  %3816 = vmatmul.mubr.f32.gmra.mrb[0].mxu0 %v3553
  %v3817 = vpop.f32.mrb[0].mxu0
  %v3818 = vadd.f32 0.0, %v3817
  %v3819 = vpop.f32.mrb[0].mxu0
  %3820 = vmatprep.mubr.f32.mxu0 0.0
  %3821 = vmatmul.mubr.f32.gmra.mrb[0].mxu0 %v3556
  %v3822 = vpop.f32.mrb[0].mxu0
  %v3823 = vadd.f32 0.0, %v3822
  %v3824 = vpop.f32.mrb[0].mxu0
  %3825 = vmatprep.mubr.f32.mxu0 0.0
  %3826 = vmatmul.mubr.f32.gmra.mrb[0].mxu0 %v3559
  %v3827 = vpop.f32.mrb[0].mxu0
  %v3828 = vadd.f32 0.0, %v3827
  %v3829 = vpop.f32.mrb[0].mxu0
  %3830 = vmatprep.mubr.f32.mxu0 0.0
  %3831 = vmatmul.mubr.f32.gmra.mrb[0].mxu0 %v3562
  %v3832 = vpop.f32.mrb[0].mxu0
  %v3833 = vadd.f32 0.0, %v3832
  %v3834 = vpop.f32.mrb[0].mxu0
  %3835 = vmatprep.mubr.f32.mxu0 0.0
  %3836 = vmatmul.mubr.f32.gmra.mrb[0].mxu0 %v3565
  %v3837 = vpop.f32.mrb[0].mxu0
  %v3838 = vadd.f32 0.0, %v3837
  %v3839 = vpop.f32.mrb[0].mxu0
  %3840 = vmatprep.mubr.f32.mxu0 0.0
  %3841 = vmatmul.mubr.f32.gmra.mrb[0].mxu0 %v3568
  %v3842 = vpop.f32.mrb[0].mxu0
  %v3843 = vadd.f32 0.0, %v3842
  %v3844 = vpop.f32.mrb[0].mxu0
  %3845 = vmatprep.mubr.f32.mxu0 0.0
  %3846 = vmatmul.mubr.f32.gmra.mrb[0].mxu0 %v3571
  %v3847 = vpop.f32.mrb[0].mxu0
  %v3848 = vadd.f32 0.0, %v3847
  %v3849 = vpop.f32.mrb[0].mxu0
  %3850 = vmatprep.mubr.f32.mxu0 0.0
  %3851 = vmatmul.mubr.f32.gmra.mrb[0].mxu0 %v3574
  %v3852 = vpop.f32.mrb[0].mxu0
  %v3853 = vadd.f32 0.0, %v3852
  %v3854 = vpop.f32.mrb[0].mxu0
  %3855 = vmatprep.mubr.f32.mxu0 0.0
  %3856 = vmatmul.mubr.f32.gmra.mrb[0].mxu0 %v3577
  %v3857 = vpop.f32.mrb[0].mxu0
  %v3858 = vadd.f32 0.0, %v3857
  %v3859 = vpop.f32.mrb[0].mxu0
  %3860 = vmatprep.mubr.f32.mxu0 0.0
  %3861 = vmatmul.mubr.f32.gmra.mrb[0].mxu0 %v3580
  %v3862 = vpop.f32.mrb[0].mxu0
  %v3863 = vadd.f32 0.0, %v3862
  %v3864 = vpop.f32.mrb[0].mxu0
  %3865 = vmatprep.mubr.f32.mxu0 0.0
  %3866 = vmatmul.mubr.f32.gmra.mrb[0].mxu0 %v3583
  %v3867 = vpop.f32.mrb[0].mxu0
  %v3868 = vadd.f32 0.0, %v3867
  %v3869 = vpop.f32.mrb[0].mxu0
  %3870 = vmatprep.mubr.f32.mxu0 0.0
  %3871 = vmatmul.mubr.f32.gmra.mrb[0].mxu0 %v3586
  %v3872 = vpop.f32.mrb[0].mxu0
  %v3873 = vadd.f32 0.0, %v3872
  %v3874 = vpop.f32.mrb[0].mxu0
  %3875 = vmatprep.mubr.f32.mxu0 0.0
  %3876 = vmatmul.mubr.f32.gmra.mrb[0].mxu0 %v3589
  %v3877 = vpop.f32.mrb[0].mxu0
  %v3878 = vadd.f32 0.0, %v3877
  %v3879 = vpop.f32.mrb[0].mxu0
  %3880 = vmatprep.mubr.f32.mxu0 0.0
  %3881 = vmatmul.mubr.f32.gmra.mrb[0].mxu0 %v3592
  %v3882 = vpop.f32.mrb[0].mxu0
  %v3883 = vadd.f32 0.0, %v3882
  %v3884 = vpop.f32.mrb[0].mxu0
  %3885 = vmatprep.mubr.f32.mxu0 0.0
  %3886 = vmatmul.mubr.f32.gmra.mrb[0].mxu0 %v3595
  %v3887 = vpop.f32.mrb[0].mxu0
  %v3888 = vadd.f32 0.0, %v3887
  %v3889 = vpop.f32.mrb[0].mxu0
  %3890 = vmatprep.mubr.f32.mxu0 0.0
  %3891 = vmatmul.mubr.f32.gmra.mrb[0].mxu0 %v3598
  %v3892 = vpop.f32.mrb[0].mxu0
  %v3893 = vadd.f32 0.0, %v3892
  %v3894 = vpop.f32.mrb[0].mxu0
  %3895 = vmatprep.mubr.f32.mxu0 0.0
  %3896 = vmatmul.mubr.f32.gmra.mrb[0].mxu0 %v3601
  %v3897 = vpop.f32.mrb[0].mxu0
  %v3898 = vadd.f32 0.0, %v3897
  %v3899 = vpop.f32.mrb[0].mxu0
  %3900 = vmatprep.mubr.f32.mxu0 0.0
  %3901 = vmatmul.mubr.f32.gmra.mrb[0].mxu0 %v3604
  %v3902 = vpop.f32.mrb[0].mxu0
  %v3903 = vadd.f32 0.0, %v3902
  %v3904 = vpop.f32.mrb[0].mxu0
  %3905 = vmatprep.mubr.f32.mxu0 0.0
  %3906 = vmatmul.mubr.f32.gmra.mrb[0].mxu0 %v3607
  %v3907 = vpop.f32.mrb[0].mxu0
  %v3908 = vadd.f32 0.0, %v3907
  %v3909 = vpop.f32.mrb[0].mxu0
  %3910 = vmatprep.mubr.f32.mxu0 0.0
  %3911 = vmatmul.mubr.f32.gmra.mrb[0].mxu0 %v3610
  %v3912 = vpop.f32.mrb[0].mxu0
  %v3913 = vadd.f32 0.0, %v3912
  %v3914 = vpop.f32.mrb[0].mxu0
  %3915 = vmatprep.mubr.f32.mxu0 0.0
  %3916 = vmatmul.mubr.f32.gmra.mrb[0].mxu0 %v3613
  %v3917 = vpop.f32.mrb[0].mxu0
  %v3918 = vadd.f32 0.0, %v3917
  %v3919 = vpop.f32.mrb[0].mxu0
  %3920 = vmatprep.mubr.f32.mxu0 0.0
  %3921 = vmatmul.mubr.f32.gmra.mrb[0].mxu0 %v3616
  %v3922 = vpop.f32.mrb[0].mxu0
  %v3923 = vadd.f32 0.0, %v3922
  %v3924 = vpop.f32.mrb[0].mxu0
  %3925 = vmatprep.mubr.f32.mxu0 0.0
  %3926 = vmatmul.mubr.f32.gmra.mrb[0].mxu0 %v3619
  %v3927 = vpop.f32.mrb[0].mxu0
  %v3928 = vadd.f32 0.0, %v3927
  %v3929 = vpop.f32.mrb[0].mxu0
  %3930 = vmatprep.mubr.f32.mxu0 0.0
  %3931 = vmatmul.mubr.f32.gmra.mrb[0].mxu0 %v3622
  %v3932 = vpop.f32.mrb[0].mxu0
  %v3933 = vadd.f32 0.0, %v3932
  %v3934 = vpop.f32.mrb[0].mxu0
  %3935 = vmatprep.mubr.f32.mxu0 0.0
  %3936 = vmatmul.mubr.f32.gmra.mrb[0].mxu0 %v3625
  %v3937 = vpop.f32.mrb[0].mxu0
  %v3938 = vadd.f32 0.0, %v3937
  %v3939 = vpop.f32.mrb[0].mxu0
  %3940 = vmatprep.mubr.f32.mxu0 0.0
  %3941 = vmatmul.mubr.f32.gmra.mrb[0].mxu0 %v3628
  %v3942 = vpop.f32.mrb[0].mxu0
  %v3943 = vadd.f32 0.0, %v3942
  %v3944 = vpop.f32.mrb[0].mxu0
  %3945 = vmatprep.mubr.f32.mxu0 0.0
  %3946 = vmatmul.mubr.f32.gmra.mrb[0].mxu0 %v3631
  %v3947 = vpop.f32.mrb[0].mxu0
  %v3948 = vadd.f32 0.0, %v3947
  %v3949 = vpop.f32.mrb[0].mxu0
  %3950 = vmatprep.mubr.f32.mxu0 0.0
  %3951 = vmatmul.mubr.f32.gmra.mrb[0].mxu0 %v3634
  %v3952 = vpop.f32.mrb[0].mxu0
  %v3953 = vadd.f32 0.0, %v3952
  %v3954 = vpop.f32.mrb[0].mxu0
  %3955 = vmatprep.mubr.f32.mxu0 0.0
  %3956 = vmatmul.mubr.f32.gmra.mrb[0].mxu0 %v3637
  %v3957 = vpop.f32.mrb[0].mxu0
  %v3958 = vadd.f32 0.0, %v3957
  %v3959 = vpop.f32.mrb[0].mxu0
  %3960 = vmatprep.mubr.f32.mxu0 0.0
  %3961 = vmatmul.mubr.f32.gmra.mrb[0].mxu0 %v3640
  %v3962 = vpop.f32.mrb[0].mxu0
  %v3963 = vadd.f32 0.0, %v3962
  %v3964 = vpop.f32.mrb[0].mxu0
  %3965 = vmatprep.mubr.f32.mxu0 0.0
  %3966 = vmatmul.mubr.f32.gmra.mrb[0].mxu0 %v3643
  %v3967 = vpop.f32.mrb[0].mxu0
  %v3968 = vadd.f32 0.0, %v3967
  %v3969 = vpop.f32.mrb[0].mxu0
  %3970 = vmatprep.mubr.f32.mxu0 0.0
  %3971 = vmatmul.mubr.f32.gmra.mrb[0].mxu0 %v3646
  %v3972 = vpop.f32.mrb[0].mxu0
  %v3973 = vadd.f32 0.0, %v3972
  %v3974 = vpop.f32.mrb[0].mxu0
  %3975 = vmatprep.mubr.f32.mxu0 0.0
  %3976 = vmatmul.mubr.f32.gmra.mrb[0].mxu0 %v3649
  %v3977 = vpop.f32.mrb[0].mxu0
  %v3978 = vadd.f32 0.0, %v3977
  %v3979 = vpop.f32.mrb[0].mxu0
  %3980 = vmatprep.mubr.f32.mxu0 0.0
  %3981 = vmatmul.mubr.f32.gmra.mrb[0].mxu0 %v3652
  %v3982 = vpop.f32.mrb[0].mxu0
  %v3983 = vadd.f32 0.0, %v3982
  %v3984 = vpop.f32.mrb[0].mxu0
  %3985 = vmatprep.mubr.f32.mxu0 0.0
  %3986 = vmatmul.mubr.f32.gmra.mrb[0].mxu0 %v3655
  %v3987 = vpop.f32.mrb[0].mxu0
  %v3988 = vadd.f32 0.0, %v3987
  %v3989 = vpop.f32.mrb[0].mxu0
  %3990 = vmatprep.mubr.f32.mxu0 0.0
  %3991 = vmatmul.mubr.f32.gmra.mrb[0].mxu0 %v3658
  %v3992 = vpop.f32.mrb[0].mxu0
  %v3993 = vadd.f32 0.0, %v3992
  %v3994 = vpop.f32.mrb[0].mxu0
  %3995 = vmatprep.mubr.f32.mxu0 0.0
  %3996 = vmatmul.mubr.f32.gmra.mrb[0].mxu0 %v3661
  %v3997 = vpop.f32.mrb[0].mxu0
  %v3998 = vadd.f32 0.0, %v3997
  %v3999 = vpop.f32.mrb[0].mxu0
  %4000 = vmatprep.mubr.f32.mxu0 0.0
  %4001 = vmatmul.mubr.f32.gmra.mrb[0].mxu0 %v3664
  %v4002 = vpop.f32.mrb[0].mxu0
  %v4003 = vadd.f32 0.0, %v4002
  %v4004 = vpop.f32.mrb[0].mxu0
  %4005 = vmatprep.mubr.f32.mxu0 0.0
  %4006 = vmatmul.mubr.f32.gmra.mrb[0].mxu0 %v3667
  %v4007 = vpop.f32.mrb[0].mxu0
  %v4008 = vadd.f32 0.0, %v4007
  %v4009 = vpop.f32.mrb[0].mxu0
  %4010 = vmatprep.mubr.f32.mxu0 0.0
  %4011 = vmatmul.mubr.f32.gmra.mrb[0].mxu0 %v3670
  %v4012 = vpop.f32.mrb[0].mxu0
  %v4013 = vadd.f32 0.0, %v4012
  %v4014 = vpop.f32.mrb[0].mxu0
  %4015 = vmatprep.mubr.f32.mxu0 0.0
  %4016 = vmatmul.mubr.f32.gmra.mrb[0].mxu0 %v3673
  %v4017 = vpop.f32.mrb[0].mxu0
  %v4018 = vadd.f32 0.0, %v4017
  %v4019 = vpop.f32.mrb[0].mxu0
  %4020 = vmatprep.mubr.f32.mxu0 0.0
  %4021 = vmatmul.mubr.f32.gmra.mrb[0].mxu0 %v3676
  %v4022 = vpop.f32.mrb[0].mxu0
  %v4023 = vadd.f32 0.0, %v4022
  %v4024 = vpop.f32.mrb[0].mxu0
  %4025 = vmatprep.mubr.f32.mxu0 0.0
  %4026 = vmatmul.mubr.f32.gmra.mrb[0].mxu0 %v3679
  %v4027 = vpop.f32.mrb[0].mxu0
  %v4028 = vadd.f32 0.0, %v4027
  %v4029 = vpop.f32.mrb[0].mxu0
  %4030 = vmatprep.mubr.f32.mxu0 0.0
  %4031 = vmatmul.mubr.f32.gmra.mrb[0].mxu0 %v3682
  %v4032 = vpop.f32.mrb[0].mxu0
  %v4033 = vadd.f32 0.0, %v4032
  %v4034 = vpop.f32.mrb[0].mxu0
  %4035 = vmatprep.mubr.f32.mxu0 0.0
  %4036 = vmatmul.mubr.f32.gmra.mrb[0].mxu0 %v3685
  %v4037 = vpop.f32.mrb[0].mxu0
  %v4038 = vadd.f32 0.0, %v4037
  %v4039 = vpop.f32.mrb[0].mxu0
  %4040 = vmatprep.mubr.f32.mxu0 0.0
  %4041 = vmatmul.mubr.f32.gmra.mrb[0].mxu0 %v3688
  %v4042 = vpop.f32.mrb[0].mxu0
  %v4043 = vadd.f32 0.0, %v4042
  %v4044 = vpop.f32.mrb[0].mxu0
  %4045 = vmatprep.mubr.f32.mxu0 0.0
  %4046 = vmatmul.mubr.f32.gmra.mrb[0].mxu0 %v3691
  %v4047 = vpop.f32.mrb[0].mxu0
  %v4048 = vadd.f32 0.0, %v4047
  %v4049 = vpop.f32.mrb[0].mxu0
  %4050 = vmatprep.mubr.f32.mxu0 0.0
  %4051 = vmatmul.mubr.f32.gmra.mrb[0].mxu0 %v3694
  %v4052 = vpop.f32.mrb[0].mxu0
  %v4053 = vadd.f32 0.0, %v4052
  %v4054 = vpop.f32.mrb[0].mxu0
  %4055 = vmatprep.mubr.f32.mxu0 0.0
  %4056 = vmatmul.mubr.f32.gmra.mrb[0].mxu0 %v3697
  %v4057 = vpop.f32.mrb[0].mxu0
  %v4058 = vadd.f32 0.0, %v4057
  %v4059 = vpop.f32.mrb[0].mxu0
  %4060 = vmatprep.mubr.f32.mxu0 0.0
  %4061 = vmatmul.mubr.f32.gmra.mrb[0].mxu0 %v3700
  %v4062 = vpop.f32.mrb[0].mxu0
  %v4063 = vadd.f32 0.0, %v4062
  %v4064 = vpop.f32.mrb[0].mxu0
  %4065 = vmatprep.mubr.f32.mxu0 0.0
  %4066 = vmatmul.mubr.f32.gmra.mrb[0].mxu0 %v3703
  %v4067 = vpop.f32.mrb[0].mxu0
  %v4068 = vadd.f32 0.0, %v4067
  %v4069 = vpop.f32.mrb[0].mxu0
  %4070 = vmatprep.mubr.f32.mxu0 0.0
  %4071 = vmatmul.mubr.f32.gmra.mrb[0].mxu0 %v3706
  %v4072 = vpop.f32.mrb[0].mxu0
  %v4073 = vadd.f32 0.0, %v4072
  %v4074 = vpop.f32.mrb[0].mxu0
  %4075 = vmatprep.mubr.f32.mxu0 0.0
  %4076 = vmatmul.mubr.f32.gmra.mrb[0].mxu0 %v3709
  %v4077 = vpop.f32.mrb[0].mxu0
  %v4078 = vadd.f32 0.0, %v4077
  %v4079 = vpop.f32.mrb[0].mxu0
  %4080 = vmatprep.mubr.f32.mxu0 0.0
  %4081 = vmatmul.mubr.f32.gmra.mrb[0].mxu0 %v3712
  %v4082 = vpop.f32.mrb[0].mxu0
  %v4083 = vadd.f32 0.0, %v4082
  %v4084 = vpop.f32.mrb[0].mxu0
  %4085 = vmatprep.mubr.f32.mxu0 0.0
  %4086 = vmatmul.mubr.f32.gmra.mrb[0].mxu0 %v3715
  %v4087 = vpop.f32.mrb[0].mxu0
  %v4088 = vadd.f32 0.0, %v4087
  %v4089 = vpop.f32.mrb[0].mxu0
  %4090 = vmatprep.mubr.f32.mxu0 0.0
  %4091 = vmatmul.mubr.f32.gmra.mrb[0].mxu0 %v3718
  %v4092 = vpop.f32.mrb[0].mxu0
  %v4093 = vadd.f32 0.0, %v4092
  %v4094 = vpop.f32.mrb[0].mxu0
  %4095 = vmatprep.mubr.f32.mxu0 0.0
  %4096 = vmatmul.mubr.f32.gmra.mrb[0].mxu0 %v3721
  %v4097 = vpop.f32.mrb[0].mxu0
  %v4098 = vadd.f32 0.0, %v4097
  %v4099 = vpop.f32.mrb[0].mxu0
  %4100 = vmatprep.mubr.f32.mxu0 0.0
  %4101 = vmatmul.mubr.f32.gmra.mrb[0].mxu0 %v3724
  %v4102 = vpop.f32.mrb[0].mxu0
  %v4103 = vadd.f32 0.0, %v4102
  %v4104 = vpop.f32.mrb[0].mxu0
  %4105 = vmatprep.mubr.f32.mxu0 0.0
  %4106 = vmatmul.mubr.f32.gmra.mrb[0].mxu0 %v3727
  %v4107 = vpop.f32.mrb[0].mxu0
  %v4108 = vadd.f32 0.0, %v4107
  %v4109 = vpop.f32.mrb[0].mxu0
  %4110 = vmatprep.mubr.f32.mxu0 0.0
  %4111 = vmatmul.mubr.f32.gmra.mrb[0].mxu0 %v3730
  %v4112 = vpop.f32.mrb[0].mxu0
  %v4113 = vadd.f32 0.0, %v4112
  %v4114 = vpop.f32.mrb[0].mxu0
  %4115 = vmatprep.mubr.f32.mxu0 0.0
  %4116 = vmatmul.mubr.f32.gmra.mrb[0].mxu0 %v3733
  %v4117 = vpop.f32.mrb[0].mxu0
  %v4118 = vadd.f32 0.0, %v4117
  %v4119 = vpop.f32.mrb[0].mxu0
  %4120 = vmatprep.mubr.f32.mxu0 0.0
  %4121 = vmatmul.mubr.f32.gmra.mrb[0].mxu0 %v3736
  %v4122 = vpop.f32.mrb[0].mxu0
  %v4123 = vadd.f32 0.0, %v4122
  %v4124 = vpop.f32.mrb[0].mxu0
  %4125 = vdwg.mxu0
  %v4126 = vadd.f32 %v3416, %v3808
  %v4127 = vadd.f32 %v3417, %v3813
  %v4128 = vadd.f32 %v3418, %v3818
  %v4129 = vadd.f32 %v3419, %v3823
  %v4130 = vadd.f32 %v3420, %v3828
  %v4131 = vadd.f32 %v3421, %v3833
  %v4132 = vadd.f32 %v3422, %v3838
  %v4133 = vadd.f32 %v3423, %v3843
  %v4134 = vadd.f32 %v3424, %v3848
  %v4135 = vadd.f32 %v3425, %v3853
  %v4136 = vadd.f32 %v3426, %v3858
  %v4137 = vadd.f32 %v3427, %v3863
  %v4138 = vadd.f32 %v3428, %v3868
  %v4139 = vadd.f32 %v3429, %v3873
  %v4140 = vadd.f32 %v3430, %v3878
  %v4141 = vadd.f32 %v3431, %v3883
  %v4142 = vadd.f32 %v3432, %v3888
  %v4143 = vadd.f32 %v3433, %v3893
  %v4144 = vadd.f32 %v3434, %v3898
  %v4145 = vadd.f32 %v3435, %v3903
  %v4146 = vadd.f32 %v3436, %v3908
  %v4147 = vadd.f32 %v3437, %v3913
  %v4148 = vadd.f32 %v3438, %v3918
  %v4149 = vadd.f32 %v3439, %v3923
  %v4150 = vadd.f32 %v3440, %v3928
  %v4151 = vadd.f32 %v3441, %v3933
  %v4152 = vadd.f32 %v3442, %v3938
  %v4153 = vadd.f32 %v3443, %v3943
  %v4154 = vadd.f32 %v3444, %v3948
  %v4155 = vadd.f32 %v3445, %v3953
  %v4156 = vadd.f32 %v3446, %v3958
  %v4157 = vadd.f32 %v3447, %v3963
  %v4158 = vadd.f32 %v3448, %v3968
  %v4159 = vadd.f32 %v3449, %v3973
  %v4160 = vadd.f32 %v3450, %v3978
  %v4161 = vadd.f32 %v3451, %v3983
  %v4162 = vadd.f32 %v3452, %v3988
  %v4163 = vadd.f32 %v3453, %v3993
  %v4164 = vadd.f32 %v3454, %v3998
  %v4165 = vadd.f32 %v3455, %v4003
  %v4166 = vadd.f32 %v3456, %v4008
  %v4167 = vadd.f32 %v3457, %v4013
  %v4168 = vadd.f32 %v3458, %v4018
  %v4169 = vadd.f32 %v3459, %v4023
  %v4170 = vadd.f32 %v3460, %v4028
  %v4171 = vadd.f32 %v3461, %v4033
  %v4172 = vadd.f32 %v3462, %v4038
  %v4173 = vadd.f32 %v3463, %v4043
  %v4174 = vadd.f32 %v3464, %v4048
  %v4175 = vadd.f32 %v3465, %v4053
  %v4176 = vadd.f32 %v3466, %v4058
  %v4177 = vadd.f32 %v3467, %v4063
  %v4178 = vadd.f32 %v3468, %v4068
  %v4179 = vadd.f32 %v3469, %v4073
  %v4180 = vadd.f32 %v3470, %v4078
  %v4181 = vadd.f32 %v3471, %v4083
  %v4182 = vadd.f32 %v3472, %v4088
  %v4183 = vadd.f32 %v3473, %v4093
  %v4184 = vadd.f32 %v3474, %v4098
  %v4185 = vadd.f32 %v3475, %v4103
  %v4186 = vadd.f32 %v3476, %v4108
  %v4187 = vadd.f32 %v3477, %v4113
  %v4188 = vadd.f32 %v3478, %v4118
  %v4189 = vadd.f32 %v3479, %v4123
  %s4190 = scalar_lea.vmem %s0, 48
  %v4191 = vld [vmem:[%s4190] sm:$0xff]
  %v4192 = vld [vmem:[%s4190 + $0x8] sm:$0xff]
  %v4193 = vld [vmem:[%s4190 + $0x18] sm:$0xff]
  %v4194 = vld [vmem:[%s4190 + $0x20] sm:$0xff]
  %v4195 = vld [vmem:[%s4190 + $0x30] sm:$0xff]
  %v4196 = vld [vmem:[%s4190 + $0x38] sm:$0xff]
  %v4197 = vld [vmem:[%s4190 + $0x48] sm:$0xff]
  %v4198 = vld [vmem:[%s4190 + $0x50] sm:$0xff]
  %v4199 = vld [vmem:[%s4190 + $0x60] sm:$0xff]
  %v4200 = vld [vmem:[%s4190 + $0x68] sm:$0xff]
  %v4201 = vld [vmem:[%s4190 + $0x78] sm:$0xff]
  %v4202 = vld [vmem:[%s4190 + $0x80] sm:$0xff]
  %v4203 = vld [vmem:[%s4190 + $0x90] sm:$0xff]
  %v4204 = vld [vmem:[%s4190 + $0x98] sm:$0xff]
  %v4205 = vld [vmem:[%s4190 + $0xa8] sm:$0xff]
  %v4206 = vld [vmem:[%s4190 + $0xb0] sm:$0xff]
  %v4207 = vld [vmem:[%s4190 + $0xc0] sm:$0xff]
  %v4208 = vld [vmem:[%s4190 + $0xc8] sm:$0xff]
  %v4209 = vld [vmem:[%s4190 + $0xd8] sm:$0xff]
  %v4210 = vld [vmem:[%s4190 + $0xe0] sm:$0xff]
  %v4211 = vld [vmem:[%s4190 + $0xf0] sm:$0xff]
  %v4212 = vld [vmem:[%s4190 + $0xf8] sm:$0xff]
  %v4213 = vld [vmem:[%s4190 + $0x108] sm:$0xff]
  %v4214 = vld [vmem:[%s4190 + $0x110] sm:$0xff]
  %v4215 = vld [vmem:[%s4190 + $0x120] sm:$0xff]
  %v4216 = vld [vmem:[%s4190 + $0x128] sm:$0xff]
  %v4217 = vld [vmem:[%s4190 + $0x138] sm:$0xff]
  %v4218 = vld [vmem:[%s4190 + $0x140] sm:$0xff]
  %v4219 = vld [vmem:[%s4190 + $0x150] sm:$0xff]
  %v4220 = vld [vmem:[%s4190 + $0x158] sm:$0xff]
  %v4221 = vld [vmem:[%s4190 + $0x168] sm:$0xff]
  %v4222 = vld [vmem:[%s4190 + $0x170] sm:$0xff]
  %v4223 = vld [vmem:[%s4190 + $0x1b0] sm:$0xff]
  %v4224 = vld [vmem:[%s4190 + $0x1b8] sm:$0xff]
  %v4225 = vld [vmem:[%s4190 + $0x1c8] sm:$0xff]
  %v4226 = vld [vmem:[%s4190 + $0x1d0] sm:$0xff]
  %v4227 = vld [vmem:[%s4190 + $0x1e0] sm:$0xff]
  %v4228 = vld [vmem:[%s4190 + $0x1e8] sm:$0xff]
  %v4229 = vld [vmem:[%s4190 + $0x1f8] sm:$0xff]
  %v4230 = vld [vmem:[%s4190 + $0x200] sm:$0xff]
  %v4231 = vld [vmem:[%s4190 + $0x210] sm:$0xff]
  %v4232 = vld [vmem:[%s4190 + $0x218] sm:$0xff]
  %v4233 = vld [vmem:[%s4190 + $0x228] sm:$0xff]
  %v4234 = vld [vmem:[%s4190 + $0x230] sm:$0xff]
  %v4235 = vld [vmem:[%s4190 + $0x240] sm:$0xff]
  %v4236 = vld [vmem:[%s4190 + $0x248] sm:$0xff]
  %v4237 = vld [vmem:[%s4190 + $0x258] sm:$0xff]
  %v4238 = vld [vmem:[%s4190 + $0x260] sm:$0xff]
  %v4239 = vld [vmem:[%s4190 + $0x270] sm:$0xff]
  %v4240 = vld [vmem:[%s4190 + $0x278] sm:$0xff]
  %v4241 = vld [vmem:[%s4190 + $0x288] sm:$0xff]
  %v4242 = vld [vmem:[%s4190 + $0x290] sm:$0xff]
  %v4243 = vld [vmem:[%s4190 + $0x2a0] sm:$0xff]
  %v4244 = vld [vmem:[%s4190 + $0x2a8] sm:$0xff]
  %v4245 = vld [vmem:[%s4190 + $0x2b8] sm:$0xff]
  %v4246 = vld [vmem:[%s4190 + $0x2c0] sm:$0xff]
  %v4247 = vld [vmem:[%s4190 + $0x2d0] sm:$0xff]
  %v4248 = vld [vmem:[%s4190 + $0x2d8] sm:$0xff]
  %v4249 = vld [vmem:[%s4190 + $0x2e8] sm:$0xff]
  %v4250 = vld [vmem:[%s4190 + $0x2f0] sm:$0xff]
  %v4251 = vld [vmem:[%s4190 + $0x300] sm:$0xff]
  %v4252 = vld [vmem:[%s4190 + $0x308] sm:$0xff]
  %v4253 = vld [vmem:[%s4190 + $0x318] sm:$0xff]
  %v4254 = vld [vmem:[%s4190 + $0x320] sm:$0xff]
  %s4255 = scalar_lea.vmem %s2, 24
  %v4256 = vld [vmem:[%s4255] sm:$0x7]
  %v4258 = vsel %vm187, %v4191, 0
  %v4261 = vsel %vm187, %v4192, 0
  %v4264 = vsel %vm187, %v4193, 0
  %v4267 = vsel %vm187, %v4194, 0
  %v4270 = vsel %vm187, %v4195, 0
  %v4273 = vsel %vm187, %v4196, 0
  %v4276 = vsel %vm187, %v4197, 0
  %v4279 = vsel %vm187, %v4198, 0
  %v4282 = vsel %vm187, %v4199, 0
  %v4285 = vsel %vm187, %v4200, 0
  %v4288 = vsel %vm187, %v4201, 0
  %v4291 = vsel %vm187, %v4202, 0
  %v4294 = vsel %vm187, %v4203, 0
  %v4297 = vsel %vm187, %v4204, 0
  %v4300 = vsel %vm187, %v4205, 0
  %v4303 = vsel %vm187, %v4206, 0
  %v4306 = vsel %vm187, %v4207, 0
  %v4309 = vsel %vm187, %v4208, 0
  %v4312 = vsel %vm187, %v4209, 0
  %v4315 = vsel %vm187, %v4210, 0
  %v4318 = vsel %vm187, %v4211, 0
  %v4321 = vsel %vm187, %v4212, 0
  %v4324 = vsel %vm187, %v4213, 0
  %v4327 = vsel %vm187, %v4214, 0
  %v4330 = vsel %vm187, %v4215, 0
  %v4333 = vsel %vm187, %v4216, 0
  %v4336 = vsel %vm187, %v4217, 0
  %v4339 = vsel %vm187, %v4218, 0
  %v4342 = vsel %vm187, %v4219, 0
  %v4345 = vsel %vm187, %v4220, 0
  %v4348 = vsel %vm187, %v4221, 0
  %v4351 = vsel %vm187, %v4222, 0
  %v4354 = vsel %vm187, %v4223, 0
  %v4357 = vsel %vm187, %v4224, 0
  %v4360 = vsel %vm187, %v4225, 0
  %v4363 = vsel %vm187, %v4226, 0
  %v4366 = vsel %vm187, %v4227, 0
  %v4369 = vsel %vm187, %v4228, 0
  %v4372 = vsel %vm187, %v4229, 0
  %v4375 = vsel %vm187, %v4230, 0
  %v4378 = vsel %vm187, %v4231, 0
  %v4381 = vsel %vm187, %v4232, 0
  %v4384 = vsel %vm187, %v4233, 0
  %v4387 = vsel %vm187, %v4234, 0
  %v4390 = vsel %vm187, %v4235, 0
  %v4393 = vsel %vm187, %v4236, 0
  %v4396 = vsel %vm187, %v4237, 0
  %v4399 = vsel %vm187, %v4238, 0
  %v4402 = vsel %vm187, %v4239, 0
  %v4405 = vsel %vm187, %v4240, 0
  %v4408 = vsel %vm187, %v4241, 0
  %v4411 = vsel %vm187, %v4242, 0
  %v4414 = vsel %vm187, %v4243, 0
  %v4417 = vsel %vm187, %v4244, 0
  %v4420 = vsel %vm187, %v4245, 0
  %v4423 = vsel %vm187, %v4246, 0
  %v4426 = vsel %vm187, %v4247, 0
  %v4429 = vsel %vm187, %v4248, 0
  %v4432 = vsel %vm187, %v4249, 0
  %v4435 = vsel %vm187, %v4250, 0
  %v4438 = vsel %vm187, %v4251, 0
  %v4441 = vsel %vm187, %v4252, 0
  %v4444 = vsel %vm187, %v4253, 0
  %v4447 = vsel %vm187, %v4254, 0
  %v4450 = vsel %vm380, %v4256, 0
  %4452 = vmatprep.subr.mxu0 0.0
  %4453 = vmatpush1.msra.mxu0 %v4450
  %4454 = vmatprep.subr.mxu0 0.0
  %4455 = vmatpush1.msra.mxu0 0.0
  %4456 = vmatprep.subr.mxu0 0.0
  %4457 = vmatpush1.msra.mxu0 0.0
  %4458 = vmatprep.subr.mxu0 0.0
  %4459 = vmatpush1.msra.mxu0 0.0
  %4460 = vmatprep.subr.mxu0 0.0
  %4461 = vmatpush1.msra.mxu0 0.0
  %4462 = vmatprep.subr.mxu0 0.0
  %4463 = vmatpush1.msra.mxu0 0.0
  %4464 = vmatprep.subr.mxu0 0.0
  %4465 = vmatpush1.msra.mxu0 0.0
  %4466 = vmatprep.subr.mxu0 0.0
  %4467 = vmatpush1.msra.mxu0 0.0
  %4468 = vmatprep.subr.mxu0 0.0
  %4469 = vmatpush1.msra.mxu0 0.0
  %4470 = vmatprep.subr.mxu0 0.0
  %4471 = vmatpush1.msra.mxu0 0.0
  %4472 = vmatprep.subr.mxu0 0.0
  %4473 = vmatpush1.msra.mxu0 0.0
  %4474 = vmatprep.subr.mxu0 0.0
  %4475 = vmatpush1.msra.mxu0 0.0
  %4476 = vmatprep.subr.mxu0 0.0
  %4477 = vmatpush1.msra.mxu0 0.0
  %4478 = vmatprep.subr.mxu0 0.0
  %4479 = vmatpush1.msra.mxu0 0.0
  %4480 = vmatprep.subr.mxu0 0.0
  %4481 = vmatpush1.msra.mxu0 0.0
  %4482 = vmatprep.subr.mxu0 0.0
  %4483 = vmatpush1.msra.mxu0 0.0
  %4484 = vmatprep.subr.mxu0 0.0
  %4485 = vmatpush1.msra.mxu0 0.0
  %4486 = vmatprep.subr.mxu0 0.0
  %4487 = vmatpush1.msra.mxu0 0.0
  %4488 = vmatprep.subr.mxu0 0.0
  %4489 = vmatpush1.msra.mxu0 0.0
  %4490 = vmatprep.subr.mxu0 0.0
  %4491 = vmatpush1.msra.mxu0 0.0
  %4492 = vmatprep.subr.mxu0 0.0
  %4493 = vmatpush1.msra.mxu0 0.0
  %4494 = vmatprep.subr.mxu0 0.0
  %4495 = vmatpush1.msra.mxu0 0.0
  %4496 = vmatprep.subr.mxu0 0.0
  %4497 = vmatpush1.msra.mxu0 0.0
  %4498 = vmatprep.subr.mxu0 0.0
  %4499 = vmatpush1.msra.mxu0 0.0
  %4500 = vmatprep.subr.mxu0 0.0
  %4501 = vmatpush1.msra.mxu0 0.0
  %4502 = vmatprep.subr.mxu0 0.0
  %4503 = vmatpush1.msra.mxu0 0.0
  %4504 = vmatprep.subr.mxu0 0.0
  %4505 = vmatpush1.msra.mxu0 0.0
  %4506 = vmatprep.subr.mxu0 0.0
  %4507 = vmatpush1.msra.mxu0 0.0
  %4508 = vmatprep.subr.mxu0 0.0
  %4509 = vmatpush1.msra.mxu0 0.0
  %4510 = vmatprep.subr.mxu0 0.0
  %4511 = vmatpush1.msra.mxu0 0.0
  %4512 = vmatprep.subr.mxu0 0.0
  %4513 = vmatpush1.msra.mxu0 0.0
  %4514 = vmatprep.subr.mxu0 0.0
  %4515 = vmatpush1.msra.mxu0 0.0
  %4516 = vmatprep.mubr.f32.mxu0 0.0
  %4517 = vmatmul.mubr.f32.gmra.mrb[0].mxu0 %v4258
  %v4518 = vpop.f32.mrb[0].mxu0
  %v4519 = vadd.f32 0.0, %v4518
  %v4520 = vpop.f32.mrb[0].mxu0
  %4521 = vmatprep.mubr.f32.mxu0 0.0
  %4522 = vmatmul.mubr.f32.gmra.mrb[0].mxu0 %v4261
  %v4523 = vpop.f32.mrb[0].mxu0
  %v4524 = vadd.f32 0.0, %v4523
  %v4525 = vpop.f32.mrb[0].mxu0
  %4526 = vmatprep.mubr.f32.mxu0 0.0
  %4527 = vmatmul.mubr.f32.gmra.mrb[0].mxu0 %v4264
  %v4528 = vpop.f32.mrb[0].mxu0
  %v4529 = vadd.f32 0.0, %v4528
  %v4530 = vpop.f32.mrb[0].mxu0
  %4531 = vmatprep.mubr.f32.mxu0 0.0
  %4532 = vmatmul.mubr.f32.gmra.mrb[0].mxu0 %v4267
  %v4533 = vpop.f32.mrb[0].mxu0
  %v4534 = vadd.f32 0.0, %v4533
  %v4535 = vpop.f32.mrb[0].mxu0
  %4536 = vmatprep.mubr.f32.mxu0 0.0
  %4537 = vmatmul.mubr.f32.gmra.mrb[0].mxu0 %v4270
  %v4538 = vpop.f32.mrb[0].mxu0
  %v4539 = vadd.f32 0.0, %v4538
  %v4540 = vpop.f32.mrb[0].mxu0
  %4541 = vmatprep.mubr.f32.mxu0 0.0
  %4542 = vmatmul.mubr.f32.gmra.mrb[0].mxu0 %v4273
  %v4543 = vpop.f32.mrb[0].mxu0
  %v4544 = vadd.f32 0.0, %v4543
  %v4545 = vpop.f32.mrb[0].mxu0
  %4546 = vmatprep.mubr.f32.mxu0 0.0
  %4547 = vmatmul.mubr.f32.gmra.mrb[0].mxu0 %v4276
  %v4548 = vpop.f32.mrb[0].mxu0
  %v4549 = vadd.f32 0.0, %v4548
  %v4550 = vpop.f32.mrb[0].mxu0
  %4551 = vmatprep.mubr.f32.mxu0 0.0
  %4552 = vmatmul.mubr.f32.gmra.mrb[0].mxu0 %v4279
  %v4553 = vpop.f32.mrb[0].mxu0
  %v4554 = vadd.f32 0.0, %v4553
  %v4555 = vpop.f32.mrb[0].mxu0
  %4556 = vmatprep.mubr.f32.mxu0 0.0
  %4557 = vmatmul.mubr.f32.gmra.mrb[0].mxu0 %v4282
  %v4558 = vpop.f32.mrb[0].mxu0
  %v4559 = vadd.f32 0.0, %v4558
  %v4560 = vpop.f32.mrb[0].mxu0
  %4561 = vmatprep.mubr.f32.mxu0 0.0
  %4562 = vmatmul.mubr.f32.gmra.mrb[0].mxu0 %v4285
  %v4563 = vpop.f32.mrb[0].mxu0
  %v4564 = vadd.f32 0.0, %v4563
  %v4565 = vpop.f32.mrb[0].mxu0
  %4566 = vmatprep.mubr.f32.mxu0 0.0
  %4567 = vmatmul.mubr.f32.gmra.mrb[0].mxu0 %v4288
  %v4568 = vpop.f32.mrb[0].mxu0
  %v4569 = vadd.f32 0.0, %v4568
  %v4570 = vpop.f32.mrb[0].mxu0
  %4571 = vmatprep.mubr.f32.mxu0 0.0
  %4572 = vmatmul.mubr.f32.gmra.mrb[0].mxu0 %v4291
  %v4573 = vpop.f32.mrb[0].mxu0
  %v4574 = vadd.f32 0.0, %v4573
  %v4575 = vpop.f32.mrb[0].mxu0
  %4576 = vmatprep.mubr.f32.mxu0 0.0
  %4577 = vmatmul.mubr.f32.gmra.mrb[0].mxu0 %v4294
  %v4578 = vpop.f32.mrb[0].mxu0
  %v4579 = vadd.f32 0.0, %v4578
  %v4580 = vpop.f32.mrb[0].mxu0
  %4581 = vmatprep.mubr.f32.mxu0 0.0
  %4582 = vmatmul.mubr.f32.gmra.mrb[0].mxu0 %v4297
  %v4583 = vpop.f32.mrb[0].mxu0
  %v4584 = vadd.f32 0.0, %v4583
  %v4585 = vpop.f32.mrb[0].mxu0
  %4586 = vmatprep.mubr.f32.mxu0 0.0
  %4587 = vmatmul.mubr.f32.gmra.mrb[0].mxu0 %v4300
  %v4588 = vpop.f32.mrb[0].mxu0
  %v4589 = vadd.f32 0.0, %v4588
  %v4590 = vpop.f32.mrb[0].mxu0
  %4591 = vmatprep.mubr.f32.mxu0 0.0
  %4592 = vmatmul.mubr.f32.gmra.mrb[0].mxu0 %v4303
  %v4593 = vpop.f32.mrb[0].mxu0
  %v4594 = vadd.f32 0.0, %v4593
  %v4595 = vpop.f32.mrb[0].mxu0
  %4596 = vmatprep.mubr.f32.mxu0 0.0
  %4597 = vmatmul.mubr.f32.gmra.mrb[0].mxu0 %v4306
  %v4598 = vpop.f32.mrb[0].mxu0
  %v4599 = vadd.f32 0.0, %v4598
  %v4600 = vpop.f32.mrb[0].mxu0
  %4601 = vmatprep.mubr.f32.mxu0 0.0
  %4602 = vmatmul.mubr.f32.gmra.mrb[0].mxu0 %v4309
  %v4603 = vpop.f32.mrb[0].mxu0
  %v4604 = vadd.f32 0.0, %v4603
  %v4605 = vpop.f32.mrb[0].mxu0
  %4606 = vmatprep.mubr.f32.mxu0 0.0
  %4607 = vmatmul.mubr.f32.gmra.mrb[0].mxu0 %v4312
  %v4608 = vpop.f32.mrb[0].mxu0
  %v4609 = vadd.f32 0.0, %v4608
  %v4610 = vpop.f32.mrb[0].mxu0
  %4611 = vmatprep.mubr.f32.mxu0 0.0
  %4612 = vmatmul.mubr.f32.gmra.mrb[0].mxu0 %v4315
  %v4613 = vpop.f32.mrb[0].mxu0
  %v4614 = vadd.f32 0.0, %v4613
  %v4615 = vpop.f32.mrb[0].mxu0
  %4616 = vmatprep.mubr.f32.mxu0 0.0
  %4617 = vmatmul.mubr.f32.gmra.mrb[0].mxu0 %v4318
  %v4618 = vpop.f32.mrb[0].mxu0
  %v4619 = vadd.f32 0.0, %v4618
  %v4620 = vpop.f32.mrb[0].mxu0
  %4621 = vmatprep.mubr.f32.mxu0 0.0
  %4622 = vmatmul.mubr.f32.gmra.mrb[0].mxu0 %v4321
  %v4623 = vpop.f32.mrb[0].mxu0
  %v4624 = vadd.f32 0.0, %v4623
  %v4625 = vpop.f32.mrb[0].mxu0
  %4626 = vmatprep.mubr.f32.mxu0 0.0
  %4627 = vmatmul.mubr.f32.gmra.mrb[0].mxu0 %v4324
  %v4628 = vpop.f32.mrb[0].mxu0
  %v4629 = vadd.f32 0.0, %v4628
  %v4630 = vpop.f32.mrb[0].mxu0
  %4631 = vmatprep.mubr.f32.mxu0 0.0
  %4632 = vmatmul.mubr.f32.gmra.mrb[0].mxu0 %v4327
  %v4633 = vpop.f32.mrb[0].mxu0
  %v4634 = vadd.f32 0.0, %v4633
  %v4635 = vpop.f32.mrb[0].mxu0
  %4636 = vmatprep.mubr.f32.mxu0 0.0
  %4637 = vmatmul.mubr.f32.gmra.mrb[0].mxu0 %v4330
  %v4638 = vpop.f32.mrb[0].mxu0
  %v4639 = vadd.f32 0.0, %v4638
  %v4640 = vpop.f32.mrb[0].mxu0
  %4641 = vmatprep.mubr.f32.mxu0 0.0
  %4642 = vmatmul.mubr.f32.gmra.mrb[0].mxu0 %v4333
  %v4643 = vpop.f32.mrb[0].mxu0
  %v4644 = vadd.f32 0.0, %v4643
  %v4645 = vpop.f32.mrb[0].mxu0
  %4646 = vmatprep.mubr.f32.mxu0 0.0
  %4647 = vmatmul.mubr.f32.gmra.mrb[0].mxu0 %v4336
  %v4648 = vpop.f32.mrb[0].mxu0
  %v4649 = vadd.f32 0.0, %v4648
  %v4650 = vpop.f32.mrb[0].mxu0
  %4651 = vmatprep.mubr.f32.mxu0 0.0
  %4652 = vmatmul.mubr.f32.gmra.mrb[0].mxu0 %v4339
  %v4653 = vpop.f32.mrb[0].mxu0
  %v4654 = vadd.f32 0.0, %v4653
  %v4655 = vpop.f32.mrb[0].mxu0
  %4656 = vmatprep.mubr.f32.mxu0 0.0
  %4657 = vmatmul.mubr.f32.gmra.mrb[0].mxu0 %v4342
  %v4658 = vpop.f32.mrb[0].mxu0
  %v4659 = vadd.f32 0.0, %v4658
  %v4660 = vpop.f32.mrb[0].mxu0
  %4661 = vmatprep.mubr.f32.mxu0 0.0
  %4662 = vmatmul.mubr.f32.gmra.mrb[0].mxu0 %v4345
  %v4663 = vpop.f32.mrb[0].mxu0
  %v4664 = vadd.f32 0.0, %v4663
  %v4665 = vpop.f32.mrb[0].mxu0
  %4666 = vmatprep.mubr.f32.mxu0 0.0
  %4667 = vmatmul.mubr.f32.gmra.mrb[0].mxu0 %v4348
  %v4668 = vpop.f32.mrb[0].mxu0
  %v4669 = vadd.f32 0.0, %v4668
  %v4670 = vpop.f32.mrb[0].mxu0
  %4671 = vmatprep.mubr.f32.mxu0 0.0
  %4672 = vmatmul.mubr.f32.gmra.mrb[0].mxu0 %v4351
  %v4673 = vpop.f32.mrb[0].mxu0
  %v4674 = vadd.f32 0.0, %v4673
  %v4675 = vpop.f32.mrb[0].mxu0
  %4676 = vmatprep.mubr.f32.mxu0 0.0
  %4677 = vmatmul.mubr.f32.gmra.mrb[0].mxu0 %v4354
  %v4678 = vpop.f32.mrb[0].mxu0
  %v4679 = vadd.f32 0.0, %v4678
  %v4680 = vpop.f32.mrb[0].mxu0
  %4681 = vmatprep.mubr.f32.mxu0 0.0
  %4682 = vmatmul.mubr.f32.gmra.mrb[0].mxu0 %v4357
  %v4683 = vpop.f32.mrb[0].mxu0
  %v4684 = vadd.f32 0.0, %v4683
  %v4685 = vpop.f32.mrb[0].mxu0
  %4686 = vmatprep.mubr.f32.mxu0 0.0
  %4687 = vmatmul.mubr.f32.gmra.mrb[0].mxu0 %v4360
  %v4688 = vpop.f32.mrb[0].mxu0
  %v4689 = vadd.f32 0.0, %v4688
  %v4690 = vpop.f32.mrb[0].mxu0
  %4691 = vmatprep.mubr.f32.mxu0 0.0
  %4692 = vmatmul.mubr.f32.gmra.mrb[0].mxu0 %v4363
  %v4693 = vpop.f32.mrb[0].mxu0
  %v4694 = vadd.f32 0.0, %v4693
  %v4695 = vpop.f32.mrb[0].mxu0
  %4696 = vmatprep.mubr.f32.mxu0 0.0
  %4697 = vmatmul.mubr.f32.gmra.mrb[0].mxu0 %v4366
  %v4698 = vpop.f32.mrb[0].mxu0
  %v4699 = vadd.f32 0.0, %v4698
  %v4700 = vpop.f32.mrb[0].mxu0
  %4701 = vmatprep.mubr.f32.mxu0 0.0
  %4702 = vmatmul.mubr.f32.gmra.mrb[0].mxu0 %v4369
  %v4703 = vpop.f32.mrb[0].mxu0
  %v4704 = vadd.f32 0.0, %v4703
  %v4705 = vpop.f32.mrb[0].mxu0
  %4706 = vmatprep.mubr.f32.mxu0 0.0
  %4707 = vmatmul.mubr.f32.gmra.mrb[0].mxu0 %v4372
  %v4708 = vpop.f32.mrb[0].mxu0
  %v4709 = vadd.f32 0.0, %v4708
  %v4710 = vpop.f32.mrb[0].mxu0
  %4711 = vmatprep.mubr.f32.mxu0 0.0
  %4712 = vmatmul.mubr.f32.gmra.mrb[0].mxu0 %v4375
  %v4713 = vpop.f32.mrb[0].mxu0
  %v4714 = vadd.f32 0.0, %v4713
  %v4715 = vpop.f32.mrb[0].mxu0
  %4716 = vmatprep.mubr.f32.mxu0 0.0
  %4717 = vmatmul.mubr.f32.gmra.mrb[0].mxu0 %v4378
  %v4718 = vpop.f32.mrb[0].mxu0
  %v4719 = vadd.f32 0.0, %v4718
  %v4720 = vpop.f32.mrb[0].mxu0
  %4721 = vmatprep.mubr.f32.mxu0 0.0
  %4722 = vmatmul.mubr.f32.gmra.mrb[0].mxu0 %v4381
  %v4723 = vpop.f32.mrb[0].mxu0
  %v4724 = vadd.f32 0.0, %v4723
  %v4725 = vpop.f32.mrb[0].mxu0
  %4726 = vmatprep.mubr.f32.mxu0 0.0
  %4727 = vmatmul.mubr.f32.gmra.mrb[0].mxu0 %v4384
  %v4728 = vpop.f32.mrb[0].mxu0
  %v4729 = vadd.f32 0.0, %v4728
  %v4730 = vpop.f32.mrb[0].mxu0
  %4731 = vmatprep.mubr.f32.mxu0 0.0
  %4732 = vmatmul.mubr.f32.gmra.mrb[0].mxu0 %v4387
  %v4733 = vpop.f32.mrb[0].mxu0
  %v4734 = vadd.f32 0.0, %v4733
  %v4735 = vpop.f32.mrb[0].mxu0
  %4736 = vmatprep.mubr.f32.mxu0 0.0
  %4737 = vmatmul.mubr.f32.gmra.mrb[0].mxu0 %v4390
  %v4738 = vpop.f32.mrb[0].mxu0
  %v4739 = vadd.f32 0.0, %v4738
  %v4740 = vpop.f32.mrb[0].mxu0
  %4741 = vmatprep.mubr.f32.mxu0 0.0
  %4742 = vmatmul.mubr.f32.gmra.mrb[0].mxu0 %v4393
  %v4743 = vpop.f32.mrb[0].mxu0
  %v4744 = vadd.f32 0.0, %v4743
  %v4745 = vpop.f32.mrb[0].mxu0
  %4746 = vmatprep.mubr.f32.mxu0 0.0
  %4747 = vmatmul.mubr.f32.gmra.mrb[0].mxu0 %v4396
  %v4748 = vpop.f32.mrb[0].mxu0
  %v4749 = vadd.f32 0.0, %v4748
  %v4750 = vpop.f32.mrb[0].mxu0
  %4751 = vmatprep.mubr.f32.mxu0 0.0
  %4752 = vmatmul.mubr.f32.gmra.mrb[0].mxu0 %v4399
  %v4753 = vpop.f32.mrb[0].mxu0
  %v4754 = vadd.f32 0.0, %v4753
  %v4755 = vpop.f32.mrb[0].mxu0
  %4756 = vmatprep.mubr.f32.mxu0 0.0
  %4757 = vmatmul.mubr.f32.gmra.mrb[0].mxu0 %v4402
  %v4758 = vpop.f32.mrb[0].mxu0
  %v4759 = vadd.f32 0.0, %v4758
  %v4760 = vpop.f32.mrb[0].mxu0
  %4761 = vmatprep.mubr.f32.mxu0 0.0
  %4762 = vmatmul.mubr.f32.gmra.mrb[0].mxu0 %v4405
  %v4763 = vpop.f32.mrb[0].mxu0
  %v4764 = vadd.f32 0.0, %v4763
  %v4765 = vpop.f32.mrb[0].mxu0
  %4766 = vmatprep.mubr.f32.mxu0 0.0
  %4767 = vmatmul.mubr.f32.gmra.mrb[0].mxu0 %v4408
  %v4768 = vpop.f32.mrb[0].mxu0
  %v4769 = vadd.f32 0.0, %v4768
  %v4770 = vpop.f32.mrb[0].mxu0
  %4771 = vmatprep.mubr.f32.mxu0 0.0
  %4772 = vmatmul.mubr.f32.gmra.mrb[0].mxu0 %v4411
  %v4773 = vpop.f32.mrb[0].mxu0
  %v4774 = vadd.f32 0.0, %v4773
  %v4775 = vpop.f32.mrb[0].mxu0
  %4776 = vmatprep.mubr.f32.mxu0 0.0
  %4777 = vmatmul.mubr.f32.gmra.mrb[0].mxu0 %v4414
  %v4778 = vpop.f32.mrb[0].mxu0
  %v4779 = vadd.f32 0.0, %v4778
  %v4780 = vpop.f32.mrb[0].mxu0
  %4781 = vmatprep.mubr.f32.mxu0 0.0
  %4782 = vmatmul.mubr.f32.gmra.mrb[0].mxu0 %v4417
  %v4783 = vpop.f32.mrb[0].mxu0
  %v4784 = vadd.f32 0.0, %v4783
  %v4785 = vpop.f32.mrb[0].mxu0
  %4786 = vmatprep.mubr.f32.mxu0 0.0
  %4787 = vmatmul.mubr.f32.gmra.mrb[0].mxu0 %v4420
  %v4788 = vpop.f32.mrb[0].mxu0
  %v4789 = vadd.f32 0.0, %v4788
  %v4790 = vpop.f32.mrb[0].mxu0
  %4791 = vmatprep.mubr.f32.mxu0 0.0
  %4792 = vmatmul.mubr.f32.gmra.mrb[0].mxu0 %v4423
  %v4793 = vpop.f32.mrb[0].mxu0
  %v4794 = vadd.f32 0.0, %v4793
  %v4795 = vpop.f32.mrb[0].mxu0
  %4796 = vmatprep.mubr.f32.mxu0 0.0
  %4797 = vmatmul.mubr.f32.gmra.mrb[0].mxu0 %v4426
  %v4798 = vpop.f32.mrb[0].mxu0
  %v4799 = vadd.f32 0.0, %v4798
  %v4800 = vpop.f32.mrb[0].mxu0
  %4801 = vmatprep.mubr.f32.mxu0 0.0
  %4802 = vmatmul.mubr.f32.gmra.mrb[0].mxu0 %v4429
  %v4803 = vpop.f32.mrb[0].mxu0
  %v4804 = vadd.f32 0.0, %v4803
  %v4805 = vpop.f32.mrb[0].mxu0
  %4806 = vmatprep.mubr.f32.mxu0 0.0
  %4807 = vmatmul.mubr.f32.gmra.mrb[0].mxu0 %v4432
  %v4808 = vpop.f32.mrb[0].mxu0
  %v4809 = vadd.f32 0.0, %v4808
  %v4810 = vpop.f32.mrb[0].mxu0
  %4811 = vmatprep.mubr.f32.mxu0 0.0
  %4812 = vmatmul.mubr.f32.gmra.mrb[0].mxu0 %v4435
  %v4813 = vpop.f32.mrb[0].mxu0
  %v4814 = vadd.f32 0.0, %v4813
  %v4815 = vpop.f32.mrb[0].mxu0
  %4816 = vmatprep.mubr.f32.mxu0 0.0
  %4817 = vmatmul.mubr.f32.gmra.mrb[0].mxu0 %v4438
  %v4818 = vpop.f32.mrb[0].mxu0
  %v4819 = vadd.f32 0.0, %v4818
  %v4820 = vpop.f32.mrb[0].mxu0
  %4821 = vmatprep.mubr.f32.mxu0 0.0
  %4822 = vmatmul.mubr.f32.gmra.mrb[0].mxu0 %v4441
  %v4823 = vpop.f32.mrb[0].mxu0
  %v4824 = vadd.f32 0.0, %v4823
  %v4825 = vpop.f32.mrb[0].mxu0
  %4826 = vmatprep.mubr.f32.mxu0 0.0
  %4827 = vmatmul.mubr.f32.gmra.mrb[0].mxu0 %v4444
  %v4828 = vpop.f32.mrb[0].mxu0
  %v4829 = vadd.f32 0.0, %v4828
  %v4830 = vpop.f32.mrb[0].mxu0
  %4831 = vmatprep.mubr.f32.mxu0 0.0
  %4832 = vmatmul.mubr.f32.gmra.mrb[0].mxu0 %v4447
  %v4833 = vpop.f32.mrb[0].mxu0
  %v4834 = vadd.f32 0.0, %v4833
  %v4835 = vpop.f32.mrb[0].mxu0
  %4836 = vdwg.mxu0
  %v4837 = vadd.f32 %v4126, %v4519
  %v4838 = vadd.f32 %v4127, %v4524
  %v4839 = vadd.f32 %v4128, %v4529
  %v4840 = vadd.f32 %v4129, %v4534
  %v4841 = vadd.f32 %v4130, %v4539
  %v4842 = vadd.f32 %v4131, %v4544
  %v4843 = vadd.f32 %v4132, %v4549
  %v4844 = vadd.f32 %v4133, %v4554
  %v4845 = vadd.f32 %v4134, %v4559
  %v4846 = vadd.f32 %v4135, %v4564
  %v4847 = vadd.f32 %v4136, %v4569
  %v4848 = vadd.f32 %v4137, %v4574
  %v4849 = vadd.f32 %v4138, %v4579
  %v4850 = vadd.f32 %v4139, %v4584
  %v4851 = vadd.f32 %v4140, %v4589
  %v4852 = vadd.f32 %v4141, %v4594
  %v4853 = vadd.f32 %v4142, %v4599
  %v4854 = vadd.f32 %v4143, %v4604
  %v4855 = vadd.f32 %v4144, %v4609
  %v4856 = vadd.f32 %v4145, %v4614
  %v4857 = vadd.f32 %v4146, %v4619
  %v4858 = vadd.f32 %v4147, %v4624
  %v4859 = vadd.f32 %v4148, %v4629
  %v4860 = vadd.f32 %v4149, %v4634
  %v4861 = vadd.f32 %v4150, %v4639
  %v4862 = vadd.f32 %v4151, %v4644
  %v4863 = vadd.f32 %v4152, %v4649
  %v4864 = vadd.f32 %v4153, %v4654
  %v4865 = vadd.f32 %v4154, %v4659
  %v4866 = vadd.f32 %v4155, %v4664
  %v4867 = vadd.f32 %v4156, %v4669
  %v4868 = vadd.f32 %v4157, %v4674
  %v4869 = vadd.f32 %v4158, %v4679
  %v4870 = vadd.f32 %v4159, %v4684
  %v4871 = vadd.f32 %v4160, %v4689
  %v4872 = vadd.f32 %v4161, %v4694
  %v4873 = vadd.f32 %v4162, %v4699
  %v4874 = vadd.f32 %v4163, %v4704
  %v4875 = vadd.f32 %v4164, %v4709
  %v4876 = vadd.f32 %v4165, %v4714
  %v4877 = vadd.f32 %v4166, %v4719
  %v4878 = vadd.f32 %v4167, %v4724
  %v4879 = vadd.f32 %v4168, %v4729
  %v4880 = vadd.f32 %v4169, %v4734
  %v4881 = vadd.f32 %v4170, %v4739
  %v4882 = vadd.f32 %v4171, %v4744
  %v4883 = vadd.f32 %v4172, %v4749
  %v4884 = vadd.f32 %v4173, %v4754
  %v4885 = vadd.f32 %v4174, %v4759
  %v4886 = vadd.f32 %v4175, %v4764
  %v4887 = vadd.f32 %v4176, %v4769
  %v4888 = vadd.f32 %v4177, %v4774
  %v4889 = vadd.f32 %v4178, %v4779
  %v4890 = vadd.f32 %v4179, %v4784
  %v4891 = vadd.f32 %v4180, %v4789
  %v4892 = vadd.f32 %v4181, %v4794
  %v4893 = vadd.f32 %v4182, %v4799
  %v4894 = vadd.f32 %v4183, %v4804
  %v4895 = vadd.f32 %v4184, %v4809
  %v4896 = vadd.f32 %v4185, %v4814
  %v4897 = vadd.f32 %v4186, %v4819
  %v4898 = vadd.f32 %v4187, %v4824
  %v4899 = vadd.f32 %v4188, %v4829
  %v4900 = vadd.f32 %v4189, %v4834
  %v4901 = vld [vmem:[%s4190 + $0x1] sm:$0xff]
  %v4902 = vld [vmem:[%s4190 + $0x9] sm:$0xff]
  %v4903 = vld [vmem:[%s4190 + $0x19] sm:$0xff]
  %v4904 = vld [vmem:[%s4190 + $0x21] sm:$0xff]
  %v4905 = vld [vmem:[%s4190 + $0x31] sm:$0xff]
  %v4906 = vld [vmem:[%s4190 + $0x39] sm:$0xff]
  %v4907 = vld [vmem:[%s4190 + $0x49] sm:$0xff]
  %v4908 = vld [vmem:[%s4190 + $0x51] sm:$0xff]
  %v4909 = vld [vmem:[%s4190 + $0x61] sm:$0xff]
  %v4910 = vld [vmem:[%s4190 + $0x69] sm:$0xff]
  %v4911 = vld [vmem:[%s4190 + $0x79] sm:$0xff]
  %v4912 = vld [vmem:[%s4190 + $0x81] sm:$0xff]
  %v4913 = vld [vmem:[%s4190 + $0x91] sm:$0xff]
  %v4914 = vld [vmem:[%s4190 + $0x99] sm:$0xff]
  %v4915 = vld [vmem:[%s4190 + $0xa9] sm:$0xff]
  %v4916 = vld [vmem:[%s4190 + $0xb1] sm:$0xff]
  %v4917 = vld [vmem:[%s4190 + $0xc1] sm:$0xff]
  %v4918 = vld [vmem:[%s4190 + $0xc9] sm:$0xff]
  %v4919 = vld [vmem:[%s4190 + $0xd9] sm:$0xff]
  %v4920 = vld [vmem:[%s4190 + $0xe1] sm:$0xff]
  %v4921 = vld [vmem:[%s4190 + $0xf1] sm:$0xff]
  %v4922 = vld [vmem:[%s4190 + $0xf9] sm:$0xff]
  %v4923 = vld [vmem:[%s4190 + $0x109] sm:$0xff]
  %v4924 = vld [vmem:[%s4190 + $0x111] sm:$0xff]
  %v4925 = vld [vmem:[%s4190 + $0x121] sm:$0xff]
  %v4926 = vld [vmem:[%s4190 + $0x129] sm:$0xff]
  %v4927 = vld [vmem:[%s4190 + $0x139] sm:$0xff]
  %v4928 = vld [vmem:[%s4190 + $0x141] sm:$0xff]
  %v4929 = vld [vmem:[%s4190 + $0x151] sm:$0xff]
  %v4930 = vld [vmem:[%s4190 + $0x159] sm:$0xff]
  %v4931 = vld [vmem:[%s4190 + $0x169] sm:$0xff]
  %v4932 = vld [vmem:[%s4190 + $0x171] sm:$0xff]
  %v4933 = vld [vmem:[%s4190 + $0x1b1] sm:$0xff]
  %v4934 = vld [vmem:[%s4190 + $0x1b9] sm:$0xff]
  %v4935 = vld [vmem:[%s4190 + $0x1c9] sm:$0xff]
  %v4936 = vld [vmem:[%s4190 + $0x1d1] sm:$0xff]
  %v4937 = vld [vmem:[%s4190 + $0x1e1] sm:$0xff]
  %v4938 = vld [vmem:[%s4190 + $0x1e9] sm:$0xff]
  %v4939 = vld [vmem:[%s4190 + $0x1f9] sm:$0xff]
  %v4940 = vld [vmem:[%s4190 + $0x201] sm:$0xff]
  %v4941 = vld [vmem:[%s4190 + $0x211] sm:$0xff]
  %v4942 = vld [vmem:[%s4190 + $0x219] sm:$0xff]
  %v4943 = vld [vmem:[%s4190 + $0x229] sm:$0xff]
  %v4944 = vld [vmem:[%s4190 + $0x231] sm:$0xff]
  %v4945 = vld [vmem:[%s4190 + $0x241] sm:$0xff]
  %v4946 = vld [vmem:[%s4190 + $0x249] sm:$0xff]
  %v4947 = vld [vmem:[%s4190 + $0x259] sm:$0xff]
  %v4948 = vld [vmem:[%s4190 + $0x261] sm:$0xff]
  %v4949 = vld [vmem:[%s4190 + $0x271] sm:$0xff]
  %v4950 = vld [vmem:[%s4190 + $0x279] sm:$0xff]
  %v4951 = vld [vmem:[%s4190 + $0x289] sm:$0xff]
  %v4952 = vld [vmem:[%s4190 + $0x291] sm:$0xff]
  %v4953 = vld [vmem:[%s4190 + $0x2a1] sm:$0xff]
  %v4954 = vld [vmem:[%s4190 + $0x2a9] sm:$0xff]
  %v4955 = vld [vmem:[%s4190 + $0x2b9] sm:$0xff]
  %v4956 = vld [vmem:[%s4190 + $0x2c1] sm:$0xff]
  %v4957 = vld [vmem:[%s4190 + $0x2d1] sm:$0xff]
  %v4958 = vld [vmem:[%s4190 + $0x2d9] sm:$0xff]
  %v4959 = vld [vmem:[%s4190 + $0x2e9] sm:$0xff]
  %v4960 = vld [vmem:[%s4190 + $0x2f1] sm:$0xff]
  %v4961 = vld [vmem:[%s4190 + $0x301] sm:$0xff]
  %v4962 = vld [vmem:[%s4190 + $0x309] sm:$0xff]
  %v4963 = vld [vmem:[%s4190 + $0x319] sm:$0xff]
  %v4964 = vld [vmem:[%s4190 + $0x321] sm:$0xff]
  %s4965 = scalar_lea.vmem %s2, 28
  %v4966 = vld [vmem:[%s4965] sm:$0x7]
  %v4968 = vsel %vm187, %v4901, 0
  %v4971 = vsel %vm187, %v4902, 0
  %v4974 = vsel %vm187, %v4903, 0
  %v4977 = vsel %vm187, %v4904, 0
  %v4980 = vsel %vm187, %v4905, 0
  %v4983 = vsel %vm187, %v4906, 0
  %v4986 = vsel %vm187, %v4907, 0
  %v4989 = vsel %vm187, %v4908, 0
  %v4992 = vsel %vm187, %v4909, 0
  %v4995 = vsel %vm187, %v4910, 0
  %v4998 = vsel %vm187, %v4911, 0
  %v5001 = vsel %vm187, %v4912, 0
  %v5004 = vsel %vm187, %v4913, 0
  %v5007 = vsel %vm187, %v4914, 0
  %v5010 = vsel %vm187, %v4915, 0
  %v5013 = vsel %vm187, %v4916, 0
  %v5016 = vsel %vm187, %v4917, 0
  %v5019 = vsel %vm187, %v4918, 0
  %v5022 = vsel %vm187, %v4919, 0
  %v5025 = vsel %vm187, %v4920, 0
  %v5028 = vsel %vm187, %v4921, 0
  %v5031 = vsel %vm187, %v4922, 0
  %v5034 = vsel %vm187, %v4923, 0
  %v5037 = vsel %vm187, %v4924, 0
  %v5040 = vsel %vm187, %v4925, 0
  %v5043 = vsel %vm187, %v4926, 0
  %v5046 = vsel %vm187, %v4927, 0
  %v5049 = vsel %vm187, %v4928, 0
  %v5052 = vsel %vm187, %v4929, 0
  %v5055 = vsel %vm187, %v4930, 0
  %v5058 = vsel %vm187, %v4931, 0
  %v5061 = vsel %vm187, %v4932, 0
  %v5064 = vsel %vm187, %v4933, 0
  %v5067 = vsel %vm187, %v4934, 0
  %v5070 = vsel %vm187, %v4935, 0
  %v5073 = vsel %vm187, %v4936, 0
  %v5076 = vsel %vm187, %v4937, 0
  %v5079 = vsel %vm187, %v4938, 0
  %v5082 = vsel %vm187, %v4939, 0
  %v5085 = vsel %vm187, %v4940, 0
  %v5088 = vsel %vm187, %v4941, 0
  %v5091 = vsel %vm187, %v4942, 0
  %v5094 = vsel %vm187, %v4943, 0
  %v5097 = vsel %vm187, %v4944, 0
  %v5100 = vsel %vm187, %v4945, 0
  %v5103 = vsel %vm187, %v4946, 0
  %v5106 = vsel %vm187, %v4947, 0
  %v5109 = vsel %vm187, %v4948, 0
  %v5112 = vsel %vm187, %v4949, 0
  %v5115 = vsel %vm187, %v4950, 0
  %v5118 = vsel %vm187, %v4951, 0
  %v5121 = vsel %vm187, %v4952, 0
  %v5124 = vsel %vm187, %v4953, 0
  %v5127 = vsel %vm187, %v4954, 0
  %v5130 = vsel %vm187, %v4955, 0
  %v5133 = vsel %vm187, %v4956, 0
  %v5136 = vsel %vm187, %v4957, 0
  %v5139 = vsel %vm187, %v4958, 0
  %v5142 = vsel %vm187, %v4959, 0
  %v5145 = vsel %vm187, %v4960, 0
  %v5148 = vsel %vm187, %v4961, 0
  %v5151 = vsel %vm187, %v4962, 0
  %v5154 = vsel %vm187, %v4963, 0
  %v5157 = vsel %vm187, %v4964, 0
  %v5160 = vsel %vm380, %v4966, 0
  %5162 = vmatprep.subr.mxu0 0.0
  %5163 = vmatpush1.msra.mxu0 %v5160
  %5164 = vmatprep.subr.mxu0 0.0
  %5165 = vmatpush1.msra.mxu0 0.0
  %5166 = vmatprep.subr.mxu0 0.0
  %5167 = vmatpush1.msra.mxu0 0.0
  %5168 = vmatprep.subr.mxu0 0.0
  %5169 = vmatpush1.msra.mxu0 0.0
  %5170 = vmatprep.subr.mxu0 0.0
  %5171 = vmatpush1.msra.mxu0 0.0
  %5172 = vmatprep.subr.mxu0 0.0
  %5173 = vmatpush1.msra.mxu0 0.0
  %5174 = vmatprep.subr.mxu0 0.0
  %5175 = vmatpush1.msra.mxu0 0.0
  %5176 = vmatprep.subr.mxu0 0.0
  %5177 = vmatpush1.msra.mxu0 0.0
  %5178 = vmatprep.subr.mxu0 0.0
  %5179 = vmatpush1.msra.mxu0 0.0
  %5180 = vmatprep.subr.mxu0 0.0
  %5181 = vmatpush1.msra.mxu0 0.0
  %5182 = vmatprep.subr.mxu0 0.0
  %5183 = vmatpush1.msra.mxu0 0.0
  %5184 = vmatprep.subr.mxu0 0.0
  %5185 = vmatpush1.msra.mxu0 0.0
  %5186 = vmatprep.subr.mxu0 0.0
  %5187 = vmatpush1.msra.mxu0 0.0
  %5188 = vmatprep.subr.mxu0 0.0
  %5189 = vmatpush1.msra.mxu0 0.0
  %5190 = vmatprep.subr.mxu0 0.0
  %5191 = vmatpush1.msra.mxu0 0.0
  %5192 = vmatprep.subr.mxu0 0.0
  %5193 = vmatpush1.msra.mxu0 0.0
  %5194 = vmatprep.subr.mxu0 0.0
  %5195 = vmatpush1.msra.mxu0 0.0
  %5196 = vmatprep.subr.mxu0 0.0
  %5197 = vmatpush1.msra.mxu0 0.0
  %5198 = vmatprep.subr.mxu0 0.0
  %5199 = vmatpush1.msra.mxu0 0.0
  %5200 = vmatprep.subr.mxu0 0.0
  %5201 = vmatpush1.msra.mxu0 0.0
  %5202 = vmatprep.subr.mxu0 0.0
  %5203 = vmatpush1.msra.mxu0 0.0
  %5204 = vmatprep.subr.mxu0 0.0
  %5205 = vmatpush1.msra.mxu0 0.0
  %5206 = vmatprep.subr.mxu0 0.0
  %5207 = vmatpush1.msra.mxu0 0.0
  %5208 = vmatprep.subr.mxu0 0.0
  %5209 = vmatpush1.msra.mxu0 0.0
  %5210 = vmatprep.subr.mxu0 0.0
  %5211 = vmatpush1.msra.mxu0 0.0
  %5212 = vmatprep.subr.mxu0 0.0
  %5213 = vmatpush1.msra.mxu0 0.0
  %5214 = vmatprep.subr.mxu0 0.0
  %5215 = vmatpush1.msra.mxu0 0.0
  %5216 = vmatprep.subr.mxu0 0.0
  %5217 = vmatpush1.msra.mxu0 0.0
  %5218 = vmatprep.subr.mxu0 0.0
  %5219 = vmatpush1.msra.mxu0 0.0
  %5220 = vmatprep.subr.mxu0 0.0
  %5221 = vmatpush1.msra.mxu0 0.0
  %5222 = vmatprep.subr.mxu0 0.0
  %5223 = vmatpush1.msra.mxu0 0.0
  %5224 = vmatprep.subr.mxu0 0.0
  %5225 = vmatpush1.msra.mxu0 0.0
  %5226 = vmatprep.mubr.f32.mxu0 0.0
  %5227 = vmatmul.mubr.f32.gmra.mrb[0].mxu0 %v4968
  %v5228 = vpop.f32.mrb[0].mxu0
  %v5229 = vadd.f32 0.0, %v5228
  %v5230 = vpop.f32.mrb[0].mxu0
  %5231 = vmatprep.mubr.f32.mxu0 0.0
  %5232 = vmatmul.mubr.f32.gmra.mrb[0].mxu0 %v4971
  %v5233 = vpop.f32.mrb[0].mxu0
  %v5234 = vadd.f32 0.0, %v5233
  %v5235 = vpop.f32.mrb[0].mxu0
  %5236 = vmatprep.mubr.f32.mxu0 0.0
  %5237 = vmatmul.mubr.f32.gmra.mrb[0].mxu0 %v4974
  %v5238 = vpop.f32.mrb[0].mxu0
  %v5239 = vadd.f32 0.0, %v5238
  %v5240 = vpop.f32.mrb[0].mxu0
  %5241 = vmatprep.mubr.f32.mxu0 0.0
  %5242 = vmatmul.mubr.f32.gmra.mrb[0].mxu0 %v4977
  %v5243 = vpop.f32.mrb[0].mxu0
  %v5244 = vadd.f32 0.0, %v5243
  %v5245 = vpop.f32.mrb[0].mxu0
  %5246 = vmatprep.mubr.f32.mxu0 0.0
  %5247 = vmatmul.mubr.f32.gmra.mrb[0].mxu0 %v4980
  %v5248 = vpop.f32.mrb[0].mxu0
  %v5249 = vadd.f32 0.0, %v5248
  %v5250 = vpop.f32.mrb[0].mxu0
  %5251 = vmatprep.mubr.f32.mxu0 0.0
  %5252 = vmatmul.mubr.f32.gmra.mrb[0].mxu0 %v4983
  %v5253 = vpop.f32.mrb[0].mxu0
  %v5254 = vadd.f32 0.0, %v5253
  %v5255 = vpop.f32.mrb[0].mxu0
  %5256 = vmatprep.mubr.f32.mxu0 0.0
  %5257 = vmatmul.mubr.f32.gmra.mrb[0].mxu0 %v4986
  %v5258 = vpop.f32.mrb[0].mxu0
  %v5259 = vadd.f32 0.0, %v5258
  %v5260 = vpop.f32.mrb[0].mxu0
  %5261 = vmatprep.mubr.f32.mxu0 0.0
  %5262 = vmatmul.mubr.f32.gmra.mrb[0].mxu0 %v4989
  %v5263 = vpop.f32.mrb[0].mxu0
  %v5264 = vadd.f32 0.0, %v5263
  %v5265 = vpop.f32.mrb[0].mxu0
  %5266 = vmatprep.mubr.f32.mxu0 0.0
  %5267 = vmatmul.mubr.f32.gmra.mrb[0].mxu0 %v4992
  %v5268 = vpop.f32.mrb[0].mxu0
  %v5269 = vadd.f32 0.0, %v5268
  %v5270 = vpop.f32.mrb[0].mxu0
  %5271 = vmatprep.mubr.f32.mxu0 0.0
  %5272 = vmatmul.mubr.f32.gmra.mrb[0].mxu0 %v4995
  %v5273 = vpop.f32.mrb[0].mxu0
  %v5274 = vadd.f32 0.0, %v5273
  %v5275 = vpop.f32.mrb[0].mxu0
  %5276 = vmatprep.mubr.f32.mxu0 0.0
  %5277 = vmatmul.mubr.f32.gmra.mrb[0].mxu0 %v4998
  %v5278 = vpop.f32.mrb[0].mxu0
  %v5279 = vadd.f32 0.0, %v5278
  %v5280 = vpop.f32.mrb[0].mxu0
  %5281 = vmatprep.mubr.f32.mxu0 0.0
  %5282 = vmatmul.mubr.f32.gmra.mrb[0].mxu0 %v5001
  %v5283 = vpop.f32.mrb[0].mxu0
  %v5284 = vadd.f32 0.0, %v5283
  %v5285 = vpop.f32.mrb[0].mxu0
  %5286 = vmatprep.mubr.f32.mxu0 0.0
  %5287 = vmatmul.mubr.f32.gmra.mrb[0].mxu0 %v5004
  %v5288 = vpop.f32.mrb[0].mxu0
  %v5289 = vadd.f32 0.0, %v5288
  %v5290 = vpop.f32.mrb[0].mxu0
  %5291 = vmatprep.mubr.f32.mxu0 0.0
  %5292 = vmatmul.mubr.f32.gmra.mrb[0].mxu0 %v5007
  %v5293 = vpop.f32.mrb[0].mxu0
  %v5294 = vadd.f32 0.0, %v5293
  %v5295 = vpop.f32.mrb[0].mxu0
  %5296 = vmatprep.mubr.f32.mxu0 0.0
  %5297 = vmatmul.mubr.f32.gmra.mrb[0].mxu0 %v5010
  %v5298 = vpop.f32.mrb[0].mxu0
  %v5299 = vadd.f32 0.0, %v5298
  %v5300 = vpop.f32.mrb[0].mxu0
  %5301 = vmatprep.mubr.f32.mxu0 0.0
  %5302 = vmatmul.mubr.f32.gmra.mrb[0].mxu0 %v5013
  %v5303 = vpop.f32.mrb[0].mxu0
  %v5304 = vadd.f32 0.0, %v5303
  %v5305 = vpop.f32.mrb[0].mxu0
  %5306 = vmatprep.mubr.f32.mxu0 0.0
  %5307 = vmatmul.mubr.f32.gmra.mrb[0].mxu0 %v5016
  %v5308 = vpop.f32.mrb[0].mxu0
  %v5309 = vadd.f32 0.0, %v5308
  %v5310 = vpop.f32.mrb[0].mxu0
  %5311 = vmatprep.mubr.f32.mxu0 0.0
  %5312 = vmatmul.mubr.f32.gmra.mrb[0].mxu0 %v5019
  %v5313 = vpop.f32.mrb[0].mxu0
  %v5314 = vadd.f32 0.0, %v5313
  %v5315 = vpop.f32.mrb[0].mxu0
  %5316 = vmatprep.mubr.f32.mxu0 0.0
  %5317 = vmatmul.mubr.f32.gmra.mrb[0].mxu0 %v5022
  %v5318 = vpop.f32.mrb[0].mxu0
  %v5319 = vadd.f32 0.0, %v5318
  %v5320 = vpop.f32.mrb[0].mxu0
  %5321 = vmatprep.mubr.f32.mxu0 0.0
  %5322 = vmatmul.mubr.f32.gmra.mrb[0].mxu0 %v5025
  %v5323 = vpop.f32.mrb[0].mxu0
  %v5324 = vadd.f32 0.0, %v5323
  %v5325 = vpop.f32.mrb[0].mxu0
  %5326 = vmatprep.mubr.f32.mxu0 0.0
  %5327 = vmatmul.mubr.f32.gmra.mrb[0].mxu0 %v5028
  %v5328 = vpop.f32.mrb[0].mxu0
  %v5329 = vadd.f32 0.0, %v5328
  %v5330 = vpop.f32.mrb[0].mxu0
  %5331 = vmatprep.mubr.f32.mxu0 0.0
  %5332 = vmatmul.mubr.f32.gmra.mrb[0].mxu0 %v5031
  %v5333 = vpop.f32.mrb[0].mxu0
  %v5334 = vadd.f32 0.0, %v5333
  %v5335 = vpop.f32.mrb[0].mxu0
  %5336 = vmatprep.mubr.f32.mxu0 0.0
  %5337 = vmatmul.mubr.f32.gmra.mrb[0].mxu0 %v5034
  %v5338 = vpop.f32.mrb[0].mxu0
  %v5339 = vadd.f32 0.0, %v5338
  %v5340 = vpop.f32.mrb[0].mxu0
  %5341 = vmatprep.mubr.f32.mxu0 0.0
  %5342 = vmatmul.mubr.f32.gmra.mrb[0].mxu0 %v5037
  %v5343 = vpop.f32.mrb[0].mxu0
  %v5344 = vadd.f32 0.0, %v5343
  %v5345 = vpop.f32.mrb[0].mxu0
  %5346 = vmatprep.mubr.f32.mxu0 0.0
  %5347 = vmatmul.mubr.f32.gmra.mrb[0].mxu0 %v5040
  %v5348 = vpop.f32.mrb[0].mxu0
  %v5349 = vadd.f32 0.0, %v5348
  %v5350 = vpop.f32.mrb[0].mxu0
  %5351 = vmatprep.mubr.f32.mxu0 0.0
  %5352 = vmatmul.mubr.f32.gmra.mrb[0].mxu0 %v5043
  %v5353 = vpop.f32.mrb[0].mxu0
  %v5354 = vadd.f32 0.0, %v5353
  %v5355 = vpop.f32.mrb[0].mxu0
  %5356 = vmatprep.mubr.f32.mxu0 0.0
  %5357 = vmatmul.mubr.f32.gmra.mrb[0].mxu0 %v5046
  %v5358 = vpop.f32.mrb[0].mxu0
  %v5359 = vadd.f32 0.0, %v5358
  %v5360 = vpop.f32.mrb[0].mxu0
  %5361 = vmatprep.mubr.f32.mxu0 0.0
  %5362 = vmatmul.mubr.f32.gmra.mrb[0].mxu0 %v5049
  %v5363 = vpop.f32.mrb[0].mxu0
  %v5364 = vadd.f32 0.0, %v5363
  %v5365 = vpop.f32.mrb[0].mxu0
  %5366 = vmatprep.mubr.f32.mxu0 0.0
  %5367 = vmatmul.mubr.f32.gmra.mrb[0].mxu0 %v5052
  %v5368 = vpop.f32.mrb[0].mxu0
  %v5369 = vadd.f32 0.0, %v5368
  %v5370 = vpop.f32.mrb[0].mxu0
  %5371 = vmatprep.mubr.f32.mxu0 0.0
  %5372 = vmatmul.mubr.f32.gmra.mrb[0].mxu0 %v5055
  %v5373 = vpop.f32.mrb[0].mxu0
  %v5374 = vadd.f32 0.0, %v5373
  %v5375 = vpop.f32.mrb[0].mxu0
  %5376 = vmatprep.mubr.f32.mxu0 0.0
  %5377 = vmatmul.mubr.f32.gmra.mrb[0].mxu0 %v5058
  %v5378 = vpop.f32.mrb[0].mxu0
  %v5379 = vadd.f32 0.0, %v5378
  %v5380 = vpop.f32.mrb[0].mxu0
  %5381 = vmatprep.mubr.f32.mxu0 0.0
  %5382 = vmatmul.mubr.f32.gmra.mrb[0].mxu0 %v5061
  %v5383 = vpop.f32.mrb[0].mxu0
  %v5384 = vadd.f32 0.0, %v5383
  %v5385 = vpop.f32.mrb[0].mxu0
  %5386 = vmatprep.mubr.f32.mxu0 0.0
  %5387 = vmatmul.mubr.f32.gmra.mrb[0].mxu0 %v5064
  %v5388 = vpop.f32.mrb[0].mxu0
  %v5389 = vadd.f32 0.0, %v5388
  %v5390 = vpop.f32.mrb[0].mxu0
  %5391 = vmatprep.mubr.f32.mxu0 0.0
  %5392 = vmatmul.mubr.f32.gmra.mrb[0].mxu0 %v5067
  %v5393 = vpop.f32.mrb[0].mxu0
  %v5394 = vadd.f32 0.0, %v5393
  %v5395 = vpop.f32.mrb[0].mxu0
  %5396 = vmatprep.mubr.f32.mxu0 0.0
  %5397 = vmatmul.mubr.f32.gmra.mrb[0].mxu0 %v5070
  %v5398 = vpop.f32.mrb[0].mxu0
  %v5399 = vadd.f32 0.0, %v5398
  %v5400 = vpop.f32.mrb[0].mxu0
  %5401 = vmatprep.mubr.f32.mxu0 0.0
  %5402 = vmatmul.mubr.f32.gmra.mrb[0].mxu0 %v5073
  %v5403 = vpop.f32.mrb[0].mxu0
  %v5404 = vadd.f32 0.0, %v5403
  %v5405 = vpop.f32.mrb[0].mxu0
  %5406 = vmatprep.mubr.f32.mxu0 0.0
  %5407 = vmatmul.mubr.f32.gmra.mrb[0].mxu0 %v5076
  %v5408 = vpop.f32.mrb[0].mxu0
  %v5409 = vadd.f32 0.0, %v5408
  %v5410 = vpop.f32.mrb[0].mxu0
  %5411 = vmatprep.mubr.f32.mxu0 0.0
  %5412 = vmatmul.mubr.f32.gmra.mrb[0].mxu0 %v5079
  %v5413 = vpop.f32.mrb[0].mxu0
  %v5414 = vadd.f32 0.0, %v5413
  %v5415 = vpop.f32.mrb[0].mxu0
  %5416 = vmatprep.mubr.f32.mxu0 0.0
  %5417 = vmatmul.mubr.f32.gmra.mrb[0].mxu0 %v5082
  %v5418 = vpop.f32.mrb[0].mxu0
  %v5419 = vadd.f32 0.0, %v5418
  %v5420 = vpop.f32.mrb[0].mxu0
  %5421 = vmatprep.mubr.f32.mxu0 0.0
  %5422 = vmatmul.mubr.f32.gmra.mrb[0].mxu0 %v5085
  %v5423 = vpop.f32.mrb[0].mxu0
  %v5424 = vadd.f32 0.0, %v5423
  %v5425 = vpop.f32.mrb[0].mxu0
  %5426 = vmatprep.mubr.f32.mxu0 0.0
  %5427 = vmatmul.mubr.f32.gmra.mrb[0].mxu0 %v5088
  %v5428 = vpop.f32.mrb[0].mxu0
  %v5429 = vadd.f32 0.0, %v5428
  %v5430 = vpop.f32.mrb[0].mxu0
  %5431 = vmatprep.mubr.f32.mxu0 0.0
  %5432 = vmatmul.mubr.f32.gmra.mrb[0].mxu0 %v5091
  %v5433 = vpop.f32.mrb[0].mxu0
  %v5434 = vadd.f32 0.0, %v5433
  %v5435 = vpop.f32.mrb[0].mxu0
  %5436 = vmatprep.mubr.f32.mxu0 0.0
  %5437 = vmatmul.mubr.f32.gmra.mrb[0].mxu0 %v5094
  %v5438 = vpop.f32.mrb[0].mxu0
  %v5439 = vadd.f32 0.0, %v5438
  %v5440 = vpop.f32.mrb[0].mxu0
  %5441 = vmatprep.mubr.f32.mxu0 0.0
  %5442 = vmatmul.mubr.f32.gmra.mrb[0].mxu0 %v5097
  %v5443 = vpop.f32.mrb[0].mxu0
  %v5444 = vadd.f32 0.0, %v5443
  %v5445 = vpop.f32.mrb[0].mxu0
  %5446 = vmatprep.mubr.f32.mxu0 0.0
  %5447 = vmatmul.mubr.f32.gmra.mrb[0].mxu0 %v5100
  %v5448 = vpop.f32.mrb[0].mxu0
  %v5449 = vadd.f32 0.0, %v5448
  %v5450 = vpop.f32.mrb[0].mxu0
  %5451 = vmatprep.mubr.f32.mxu0 0.0
  %5452 = vmatmul.mubr.f32.gmra.mrb[0].mxu0 %v5103
  %v5453 = vpop.f32.mrb[0].mxu0
  %v5454 = vadd.f32 0.0, %v5453
  %v5455 = vpop.f32.mrb[0].mxu0
  %5456 = vmatprep.mubr.f32.mxu0 0.0
  %5457 = vmatmul.mubr.f32.gmra.mrb[0].mxu0 %v5106
  %v5458 = vpop.f32.mrb[0].mxu0
  %v5459 = vadd.f32 0.0, %v5458
  %v5460 = vpop.f32.mrb[0].mxu0
  %5461 = vmatprep.mubr.f32.mxu0 0.0
  %5462 = vmatmul.mubr.f32.gmra.mrb[0].mxu0 %v5109
  %v5463 = vpop.f32.mrb[0].mxu0
  %v5464 = vadd.f32 0.0, %v5463
  %v5465 = vpop.f32.mrb[0].mxu0
  %5466 = vmatprep.mubr.f32.mxu0 0.0
  %5467 = vmatmul.mubr.f32.gmra.mrb[0].mxu0 %v5112
  %v5468 = vpop.f32.mrb[0].mxu0
  %v5469 = vadd.f32 0.0, %v5468
  %v5470 = vpop.f32.mrb[0].mxu0
  %5471 = vmatprep.mubr.f32.mxu0 0.0
  %5472 = vmatmul.mubr.f32.gmra.mrb[0].mxu0 %v5115
  %v5473 = vpop.f32.mrb[0].mxu0
  %v5474 = vadd.f32 0.0, %v5473
  %v5475 = vpop.f32.mrb[0].mxu0
  %5476 = vmatprep.mubr.f32.mxu0 0.0
  %5477 = vmatmul.mubr.f32.gmra.mrb[0].mxu0 %v5118
  %v5478 = vpop.f32.mrb[0].mxu0
  %v5479 = vadd.f32 0.0, %v5478
  %v5480 = vpop.f32.mrb[0].mxu0
  %5481 = vmatprep.mubr.f32.mxu0 0.0
  %5482 = vmatmul.mubr.f32.gmra.mrb[0].mxu0 %v5121
  %v5483 = vpop.f32.mrb[0].mxu0
  %v5484 = vadd.f32 0.0, %v5483
  %v5485 = vpop.f32.mrb[0].mxu0
  %5486 = vmatprep.mubr.f32.mxu0 0.0
  %5487 = vmatmul.mubr.f32.gmra.mrb[0].mxu0 %v5124
  %v5488 = vpop.f32.mrb[0].mxu0
  %v5489 = vadd.f32 0.0, %v5488
  %v5490 = vpop.f32.mrb[0].mxu0
  %5491 = vmatprep.mubr.f32.mxu0 0.0
  %5492 = vmatmul.mubr.f32.gmra.mrb[0].mxu0 %v5127
  %v5493 = vpop.f32.mrb[0].mxu0
  %v5494 = vadd.f32 0.0, %v5493
  %v5495 = vpop.f32.mrb[0].mxu0
  %5496 = vmatprep.mubr.f32.mxu0 0.0
  %5497 = vmatmul.mubr.f32.gmra.mrb[0].mxu0 %v5130
  %v5498 = vpop.f32.mrb[0].mxu0
  %v5499 = vadd.f32 0.0, %v5498
  %v5500 = vpop.f32.mrb[0].mxu0
  %5501 = vmatprep.mubr.f32.mxu0 0.0
  %5502 = vmatmul.mubr.f32.gmra.mrb[0].mxu0 %v5133
  %v5503 = vpop.f32.mrb[0].mxu0
  %v5504 = vadd.f32 0.0, %v5503
  %v5505 = vpop.f32.mrb[0].mxu0
  %5506 = vmatprep.mubr.f32.mxu0 0.0
  %5507 = vmatmul.mubr.f32.gmra.mrb[0].mxu0 %v5136
  %v5508 = vpop.f32.mrb[0].mxu0
  %v5509 = vadd.f32 0.0, %v5508
  %v5510 = vpop.f32.mrb[0].mxu0
  %5511 = vmatprep.mubr.f32.mxu0 0.0
  %5512 = vmatmul.mubr.f32.gmra.mrb[0].mxu0 %v5139
  %v5513 = vpop.f32.mrb[0].mxu0
  %v5514 = vadd.f32 0.0, %v5513
  %v5515 = vpop.f32.mrb[0].mxu0
  %5516 = vmatprep.mubr.f32.mxu0 0.0
  %5517 = vmatmul.mubr.f32.gmra.mrb[0].mxu0 %v5142
  %v5518 = vpop.f32.mrb[0].mxu0
  %v5519 = vadd.f32 0.0, %v5518
  %v5520 = vpop.f32.mrb[0].mxu0
  %5521 = vmatprep.mubr.f32.mxu0 0.0
  %5522 = vmatmul.mubr.f32.gmra.mrb[0].mxu0 %v5145
  %v5523 = vpop.f32.mrb[0].mxu0
  %v5524 = vadd.f32 0.0, %v5523
  %v5525 = vpop.f32.mrb[0].mxu0
  %5526 = vmatprep.mubr.f32.mxu0 0.0
  %5527 = vmatmul.mubr.f32.gmra.mrb[0].mxu0 %v5148
  %v5528 = vpop.f32.mrb[0].mxu0
  %v5529 = vadd.f32 0.0, %v5528
  %v5530 = vpop.f32.mrb[0].mxu0
  %5531 = vmatprep.mubr.f32.mxu0 0.0
  %5532 = vmatmul.mubr.f32.gmra.mrb[0].mxu0 %v5151
  %v5533 = vpop.f32.mrb[0].mxu0
  %v5534 = vadd.f32 0.0, %v5533
  %v5535 = vpop.f32.mrb[0].mxu0
  %5536 = vmatprep.mubr.f32.mxu0 0.0
  %5537 = vmatmul.mubr.f32.gmra.mrb[0].mxu0 %v5154
  %v5538 = vpop.f32.mrb[0].mxu0
  %v5539 = vadd.f32 0.0, %v5538
  %v5540 = vpop.f32.mrb[0].mxu0
  %5541 = vmatprep.mubr.f32.mxu0 0.0
  %5542 = vmatmul.mubr.f32.gmra.mrb[0].mxu0 %v5157
  %v5543 = vpop.f32.mrb[0].mxu0
  %v5544 = vadd.f32 0.0, %v5543
  %v5545 = vpop.f32.mrb[0].mxu0
  %5546 = vdwg.mxu0
  %v5547 = vadd.f32 %v4837, %v5229
  %v5548 = vadd.f32 %v4838, %v5234
  %v5549 = vadd.f32 %v4839, %v5239
  %v5550 = vadd.f32 %v4840, %v5244
  %v5551 = vadd.f32 %v4841, %v5249
  %v5552 = vadd.f32 %v4842, %v5254
  %v5553 = vadd.f32 %v4843, %v5259
  %v5554 = vadd.f32 %v4844, %v5264
  %v5555 = vadd.f32 %v4845, %v5269
  %v5556 = vadd.f32 %v4846, %v5274
  %v5557 = vadd.f32 %v4847, %v5279
  %v5558 = vadd.f32 %v4848, %v5284
  %v5559 = vadd.f32 %v4849, %v5289
  %v5560 = vadd.f32 %v4850, %v5294
  %v5561 = vadd.f32 %v4851, %v5299
  %v5562 = vadd.f32 %v4852, %v5304
  %v5563 = vadd.f32 %v4853, %v5309
  %v5564 = vadd.f32 %v4854, %v5314
  %v5565 = vadd.f32 %v4855, %v5319
  %v5566 = vadd.f32 %v4856, %v5324
  %v5567 = vadd.f32 %v4857, %v5329
  %v5568 = vadd.f32 %v4858, %v5334
  %v5569 = vadd.f32 %v4859, %v5339
  %v5570 = vadd.f32 %v4860, %v5344
  %v5571 = vadd.f32 %v4861, %v5349
  %v5572 = vadd.f32 %v4862, %v5354
  %v5573 = vadd.f32 %v4863, %v5359
  %v5574 = vadd.f32 %v4864, %v5364
  %v5575 = vadd.f32 %v4865, %v5369
  %v5576 = vadd.f32 %v4866, %v5374
  %v5577 = vadd.f32 %v4867, %v5379
  %v5578 = vadd.f32 %v4868, %v5384
  %v5579 = vadd.f32 %v4869, %v5389
  %v5580 = vadd.f32 %v4870, %v5394
  %v5581 = vadd.f32 %v4871, %v5399
  %v5582 = vadd.f32 %v4872, %v5404
  %v5583 = vadd.f32 %v4873, %v5409
  %v5584 = vadd.f32 %v4874, %v5414
  %v5585 = vadd.f32 %v4875, %v5419
  %v5586 = vadd.f32 %v4876, %v5424
  %v5587 = vadd.f32 %v4877, %v5429
  %v5588 = vadd.f32 %v4878, %v5434
  %v5589 = vadd.f32 %v4879, %v5439
  %v5590 = vadd.f32 %v4880, %v5444
  %v5591 = vadd.f32 %v4881, %v5449
  %v5592 = vadd.f32 %v4882, %v5454
  %v5593 = vadd.f32 %v4883, %v5459
  %v5594 = vadd.f32 %v4884, %v5464
  %v5595 = vadd.f32 %v4885, %v5469
  %v5596 = vadd.f32 %v4886, %v5474
  %v5597 = vadd.f32 %v4887, %v5479
  %v5598 = vadd.f32 %v4888, %v5484
  %v5599 = vadd.f32 %v4889, %v5489
  %v5600 = vadd.f32 %v4890, %v5494
  %v5601 = vadd.f32 %v4891, %v5499
  %v5602 = vadd.f32 %v4892, %v5504
  %v5603 = vadd.f32 %v4893, %v5509
  %v5604 = vadd.f32 %v4894, %v5514
  %v5605 = vadd.f32 %v4895, %v5519
  %v5606 = vadd.f32 %v4896, %v5524
  %v5607 = vadd.f32 %v4897, %v5529
  %v5608 = vadd.f32 %v4898, %v5534
  %v5609 = vadd.f32 %v4899, %v5539
  %v5610 = vadd.f32 %v4900, %v5544
  %v5611 = vld [vmem:[%s4190 + $0x2] sm:$0xff]
  %v5612 = vld [vmem:[%s4190 + $0xa] sm:$0xff]
  %v5613 = vld [vmem:[%s4190 + $0x1a] sm:$0xff]
  %v5614 = vld [vmem:[%s4190 + $0x22] sm:$0xff]
  %v5615 = vld [vmem:[%s4190 + $0x32] sm:$0xff]
  %v5616 = vld [vmem:[%s4190 + $0x3a] sm:$0xff]
  %v5617 = vld [vmem:[%s4190 + $0x4a] sm:$0xff]
  %v5618 = vld [vmem:[%s4190 + $0x52] sm:$0xff]
  %v5619 = vld [vmem:[%s4190 + $0x62] sm:$0xff]
  %v5620 = vld [vmem:[%s4190 + $0x6a] sm:$0xff]
  %v5621 = vld [vmem:[%s4190 + $0x7a] sm:$0xff]
  %v5622 = vld [vmem:[%s4190 + $0x82] sm:$0xff]
  %v5623 = vld [vmem:[%s4190 + $0x92] sm:$0xff]
  %v5624 = vld [vmem:[%s4190 + $0x9a] sm:$0xff]
  %v5625 = vld [vmem:[%s4190 + $0xaa] sm:$0xff]
  %v5626 = vld [vmem:[%s4190 + $0xb2] sm:$0xff]
  %v5627 = vld [vmem:[%s4190 + $0xc2] sm:$0xff]
  %v5628 = vld [vmem:[%s4190 + $0xca] sm:$0xff]
  %v5629 = vld [vmem:[%s4190 + $0xda] sm:$0xff]
  %v5630 = vld [vmem:[%s4190 + $0xe2] sm:$0xff]
  %v5631 = vld [vmem:[%s4190 + $0xf2] sm:$0xff]
  %v5632 = vld [vmem:[%s4190 + $0xfa] sm:$0xff]
  %v5633 = vld [vmem:[%s4190 + $0x10a] sm:$0xff]
  %v5634 = vld [vmem:[%s4190 + $0x112] sm:$0xff]
  %v5635 = vld [vmem:[%s4190 + $0x122] sm:$0xff]
  %v5636 = vld [vmem:[%s4190 + $0x12a] sm:$0xff]
  %v5637 = vld [vmem:[%s4190 + $0x13a] sm:$0xff]
  %v5638 = vld [vmem:[%s4190 + $0x142] sm:$0xff]
  %v5639 = vld [vmem:[%s4190 + $0x152] sm:$0xff]
  %v5640 = vld [vmem:[%s4190 + $0x15a] sm:$0xff]
  %v5641 = vld [vmem:[%s4190 + $0x16a] sm:$0xff]
  %v5642 = vld [vmem:[%s4190 + $0x172] sm:$0xff]
  %v5643 = vld [vmem:[%s4190 + $0x1b2] sm:$0xff]
  %v5644 = vld [vmem:[%s4190 + $0x1ba] sm:$0xff]
  %v5645 = vld [vmem:[%s4190 + $0x1ca] sm:$0xff]
  %v5646 = vld [vmem:[%s4190 + $0x1d2] sm:$0xff]
  %v5647 = vld [vmem:[%s4190 + $0x1e2] sm:$0xff]
  %v5648 = vld [vmem:[%s4190 + $0x1ea] sm:$0xff]
  %v5649 = vld [vmem:[%s4190 + $0x1fa] sm:$0xff]
  %v5650 = vld [vmem:[%s4190 + $0x202] sm:$0xff]
  %v5651 = vld [vmem:[%s4190 + $0x212] sm:$0xff]
  %v5652 = vld [vmem:[%s4190 + $0x21a] sm:$0xff]
  %v5653 = vld [vmem:[%s4190 + $0x22a] sm:$0xff]
  %v5654 = vld [vmem:[%s4190 + $0x232] sm:$0xff]
  %v5655 = vld [vmem:[%s4190 + $0x242] sm:$0xff]
  %v5656 = vld [vmem:[%s4190 + $0x24a] sm:$0xff]
  %v5657 = vld [vmem:[%s4190 + $0x25a] sm:$0xff]
  %v5658 = vld [vmem:[%s4190 + $0x262] sm:$0xff]
  %v5659 = vld [vmem:[%s4190 + $0x272] sm:$0xff]
  %v5660 = vld [vmem:[%s4190 + $0x27a] sm:$0xff]
  %v5661 = vld [vmem:[%s4190 + $0x28a] sm:$0xff]
  %v5662 = vld [vmem:[%s4190 + $0x292] sm:$0xff]
  %v5663 = vld [vmem:[%s4190 + $0x2a2] sm:$0xff]
  %v5664 = vld [vmem:[%s4190 + $0x2aa] sm:$0xff]
  %v5665 = vld [vmem:[%s4190 + $0x2ba] sm:$0xff]
  %v5666 = vld [vmem:[%s4190 + $0x2c2] sm:$0xff]
  %v5667 = vld [vmem:[%s4190 + $0x2d2] sm:$0xff]
  %v5668 = vld [vmem:[%s4190 + $0x2da] sm:$0xff]
  %v5669 = vld [vmem:[%s4190 + $0x2ea] sm:$0xff]
  %v5670 = vld [vmem:[%s4190 + $0x2f2] sm:$0xff]
  %v5671 = vld [vmem:[%s4190 + $0x302] sm:$0xff]
  %v5672 = vld [vmem:[%s4190 + $0x30a] sm:$0xff]
  %v5673 = vld [vmem:[%s4190 + $0x31a] sm:$0xff]
  %v5674 = vld [vmem:[%s4190 + $0x322] sm:$0xff]
  %s5675 = scalar_lea.vmem %s2, 32
  %v5676 = vld [vmem:[%s5675] sm:$0x7]
  %v5678 = vsel %vm187, %v5611, 0
  %v5681 = vsel %vm187, %v5612, 0
  %v5684 = vsel %vm187, %v5613, 0
  %v5687 = vsel %vm187, %v5614, 0
  %v5690 = vsel %vm187, %v5615, 0
  %v5693 = vsel %vm187, %v5616, 0
  %v5696 = vsel %vm187, %v5617, 0
  %v5699 = vsel %vm187, %v5618, 0
  %v5702 = vsel %vm187, %v5619, 0
  %v5705 = vsel %vm187, %v5620, 0
  %v5708 = vsel %vm187, %v5621, 0
  %v5711 = vsel %vm187, %v5622, 0
  %v5714 = vsel %vm187, %v5623, 0
  %v5717 = vsel %vm187, %v5624, 0
  %v5720 = vsel %vm187, %v5625, 0
  %v5723 = vsel %vm187, %v5626, 0
  %v5726 = vsel %vm187, %v5627, 0
  %v5729 = vsel %vm187, %v5628, 0
  %v5732 = vsel %vm187, %v5629, 0
  %v5735 = vsel %vm187, %v5630, 0
  %v5738 = vsel %vm187, %v5631, 0
  %v5741 = vsel %vm187, %v5632, 0
  %v5744 = vsel %vm187, %v5633, 0
  %v5747 = vsel %vm187, %v5634, 0
  %v5750 = vsel %vm187, %v5635, 0
  %v5753 = vsel %vm187, %v5636, 0
  %v5756 = vsel %vm187, %v5637, 0
  %v5759 = vsel %vm187, %v5638, 0
  %v5762 = vsel %vm187, %v5639, 0
  %v5765 = vsel %vm187, %v5640, 0
  %v5768 = vsel %vm187, %v5641, 0
  %v5771 = vsel %vm187, %v5642, 0
  %v5774 = vsel %vm187, %v5643, 0
  %v5777 = vsel %vm187, %v5644, 0
  %v5780 = vsel %vm187, %v5645, 0
  %v5783 = vsel %vm187, %v5646, 0
  %v5786 = vsel %vm187, %v5647, 0
  %v5789 = vsel %vm187, %v5648, 0
  %v5792 = vsel %vm187, %v5649, 0
  %v5795 = vsel %vm187, %v5650, 0
  %v5798 = vsel %vm187, %v5651, 0
  %v5801 = vsel %vm187, %v5652, 0
  %v5804 = vsel %vm187, %v5653, 0
  %v5807 = vsel %vm187, %v5654, 0
  %v5810 = vsel %vm187, %v5655, 0
  %v5813 = vsel %vm187, %v5656, 0
  %v5816 = vsel %vm187, %v5657, 0
  %v5819 = vsel %vm187, %v5658, 0
  %v5822 = vsel %vm187, %v5659, 0
  %v5825 = vsel %vm187, %v5660, 0
  %v5828 = vsel %vm187, %v5661, 0
  %v5831 = vsel %vm187, %v5662, 0
  %v5834 = vsel %vm187, %v5663, 0
  %v5837 = vsel %vm187, %v5664, 0
  %v5840 = vsel %vm187, %v5665, 0
  %v5843 = vsel %vm187, %v5666, 0
  %v5846 = vsel %vm187, %v5667, 0
  %v5849 = vsel %vm187, %v5668, 0
  %v5852 = vsel %vm187, %v5669, 0
  %v5855 = vsel %vm187, %v5670, 0
  %v5858 = vsel %vm187, %v5671, 0
  %v5861 = vsel %vm187, %v5672, 0
  %v5864 = vsel %vm187, %v5673, 0
  %v5867 = vsel %vm187, %v5674, 0
  %v5870 = vsel %vm380, %v5676, 0
  %5872 = vmatprep.subr.mxu0 0.0
  %5873 = vmatpush1.msra.mxu0 %v5870
  %5874 = vmatprep.subr.mxu0 0.0
  %5875 = vmatpush1.msra.mxu0 0.0
  %5876 = vmatprep.subr.mxu0 0.0
  %5877 = vmatpush1.msra.mxu0 0.0
  %5878 = vmatprep.subr.mxu0 0.0
  %5879 = vmatpush1.msra.mxu0 0.0
  %5880 = vmatprep.subr.mxu0 0.0
  %5881 = vmatpush1.msra.mxu0 0.0
  %5882 = vmatprep.subr.mxu0 0.0
  %5883 = vmatpush1.msra.mxu0 0.0
  %5884 = vmatprep.subr.mxu0 0.0
  %5885 = vmatpush1.msra.mxu0 0.0
  %5886 = vmatprep.subr.mxu0 0.0
  %5887 = vmatpush1.msra.mxu0 0.0
  %5888 = vmatprep.subr.mxu0 0.0
  %5889 = vmatpush1.msra.mxu0 0.0
  %5890 = vmatprep.subr.mxu0 0.0
  %5891 = vmatpush1.msra.mxu0 0.0
  %5892 = vmatprep.subr.mxu0 0.0
  %5893 = vmatpush1.msra.mxu0 0.0
  %5894 = vmatprep.subr.mxu0 0.0
  %5895 = vmatpush1.msra.mxu0 0.0
  %5896 = vmatprep.subr.mxu0 0.0
  %5897 = vmatpush1.msra.mxu0 0.0
  %5898 = vmatprep.subr.mxu0 0.0
  %5899 = vmatpush1.msra.mxu0 0.0
  %5900 = vmatprep.subr.mxu0 0.0
  %5901 = vmatpush1.msra.mxu0 0.0
  %5902 = vmatprep.subr.mxu0 0.0
  %5903 = vmatpush1.msra.mxu0 0.0
  %5904 = vmatprep.subr.mxu0 0.0
  %5905 = vmatpush1.msra.mxu0 0.0
  %5906 = vmatprep.subr.mxu0 0.0
  %5907 = vmatpush1.msra.mxu0 0.0
  %5908 = vmatprep.subr.mxu0 0.0
  %5909 = vmatpush1.msra.mxu0 0.0
  %5910 = vmatprep.subr.mxu0 0.0
  %5911 = vmatpush1.msra.mxu0 0.0
  %5912 = vmatprep.subr.mxu0 0.0
  %5913 = vmatpush1.msra.mxu0 0.0
  %5914 = vmatprep.subr.mxu0 0.0
  %5915 = vmatpush1.msra.mxu0 0.0
  %5916 = vmatprep.subr.mxu0 0.0
  %5917 = vmatpush1.msra.mxu0 0.0
  %5918 = vmatprep.subr.mxu0 0.0
  %5919 = vmatpush1.msra.mxu0 0.0
  %5920 = vmatprep.subr.mxu0 0.0
  %5921 = vmatpush1.msra.mxu0 0.0
  %5922 = vmatprep.subr.mxu0 0.0
  %5923 = vmatpush1.msra.mxu0 0.0
  %5924 = vmatprep.subr.mxu0 0.0
  %5925 = vmatpush1.msra.mxu0 0.0
  %5926 = vmatprep.subr.mxu0 0.0
  %5927 = vmatpush1.msra.mxu0 0.0
  %5928 = vmatprep.subr.mxu0 0.0
  %5929 = vmatpush1.msra.mxu0 0.0
  %5930 = vmatprep.subr.mxu0 0.0
  %5931 = vmatpush1.msra.mxu0 0.0
  %5932 = vmatprep.subr.mxu0 0.0
  %5933 = vmatpush1.msra.mxu0 0.0
  %5934 = vmatprep.subr.mxu0 0.0
  %5935 = vmatpush1.msra.mxu0 0.0
  %5936 = vmatprep.mubr.f32.mxu0 0.0
  %5937 = vmatmul.mubr.f32.gmra.mrb[0].mxu0 %v5678
  %v5938 = vpop.f32.mrb[0].mxu0
  %v5939 = vadd.f32 0.0, %v5938
  %v5940 = vpop.f32.mrb[0].mxu0
  %5941 = vmatprep.mubr.f32.mxu0 0.0
  %5942 = vmatmul.mubr.f32.gmra.mrb[0].mxu0 %v5681
  %v5943 = vpop.f32.mrb[0].mxu0
  %v5944 = vadd.f32 0.0, %v5943
  %v5945 = vpop.f32.mrb[0].mxu0
  %5946 = vmatprep.mubr.f32.mxu0 0.0
  %5947 = vmatmul.mubr.f32.gmra.mrb[0].mxu0 %v5684
  %v5948 = vpop.f32.mrb[0].mxu0
  %v5949 = vadd.f32 0.0, %v5948
  %v5950 = vpop.f32.mrb[0].mxu0
  %5951 = vmatprep.mubr.f32.mxu0 0.0
  %5952 = vmatmul.mubr.f32.gmra.mrb[0].mxu0 %v5687
  %v5953 = vpop.f32.mrb[0].mxu0
  %v5954 = vadd.f32 0.0, %v5953
  %v5955 = vpop.f32.mrb[0].mxu0
  %5956 = vmatprep.mubr.f32.mxu0 0.0
  %5957 = vmatmul.mubr.f32.gmra.mrb[0].mxu0 %v5690
  %v5958 = vpop.f32.mrb[0].mxu0
  %v5959 = vadd.f32 0.0, %v5958
  %v5960 = vpop.f32.mrb[0].mxu0
  %5961 = vmatprep.mubr.f32.mxu0 0.0
  %5962 = vmatmul.mubr.f32.gmra.mrb[0].mxu0 %v5693
  %v5963 = vpop.f32.mrb[0].mxu0
  %v5964 = vadd.f32 0.0, %v5963
  %v5965 = vpop.f32.mrb[0].mxu0
  %5966 = vmatprep.mubr.f32.mxu0 0.0
  %5967 = vmatmul.mubr.f32.gmra.mrb[0].mxu0 %v5696
  %v5968 = vpop.f32.mrb[0].mxu0
  %v5969 = vadd.f32 0.0, %v5968
  %v5970 = vpop.f32.mrb[0].mxu0
  %5971 = vmatprep.mubr.f32.mxu0 0.0
  %5972 = vmatmul.mubr.f32.gmra.mrb[0].mxu0 %v5699
  %v5973 = vpop.f32.mrb[0].mxu0
  %v5974 = vadd.f32 0.0, %v5973
  %v5975 = vpop.f32.mrb[0].mxu0
  %5976 = vmatprep.mubr.f32.mxu0 0.0
  %5977 = vmatmul.mubr.f32.gmra.mrb[0].mxu0 %v5702
  %v5978 = vpop.f32.mrb[0].mxu0
  %v5979 = vadd.f32 0.0, %v5978
  %v5980 = vpop.f32.mrb[0].mxu0
  %5981 = vmatprep.mubr.f32.mxu0 0.0
  %5982 = vmatmul.mubr.f32.gmra.mrb[0].mxu0 %v5705
  %v5983 = vpop.f32.mrb[0].mxu0
  %v5984 = vadd.f32 0.0, %v5983
  %v5985 = vpop.f32.mrb[0].mxu0
  %5986 = vmatprep.mubr.f32.mxu0 0.0
  %5987 = vmatmul.mubr.f32.gmra.mrb[0].mxu0 %v5708
  %v5988 = vpop.f32.mrb[0].mxu0
  %v5989 = vadd.f32 0.0, %v5988
  %v5990 = vpop.f32.mrb[0].mxu0
  %5991 = vmatprep.mubr.f32.mxu0 0.0
  %5992 = vmatmul.mubr.f32.gmra.mrb[0].mxu0 %v5711
  %v5993 = vpop.f32.mrb[0].mxu0
  %v5994 = vadd.f32 0.0, %v5993
  %v5995 = vpop.f32.mrb[0].mxu0
  %5996 = vmatprep.mubr.f32.mxu0 0.0
  %5997 = vmatmul.mubr.f32.gmra.mrb[0].mxu0 %v5714
  %v5998 = vpop.f32.mrb[0].mxu0
  %v5999 = vadd.f32 0.0, %v5998
  %v6000 = vpop.f32.mrb[0].mxu0
  %6001 = vmatprep.mubr.f32.mxu0 0.0
  %6002 = vmatmul.mubr.f32.gmra.mrb[0].mxu0 %v5717
  %v6003 = vpop.f32.mrb[0].mxu0
  %v6004 = vadd.f32 0.0, %v6003
  %v6005 = vpop.f32.mrb[0].mxu0
  %6006 = vmatprep.mubr.f32.mxu0 0.0
  %6007 = vmatmul.mubr.f32.gmra.mrb[0].mxu0 %v5720
  %v6008 = vpop.f32.mrb[0].mxu0
  %v6009 = vadd.f32 0.0, %v6008
  %v6010 = vpop.f32.mrb[0].mxu0
  %6011 = vmatprep.mubr.f32.mxu0 0.0
  %6012 = vmatmul.mubr.f32.gmra.mrb[0].mxu0 %v5723
  %v6013 = vpop.f32.mrb[0].mxu0
  %v6014 = vadd.f32 0.0, %v6013
  %v6015 = vpop.f32.mrb[0].mxu0
  %6016 = vmatprep.mubr.f32.mxu0 0.0
  %6017 = vmatmul.mubr.f32.gmra.mrb[0].mxu0 %v5726
  %v6018 = vpop.f32.mrb[0].mxu0
  %v6019 = vadd.f32 0.0, %v6018
  %v6020 = vpop.f32.mrb[0].mxu0
  %6021 = vmatprep.mubr.f32.mxu0 0.0
  %6022 = vmatmul.mubr.f32.gmra.mrb[0].mxu0 %v5729
  %v6023 = vpop.f32.mrb[0].mxu0
  %v6024 = vadd.f32 0.0, %v6023
  %v6025 = vpop.f32.mrb[0].mxu0
  %6026 = vmatprep.mubr.f32.mxu0 0.0
  %6027 = vmatmul.mubr.f32.gmra.mrb[0].mxu0 %v5732
  %v6028 = vpop.f32.mrb[0].mxu0
  %v6029 = vadd.f32 0.0, %v6028
  %v6030 = vpop.f32.mrb[0].mxu0
  %6031 = vmatprep.mubr.f32.mxu0 0.0
  %6032 = vmatmul.mubr.f32.gmra.mrb[0].mxu0 %v5735
  %v6033 = vpop.f32.mrb[0].mxu0
  %v6034 = vadd.f32 0.0, %v6033
  %v6035 = vpop.f32.mrb[0].mxu0
  %6036 = vmatprep.mubr.f32.mxu0 0.0
  %6037 = vmatmul.mubr.f32.gmra.mrb[0].mxu0 %v5738
  %v6038 = vpop.f32.mrb[0].mxu0
  %v6039 = vadd.f32 0.0, %v6038
  %v6040 = vpop.f32.mrb[0].mxu0
  %6041 = vmatprep.mubr.f32.mxu0 0.0
  %6042 = vmatmul.mubr.f32.gmra.mrb[0].mxu0 %v5741
  %v6043 = vpop.f32.mrb[0].mxu0
  %v6044 = vadd.f32 0.0, %v6043
  %v6045 = vpop.f32.mrb[0].mxu0
  %6046 = vmatprep.mubr.f32.mxu0 0.0
  %6047 = vmatmul.mubr.f32.gmra.mrb[0].mxu0 %v5744
  %v6048 = vpop.f32.mrb[0].mxu0
  %v6049 = vadd.f32 0.0, %v6048
  %v6050 = vpop.f32.mrb[0].mxu0
  %6051 = vmatprep.mubr.f32.mxu0 0.0
  %6052 = vmatmul.mubr.f32.gmra.mrb[0].mxu0 %v5747
  %v6053 = vpop.f32.mrb[0].mxu0
  %v6054 = vadd.f32 0.0, %v6053
  %v6055 = vpop.f32.mrb[0].mxu0
  %6056 = vmatprep.mubr.f32.mxu0 0.0
  %6057 = vmatmul.mubr.f32.gmra.mrb[0].mxu0 %v5750
  %v6058 = vpop.f32.mrb[0].mxu0
  %v6059 = vadd.f32 0.0, %v6058
  %v6060 = vpop.f32.mrb[0].mxu0
  %6061 = vmatprep.mubr.f32.mxu0 0.0
  %6062 = vmatmul.mubr.f32.gmra.mrb[0].mxu0 %v5753
  %v6063 = vpop.f32.mrb[0].mxu0
  %v6064 = vadd.f32 0.0, %v6063
  %v6065 = vpop.f32.mrb[0].mxu0
  %6066 = vmatprep.mubr.f32.mxu0 0.0
  %6067 = vmatmul.mubr.f32.gmra.mrb[0].mxu0 %v5756
  %v6068 = vpop.f32.mrb[0].mxu0
  %v6069 = vadd.f32 0.0, %v6068
  %v6070 = vpop.f32.mrb[0].mxu0
  %6071 = vmatprep.mubr.f32.mxu0 0.0
  %6072 = vmatmul.mubr.f32.gmra.mrb[0].mxu0 %v5759
  %v6073 = vpop.f32.mrb[0].mxu0
  %v6074 = vadd.f32 0.0, %v6073
  %v6075 = vpop.f32.mrb[0].mxu0
  %6076 = vmatprep.mubr.f32.mxu0 0.0
  %6077 = vmatmul.mubr.f32.gmra.mrb[0].mxu0 %v5762
  %v6078 = vpop.f32.mrb[0].mxu0
  %v6079 = vadd.f32 0.0, %v6078
  %v6080 = vpop.f32.mrb[0].mxu0
  %6081 = vmatprep.mubr.f32.mxu0 0.0
  %6082 = vmatmul.mubr.f32.gmra.mrb[0].mxu0 %v5765
  %v6083 = vpop.f32.mrb[0].mxu0
  %v6084 = vadd.f32 0.0, %v6083
  %v6085 = vpop.f32.mrb[0].mxu0
  %6086 = vmatprep.mubr.f32.mxu0 0.0
  %6087 = vmatmul.mubr.f32.gmra.mrb[0].mxu0 %v5768
  %v6088 = vpop.f32.mrb[0].mxu0
  %v6089 = vadd.f32 0.0, %v6088
  %v6090 = vpop.f32.mrb[0].mxu0
  %6091 = vmatprep.mubr.f32.mxu0 0.0
  %6092 = vmatmul.mubr.f32.gmra.mrb[0].mxu0 %v5771
  %v6093 = vpop.f32.mrb[0].mxu0
  %v6094 = vadd.f32 0.0, %v6093
  %v6095 = vpop.f32.mrb[0].mxu0
  %6096 = vmatprep.mubr.f32.mxu0 0.0
  %6097 = vmatmul.mubr.f32.gmra.mrb[0].mxu0 %v5774
  %v6098 = vpop.f32.mrb[0].mxu0
  %v6099 = vadd.f32 0.0, %v6098
  %v6100 = vpop.f32.mrb[0].mxu0
  %6101 = vmatprep.mubr.f32.mxu0 0.0
  %6102 = vmatmul.mubr.f32.gmra.mrb[0].mxu0 %v5777
  %v6103 = vpop.f32.mrb[0].mxu0
  %v6104 = vadd.f32 0.0, %v6103
  %v6105 = vpop.f32.mrb[0].mxu0
  %6106 = vmatprep.mubr.f32.mxu0 0.0
  %6107 = vmatmul.mubr.f32.gmra.mrb[0].mxu0 %v5780
  %v6108 = vpop.f32.mrb[0].mxu0
  %v6109 = vadd.f32 0.0, %v6108
  %v6110 = vpop.f32.mrb[0].mxu0
  %6111 = vmatprep.mubr.f32.mxu0 0.0
  %6112 = vmatmul.mubr.f32.gmra.mrb[0].mxu0 %v5783
  %v6113 = vpop.f32.mrb[0].mxu0
  %v6114 = vadd.f32 0.0, %v6113
  %v6115 = vpop.f32.mrb[0].mxu0
  %6116 = vmatprep.mubr.f32.mxu0 0.0
  %6117 = vmatmul.mubr.f32.gmra.mrb[0].mxu0 %v5786
  %v6118 = vpop.f32.mrb[0].mxu0
  %v6119 = vadd.f32 0.0, %v6118
  %v6120 = vpop.f32.mrb[0].mxu0
  %6121 = vmatprep.mubr.f32.mxu0 0.0
  %6122 = vmatmul.mubr.f32.gmra.mrb[0].mxu0 %v5789
  %v6123 = vpop.f32.mrb[0].mxu0
  %v6124 = vadd.f32 0.0, %v6123
  %v6125 = vpop.f32.mrb[0].mxu0
  %6126 = vmatprep.mubr.f32.mxu0 0.0
  %6127 = vmatmul.mubr.f32.gmra.mrb[0].mxu0 %v5792
  %v6128 = vpop.f32.mrb[0].mxu0
  %v6129 = vadd.f32 0.0, %v6128
  %v6130 = vpop.f32.mrb[0].mxu0
  %6131 = vmatprep.mubr.f32.mxu0 0.0
  %6132 = vmatmul.mubr.f32.gmra.mrb[0].mxu0 %v5795
  %v6133 = vpop.f32.mrb[0].mxu0
  %v6134 = vadd.f32 0.0, %v6133
  %v6135 = vpop.f32.mrb[0].mxu0
  %6136 = vmatprep.mubr.f32.mxu0 0.0
  %6137 = vmatmul.mubr.f32.gmra.mrb[0].mxu0 %v5798
  %v6138 = vpop.f32.mrb[0].mxu0
  %v6139 = vadd.f32 0.0, %v6138
  %v6140 = vpop.f32.mrb[0].mxu0
  %6141 = vmatprep.mubr.f32.mxu0 0.0
  %6142 = vmatmul.mubr.f32.gmra.mrb[0].mxu0 %v5801
  %v6143 = vpop.f32.mrb[0].mxu0
  %v6144 = vadd.f32 0.0, %v6143
  %v6145 = vpop.f32.mrb[0].mxu0
  %6146 = vmatprep.mubr.f32.mxu0 0.0
  %6147 = vmatmul.mubr.f32.gmra.mrb[0].mxu0 %v5804
  %v6148 = vpop.f32.mrb[0].mxu0
  %v6149 = vadd.f32 0.0, %v6148
  %v6150 = vpop.f32.mrb[0].mxu0
  %6151 = vmatprep.mubr.f32.mxu0 0.0
  %6152 = vmatmul.mubr.f32.gmra.mrb[0].mxu0 %v5807
  %v6153 = vpop.f32.mrb[0].mxu0
  %v6154 = vadd.f32 0.0, %v6153
  %v6155 = vpop.f32.mrb[0].mxu0
  %6156 = vmatprep.mubr.f32.mxu0 0.0
  %6157 = vmatmul.mubr.f32.gmra.mrb[0].mxu0 %v5810
  %v6158 = vpop.f32.mrb[0].mxu0
  %v6159 = vadd.f32 0.0, %v6158
  %v6160 = vpop.f32.mrb[0].mxu0
  %6161 = vmatprep.mubr.f32.mxu0 0.0
  %6162 = vmatmul.mubr.f32.gmra.mrb[0].mxu0 %v5813
  %v6163 = vpop.f32.mrb[0].mxu0
  %v6164 = vadd.f32 0.0, %v6163
  %v6165 = vpop.f32.mrb[0].mxu0
  %6166 = vmatprep.mubr.f32.mxu0 0.0
  %6167 = vmatmul.mubr.f32.gmra.mrb[0].mxu0 %v5816
  %v6168 = vpop.f32.mrb[0].mxu0
  %v6169 = vadd.f32 0.0, %v6168
  %v6170 = vpop.f32.mrb[0].mxu0
  %6171 = vmatprep.mubr.f32.mxu0 0.0
  %6172 = vmatmul.mubr.f32.gmra.mrb[0].mxu0 %v5819
  %v6173 = vpop.f32.mrb[0].mxu0
  %v6174 = vadd.f32 0.0, %v6173
  %v6175 = vpop.f32.mrb[0].mxu0
  %6176 = vmatprep.mubr.f32.mxu0 0.0
  %6177 = vmatmul.mubr.f32.gmra.mrb[0].mxu0 %v5822
  %v6178 = vpop.f32.mrb[0].mxu0
  %v6179 = vadd.f32 0.0, %v6178
  %v6180 = vpop.f32.mrb[0].mxu0
  %6181 = vmatprep.mubr.f32.mxu0 0.0
  %6182 = vmatmul.mubr.f32.gmra.mrb[0].mxu0 %v5825
  %v6183 = vpop.f32.mrb[0].mxu0
  %v6184 = vadd.f32 0.0, %v6183
  %v6185 = vpop.f32.mrb[0].mxu0
  %6186 = vmatprep.mubr.f32.mxu0 0.0
  %6187 = vmatmul.mubr.f32.gmra.mrb[0].mxu0 %v5828
  %v6188 = vpop.f32.mrb[0].mxu0
  %v6189 = vadd.f32 0.0, %v6188
  %v6190 = vpop.f32.mrb[0].mxu0
  %6191 = vmatprep.mubr.f32.mxu0 0.0
  %6192 = vmatmul.mubr.f32.gmra.mrb[0].mxu0 %v5831
  %v6193 = vpop.f32.mrb[0].mxu0
  %v6194 = vadd.f32 0.0, %v6193
  %v6195 = vpop.f32.mrb[0].mxu0
  %6196 = vmatprep.mubr.f32.mxu0 0.0
  %6197 = vmatmul.mubr.f32.gmra.mrb[0].mxu0 %v5834
  %v6198 = vpop.f32.mrb[0].mxu0
  %v6199 = vadd.f32 0.0, %v6198
  %v6200 = vpop.f32.mrb[0].mxu0
  %6201 = vmatprep.mubr.f32.mxu0 0.0
  %6202 = vmatmul.mubr.f32.gmra.mrb[0].mxu0 %v5837
  %v6203 = vpop.f32.mrb[0].mxu0
  %v6204 = vadd.f32 0.0, %v6203
  %v6205 = vpop.f32.mrb[0].mxu0
  %6206 = vmatprep.mubr.f32.mxu0 0.0
  %6207 = vmatmul.mubr.f32.gmra.mrb[0].mxu0 %v5840
  %v6208 = vpop.f32.mrb[0].mxu0
  %v6209 = vadd.f32 0.0, %v6208
  %v6210 = vpop.f32.mrb[0].mxu0
  %6211 = vmatprep.mubr.f32.mxu0 0.0
  %6212 = vmatmul.mubr.f32.gmra.mrb[0].mxu0 %v5843
  %v6213 = vpop.f32.mrb[0].mxu0
  %v6214 = vadd.f32 0.0, %v6213
  %v6215 = vpop.f32.mrb[0].mxu0
  %6216 = vmatprep.mubr.f32.mxu0 0.0
  %6217 = vmatmul.mubr.f32.gmra.mrb[0].mxu0 %v5846
  %v6218 = vpop.f32.mrb[0].mxu0
  %v6219 = vadd.f32 0.0, %v6218
  %v6220 = vpop.f32.mrb[0].mxu0
  %6221 = vmatprep.mubr.f32.mxu0 0.0
  %6222 = vmatmul.mubr.f32.gmra.mrb[0].mxu0 %v5849
  %v6223 = vpop.f32.mrb[0].mxu0
  %v6224 = vadd.f32 0.0, %v6223
  %v6225 = vpop.f32.mrb[0].mxu0
  %6226 = vmatprep.mubr.f32.mxu0 0.0
  %6227 = vmatmul.mubr.f32.gmra.mrb[0].mxu0 %v5852
  %v6228 = vpop.f32.mrb[0].mxu0
  %v6229 = vadd.f32 0.0, %v6228
  %v6230 = vpop.f32.mrb[0].mxu0
  %6231 = vmatprep.mubr.f32.mxu0 0.0
  %6232 = vmatmul.mubr.f32.gmra.mrb[0].mxu0 %v5855
  %v6233 = vpop.f32.mrb[0].mxu0
  %v6234 = vadd.f32 0.0, %v6233
  %v6235 = vpop.f32.mrb[0].mxu0
  %6236 = vmatprep.mubr.f32.mxu0 0.0
  %6237 = vmatmul.mubr.f32.gmra.mrb[0].mxu0 %v5858
  %v6238 = vpop.f32.mrb[0].mxu0
  %v6239 = vadd.f32 0.0, %v6238
  %v6240 = vpop.f32.mrb[0].mxu0
  %6241 = vmatprep.mubr.f32.mxu0 0.0
  %6242 = vmatmul.mubr.f32.gmra.mrb[0].mxu0 %v5861
  %v6243 = vpop.f32.mrb[0].mxu0
  %v6244 = vadd.f32 0.0, %v6243
  %v6245 = vpop.f32.mrb[0].mxu0
  %6246 = vmatprep.mubr.f32.mxu0 0.0
  %6247 = vmatmul.mubr.f32.gmra.mrb[0].mxu0 %v5864
  %v6248 = vpop.f32.mrb[0].mxu0
  %v6249 = vadd.f32 0.0, %v6248
  %v6250 = vpop.f32.mrb[0].mxu0
  %6251 = vmatprep.mubr.f32.mxu0 0.0
  %6252 = vmatmul.mubr.f32.gmra.mrb[0].mxu0 %v5867
  %v6253 = vpop.f32.mrb[0].mxu0
  %v6254 = vadd.f32 0.0, %v6253
  %v6255 = vpop.f32.mrb[0].mxu0
  %6256 = vdwg.mxu0
  %v6257 = vadd.f32 %v5547, %v5939
  %v6258 = vadd.f32 %v5548, %v5944
  %v6259 = vadd.f32 %v5549, %v5949
  %v6260 = vadd.f32 %v5550, %v5954
  %v6261 = vadd.f32 %v5551, %v5959
  %v6262 = vadd.f32 %v5552, %v5964
  %v6263 = vadd.f32 %v5553, %v5969
  %v6264 = vadd.f32 %v5554, %v5974
  %v6265 = vadd.f32 %v5555, %v5979
  %v6266 = vadd.f32 %v5556, %v5984
  %v6267 = vadd.f32 %v5557, %v5989
  %v6268 = vadd.f32 %v5558, %v5994
  %v6269 = vadd.f32 %v5559, %v5999
  %v6270 = vadd.f32 %v5560, %v6004
  %v6271 = vadd.f32 %v5561, %v6009
  %v6272 = vadd.f32 %v5562, %v6014
  %v6273 = vadd.f32 %v5563, %v6019
  %v6274 = vadd.f32 %v5564, %v6024
  %v6275 = vadd.f32 %v5565, %v6029
  %v6276 = vadd.f32 %v5566, %v6034
  %v6277 = vadd.f32 %v5567, %v6039
  %v6278 = vadd.f32 %v5568, %v6044
  %v6279 = vadd.f32 %v5569, %v6049
  %v6280 = vadd.f32 %v5570, %v6054
  %v6281 = vadd.f32 %v5571, %v6059
  %v6282 = vadd.f32 %v5572, %v6064
  %v6283 = vadd.f32 %v5573, %v6069
  %v6284 = vadd.f32 %v5574, %v6074
  %v6285 = vadd.f32 %v5575, %v6079
  %v6286 = vadd.f32 %v5576, %v6084
  %v6287 = vadd.f32 %v5577, %v6089
  %v6288 = vadd.f32 %v5578, %v6094
  %v6289 = vadd.f32 %v5579, %v6099
  %v6290 = vadd.f32 %v5580, %v6104
  %v6291 = vadd.f32 %v5581, %v6109
  %v6292 = vadd.f32 %v5582, %v6114
  %v6293 = vadd.f32 %v5583, %v6119
  %v6294 = vadd.f32 %v5584, %v6124
  %v6295 = vadd.f32 %v5585, %v6129
  %v6296 = vadd.f32 %v5586, %v6134
  %v6297 = vadd.f32 %v5587, %v6139
  %v6298 = vadd.f32 %v5588, %v6144
  %v6299 = vadd.f32 %v5589, %v6149
  %v6300 = vadd.f32 %v5590, %v6154
  %v6301 = vadd.f32 %v5591, %v6159
  %v6302 = vadd.f32 %v5592, %v6164
  %v6303 = vadd.f32 %v5593, %v6169
  %v6304 = vadd.f32 %v5594, %v6174
  %v6305 = vadd.f32 %v5595, %v6179
  %v6306 = vadd.f32 %v5596, %v6184
  %v6307 = vadd.f32 %v5597, %v6189
  %v6308 = vadd.f32 %v5598, %v6194
  %v6309 = vadd.f32 %v5599, %v6199
  %v6310 = vadd.f32 %v5600, %v6204
  %v6311 = vadd.f32 %v5601, %v6209
  %v6312 = vadd.f32 %v5602, %v6214
  %v6313 = vadd.f32 %v5603, %v6219
  %v6314 = vadd.f32 %v5604, %v6224
  %v6315 = vadd.f32 %v5605, %v6229
  %v6316 = vadd.f32 %v5606, %v6234
  %v6317 = vadd.f32 %v5607, %v6239
  %v6318 = vadd.f32 %v5608, %v6244
  %v6319 = vadd.f32 %v5609, %v6249
  %v6320 = vadd.f32 %v5610, %v6254
  %v6321 = vld [vmem:[%s3] sm:$0x1]
  %v6323 = vlaneseq
  %v6324 = vshrl.u32 %v6323, 7
  %v6325 = vsub.s32 0, %v6324
  %v6326 = vrot.slane %v6321, %v6325
  %v6328 = vadd.f32 %v6257, %v6326
  %v6329 = vadd.f32 %v6258, %v6326
  %v6330 = vadd.f32 %v6259, %v6326
  %v6331 = vadd.f32 %v6260, %v6326
  %v6332 = vadd.f32 %v6261, %v6326
  %v6333 = vadd.f32 %v6262, %v6326
  %v6334 = vadd.f32 %v6263, %v6326
  %v6335 = vadd.f32 %v6264, %v6326
  %v6336 = vadd.f32 %v6265, %v6326
  %v6337 = vadd.f32 %v6266, %v6326
  %v6338 = vadd.f32 %v6267, %v6326
  %v6339 = vadd.f32 %v6268, %v6326
  %v6340 = vadd.f32 %v6269, %v6326
  %v6341 = vadd.f32 %v6270, %v6326
  %v6342 = vadd.f32 %v6271, %v6326
  %v6343 = vadd.f32 %v6272, %v6326
  %v6344 = vadd.f32 %v6273, %v6326
  %v6345 = vadd.f32 %v6274, %v6326
  %v6346 = vadd.f32 %v6275, %v6326
  %v6347 = vadd.f32 %v6276, %v6326
  %v6348 = vadd.f32 %v6277, %v6326
  %v6349 = vadd.f32 %v6278, %v6326
  %v6350 = vadd.f32 %v6279, %v6326
  %v6351 = vadd.f32 %v6280, %v6326
  %v6352 = vadd.f32 %v6281, %v6326
  %v6353 = vadd.f32 %v6282, %v6326
  %v6354 = vadd.f32 %v6283, %v6326
  %v6355 = vadd.f32 %v6284, %v6326
  %v6356 = vadd.f32 %v6285, %v6326
  %v6357 = vadd.f32 %v6286, %v6326
  %v6358 = vadd.f32 %v6287, %v6326
  %v6359 = vadd.f32 %v6288, %v6326
  %v6360 = vadd.f32 %v6289, %v6326
  %v6361 = vadd.f32 %v6290, %v6326
  %v6362 = vadd.f32 %v6291, %v6326
  %v6363 = vadd.f32 %v6292, %v6326
  %v6364 = vadd.f32 %v6293, %v6326
  %v6365 = vadd.f32 %v6294, %v6326
  %v6366 = vadd.f32 %v6295, %v6326
  %v6367 = vadd.f32 %v6296, %v6326
  %v6368 = vadd.f32 %v6297, %v6326
  %v6369 = vadd.f32 %v6298, %v6326
  %v6370 = vadd.f32 %v6299, %v6326
  %v6371 = vadd.f32 %v6300, %v6326
  %v6372 = vadd.f32 %v6301, %v6326
  %v6373 = vadd.f32 %v6302, %v6326
  %v6374 = vadd.f32 %v6303, %v6326
  %v6375 = vadd.f32 %v6304, %v6326
  %v6376 = vadd.f32 %v6305, %v6326
  %v6377 = vadd.f32 %v6306, %v6326
  %v6378 = vadd.f32 %v6307, %v6326
  %v6379 = vadd.f32 %v6308, %v6326
  %v6380 = vadd.f32 %v6309, %v6326
  %v6381 = vadd.f32 %v6310, %v6326
  %v6382 = vadd.f32 %v6311, %v6326
  %v6383 = vadd.f32 %v6312, %v6326
  %v6384 = vadd.f32 %v6313, %v6326
  %v6385 = vadd.f32 %v6314, %v6326
  %v6386 = vadd.f32 %v6315, %v6326
  %v6387 = vadd.f32 %v6316, %v6326
  %v6388 = vadd.f32 %v6317, %v6326
  %v6389 = vadd.f32 %v6318, %v6326
  %v6390 = vadd.f32 %v6319, %v6326
  %v6391 = vadd.f32 %v6320, %v6326
  %v6392 = vmax.f32 %v6328, 0.0
  %v6393 = vmax.f32 %v6329, 0.0
  %v6394 = vmax.f32 %v6330, 0.0
  %v6395 = vmax.f32 %v6331, 0.0
  %v6396 = vmax.f32 %v6332, 0.0
  %v6397 = vmax.f32 %v6333, 0.0
  %v6398 = vmax.f32 %v6334, 0.0
  %v6399 = vmax.f32 %v6335, 0.0
  %v6400 = vmax.f32 %v6336, 0.0
  %v6401 = vmax.f32 %v6337, 0.0
  %v6402 = vmax.f32 %v6338, 0.0
  %v6403 = vmax.f32 %v6339, 0.0
  %v6404 = vmax.f32 %v6340, 0.0
  %v6405 = vmax.f32 %v6341, 0.0
  %v6406 = vmax.f32 %v6342, 0.0
  %v6407 = vmax.f32 %v6343, 0.0
  %v6408 = vmax.f32 %v6344, 0.0
  %v6409 = vmax.f32 %v6345, 0.0
  %v6410 = vmax.f32 %v6346, 0.0
  %v6411 = vmax.f32 %v6347, 0.0
  %v6412 = vmax.f32 %v6348, 0.0
  %v6413 = vmax.f32 %v6349, 0.0
  %v6414 = vmax.f32 %v6350, 0.0
  %v6415 = vmax.f32 %v6351, 0.0
  %v6416 = vmax.f32 %v6352, 0.0
  %v6417 = vmax.f32 %v6353, 0.0
  %v6418 = vmax.f32 %v6354, 0.0
  %v6419 = vmax.f32 %v6355, 0.0
  %v6420 = vmax.f32 %v6356, 0.0
  %v6421 = vmax.f32 %v6357, 0.0
  %v6422 = vmax.f32 %v6358, 0.0
  %v6423 = vmax.f32 %v6359, 0.0
  %v6424 = vmax.f32 %v6360, 0.0
  %v6425 = vmax.f32 %v6361, 0.0
  %v6426 = vmax.f32 %v6362, 0.0
  %v6427 = vmax.f32 %v6363, 0.0
  %v6428 = vmax.f32 %v6364, 0.0
  %v6429 = vmax.f32 %v6365, 0.0
  %v6430 = vmax.f32 %v6366, 0.0
  %v6431 = vmax.f32 %v6367, 0.0
  %v6432 = vmax.f32 %v6368, 0.0
  %v6433 = vmax.f32 %v6369, 0.0
  %v6434 = vmax.f32 %v6370, 0.0
  %v6435 = vmax.f32 %v6371, 0.0
  %v6436 = vmax.f32 %v6372, 0.0
  %v6437 = vmax.f32 %v6373, 0.0
  %v6438 = vmax.f32 %v6374, 0.0
  %v6439 = vmax.f32 %v6375, 0.0
  %v6440 = vmax.f32 %v6376, 0.0
  %v6441 = vmax.f32 %v6377, 0.0
  %v6442 = vmax.f32 %v6378, 0.0
  %v6443 = vmax.f32 %v6379, 0.0
  %v6444 = vmax.f32 %v6380, 0.0
  %v6445 = vmax.f32 %v6381, 0.0
  %v6446 = vmax.f32 %v6382, 0.0
  %v6447 = vmax.f32 %v6383, 0.0
  %v6448 = vmax.f32 %v6384, 0.0
  %v6449 = vmax.f32 %v6385, 0.0
  %v6450 = vmax.f32 %v6386, 0.0
  %v6451 = vmax.f32 %v6387, 0.0
  %v6452 = vmax.f32 %v6388, 0.0
  %v6453 = vmax.f32 %v6389, 0.0
  %v6454 = vmax.f32 %v6390, 0.0
  %v6455 = vmax.f32 %v6391, 0.0
  %v6456 = vmax.f32 %v6392, %v6394
  %v6457 = vmax.f32 %v6393, %v6395
  %v6458 = vmax.f32 %v6396, %v6398
  %v6459 = vmax.f32 %v6397, %v6399
  %v6460 = vmax.f32 %v6400, %v6402
  %v6461 = vmax.f32 %v6401, %v6403
  %v6462 = vmax.f32 %v6404, %v6406
  %v6463 = vmax.f32 %v6405, %v6407
  %v6464 = vmax.f32 %v6408, %v6410
  %v6465 = vmax.f32 %v6409, %v6411
  %v6466 = vmax.f32 %v6412, %v6414
  %v6467 = vmax.f32 %v6413, %v6415
  %v6468 = vmax.f32 %v6416, %v6418
  %v6469 = vmax.f32 %v6417, %v6419
  %v6470 = vmax.f32 %v6420, %v6422
  %v6471 = vmax.f32 %v6421, %v6423
  %v6472 = vmax.f32 %v6424, %v6426
  %v6473 = vmax.f32 %v6425, %v6427
  %v6474 = vmax.f32 %v6428, %v6430
  %v6475 = vmax.f32 %v6429, %v6431
  %v6476 = vmax.f32 %v6432, %v6434
  %v6477 = vmax.f32 %v6433, %v6435
  %v6478 = vmax.f32 %v6436, %v6438
  %v6479 = vmax.f32 %v6437, %v6439
  %v6480 = vmax.f32 %v6440, %v6442
  %v6481 = vmax.f32 %v6441, %v6443
  %v6482 = vmax.f32 %v6444, %v6446
  %v6483 = vmax.f32 %v6445, %v6447
  %v6484 = vmax.f32 %v6448, %v6450
  %v6485 = vmax.f32 %v6449, %v6451
  %v6486 = vmax.f32 %v6452, %v6454
  %v6487 = vmax.f32 %v6453, %v6455
  %v6520 = vcombine.high %v6456, %v6456
  %v6522 = vunpack.c.l.s4 1983009808
  %v6523 = vunpack.c.0.s8 %v6522
  %v6524 = vlaneseq
  %v6525 = vshrl.u32 %v6524, 7
  %v6526 = vsub.s32 %v6523, %v6525
  %v6527 = vrot.slane %v6456, %v6526
  %v6529 = vunpack.c.l.s4 1983009808
  %v6530 = vunpack.c.0.s8 %v6529
  %v6531 = vlaneseq
  %v6532 = vshrl.u32 %v6531, 7
  %v6533 = vsub.s32 %v6530, %v6532
  %v6534 = vrot.slane %v6520, %v6533
  %v6535 = vcombine.high %v6527, %v6527
  %v6536 = vcombine.high %v6534, %v6534
  %v6537 = vcombine.high %v6457, %v6457
  %v6539 = vunpack.c.l.s4 1983009808
  %v6540 = vunpack.c.0.s8 %v6539
  %v6541 = vlaneseq
  %v6542 = vshrl.u32 %v6541, 7
  %v6543 = vsub.s32 %v6540, %v6542
  %v6544 = vrot.slane %v6457, %v6543
  %v6546 = vunpack.c.l.s4 1983009808
  %v6547 = vunpack.c.0.s8 %v6546
  %v6548 = vlaneseq
  %v6549 = vshrl.u32 %v6548, 7
  %v6550 = vsub.s32 %v6547, %v6549
  %v6551 = vrot.slane %v6537, %v6550
  %v6552 = vcombine.high %v6544, %v6544
  %v6553 = vcombine.high %v6551, %v6551
  %v6554 = vcombine.high %v6458, %v6458
  %v6556 = vunpack.c.l.s4 1983009808
  %v6557 = vunpack.c.0.s8 %v6556
  %v6558 = vlaneseq
  %v6559 = vshrl.u32 %v6558, 7
  %v6560 = vsub.s32 %v6557, %v6559
  %v6561 = vrot.slane %v6458, %v6560
  %v6563 = vunpack.c.l.s4 1983009808
  %v6564 = vunpack.c.0.s8 %v6563
  %v6565 = vlaneseq
  %v6566 = vshrl.u32 %v6565, 7
  %v6567 = vsub.s32 %v6564, %v6566
  %v6568 = vrot.slane %v6554, %v6567
  %v6569 = vcombine.high %v6561, %v6561
  %v6570 = vcombine.high %v6568, %v6568
  %v6571 = vcombine.high %v6459, %v6459
  %v6573 = vunpack.c.l.s4 1983009808
  %v6574 = vunpack.c.0.s8 %v6573
  %v6575 = vlaneseq
  %v6576 = vshrl.u32 %v6575, 7
  %v6577 = vsub.s32 %v6574, %v6576
  %v6578 = vrot.slane %v6459, %v6577
  %v6580 = vunpack.c.l.s4 1983009808
  %v6581 = vunpack.c.0.s8 %v6580
  %v6582 = vlaneseq
  %v6583 = vshrl.u32 %v6582, 7
  %v6584 = vsub.s32 %v6581, %v6583
  %v6585 = vrot.slane %v6571, %v6584
  %v6586 = vcombine.high %v6578, %v6578
  %v6587 = vcombine.high %v6585, %v6585
  %v6588 = vcombine.high %v6460, %v6460
  %v6590 = vunpack.c.l.s4 1983009808
  %v6591 = vunpack.c.0.s8 %v6590
  %v6592 = vlaneseq
  %v6593 = vshrl.u32 %v6592, 7
  %v6594 = vsub.s32 %v6591, %v6593
  %v6595 = vrot.slane %v6460, %v6594
  %v6597 = vunpack.c.l.s4 1983009808
  %v6598 = vunpack.c.0.s8 %v6597
  %v6599 = vlaneseq
  %v6600 = vshrl.u32 %v6599, 7
  %v6601 = vsub.s32 %v6598, %v6600
  %v6602 = vrot.slane %v6588, %v6601
  %v6603 = vcombine.high %v6595, %v6595
  %v6604 = vcombine.high %v6602, %v6602
  %v6605 = vcombine.high %v6461, %v6461
  %v6607 = vunpack.c.l.s4 1983009808
  %v6608 = vunpack.c.0.s8 %v6607
  %v6609 = vlaneseq
  %v6610 = vshrl.u32 %v6609, 7
  %v6611 = vsub.s32 %v6608, %v6610
  %v6612 = vrot.slane %v6461, %v6611
  %v6614 = vunpack.c.l.s4 1983009808
  %v6615 = vunpack.c.0.s8 %v6614
  %v6616 = vlaneseq
  %v6617 = vshrl.u32 %v6616, 7
  %v6618 = vsub.s32 %v6615, %v6617
  %v6619 = vrot.slane %v6605, %v6618
  %v6620 = vcombine.high %v6612, %v6612
  %v6621 = vcombine.high %v6619, %v6619
  %v6622 = vcombine.high %v6462, %v6462
  %v6624 = vunpack.c.l.s4 1983009808
  %v6625 = vunpack.c.0.s8 %v6624
  %v6626 = vlaneseq
  %v6627 = vshrl.u32 %v6626, 7
  %v6628 = vsub.s32 %v6625, %v6627
  %v6629 = vrot.slane %v6462, %v6628
  %v6631 = vunpack.c.l.s4 1983009808
  %v6632 = vunpack.c.0.s8 %v6631
  %v6633 = vlaneseq
  %v6634 = vshrl.u32 %v6633, 7
  %v6635 = vsub.s32 %v6632, %v6634
  %v6636 = vrot.slane %v6622, %v6635
  %v6637 = vcombine.high %v6629, %v6629
  %v6638 = vcombine.high %v6636, %v6636
  %v6639 = vcombine.high %v6463, %v6463
  %v6641 = vunpack.c.l.s4 1983009808
  %v6642 = vunpack.c.0.s8 %v6641
  %v6643 = vlaneseq
  %v6644 = vshrl.u32 %v6643, 7
  %v6645 = vsub.s32 %v6642, %v6644
  %v6646 = vrot.slane %v6463, %v6645
  %v6648 = vunpack.c.l.s4 1983009808
  %v6649 = vunpack.c.0.s8 %v6648
  %v6650 = vlaneseq
  %v6651 = vshrl.u32 %v6650, 7
  %v6652 = vsub.s32 %v6649, %v6651
  %v6653 = vrot.slane %v6639, %v6652
  %v6654 = vcombine.high %v6646, %v6646
  %v6655 = vcombine.high %v6653, %v6653
  %v6656 = vcombine.high %v6464, %v6464
  %v6658 = vunpack.c.l.s4 1983009808
  %v6659 = vunpack.c.0.s8 %v6658
  %v6660 = vlaneseq
  %v6661 = vshrl.u32 %v6660, 7
  %v6662 = vsub.s32 %v6659, %v6661
  %v6663 = vrot.slane %v6464, %v6662
  %v6665 = vunpack.c.l.s4 1983009808
  %v6666 = vunpack.c.0.s8 %v6665
  %v6667 = vlaneseq
  %v6668 = vshrl.u32 %v6667, 7
  %v6669 = vsub.s32 %v6666, %v6668
  %v6670 = vrot.slane %v6656, %v6669
  %v6671 = vcombine.high %v6663, %v6663
  %v6672 = vcombine.high %v6670, %v6670
  %v6673 = vcombine.high %v6465, %v6465
  %v6675 = vunpack.c.l.s4 1983009808
  %v6676 = vunpack.c.0.s8 %v6675
  %v6677 = vlaneseq
  %v6678 = vshrl.u32 %v6677, 7
  %v6679 = vsub.s32 %v6676, %v6678
  %v6680 = vrot.slane %v6465, %v6679
  %v6682 = vunpack.c.l.s4 1983009808
  %v6683 = vunpack.c.0.s8 %v6682
  %v6684 = vlaneseq
  %v6685 = vshrl.u32 %v6684, 7
  %v6686 = vsub.s32 %v6683, %v6685
  %v6687 = vrot.slane %v6673, %v6686
  %v6688 = vcombine.high %v6680, %v6680
  %v6689 = vcombine.high %v6687, %v6687
  %v6690 = vcombine.high %v6466, %v6466
  %v6692 = vunpack.c.l.s4 1983009808
  %v6693 = vunpack.c.0.s8 %v6692
  %v6694 = vlaneseq
  %v6695 = vshrl.u32 %v6694, 7
  %v6696 = vsub.s32 %v6693, %v6695
  %v6697 = vrot.slane %v6466, %v6696
  %v6699 = vunpack.c.l.s4 1983009808
  %v6700 = vunpack.c.0.s8 %v6699
  %v6701 = vlaneseq
  %v6702 = vshrl.u32 %v6701, 7
  %v6703 = vsub.s32 %v6700, %v6702
  %v6704 = vrot.slane %v6690, %v6703
  %v6705 = vcombine.high %v6697, %v6697
  %v6706 = vcombine.high %v6704, %v6704
  %v6707 = vcombine.high %v6467, %v6467
  %v6709 = vunpack.c.l.s4 1983009808
  %v6710 = vunpack.c.0.s8 %v6709
  %v6711 = vlaneseq
  %v6712 = vshrl.u32 %v6711, 7
  %v6713 = vsub.s32 %v6710, %v6712
  %v6714 = vrot.slane %v6467, %v6713
  %v6716 = vunpack.c.l.s4 1983009808
  %v6717 = vunpack.c.0.s8 %v6716
  %v6718 = vlaneseq
  %v6719 = vshrl.u32 %v6718, 7
  %v6720 = vsub.s32 %v6717, %v6719
  %v6721 = vrot.slane %v6707, %v6720
  %v6722 = vcombine.high %v6714, %v6714
  %v6723 = vcombine.high %v6721, %v6721
  %v6724 = vcombine.high %v6468, %v6468
  %v6726 = vunpack.c.l.s4 1983009808
  %v6727 = vunpack.c.0.s8 %v6726
  %v6728 = vlaneseq
  %v6729 = vshrl.u32 %v6728, 7
  %v6730 = vsub.s32 %v6727, %v6729
  %v6731 = vrot.slane %v6468, %v6730
  %v6733 = vunpack.c.l.s4 1983009808
  %v6734 = vunpack.c.0.s8 %v6733
  %v6735 = vlaneseq
  %v6736 = vshrl.u32 %v6735, 7
  %v6737 = vsub.s32 %v6734, %v6736
  %v6738 = vrot.slane %v6724, %v6737
  %v6739 = vcombine.high %v6731, %v6731
  %v6740 = vcombine.high %v6738, %v6738
  %v6741 = vcombine.high %v6469, %v6469
  %v6743 = vunpack.c.l.s4 1983009808
  %v6744 = vunpack.c.0.s8 %v6743
  %v6745 = vlaneseq
  %v6746 = vshrl.u32 %v6745, 7
  %v6747 = vsub.s32 %v6744, %v6746
  %v6748 = vrot.slane %v6469, %v6747
  %v6750 = vunpack.c.l.s4 1983009808
  %v6751 = vunpack.c.0.s8 %v6750
  %v6752 = vlaneseq
  %v6753 = vshrl.u32 %v6752, 7
  %v6754 = vsub.s32 %v6751, %v6753
  %v6755 = vrot.slane %v6741, %v6754
  %v6756 = vcombine.high %v6748, %v6748
  %v6757 = vcombine.high %v6755, %v6755
  %v6758 = vcombine.high %v6470, %v6470
  %v6760 = vunpack.c.l.s4 1983009808
  %v6761 = vunpack.c.0.s8 %v6760
  %v6762 = vlaneseq
  %v6763 = vshrl.u32 %v6762, 7
  %v6764 = vsub.s32 %v6761, %v6763
  %v6765 = vrot.slane %v6470, %v6764
  %v6767 = vunpack.c.l.s4 1983009808
  %v6768 = vunpack.c.0.s8 %v6767
  %v6769 = vlaneseq
  %v6770 = vshrl.u32 %v6769, 7
  %v6771 = vsub.s32 %v6768, %v6770
  %v6772 = vrot.slane %v6758, %v6771
  %v6773 = vcombine.high %v6765, %v6765
  %v6774 = vcombine.high %v6772, %v6772
  %v6775 = vcombine.high %v6471, %v6471
  %v6777 = vunpack.c.l.s4 1983009808
  %v6778 = vunpack.c.0.s8 %v6777
  %v6779 = vlaneseq
  %v6780 = vshrl.u32 %v6779, 7
  %v6781 = vsub.s32 %v6778, %v6780
  %v6782 = vrot.slane %v6471, %v6781
  %v6784 = vunpack.c.l.s4 1983009808
  %v6785 = vunpack.c.0.s8 %v6784
  %v6786 = vlaneseq
  %v6787 = vshrl.u32 %v6786, 7
  %v6788 = vsub.s32 %v6785, %v6787
  %v6789 = vrot.slane %v6775, %v6788
  %v6790 = vcombine.high %v6782, %v6782
  %v6791 = vcombine.high %v6789, %v6789
  %v6792 = vcombine.high %v6472, %v6472
  %v6794 = vunpack.c.l.s4 1983009808
  %v6795 = vunpack.c.0.s8 %v6794
  %v6796 = vlaneseq
  %v6797 = vshrl.u32 %v6796, 7
  %v6798 = vsub.s32 %v6795, %v6797
  %v6799 = vrot.slane %v6472, %v6798
  %v6801 = vunpack.c.l.s4 1983009808
  %v6802 = vunpack.c.0.s8 %v6801
  %v6803 = vlaneseq
  %v6804 = vshrl.u32 %v6803, 7
  %v6805 = vsub.s32 %v6802, %v6804
  %v6806 = vrot.slane %v6792, %v6805
  %v6807 = vcombine.high %v6799, %v6799
  %v6808 = vcombine.high %v6806, %v6806
  %v6809 = vcombine.high %v6473, %v6473
  %v6811 = vunpack.c.l.s4 1983009808
  %v6812 = vunpack.c.0.s8 %v6811
  %v6813 = vlaneseq
  %v6814 = vshrl.u32 %v6813, 7
  %v6815 = vsub.s32 %v6812, %v6814
  %v6816 = vrot.slane %v6473, %v6815
  %v6818 = vunpack.c.l.s4 1983009808
  %v6819 = vunpack.c.0.s8 %v6818
  %v6820 = vlaneseq
  %v6821 = vshrl.u32 %v6820, 7
  %v6822 = vsub.s32 %v6819, %v6821
  %v6823 = vrot.slane %v6809, %v6822
  %v6824 = vcombine.high %v6816, %v6816
  %v6825 = vcombine.high %v6823, %v6823
  %v6826 = vcombine.high %v6474, %v6474
  %v6828 = vunpack.c.l.s4 1983009808
  %v6829 = vunpack.c.0.s8 %v6828
  %v6830 = vlaneseq
  %v6831 = vshrl.u32 %v6830, 7
  %v6832 = vsub.s32 %v6829, %v6831
  %v6833 = vrot.slane %v6474, %v6832
  %v6835 = vunpack.c.l.s4 1983009808
  %v6836 = vunpack.c.0.s8 %v6835
  %v6837 = vlaneseq
  %v6838 = vshrl.u32 %v6837, 7
  %v6839 = vsub.s32 %v6836, %v6838
  %v6840 = vrot.slane %v6826, %v6839
  %v6841 = vcombine.high %v6833, %v6833
  %v6842 = vcombine.high %v6840, %v6840
  %v6843 = vcombine.high %v6475, %v6475
  %v6845 = vunpack.c.l.s4 1983009808
  %v6846 = vunpack.c.0.s8 %v6845
  %v6847 = vlaneseq
  %v6848 = vshrl.u32 %v6847, 7
  %v6849 = vsub.s32 %v6846, %v6848
  %v6850 = vrot.slane %v6475, %v6849
  %v6852 = vunpack.c.l.s4 1983009808
  %v6853 = vunpack.c.0.s8 %v6852
  %v6854 = vlaneseq
  %v6855 = vshrl.u32 %v6854, 7
  %v6856 = vsub.s32 %v6853, %v6855
  %v6857 = vrot.slane %v6843, %v6856
  %v6858 = vcombine.high %v6850, %v6850
  %v6859 = vcombine.high %v6857, %v6857
  %v6860 = vcombine.high %v6476, %v6476
  %v6862 = vunpack.c.l.s4 1983009808
  %v6863 = vunpack.c.0.s8 %v6862
  %v6864 = vlaneseq
  %v6865 = vshrl.u32 %v6864, 7
  %v6866 = vsub.s32 %v6863, %v6865
  %v6867 = vrot.slane %v6476, %v6866
  %v6869 = vunpack.c.l.s4 1983009808
  %v6870 = vunpack.c.0.s8 %v6869
  %v6871 = vlaneseq
  %v6872 = vshrl.u32 %v6871, 7
  %v6873 = vsub.s32 %v6870, %v6872
  %v6874 = vrot.slane %v6860, %v6873
  %v6875 = vcombine.high %v6867, %v6867
  %v6876 = vcombine.high %v6874, %v6874
  %v6877 = vcombine.high %v6477, %v6477
  %v6879 = vunpack.c.l.s4 1983009808
  %v6880 = vunpack.c.0.s8 %v6879
  %v6881 = vlaneseq
  %v6882 = vshrl.u32 %v6881, 7
  %v6883 = vsub.s32 %v6880, %v6882
  %v6884 = vrot.slane %v6477, %v6883
  %v6886 = vunpack.c.l.s4 1983009808
  %v6887 = vunpack.c.0.s8 %v6886
  %v6888 = vlaneseq
  %v6889 = vshrl.u32 %v6888, 7
  %v6890 = vsub.s32 %v6887, %v6889
  %v6891 = vrot.slane %v6877, %v6890
  %v6892 = vcombine.high %v6884, %v6884
  %v6893 = vcombine.high %v6891, %v6891
  %v6894 = vcombine.high %v6478, %v6478
  %v6896 = vunpack.c.l.s4 1983009808
  %v6897 = vunpack.c.0.s8 %v6896
  %v6898 = vlaneseq
  %v6899 = vshrl.u32 %v6898, 7
  %v6900 = vsub.s32 %v6897, %v6899
  %v6901 = vrot.slane %v6478, %v6900
  %v6903 = vunpack.c.l.s4 1983009808
  %v6904 = vunpack.c.0.s8 %v6903
  %v6905 = vlaneseq
  %v6906 = vshrl.u32 %v6905, 7
  %v6907 = vsub.s32 %v6904, %v6906
  %v6908 = vrot.slane %v6894, %v6907
  %v6909 = vcombine.high %v6901, %v6901
  %v6910 = vcombine.high %v6908, %v6908
  %v6911 = vcombine.high %v6479, %v6479
  %v6913 = vunpack.c.l.s4 1983009808
  %v6914 = vunpack.c.0.s8 %v6913
  %v6915 = vlaneseq
  %v6916 = vshrl.u32 %v6915, 7
  %v6917 = vsub.s32 %v6914, %v6916
  %v6918 = vrot.slane %v6479, %v6917
  %v6920 = vunpack.c.l.s4 1983009808
  %v6921 = vunpack.c.0.s8 %v6920
  %v6922 = vlaneseq
  %v6923 = vshrl.u32 %v6922, 7
  %v6924 = vsub.s32 %v6921, %v6923
  %v6925 = vrot.slane %v6911, %v6924
  %v6926 = vcombine.high %v6918, %v6918
  %v6927 = vcombine.high %v6925, %v6925
  %v6928 = vcombine.high %v6480, %v6480
  %v6930 = vunpack.c.l.s4 1983009808
  %v6931 = vunpack.c.0.s8 %v6930
  %v6932 = vlaneseq
  %v6933 = vshrl.u32 %v6932, 7
  %v6934 = vsub.s32 %v6931, %v6933
  %v6935 = vrot.slane %v6480, %v6934
  %v6937 = vunpack.c.l.s4 1983009808
  %v6938 = vunpack.c.0.s8 %v6937
  %v6939 = vlaneseq
  %v6940 = vshrl.u32 %v6939, 7
  %v6941 = vsub.s32 %v6938, %v6940
  %v6942 = vrot.slane %v6928, %v6941
  %v6943 = vcombine.high %v6935, %v6935
  %v6944 = vcombine.high %v6942, %v6942
  %v6945 = vcombine.high %v6481, %v6481
  %v6947 = vunpack.c.l.s4 1983009808
  %v6948 = vunpack.c.0.s8 %v6947
  %v6949 = vlaneseq
  %v6950 = vshrl.u32 %v6949, 7
  %v6951 = vsub.s32 %v6948, %v6950
  %v6952 = vrot.slane %v6481, %v6951
  %v6954 = vunpack.c.l.s4 1983009808
  %v6955 = vunpack.c.0.s8 %v6954
  %v6956 = vlaneseq
  %v6957 = vshrl.u32 %v6956, 7
  %v6958 = vsub.s32 %v6955, %v6957
  %v6959 = vrot.slane %v6945, %v6958
  %v6960 = vcombine.high %v6952, %v6952
  %v6961 = vcombine.high %v6959, %v6959
  %v6962 = vcombine.high %v6482, %v6482
  %v6964 = vunpack.c.l.s4 1983009808
  %v6965 = vunpack.c.0.s8 %v6964
  %v6966 = vlaneseq
  %v6967 = vshrl.u32 %v6966, 7
  %v6968 = vsub.s32 %v6965, %v6967
  %v6969 = vrot.slane %v6482, %v6968
  %v6971 = vunpack.c.l.s4 1983009808
  %v6972 = vunpack.c.0.s8 %v6971
  %v6973 = vlaneseq
  %v6974 = vshrl.u32 %v6973, 7
  %v6975 = vsub.s32 %v6972, %v6974
  %v6976 = vrot.slane %v6962, %v6975
  %v6977 = vcombine.high %v6969, %v6969
  %v6978 = vcombine.high %v6976, %v6976
  %v6979 = vcombine.high %v6483, %v6483
  %v6981 = vunpack.c.l.s4 1983009808
  %v6982 = vunpack.c.0.s8 %v6981
  %v6983 = vlaneseq
  %v6984 = vshrl.u32 %v6983, 7
  %v6985 = vsub.s32 %v6982, %v6984
  %v6986 = vrot.slane %v6483, %v6985
  %v6988 = vunpack.c.l.s4 1983009808
  %v6989 = vunpack.c.0.s8 %v6988
  %v6990 = vlaneseq
  %v6991 = vshrl.u32 %v6990, 7
  %v6992 = vsub.s32 %v6989, %v6991
  %v6993 = vrot.slane %v6979, %v6992
  %v6994 = vcombine.high %v6986, %v6986
  %v6995 = vcombine.high %v6993, %v6993
  %v6996 = vcombine.high %v6484, %v6484
  %v6998 = vunpack.c.l.s4 1983009808
  %v6999 = vunpack.c.0.s8 %v6998
  %v7000 = vlaneseq
  %v7001 = vshrl.u32 %v7000, 7
  %v7002 = vsub.s32 %v6999, %v7001
  %v7003 = vrot.slane %v6484, %v7002
  %v7005 = vunpack.c.l.s4 1983009808
  %v7006 = vunpack.c.0.s8 %v7005
  %v7007 = vlaneseq
  %v7008 = vshrl.u32 %v7007, 7
  %v7009 = vsub.s32 %v7006, %v7008
  %v7010 = vrot.slane %v6996, %v7009
  %v7011 = vcombine.high %v7003, %v7003
  %v7012 = vcombine.high %v7010, %v7010
  %v7013 = vcombine.high %v6485, %v6485
  %v7015 = vunpack.c.l.s4 1983009808
  %v7016 = vunpack.c.0.s8 %v7015
  %v7017 = vlaneseq
  %v7018 = vshrl.u32 %v7017, 7
  %v7019 = vsub.s32 %v7016, %v7018
  %v7020 = vrot.slane %v6485, %v7019
  %v7022 = vunpack.c.l.s4 1983009808
  %v7023 = vunpack.c.0.s8 %v7022
  %v7024 = vlaneseq
  %v7025 = vshrl.u32 %v7024, 7
  %v7026 = vsub.s32 %v7023, %v7025
  %v7027 = vrot.slane %v7013, %v7026
  %v7028 = vcombine.high %v7020, %v7020
  %v7029 = vcombine.high %v7027, %v7027
  %v7030 = vcombine.high %v6486, %v6486
  %v7032 = vunpack.c.l.s4 1983009808
  %v7033 = vunpack.c.0.s8 %v7032
  %v7034 = vlaneseq
  %v7035 = vshrl.u32 %v7034, 7
  %v7036 = vsub.s32 %v7033, %v7035
  %v7037 = vrot.slane %v6486, %v7036
  %v7039 = vunpack.c.l.s4 1983009808
  %v7040 = vunpack.c.0.s8 %v7039
  %v7041 = vlaneseq
  %v7042 = vshrl.u32 %v7041, 7
  %v7043 = vsub.s32 %v7040, %v7042
  %v7044 = vrot.slane %v7030, %v7043
  %v7045 = vcombine.high %v7037, %v7037
  %v7046 = vcombine.high %v7044, %v7044
  %v7047 = vcombine.high %v6487, %v6487
  %v7049 = vunpack.c.l.s4 1983009808
  %v7050 = vunpack.c.0.s8 %v7049
  %v7051 = vlaneseq
  %v7052 = vshrl.u32 %v7051, 7
  %v7053 = vsub.s32 %v7050, %v7052
  %v7054 = vrot.slane %v6487, %v7053
  %v7056 = vunpack.c.l.s4 1983009808
  %v7057 = vunpack.c.0.s8 %v7056
  %v7058 = vlaneseq
  %v7059 = vshrl.u32 %v7058, 7
  %v7060 = vsub.s32 %v7057, %v7059
  %v7061 = vrot.slane %v7047, %v7060
  %v7062 = vcombine.high %v7054, %v7054
  %v7063 = vcombine.high %v7061, %v7061
  %vm7192 = vcmask 123904
  %v7193 = vsel %vm7192, %v6527, -inf
  %v7194 = vrot.slane %v7193, 4
  %v7195 = vmax.f32 %v7193, %v7194
  %v7196 = vrot.slane %v7195, 2
  %v7197 = vmax.f32 %v7195, %v7196
  %v7198 = vrot.slane %v7197, 1
  %v7199 = vmax.f32 %v7197, %v7198
  %v7200 = vsel %vm7192, %v6535, -inf
  %v7201 = vrot.slane %v7200, 4
  %v7202 = vmax.f32 %v7200, %v7201
  %v7203 = vrot.slane %v7202, 2
  %v7204 = vmax.f32 %v7202, %v7203
  %v7205 = vrot.slane %v7204, 1
  %v7206 = vmax.f32 %v7204, %v7205
  %v7207 = vsel %vm7192, %v6534, -inf
  %v7208 = vrot.slane %v7207, 4
  %v7209 = vmax.f32 %v7207, %v7208
  %v7210 = vrot.slane %v7209, 2
  %v7211 = vmax.f32 %v7209, %v7210
  %v7212 = vrot.slane %v7211, 1
  %v7213 = vmax.f32 %v7211, %v7212
  %v7214 = vsel %vm7192, %v6536, -inf
  %v7215 = vrot.slane %v7214, 4
  %v7216 = vmax.f32 %v7214, %v7215
  %v7217 = vrot.slane %v7216, 2
  %v7218 = vmax.f32 %v7216, %v7217
  %v7219 = vrot.slane %v7218, 1
  %v7220 = vmax.f32 %v7218, %v7219
  %v7221 = vsel %vm7192, %v6544, -inf
  %v7222 = vrot.slane %v7221, 4
  %v7223 = vmax.f32 %v7221, %v7222
  %v7224 = vrot.slane %v7223, 2
  %v7225 = vmax.f32 %v7223, %v7224
  %v7226 = vrot.slane %v7225, 1
  %v7227 = vmax.f32 %v7225, %v7226
  %v7228 = vsel %vm7192, %v6552, -inf
  %v7229 = vrot.slane %v7228, 4
  %v7230 = vmax.f32 %v7228, %v7229
  %v7231 = vrot.slane %v7230, 2
  %v7232 = vmax.f32 %v7230, %v7231
  %v7233 = vrot.slane %v7232, 1
  %v7234 = vmax.f32 %v7232, %v7233
  %v7235 = vsel %vm7192, %v6551, -inf
  %v7236 = vrot.slane %v7235, 4
  %v7237 = vmax.f32 %v7235, %v7236
  %v7238 = vrot.slane %v7237, 2
  %v7239 = vmax.f32 %v7237, %v7238
  %v7240 = vrot.slane %v7239, 1
  %v7241 = vmax.f32 %v7239, %v7240
  %v7242 = vsel %vm7192, %v6553, -inf
  %v7243 = vrot.slane %v7242, 4
  %v7244 = vmax.f32 %v7242, %v7243
  %v7245 = vrot.slane %v7244, 2
  %v7246 = vmax.f32 %v7244, %v7245
  %v7247 = vrot.slane %v7246, 1
  %v7248 = vmax.f32 %v7246, %v7247
  %v7249 = vsel %vm7192, %v6561, -inf
  %v7250 = vrot.slane %v7249, 4
  %v7251 = vmax.f32 %v7249, %v7250
  %v7252 = vrot.slane %v7251, 2
  %v7253 = vmax.f32 %v7251, %v7252
  %v7254 = vrot.slane %v7253, 1
  %v7255 = vmax.f32 %v7253, %v7254
  %v7256 = vsel %vm7192, %v6569, -inf
  %v7257 = vrot.slane %v7256, 4
  %v7258 = vmax.f32 %v7256, %v7257
  %v7259 = vrot.slane %v7258, 2
  %v7260 = vmax.f32 %v7258, %v7259
  %v7261 = vrot.slane %v7260, 1
  %v7262 = vmax.f32 %v7260, %v7261
  %v7263 = vsel %vm7192, %v6568, -inf
  %v7264 = vrot.slane %v7263, 4
  %v7265 = vmax.f32 %v7263, %v7264
  %v7266 = vrot.slane %v7265, 2
  %v7267 = vmax.f32 %v7265, %v7266
  %v7268 = vrot.slane %v7267, 1
  %v7269 = vmax.f32 %v7267, %v7268
  %v7270 = vsel %vm7192, %v6570, -inf
  %v7271 = vrot.slane %v7270, 4
  %v7272 = vmax.f32 %v7270, %v7271
  %v7273 = vrot.slane %v7272, 2
  %v7274 = vmax.f32 %v7272, %v7273
  %v7275 = vrot.slane %v7274, 1
  %v7276 = vmax.f32 %v7274, %v7275
  %v7277 = vsel %vm7192, %v6578, -inf
  %v7278 = vrot.slane %v7277, 4
  %v7279 = vmax.f32 %v7277, %v7278
  %v7280 = vrot.slane %v7279, 2
  %v7281 = vmax.f32 %v7279, %v7280
  %v7282 = vrot.slane %v7281, 1
  %v7283 = vmax.f32 %v7281, %v7282
  %v7284 = vsel %vm7192, %v6586, -inf
  %v7285 = vrot.slane %v7284, 4
  %v7286 = vmax.f32 %v7284, %v7285
  %v7287 = vrot.slane %v7286, 2
  %v7288 = vmax.f32 %v7286, %v7287
  %v7289 = vrot.slane %v7288, 1
  %v7290 = vmax.f32 %v7288, %v7289
  %v7291 = vsel %vm7192, %v6585, -inf
  %v7292 = vrot.slane %v7291, 4
  %v7293 = vmax.f32 %v7291, %v7292
  %v7294 = vrot.slane %v7293, 2
  %v7295 = vmax.f32 %v7293, %v7294
  %v7296 = vrot.slane %v7295, 1
  %v7297 = vmax.f32 %v7295, %v7296
  %v7298 = vsel %vm7192, %v6587, -inf
  %v7299 = vrot.slane %v7298, 4
  %v7300 = vmax.f32 %v7298, %v7299
  %v7301 = vrot.slane %v7300, 2
  %v7302 = vmax.f32 %v7300, %v7301
  %v7303 = vrot.slane %v7302, 1
  %v7304 = vmax.f32 %v7302, %v7303
  %v7305 = vsel %vm7192, %v6595, -inf
  %v7306 = vrot.slane %v7305, 4
  %v7307 = vmax.f32 %v7305, %v7306
  %v7308 = vrot.slane %v7307, 2
  %v7309 = vmax.f32 %v7307, %v7308
  %v7310 = vrot.slane %v7309, 1
  %v7311 = vmax.f32 %v7309, %v7310
  %v7312 = vsel %vm7192, %v6603, -inf
  %v7313 = vrot.slane %v7312, 4
  %v7314 = vmax.f32 %v7312, %v7313
  %v7315 = vrot.slane %v7314, 2
  %v7316 = vmax.f32 %v7314, %v7315
  %v7317 = vrot.slane %v7316, 1
  %v7318 = vmax.f32 %v7316, %v7317
  %v7319 = vsel %vm7192, %v6602, -inf
  %v7320 = vrot.slane %v7319, 4
  %v7321 = vmax.f32 %v7319, %v7320
  %v7322 = vrot.slane %v7321, 2
  %v7323 = vmax.f32 %v7321, %v7322
  %v7324 = vrot.slane %v7323, 1
  %v7325 = vmax.f32 %v7323, %v7324
  %v7326 = vsel %vm7192, %v6604, -inf
  %v7327 = vrot.slane %v7326, 4
  %v7328 = vmax.f32 %v7326, %v7327
  %v7329 = vrot.slane %v7328, 2
  %v7330 = vmax.f32 %v7328, %v7329
  %v7331 = vrot.slane %v7330, 1
  %v7332 = vmax.f32 %v7330, %v7331
  %v7333 = vsel %vm7192, %v6612, -inf
  %v7334 = vrot.slane %v7333, 4
  %v7335 = vmax.f32 %v7333, %v7334
  %v7336 = vrot.slane %v7335, 2
  %v7337 = vmax.f32 %v7335, %v7336
  %v7338 = vrot.slane %v7337, 1
  %v7339 = vmax.f32 %v7337, %v7338
  %v7340 = vsel %vm7192, %v6620, -inf
  %v7341 = vrot.slane %v7340, 4
  %v7342 = vmax.f32 %v7340, %v7341
  %v7343 = vrot.slane %v7342, 2
  %v7344 = vmax.f32 %v7342, %v7343
  %v7345 = vrot.slane %v7344, 1
  %v7346 = vmax.f32 %v7344, %v7345
  %v7347 = vsel %vm7192, %v6619, -inf
  %v7348 = vrot.slane %v7347, 4
  %v7349 = vmax.f32 %v7347, %v7348
  %v7350 = vrot.slane %v7349, 2
  %v7351 = vmax.f32 %v7349, %v7350
  %v7352 = vrot.slane %v7351, 1
  %v7353 = vmax.f32 %v7351, %v7352
  %v7354 = vsel %vm7192, %v6621, -inf
  %v7355 = vrot.slane %v7354, 4
  %v7356 = vmax.f32 %v7354, %v7355
  %v7357 = vrot.slane %v7356, 2
  %v7358 = vmax.f32 %v7356, %v7357
  %v7359 = vrot.slane %v7358, 1
  %v7360 = vmax.f32 %v7358, %v7359
  %v7361 = vsel %vm7192, %v6629, -inf
  %v7362 = vrot.slane %v7361, 4
  %v7363 = vmax.f32 %v7361, %v7362
  %v7364 = vrot.slane %v7363, 2
  %v7365 = vmax.f32 %v7363, %v7364
  %v7366 = vrot.slane %v7365, 1
  %v7367 = vmax.f32 %v7365, %v7366
  %v7368 = vsel %vm7192, %v6637, -inf
  %v7369 = vrot.slane %v7368, 4
  %v7370 = vmax.f32 %v7368, %v7369
  %v7371 = vrot.slane %v7370, 2
  %v7372 = vmax.f32 %v7370, %v7371
  %v7373 = vrot.slane %v7372, 1
  %v7374 = vmax.f32 %v7372, %v7373
  %v7375 = vsel %vm7192, %v6636, -inf
  %v7376 = vrot.slane %v7375, 4
  %v7377 = vmax.f32 %v7375, %v7376
  %v7378 = vrot.slane %v7377, 2
  %v7379 = vmax.f32 %v7377, %v7378
  %v7380 = vrot.slane %v7379, 1
  %v7381 = vmax.f32 %v7379, %v7380
  %v7382 = vsel %vm7192, %v6638, -inf
  %v7383 = vrot.slane %v7382, 4
  %v7384 = vmax.f32 %v7382, %v7383
  %v7385 = vrot.slane %v7384, 2
  %v7386 = vmax.f32 %v7384, %v7385
  %v7387 = vrot.slane %v7386, 1
  %v7388 = vmax.f32 %v7386, %v7387
  %v7389 = vsel %vm7192, %v6646, -inf
  %v7390 = vrot.slane %v7389, 4
  %v7391 = vmax.f32 %v7389, %v7390
  %v7392 = vrot.slane %v7391, 2
  %v7393 = vmax.f32 %v7391, %v7392
  %v7394 = vrot.slane %v7393, 1
  %v7395 = vmax.f32 %v7393, %v7394
  %v7396 = vsel %vm7192, %v6654, -inf
  %v7397 = vrot.slane %v7396, 4
  %v7398 = vmax.f32 %v7396, %v7397
  %v7399 = vrot.slane %v7398, 2
  %v7400 = vmax.f32 %v7398, %v7399
  %v7401 = vrot.slane %v7400, 1
  %v7402 = vmax.f32 %v7400, %v7401
  %v7403 = vsel %vm7192, %v6653, -inf
  %v7404 = vrot.slane %v7403, 4
  %v7405 = vmax.f32 %v7403, %v7404
  %v7406 = vrot.slane %v7405, 2
  %v7407 = vmax.f32 %v7405, %v7406
  %v7408 = vrot.slane %v7407, 1
  %v7409 = vmax.f32 %v7407, %v7408
  %v7410 = vsel %vm7192, %v6655, -inf
  %v7411 = vrot.slane %v7410, 4
  %v7412 = vmax.f32 %v7410, %v7411
  %v7413 = vrot.slane %v7412, 2
  %v7414 = vmax.f32 %v7412, %v7413
  %v7415 = vrot.slane %v7414, 1
  %v7416 = vmax.f32 %v7414, %v7415
  %v7417 = vsel %vm7192, %v6663, -inf
  %v7418 = vrot.slane %v7417, 4
  %v7419 = vmax.f32 %v7417, %v7418
  %v7420 = vrot.slane %v7419, 2
  %v7421 = vmax.f32 %v7419, %v7420
  %v7422 = vrot.slane %v7421, 1
  %v7423 = vmax.f32 %v7421, %v7422
  %v7424 = vsel %vm7192, %v6671, -inf
  %v7425 = vrot.slane %v7424, 4
  %v7426 = vmax.f32 %v7424, %v7425
  %v7427 = vrot.slane %v7426, 2
  %v7428 = vmax.f32 %v7426, %v7427
  %v7429 = vrot.slane %v7428, 1
  %v7430 = vmax.f32 %v7428, %v7429
  %v7431 = vsel %vm7192, %v6670, -inf
  %v7432 = vrot.slane %v7431, 4
  %v7433 = vmax.f32 %v7431, %v7432
  %v7434 = vrot.slane %v7433, 2
  %v7435 = vmax.f32 %v7433, %v7434
  %v7436 = vrot.slane %v7435, 1
  %v7437 = vmax.f32 %v7435, %v7436
  %v7438 = vsel %vm7192, %v6672, -inf
  %v7439 = vrot.slane %v7438, 4
  %v7440 = vmax.f32 %v7438, %v7439
  %v7441 = vrot.slane %v7440, 2
  %v7442 = vmax.f32 %v7440, %v7441
  %v7443 = vrot.slane %v7442, 1
  %v7444 = vmax.f32 %v7442, %v7443
  %v7445 = vsel %vm7192, %v6680, -inf
  %v7446 = vrot.slane %v7445, 4
  %v7447 = vmax.f32 %v7445, %v7446
  %v7448 = vrot.slane %v7447, 2
  %v7449 = vmax.f32 %v7447, %v7448
  %v7450 = vrot.slane %v7449, 1
  %v7451 = vmax.f32 %v7449, %v7450
  %v7452 = vsel %vm7192, %v6688, -inf
  %v7453 = vrot.slane %v7452, 4
  %v7454 = vmax.f32 %v7452, %v7453
  %v7455 = vrot.slane %v7454, 2
  %v7456 = vmax.f32 %v7454, %v7455
  %v7457 = vrot.slane %v7456, 1
  %v7458 = vmax.f32 %v7456, %v7457
  %v7459 = vsel %vm7192, %v6687, -inf
  %v7460 = vrot.slane %v7459, 4
  %v7461 = vmax.f32 %v7459, %v7460
  %v7462 = vrot.slane %v7461, 2
  %v7463 = vmax.f32 %v7461, %v7462
  %v7464 = vrot.slane %v7463, 1
  %v7465 = vmax.f32 %v7463, %v7464
  %v7466 = vsel %vm7192, %v6689, -inf
  %v7467 = vrot.slane %v7466, 4
  %v7468 = vmax.f32 %v7466, %v7467
  %v7469 = vrot.slane %v7468, 2
  %v7470 = vmax.f32 %v7468, %v7469
  %v7471 = vrot.slane %v7470, 1
  %v7472 = vmax.f32 %v7470, %v7471
  %v7473 = vsel %vm7192, %v6697, -inf
  %v7474 = vrot.slane %v7473, 4
  %v7475 = vmax.f32 %v7473, %v7474
  %v7476 = vrot.slane %v7475, 2
  %v7477 = vmax.f32 %v7475, %v7476
  %v7478 = vrot.slane %v7477, 1
  %v7479 = vmax.f32 %v7477, %v7478
  %v7480 = vsel %vm7192, %v6705, -inf
  %v7481 = vrot.slane %v7480, 4
  %v7482 = vmax.f32 %v7480, %v7481
  %v7483 = vrot.slane %v7482, 2
  %v7484 = vmax.f32 %v7482, %v7483
  %v7485 = vrot.slane %v7484, 1
  %v7486 = vmax.f32 %v7484, %v7485
  %v7487 = vsel %vm7192, %v6704, -inf
  %v7488 = vrot.slane %v7487, 4
  %v7489 = vmax.f32 %v7487, %v7488
  %v7490 = vrot.slane %v7489, 2
  %v7491 = vmax.f32 %v7489, %v7490
  %v7492 = vrot.slane %v7491, 1
  %v7493 = vmax.f32 %v7491, %v7492
  %v7494 = vsel %vm7192, %v6706, -inf
  %v7495 = vrot.slane %v7494, 4
  %v7496 = vmax.f32 %v7494, %v7495
  %v7497 = vrot.slane %v7496, 2
  %v7498 = vmax.f32 %v7496, %v7497
  %v7499 = vrot.slane %v7498, 1
  %v7500 = vmax.f32 %v7498, %v7499
  %v7501 = vsel %vm7192, %v6714, -inf
  %v7502 = vrot.slane %v7501, 4
  %v7503 = vmax.f32 %v7501, %v7502
  %v7504 = vrot.slane %v7503, 2
  %v7505 = vmax.f32 %v7503, %v7504
  %v7506 = vrot.slane %v7505, 1
  %v7507 = vmax.f32 %v7505, %v7506
  %v7508 = vsel %vm7192, %v6722, -inf
  %v7509 = vrot.slane %v7508, 4
  %v7510 = vmax.f32 %v7508, %v7509
  %v7511 = vrot.slane %v7510, 2
  %v7512 = vmax.f32 %v7510, %v7511
  %v7513 = vrot.slane %v7512, 1
  %v7514 = vmax.f32 %v7512, %v7513
  %v7515 = vsel %vm7192, %v6721, -inf
  %v7516 = vrot.slane %v7515, 4
  %v7517 = vmax.f32 %v7515, %v7516
  %v7518 = vrot.slane %v7517, 2
  %v7519 = vmax.f32 %v7517, %v7518
  %v7520 = vrot.slane %v7519, 1
  %v7521 = vmax.f32 %v7519, %v7520
  %v7522 = vsel %vm7192, %v6723, -inf
  %v7523 = vrot.slane %v7522, 4
  %v7524 = vmax.f32 %v7522, %v7523
  %v7525 = vrot.slane %v7524, 2
  %v7526 = vmax.f32 %v7524, %v7525
  %v7527 = vrot.slane %v7526, 1
  %v7528 = vmax.f32 %v7526, %v7527
  %v7529 = vsel %vm7192, %v6731, -inf
  %v7530 = vrot.slane %v7529, 4
  %v7531 = vmax.f32 %v7529, %v7530
  %v7532 = vrot.slane %v7531, 2
  %v7533 = vmax.f32 %v7531, %v7532
  %v7534 = vrot.slane %v7533, 1
  %v7535 = vmax.f32 %v7533, %v7534
  %v7536 = vsel %vm7192, %v6739, -inf
  %v7537 = vrot.slane %v7536, 4
  %v7538 = vmax.f32 %v7536, %v7537
  %v7539 = vrot.slane %v7538, 2
  %v7540 = vmax.f32 %v7538, %v7539
  %v7541 = vrot.slane %v7540, 1
  %v7542 = vmax.f32 %v7540, %v7541
  %v7543 = vsel %vm7192, %v6738, -inf
  %v7544 = vrot.slane %v7543, 4
  %v7545 = vmax.f32 %v7543, %v7544
  %v7546 = vrot.slane %v7545, 2
  %v7547 = vmax.f32 %v7545, %v7546
  %v7548 = vrot.slane %v7547, 1
  %v7549 = vmax.f32 %v7547, %v7548
  %v7550 = vsel %vm7192, %v6740, -inf
  %v7551 = vrot.slane %v7550, 4
  %v7552 = vmax.f32 %v7550, %v7551
  %v7553 = vrot.slane %v7552, 2
  %v7554 = vmax.f32 %v7552, %v7553
  %v7555 = vrot.slane %v7554, 1
  %v7556 = vmax.f32 %v7554, %v7555
  %v7557 = vsel %vm7192, %v6748, -inf
  %v7558 = vrot.slane %v7557, 4
  %v7559 = vmax.f32 %v7557, %v7558
  %v7560 = vrot.slane %v7559, 2
  %v7561 = vmax.f32 %v7559, %v7560
  %v7562 = vrot.slane %v7561, 1
  %v7563 = vmax.f32 %v7561, %v7562
  %v7564 = vsel %vm7192, %v6756, -inf
  %v7565 = vrot.slane %v7564, 4
  %v7566 = vmax.f32 %v7564, %v7565
  %v7567 = vrot.slane %v7566, 2
  %v7568 = vmax.f32 %v7566, %v7567
  %v7569 = vrot.slane %v7568, 1
  %v7570 = vmax.f32 %v7568, %v7569
  %v7571 = vsel %vm7192, %v6755, -inf
  %v7572 = vrot.slane %v7571, 4
  %v7573 = vmax.f32 %v7571, %v7572
  %v7574 = vrot.slane %v7573, 2
  %v7575 = vmax.f32 %v7573, %v7574
  %v7576 = vrot.slane %v7575, 1
  %v7577 = vmax.f32 %v7575, %v7576
  %v7578 = vsel %vm7192, %v6757, -inf
  %v7579 = vrot.slane %v7578, 4
  %v7580 = vmax.f32 %v7578, %v7579
  %v7581 = vrot.slane %v7580, 2
  %v7582 = vmax.f32 %v7580, %v7581
  %v7583 = vrot.slane %v7582, 1
  %v7584 = vmax.f32 %v7582, %v7583
  %v7585 = vsel %vm7192, %v6765, -inf
  %v7586 = vrot.slane %v7585, 4
  %v7587 = vmax.f32 %v7585, %v7586
  %v7588 = vrot.slane %v7587, 2
  %v7589 = vmax.f32 %v7587, %v7588
  %v7590 = vrot.slane %v7589, 1
  %v7591 = vmax.f32 %v7589, %v7590
  %v7592 = vsel %vm7192, %v6773, -inf
  %v7593 = vrot.slane %v7592, 4
  %v7594 = vmax.f32 %v7592, %v7593
  %v7595 = vrot.slane %v7594, 2
  %v7596 = vmax.f32 %v7594, %v7595
  %v7597 = vrot.slane %v7596, 1
  %v7598 = vmax.f32 %v7596, %v7597
  %v7599 = vsel %vm7192, %v6772, -inf
  %v7600 = vrot.slane %v7599, 4
  %v7601 = vmax.f32 %v7599, %v7600
  %v7602 = vrot.slane %v7601, 2
  %v7603 = vmax.f32 %v7601, %v7602
  %v7604 = vrot.slane %v7603, 1
  %v7605 = vmax.f32 %v7603, %v7604
  %v7606 = vsel %vm7192, %v6774, -inf
  %v7607 = vrot.slane %v7606, 4
  %v7608 = vmax.f32 %v7606, %v7607
  %v7609 = vrot.slane %v7608, 2
  %v7610 = vmax.f32 %v7608, %v7609
  %v7611 = vrot.slane %v7610, 1
  %v7612 = vmax.f32 %v7610, %v7611
  %v7613 = vsel %vm7192, %v6782, -inf
  %v7614 = vrot.slane %v7613, 4
  %v7615 = vmax.f32 %v7613, %v7614
  %v7616 = vrot.slane %v7615, 2
  %v7617 = vmax.f32 %v7615, %v7616
  %v7618 = vrot.slane %v7617, 1
  %v7619 = vmax.f32 %v7617, %v7618
  %v7620 = vsel %vm7192, %v6790, -inf
  %v7621 = vrot.slane %v7620, 4
  %v7622 = vmax.f32 %v7620, %v7621
  %v7623 = vrot.slane %v7622, 2
  %v7624 = vmax.f32 %v7622, %v7623
  %v7625 = vrot.slane %v7624, 1
  %v7626 = vmax.f32 %v7624, %v7625
  %v7627 = vsel %vm7192, %v6789, -inf
  %v7628 = vrot.slane %v7627, 4
  %v7629 = vmax.f32 %v7627, %v7628
  %v7630 = vrot.slane %v7629, 2
  %v7631 = vmax.f32 %v7629, %v7630
  %v7632 = vrot.slane %v7631, 1
  %v7633 = vmax.f32 %v7631, %v7632
  %v7634 = vsel %vm7192, %v6791, -inf
  %v7635 = vrot.slane %v7634, 4
  %v7636 = vmax.f32 %v7634, %v7635
  %v7637 = vrot.slane %v7636, 2
  %v7638 = vmax.f32 %v7636, %v7637
  %v7639 = vrot.slane %v7638, 1
  %v7640 = vmax.f32 %v7638, %v7639
  %v7641 = vsel %vm7192, %v6799, -inf
  %v7642 = vrot.slane %v7641, 4
  %v7643 = vmax.f32 %v7641, %v7642
  %v7644 = vrot.slane %v7643, 2
  %v7645 = vmax.f32 %v7643, %v7644
  %v7646 = vrot.slane %v7645, 1
  %v7647 = vmax.f32 %v7645, %v7646
  %v7648 = vsel %vm7192, %v6807, -inf
  %v7649 = vrot.slane %v7648, 4
  %v7650 = vmax.f32 %v7648, %v7649
  %v7651 = vrot.slane %v7650, 2
  %v7652 = vmax.f32 %v7650, %v7651
  %v7653 = vrot.slane %v7652, 1
  %v7654 = vmax.f32 %v7652, %v7653
  %v7655 = vsel %vm7192, %v6806, -inf
  %v7656 = vrot.slane %v7655, 4
  %v7657 = vmax.f32 %v7655, %v7656
  %v7658 = vrot.slane %v7657, 2
  %v7659 = vmax.f32 %v7657, %v7658
  %v7660 = vrot.slane %v7659, 1
  %v7661 = vmax.f32 %v7659, %v7660
  %v7662 = vsel %vm7192, %v6808, -inf
  %v7663 = vrot.slane %v7662, 4
  %v7664 = vmax.f32 %v7662, %v7663
  %v7665 = vrot.slane %v7664, 2
  %v7666 = vmax.f32 %v7664, %v7665
  %v7667 = vrot.slane %v7666, 1
  %v7668 = vmax.f32 %v7666, %v7667
  %v7669 = vsel %vm7192, %v6816, -inf
  %v7670 = vrot.slane %v7669, 4
  %v7671 = vmax.f32 %v7669, %v7670
  %v7672 = vrot.slane %v7671, 2
  %v7673 = vmax.f32 %v7671, %v7672
  %v7674 = vrot.slane %v7673, 1
  %v7675 = vmax.f32 %v7673, %v7674
  %v7676 = vsel %vm7192, %v6824, -inf
  %v7677 = vrot.slane %v7676, 4
  %v7678 = vmax.f32 %v7676, %v7677
  %v7679 = vrot.slane %v7678, 2
  %v7680 = vmax.f32 %v7678, %v7679
  %v7681 = vrot.slane %v7680, 1
  %v7682 = vmax.f32 %v7680, %v7681
  %v7683 = vsel %vm7192, %v6823, -inf
  %v7684 = vrot.slane %v7683, 4
  %v7685 = vmax.f32 %v7683, %v7684
  %v7686 = vrot.slane %v7685, 2
  %v7687 = vmax.f32 %v7685, %v7686
  %v7688 = vrot.slane %v7687, 1
  %v7689 = vmax.f32 %v7687, %v7688
  %v7690 = vsel %vm7192, %v6825, -inf
  %v7691 = vrot.slane %v7690, 4
  %v7692 = vmax.f32 %v7690, %v7691
  %v7693 = vrot.slane %v7692, 2
  %v7694 = vmax.f32 %v7692, %v7693
  %v7695 = vrot.slane %v7694, 1
  %v7696 = vmax.f32 %v7694, %v7695
  %v7697 = vsel %vm7192, %v6833, -inf
  %v7698 = vrot.slane %v7697, 4
  %v7699 = vmax.f32 %v7697, %v7698
  %v7700 = vrot.slane %v7699, 2
  %v7701 = vmax.f32 %v7699, %v7700
  %v7702 = vrot.slane %v7701, 1
  %v7703 = vmax.f32 %v7701, %v7702
  %v7704 = vsel %vm7192, %v6841, -inf
  %v7705 = vrot.slane %v7704, 4
  %v7706 = vmax.f32 %v7704, %v7705
  %v7707 = vrot.slane %v7706, 2
  %v7708 = vmax.f32 %v7706, %v7707
  %v7709 = vrot.slane %v7708, 1
  %v7710 = vmax.f32 %v7708, %v7709
  %v7711 = vsel %vm7192, %v6840, -inf
  %v7712 = vrot.slane %v7711, 4
  %v7713 = vmax.f32 %v7711, %v7712
  %v7714 = vrot.slane %v7713, 2
  %v7715 = vmax.f32 %v7713, %v7714
  %v7716 = vrot.slane %v7715, 1
  %v7717 = vmax.f32 %v7715, %v7716
  %v7718 = vsel %vm7192, %v6842, -inf
  %v7719 = vrot.slane %v7718, 4
  %v7720 = vmax.f32 %v7718, %v7719
  %v7721 = vrot.slane %v7720, 2
  %v7722 = vmax.f32 %v7720, %v7721
  %v7723 = vrot.slane %v7722, 1
  %v7724 = vmax.f32 %v7722, %v7723
  %v7725 = vsel %vm7192, %v6850, -inf
  %v7726 = vrot.slane %v7725, 4
  %v7727 = vmax.f32 %v7725, %v7726
  %v7728 = vrot.slane %v7727, 2
  %v7729 = vmax.f32 %v7727, %v7728
  %v7730 = vrot.slane %v7729, 1
  %v7731 = vmax.f32 %v7729, %v7730
  %v7732 = vsel %vm7192, %v6858, -inf
  %v7733 = vrot.slane %v7732, 4
  %v7734 = vmax.f32 %v7732, %v7733
  %v7735 = vrot.slane %v7734, 2
  %v7736 = vmax.f32 %v7734, %v7735
  %v7737 = vrot.slane %v7736, 1
  %v7738 = vmax.f32 %v7736, %v7737
  %v7739 = vsel %vm7192, %v6857, -inf
  %v7740 = vrot.slane %v7739, 4
  %v7741 = vmax.f32 %v7739, %v7740
  %v7742 = vrot.slane %v7741, 2
  %v7743 = vmax.f32 %v7741, %v7742
  %v7744 = vrot.slane %v7743, 1
  %v7745 = vmax.f32 %v7743, %v7744
  %v7746 = vsel %vm7192, %v6859, -inf
  %v7747 = vrot.slane %v7746, 4
  %v7748 = vmax.f32 %v7746, %v7747
  %v7749 = vrot.slane %v7748, 2
  %v7750 = vmax.f32 %v7748, %v7749
  %v7751 = vrot.slane %v7750, 1
  %v7752 = vmax.f32 %v7750, %v7751
  %v7753 = vsel %vm7192, %v6867, -inf
  %v7754 = vrot.slane %v7753, 4
  %v7755 = vmax.f32 %v7753, %v7754
  %v7756 = vrot.slane %v7755, 2
  %v7757 = vmax.f32 %v7755, %v7756
  %v7758 = vrot.slane %v7757, 1
  %v7759 = vmax.f32 %v7757, %v7758
  %v7760 = vsel %vm7192, %v6875, -inf
  %v7761 = vrot.slane %v7760, 4
  %v7762 = vmax.f32 %v7760, %v7761
  %v7763 = vrot.slane %v7762, 2
  %v7764 = vmax.f32 %v7762, %v7763
  %v7765 = vrot.slane %v7764, 1
  %v7766 = vmax.f32 %v7764, %v7765
  %v7767 = vsel %vm7192, %v6874, -inf
  %v7768 = vrot.slane %v7767, 4
  %v7769 = vmax.f32 %v7767, %v7768
  %v7770 = vrot.slane %v7769, 2
  %v7771 = vmax.f32 %v7769, %v7770
  %v7772 = vrot.slane %v7771, 1
  %v7773 = vmax.f32 %v7771, %v7772
  %v7774 = vsel %vm7192, %v6876, -inf
  %v7775 = vrot.slane %v7774, 4
  %v7776 = vmax.f32 %v7774, %v7775
  %v7777 = vrot.slane %v7776, 2
  %v7778 = vmax.f32 %v7776, %v7777
  %v7779 = vrot.slane %v7778, 1
  %v7780 = vmax.f32 %v7778, %v7779
  %v7781 = vsel %vm7192, %v6884, -inf
  %v7782 = vrot.slane %v7781, 4
  %v7783 = vmax.f32 %v7781, %v7782
  %v7784 = vrot.slane %v7783, 2
  %v7785 = vmax.f32 %v7783, %v7784
  %v7786 = vrot.slane %v7785, 1
  %v7787 = vmax.f32 %v7785, %v7786
  %v7788 = vsel %vm7192, %v6892, -inf
  %v7789 = vrot.slane %v7788, 4
  %v7790 = vmax.f32 %v7788, %v7789
  %v7791 = vrot.slane %v7790, 2
  %v7792 = vmax.f32 %v7790, %v7791
  %v7793 = vrot.slane %v7792, 1
  %v7794 = vmax.f32 %v7792, %v7793
  %v7795 = vsel %vm7192, %v6891, -inf
  %v7796 = vrot.slane %v7795, 4
  %v7797 = vmax.f32 %v7795, %v7796
  %v7798 = vrot.slane %v7797, 2
  %v7799 = vmax.f32 %v7797, %v7798
  %v7800 = vrot.slane %v7799, 1
  %v7801 = vmax.f32 %v7799, %v7800
  %v7802 = vsel %vm7192, %v6893, -inf
  %v7803 = vrot.slane %v7802, 4
  %v7804 = vmax.f32 %v7802, %v7803
  %v7805 = vrot.slane %v7804, 2
  %v7806 = vmax.f32 %v7804, %v7805
  %v7807 = vrot.slane %v7806, 1
  %v7808 = vmax.f32 %v7806, %v7807
  %v7809 = vsel %vm7192, %v6901, -inf
  %v7810 = vrot.slane %v7809, 4
  %v7811 = vmax.f32 %v7809, %v7810
  %v7812 = vrot.slane %v7811, 2
  %v7813 = vmax.f32 %v7811, %v7812
  %v7814 = vrot.slane %v7813, 1
  %v7815 = vmax.f32 %v7813, %v7814
  %v7816 = vsel %vm7192, %v6909, -inf
  %v7817 = vrot.slane %v7816, 4
  %v7818 = vmax.f32 %v7816, %v7817
  %v7819 = vrot.slane %v7818, 2
  %v7820 = vmax.f32 %v7818, %v7819
  %v7821 = vrot.slane %v7820, 1
  %v7822 = vmax.f32 %v7820, %v7821
  %v7823 = vsel %vm7192, %v6908, -inf
  %v7824 = vrot.slane %v7823, 4
  %v7825 = vmax.f32 %v7823, %v7824
  %v7826 = vrot.slane %v7825, 2
  %v7827 = vmax.f32 %v7825, %v7826
  %v7828 = vrot.slane %v7827, 1
  %v7829 = vmax.f32 %v7827, %v7828
  %v7830 = vsel %vm7192, %v6910, -inf
  %v7831 = vrot.slane %v7830, 4
  %v7832 = vmax.f32 %v7830, %v7831
  %v7833 = vrot.slane %v7832, 2
  %v7834 = vmax.f32 %v7832, %v7833
  %v7835 = vrot.slane %v7834, 1
  %v7836 = vmax.f32 %v7834, %v7835
  %v7837 = vsel %vm7192, %v6918, -inf
  %v7838 = vrot.slane %v7837, 4
  %v7839 = vmax.f32 %v7837, %v7838
  %v7840 = vrot.slane %v7839, 2
  %v7841 = vmax.f32 %v7839, %v7840
  %v7842 = vrot.slane %v7841, 1
  %v7843 = vmax.f32 %v7841, %v7842
  %v7844 = vsel %vm7192, %v6926, -inf
  %v7845 = vrot.slane %v7844, 4
  %v7846 = vmax.f32 %v7844, %v7845
  %v7847 = vrot.slane %v7846, 2
  %v7848 = vmax.f32 %v7846, %v7847
  %v7849 = vrot.slane %v7848, 1
  %v7850 = vmax.f32 %v7848, %v7849
  %v7851 = vsel %vm7192, %v6925, -inf
  %v7852 = vrot.slane %v7851, 4
  %v7853 = vmax.f32 %v7851, %v7852
  %v7854 = vrot.slane %v7853, 2
  %v7855 = vmax.f32 %v7853, %v7854
  %v7856 = vrot.slane %v7855, 1
  %v7857 = vmax.f32 %v7855, %v7856
  %v7858 = vsel %vm7192, %v6927, -inf
  %v7859 = vrot.slane %v7858, 4
  %v7860 = vmax.f32 %v7858, %v7859
  %v7861 = vrot.slane %v7860, 2
  %v7862 = vmax.f32 %v7860, %v7861
  %v7863 = vrot.slane %v7862, 1
  %v7864 = vmax.f32 %v7862, %v7863
  %v7865 = vsel %vm7192, %v6935, -inf
  %v7866 = vrot.slane %v7865, 4
  %v7867 = vmax.f32 %v7865, %v7866
  %v7868 = vrot.slane %v7867, 2
  %v7869 = vmax.f32 %v7867, %v7868
  %v7870 = vrot.slane %v7869, 1
  %v7871 = vmax.f32 %v7869, %v7870
  %v7872 = vsel %vm7192, %v6943, -inf
  %v7873 = vrot.slane %v7872, 4
  %v7874 = vmax.f32 %v7872, %v7873
  %v7875 = vrot.slane %v7874, 2
  %v7876 = vmax.f32 %v7874, %v7875
  %v7877 = vrot.slane %v7876, 1
  %v7878 = vmax.f32 %v7876, %v7877
  %v7879 = vsel %vm7192, %v6942, -inf
  %v7880 = vrot.slane %v7879, 4
  %v7881 = vmax.f32 %v7879, %v7880
  %v7882 = vrot.slane %v7881, 2
  %v7883 = vmax.f32 %v7881, %v7882
  %v7884 = vrot.slane %v7883, 1
  %v7885 = vmax.f32 %v7883, %v7884
  %v7886 = vsel %vm7192, %v6944, -inf
  %v7887 = vrot.slane %v7886, 4
  %v7888 = vmax.f32 %v7886, %v7887
  %v7889 = vrot.slane %v7888, 2
  %v7890 = vmax.f32 %v7888, %v7889
  %v7891 = vrot.slane %v7890, 1
  %v7892 = vmax.f32 %v7890, %v7891
  %v7893 = vsel %vm7192, %v6952, -inf
  %v7894 = vrot.slane %v7893, 4
  %v7895 = vmax.f32 %v7893, %v7894
  %v7896 = vrot.slane %v7895, 2
  %v7897 = vmax.f32 %v7895, %v7896
  %v7898 = vrot.slane %v7897, 1
  %v7899 = vmax.f32 %v7897, %v7898
  %v7900 = vsel %vm7192, %v6960, -inf
  %v7901 = vrot.slane %v7900, 4
  %v7902 = vmax.f32 %v7900, %v7901
  %v7903 = vrot.slane %v7902, 2
  %v7904 = vmax.f32 %v7902, %v7903
  %v7905 = vrot.slane %v7904, 1
  %v7906 = vmax.f32 %v7904, %v7905
  %v7907 = vsel %vm7192, %v6959, -inf
  %v7908 = vrot.slane %v7907, 4
  %v7909 = vmax.f32 %v7907, %v7908
  %v7910 = vrot.slane %v7909, 2
  %v7911 = vmax.f32 %v7909, %v7910
  %v7912 = vrot.slane %v7911, 1
  %v7913 = vmax.f32 %v7911, %v7912
  %v7914 = vsel %vm7192, %v6961, -inf
  %v7915 = vrot.slane %v7914, 4
  %v7916 = vmax.f32 %v7914, %v7915
  %v7917 = vrot.slane %v7916, 2
  %v7918 = vmax.f32 %v7916, %v7917
  %v7919 = vrot.slane %v7918, 1
  %v7920 = vmax.f32 %v7918, %v7919
  %v7921 = vsel %vm7192, %v6969, -inf
  %v7922 = vrot.slane %v7921, 4
  %v7923 = vmax.f32 %v7921, %v7922
  %v7924 = vrot.slane %v7923, 2
  %v7925 = vmax.f32 %v7923, %v7924
  %v7926 = vrot.slane %v7925, 1
  %v7927 = vmax.f32 %v7925, %v7926
  %v7928 = vsel %vm7192, %v6977, -inf
  %v7929 = vrot.slane %v7928, 4
  %v7930 = vmax.f32 %v7928, %v7929
  %v7931 = vrot.slane %v7930, 2
  %v7932 = vmax.f32 %v7930, %v7931
  %v7933 = vrot.slane %v7932, 1
  %v7934 = vmax.f32 %v7932, %v7933
  %v7935 = vsel %vm7192, %v6976, -inf
  %v7936 = vrot.slane %v7935, 4
  %v7937 = vmax.f32 %v7935, %v7936
  %v7938 = vrot.slane %v7937, 2
  %v7939 = vmax.f32 %v7937, %v7938
  %v7940 = vrot.slane %v7939, 1
  %v7941 = vmax.f32 %v7939, %v7940
  %v7942 = vsel %vm7192, %v6978, -inf
  %v7943 = vrot.slane %v7942, 4
  %v7944 = vmax.f32 %v7942, %v7943
  %v7945 = vrot.slane %v7944, 2
  %v7946 = vmax.f32 %v7944, %v7945
  %v7947 = vrot.slane %v7946, 1
  %v7948 = vmax.f32 %v7946, %v7947
  %v7949 = vsel %vm7192, %v6986, -inf
  %v7950 = vrot.slane %v7949, 4
  %v7951 = vmax.f32 %v7949, %v7950
  %v7952 = vrot.slane %v7951, 2
  %v7953 = vmax.f32 %v7951, %v7952
  %v7954 = vrot.slane %v7953, 1
  %v7955 = vmax.f32 %v7953, %v7954
  %v7956 = vsel %vm7192, %v6994, -inf
  %v7957 = vrot.slane %v7956, 4
  %v7958 = vmax.f32 %v7956, %v7957
  %v7959 = vrot.slane %v7958, 2
  %v7960 = vmax.f32 %v7958, %v7959
  %v7961 = vrot.slane %v7960, 1
  %v7962 = vmax.f32 %v7960, %v7961
  %v7963 = vsel %vm7192, %v6993, -inf
  %v7964 = vrot.slane %v7963, 4
  %v7965 = vmax.f32 %v7963, %v7964
  %v7966 = vrot.slane %v7965, 2
  %v7967 = vmax.f32 %v7965, %v7966
  %v7968 = vrot.slane %v7967, 1
  %v7969 = vmax.f32 %v7967, %v7968
  %v7970 = vsel %vm7192, %v6995, -inf
  %v7971 = vrot.slane %v7970, 4
  %v7972 = vmax.f32 %v7970, %v7971
  %v7973 = vrot.slane %v7972, 2
  %v7974 = vmax.f32 %v7972, %v7973
  %v7975 = vrot.slane %v7974, 1
  %v7976 = vmax.f32 %v7974, %v7975
  %v7977 = vsel %vm7192, %v7003, -inf
  %v7978 = vrot.slane %v7977, 4
  %v7979 = vmax.f32 %v7977, %v7978
  %v7980 = vrot.slane %v7979, 2
  %v7981 = vmax.f32 %v7979, %v7980
  %v7982 = vrot.slane %v7981, 1
  %v7983 = vmax.f32 %v7981, %v7982
  %v7984 = vsel %vm7192, %v7011, -inf
  %v7985 = vrot.slane %v7984, 4
  %v7986 = vmax.f32 %v7984, %v7985
  %v7987 = vrot.slane %v7986, 2
  %v7988 = vmax.f32 %v7986, %v7987
  %v7989 = vrot.slane %v7988, 1
  %v7990 = vmax.f32 %v7988, %v7989
  %v7991 = vsel %vm7192, %v7010, -inf
  %v7992 = vrot.slane %v7991, 4
  %v7993 = vmax.f32 %v7991, %v7992
  %v7994 = vrot.slane %v7993, 2
  %v7995 = vmax.f32 %v7993, %v7994
  %v7996 = vrot.slane %v7995, 1
  %v7997 = vmax.f32 %v7995, %v7996
  %v7998 = vsel %vm7192, %v7012, -inf
  %v7999 = vrot.slane %v7998, 4
  %v8000 = vmax.f32 %v7998, %v7999
  %v8001 = vrot.slane %v8000, 2
  %v8002 = vmax.f32 %v8000, %v8001
  %v8003 = vrot.slane %v8002, 1
  %v8004 = vmax.f32 %v8002, %v8003
  %v8005 = vsel %vm7192, %v7020, -inf
  %v8006 = vrot.slane %v8005, 4
  %v8007 = vmax.f32 %v8005, %v8006
  %v8008 = vrot.slane %v8007, 2
  %v8009 = vmax.f32 %v8007, %v8008
  %v8010 = vrot.slane %v8009, 1
  %v8011 = vmax.f32 %v8009, %v8010
  %v8012 = vsel %vm7192, %v7028, -inf
  %v8013 = vrot.slane %v8012, 4
  %v8014 = vmax.f32 %v8012, %v8013
  %v8015 = vrot.slane %v8014, 2
  %v8016 = vmax.f32 %v8014, %v8015
  %v8017 = vrot.slane %v8016, 1
  %v8018 = vmax.f32 %v8016, %v8017
  %v8019 = vsel %vm7192, %v7027, -inf
  %v8020 = vrot.slane %v8019, 4
  %v8021 = vmax.f32 %v8019, %v8020
  %v8022 = vrot.slane %v8021, 2
  %v8023 = vmax.f32 %v8021, %v8022
  %v8024 = vrot.slane %v8023, 1
  %v8025 = vmax.f32 %v8023, %v8024
  %v8026 = vsel %vm7192, %v7029, -inf
  %v8027 = vrot.slane %v8026, 4
  %v8028 = vmax.f32 %v8026, %v8027
  %v8029 = vrot.slane %v8028, 2
  %v8030 = vmax.f32 %v8028, %v8029
  %v8031 = vrot.slane %v8030, 1
  %v8032 = vmax.f32 %v8030, %v8031
  %v8033 = vsel %vm7192, %v7037, -inf
  %v8034 = vrot.slane %v8033, 4
  %v8035 = vmax.f32 %v8033, %v8034
  %v8036 = vrot.slane %v8035, 2
  %v8037 = vmax.f32 %v8035, %v8036
  %v8038 = vrot.slane %v8037, 1
  %v8039 = vmax.f32 %v8037, %v8038
  %v8040 = vsel %vm7192, %v7045, -inf
  %v8041 = vrot.slane %v8040, 4
  %v8042 = vmax.f32 %v8040, %v8041
  %v8043 = vrot.slane %v8042, 2
  %v8044 = vmax.f32 %v8042, %v8043
  %v8045 = vrot.slane %v8044, 1
  %v8046 = vmax.f32 %v8044, %v8045
  %v8047 = vsel %vm7192, %v7044, -inf
  %v8048 = vrot.slane %v8047, 4
  %v8049 = vmax.f32 %v8047, %v8048
  %v8050 = vrot.slane %v8049, 2
  %v8051 = vmax.f32 %v8049, %v8050
  %v8052 = vrot.slane %v8051, 1
  %v8053 = vmax.f32 %v8051, %v8052
  %v8054 = vsel %vm7192, %v7046, -inf
  %v8055 = vrot.slane %v8054, 4
  %v8056 = vmax.f32 %v8054, %v8055
  %v8057 = vrot.slane %v8056, 2
  %v8058 = vmax.f32 %v8056, %v8057
  %v8059 = vrot.slane %v8058, 1
  %v8060 = vmax.f32 %v8058, %v8059
  %v8061 = vsel %vm7192, %v7054, -inf
  %v8062 = vrot.slane %v8061, 4
  %v8063 = vmax.f32 %v8061, %v8062
  %v8064 = vrot.slane %v8063, 2
  %v8065 = vmax.f32 %v8063, %v8064
  %v8066 = vrot.slane %v8065, 1
  %v8067 = vmax.f32 %v8065, %v8066
  %v8068 = vsel %vm7192, %v7062, -inf
  %v8069 = vrot.slane %v8068, 4
  %v8070 = vmax.f32 %v8068, %v8069
  %v8071 = vrot.slane %v8070, 2
  %v8072 = vmax.f32 %v8070, %v8071
  %v8073 = vrot.slane %v8072, 1
  %v8074 = vmax.f32 %v8072, %v8073
  %v8075 = vsel %vm7192, %v7061, -inf
  %v8076 = vrot.slane %v8075, 4
  %v8077 = vmax.f32 %v8075, %v8076
  %v8078 = vrot.slane %v8077, 2
  %v8079 = vmax.f32 %v8077, %v8078
  %v8080 = vrot.slane %v8079, 1
  %v8081 = vmax.f32 %v8079, %v8080
  %v8082 = vsel %vm7192, %v7063, -inf
  %v8083 = vrot.slane %v8082, 4
  %v8084 = vmax.f32 %v8082, %v8083
  %v8085 = vrot.slane %v8084, 2
  %v8086 = vmax.f32 %v8084, %v8085
  %v8087 = vrot.slane %v8086, 1
  %v8088 = vmax.f32 %v8086, %v8087
  %vm8089 = vcmask 130048
  %8090 = vst.msk [vmem:[#allocation2] sm:$0xff] %vm8089, 0.0
  %8091 = vst.msk [vmem:[#allocation2 + $0x8] sm:$0x3] %vm7192, 0.0
  %8092 = vst.msk [vmem:[#allocation2 + $0x10] sm:$0xff] %vm8089, 0.0
  %8093 = vst.msk [vmem:[#allocation2 + $0x18] sm:$0x3] %vm7192, 0.0
  %8094 = vst.msk [vmem:[#allocation2 + $0x20] sm:$0xff] %vm8089, 0.0
  %8095 = vst.msk [vmem:[#allocation2 + $0x28] sm:$0x3] %vm7192, 0.0
  %8096 = vst.msk [vmem:[#allocation2 + $0x30] sm:$0xff] %vm8089, 0.0
  %8097 = vst.msk [vmem:[#allocation2 + $0x38] sm:$0x3] %vm7192, 0.0
  %8098 = vst.msk [vmem:[#allocation2 + $0x40] sm:$0xff] %vm8089, 0.0
  %8099 = vst.msk [vmem:[#allocation2 + $0x48] sm:$0x3] %vm7192, 0.0
  %8100 = vst.msk [vmem:[#allocation2 + $0x50] sm:$0xff] %vm8089, 0.0
  %8101 = vst.msk [vmem:[#allocation2 + $0x58] sm:$0x3] %vm7192, 0.0
  %8102 = vst.msk [vmem:[#allocation2 + $0x60] sm:$0xff] %vm8089, 0.0
  %8103 = vst.msk [vmem:[#allocation2 + $0x68] sm:$0x3] %vm7192, 0.0
  %8104 = vst.msk [vmem:[#allocation2 + $0x70] sm:$0xff] %vm8089, 0.0
  %8105 = vst.msk [vmem:[#allocation2 + $0x78] sm:$0x3] %vm7192, 0.0
  %8106 = vst.msk [vmem:[#allocation2 + $0x80] sm:$0xff] %vm8089, 0.0
  %8107 = vst.msk [vmem:[#allocation2 + $0x88] sm:$0x3] %vm7192, 0.0
  %8108 = vst.msk [vmem:[#allocation2 + $0x90] sm:$0xff] %vm8089, 0.0
  %8109 = vst.msk [vmem:[#allocation2 + $0x98] sm:$0x3] %vm7192, 0.0
  %8110 = vst.msk [vmem:[#allocation2 + $0xa0] sm:$0xff] %vm8089, 0.0
  %8111 = vst.msk [vmem:[#allocation2 + $0xa8] sm:$0x3] %vm7192, 0.0
  %8112 = vst.msk [vmem:[#allocation2 + $0xb0] sm:$0xff] %vm8089, 0.0
  %8113 = vst.msk [vmem:[#allocation2 + $0xb8] sm:$0x3] %vm7192, 0.0
  %8114 = vst.msk [vmem:[#allocation2 + $0xc0] sm:$0xff] %vm8089, 0.0
  %8115 = vst.msk [vmem:[#allocation2 + $0xc8] sm:$0x3] %vm7192, 0.0
  %8116 = vst.msk [vmem:[#allocation2 + $0xd0] sm:$0xff] %vm8089, 0.0
  %8117 = vst.msk [vmem:[#allocation2 + $0xd8] sm:$0x3] %vm7192, 0.0
  %8118 = vst.msk [vmem:[#allocation2 + $0xe0] sm:$0xff] %vm8089, 0.0
  %8119 = vst.msk [vmem:[#allocation2 + $0xe8] sm:$0x3] %vm7192, 0.0
  %8120 = vst.msk [vmem:[#allocation2 + $0xf0] sm:$0xff] %vm8089, 0.0
  %8121 = vst.msk [vmem:[#allocation2 + $0xf8] sm:$0x3] %vm7192, 0.0
  %8122 = vst.msk [vmem:[#allocation2 + $0x100] sm:$0xff] %vm8089, 0.0
  %8123 = vst.msk [vmem:[#allocation2 + $0x108] sm:$0x3] %vm7192, 0.0
  %8124 = vst.msk [vmem:[#allocation2 + $0x110] sm:$0xff] %vm8089, 0.0
  %8125 = vst.msk [vmem:[#allocation2 + $0x118] sm:$0x3] %vm7192, 0.0
  %8126 = vst.msk [vmem:[#allocation2 + $0x120] sm:$0xff] %vm8089, 0.0
  %8127 = vst.msk [vmem:[#allocation2 + $0x128] sm:$0x3] %vm7192, 0.0
  %8128 = vst.msk [vmem:[#allocation2 + $0x130] sm:$0xff] %vm8089, 0.0
  %8129 = vst.msk [vmem:[#allocation2 + $0x138] sm:$0x3] %vm7192, 0.0
  %vm8258 = vcmask 1041409
  %v8259 = vsel %vm8258, %v7206, %v7199
  %vm8260 = vcmask 1042434
  %v8261 = vsel %vm8260, %v7213, %v8259
  %vm8262 = vcmask 1043459
  %v8263 = vsel %vm8262, %v7220, %v8261
  %vm8264 = vcmask 1044484
  %v8265 = vsel %vm8264, %v7227, %v8263
  %vm8266 = vcmask 1045509
  %v8267 = vsel %vm8266, %v7234, %v8265
  %vm8268 = vcmask 1046534
  %v8269 = vsel %vm8268, %v7241, %v8267
  %vm8270 = vcmask 1047559
  %v8271 = vsel %vm8270, %v7248, %v8269
  %v8272 = vsel %vm8258, %v7262, %v7255
  %v8273 = vsel %vm8260, %v7269, %v8272
  %v8274 = vsel %vm8262, %v7276, %v8273
  %v8275 = vsel %vm8264, %v7283, %v8274
  %v8276 = vsel %vm8266, %v7290, %v8275
  %v8277 = vsel %vm8268, %v7297, %v8276
  %v8278 = vsel %vm8270, %v7304, %v8277
  %v8279 = vsel %vm8258, %v7318, %v7311
  %v8280 = vsel %vm8260, %v7325, %v8279
  %v8281 = vsel %vm8262, %v7332, %v8280
  %v8282 = vsel %vm8264, %v7339, %v8281
  %v8283 = vsel %vm8266, %v7346, %v8282
  %v8284 = vsel %vm8268, %v7353, %v8283
  %v8285 = vsel %vm8270, %v7360, %v8284
  %v8286 = vsel %vm8258, %v7374, %v7367
  %v8287 = vsel %vm8260, %v7381, %v8286
  %v8288 = vsel %vm8262, %v7388, %v8287
  %v8289 = vsel %vm8264, %v7395, %v8288
  %v8290 = vsel %vm8266, %v7402, %v8289
  %v8291 = vsel %vm8268, %v7409, %v8290
  %v8292 = vsel %vm8270, %v7416, %v8291
  %v8293 = vsel %vm8258, %v7430, %v7423
  %v8294 = vsel %vm8260, %v7437, %v8293
  %v8295 = vsel %vm8262, %v7444, %v8294
  %v8296 = vsel %vm8264, %v7451, %v8295
  %v8297 = vsel %vm8266, %v7458, %v8296
  %v8298 = vsel %vm8268, %v7465, %v8297
  %v8299 = vsel %vm8270, %v7472, %v8298
  %v8300 = vsel %vm8258, %v7486, %v7479
  %v8301 = vsel %vm8260, %v7493, %v8300
  %v8302 = vsel %vm8262, %v7500, %v8301
  %v8303 = vsel %vm8264, %v7507, %v8302
  %v8304 = vsel %vm8266, %v7514, %v8303
  %v8305 = vsel %vm8268, %v7521, %v8304
  %v8306 = vsel %vm8270, %v7528, %v8305
  %v8307 = vsel %vm8258, %v7542, %v7535
  %v8308 = vsel %vm8260, %v7549, %v8307
  %v8309 = vsel %vm8262, %v7556, %v8308
  %v8310 = vsel %vm8264, %v7563, %v8309
  %v8311 = vsel %vm8266, %v7570, %v8310
  %v8312 = vsel %vm8268, %v7577, %v8311
  %v8313 = vsel %vm8270, %v7584, %v8312
  %v8314 = vsel %vm8258, %v7598, %v7591
  %v8315 = vsel %vm8260, %v7605, %v8314
  %v8316 = vsel %vm8262, %v7612, %v8315
  %v8317 = vsel %vm8264, %v7619, %v8316
  %v8318 = vsel %vm8266, %v7626, %v8317
  %v8319 = vsel %vm8268, %v7633, %v8318
  %v8320 = vsel %vm8270, %v7640, %v8319
  %v8321 = vsel %vm8258, %v7654, %v7647
  %v8322 = vsel %vm8260, %v7661, %v8321
  %v8323 = vsel %vm8262, %v7668, %v8322
  %v8324 = vsel %vm8264, %v7675, %v8323
  %v8325 = vsel %vm8266, %v7682, %v8324
  %v8326 = vsel %vm8268, %v7689, %v8325
  %v8327 = vsel %vm8270, %v7696, %v8326
  %v8328 = vsel %vm8258, %v7710, %v7703
  %v8329 = vsel %vm8260, %v7717, %v8328
  %v8330 = vsel %vm8262, %v7724, %v8329
  %v8331 = vsel %vm8264, %v7731, %v8330
  %v8332 = vsel %vm8266, %v7738, %v8331
  %v8333 = vsel %vm8268, %v7745, %v8332
  %v8334 = vsel %vm8270, %v7752, %v8333
  %v8335 = vsel %vm8258, %v7766, %v7759
  %v8336 = vsel %vm8260, %v7773, %v8335
  %v8337 = vsel %vm8262, %v7780, %v8336
  %v8338 = vsel %vm8264, %v7787, %v8337
  %v8339 = vsel %vm8266, %v7794, %v8338
  %v8340 = vsel %vm8268, %v7801, %v8339
  %v8341 = vsel %vm8270, %v7808, %v8340
  %v8342 = vsel %vm8258, %v7822, %v7815
  %v8343 = vsel %vm8260, %v7829, %v8342
  %v8344 = vsel %vm8262, %v7836, %v8343
  %v8345 = vsel %vm8264, %v7843, %v8344
  %v8346 = vsel %vm8266, %v7850, %v8345
  %v8347 = vsel %vm8268, %v7857, %v8346
  %v8348 = vsel %vm8270, %v7864, %v8347
  %v8349 = vsel %vm8258, %v7878, %v7871
  %v8350 = vsel %vm8260, %v7885, %v8349
  %v8351 = vsel %vm8262, %v7892, %v8350
  %v8352 = vsel %vm8264, %v7899, %v8351
  %v8353 = vsel %vm8266, %v7906, %v8352
  %v8354 = vsel %vm8268, %v7913, %v8353
  %v8355 = vsel %vm8270, %v7920, %v8354
  %v8356 = vsel %vm8258, %v7934, %v7927
  %v8357 = vsel %vm8260, %v7941, %v8356
  %v8358 = vsel %vm8262, %v7948, %v8357
  %v8359 = vsel %vm8264, %v7955, %v8358
  %v8360 = vsel %vm8266, %v7962, %v8359
  %v8361 = vsel %vm8268, %v7969, %v8360
  %v8362 = vsel %vm8270, %v7976, %v8361
  %v8363 = vsel %vm8258, %v7990, %v7983
  %v8364 = vsel %vm8260, %v7997, %v8363
  %v8365 = vsel %vm8262, %v8004, %v8364
  %v8366 = vsel %vm8264, %v8011, %v8365
  %v8367 = vsel %vm8266, %v8018, %v8366
  %v8368 = vsel %vm8268, %v8025, %v8367
  %v8369 = vsel %vm8270, %v8032, %v8368
  %v8370 = vsel %vm8258, %v8046, %v8039
  %v8371 = vsel %vm8260, %v8053, %v8370
  %v8372 = vsel %vm8262, %v8060, %v8371
  %v8373 = vsel %vm8264, %v8067, %v8372
  %v8374 = vsel %vm8266, %v8074, %v8373
  %v8375 = vsel %vm8268, %v8081, %v8374
  %v8376 = vsel %vm8270, %v8088, %v8375
  %s8393 = scalar_lea.vmem [#allocation2], 16
  %8394 = vst.msk [vmem:[%s8393 + $0x1] sm:$0xff] %vm8089, %v8271
  %8395 = vst.msk [vmem:[%s8393 + $0x11] sm:$0xff] %vm8089, %v8278
  %8396 = vst.msk [vmem:[%s8393 + $0x21] sm:$0xff] %vm8089, %v8285
  %8397 = vst.msk [vmem:[%s8393 + $0x31] sm:$0xff] %vm8089, %v8292
  %8398 = vst.msk [vmem:[%s8393 + $0x41] sm:$0xff] %vm8089, %v8299
  %8399 = vst.msk [vmem:[%s8393 + $0x51] sm:$0xff] %vm8089, %v8306
  %8400 = vst.msk [vmem:[%s8393 + $0x61] sm:$0xff] %vm8089, %v8313
  %8401 = vst.msk [vmem:[%s8393 + $0x71] sm:$0xff] %vm8089, %v8320
  %8402 = vst.msk [vmem:[%s8393 + $0xa1] sm:$0xff] %vm8089, %v8327
  %8403 = vst.msk [vmem:[%s8393 + $0xb1] sm:$0xff] %vm8089, %v8334
  %8404 = vst.msk [vmem:[%s8393 + $0xc1] sm:$0xff] %vm8089, %v8341
  %8405 = vst.msk [vmem:[%s8393 + $0xd1] sm:$0xff] %vm8089, %v8348
  %8406 = vst.msk [vmem:[%s8393 + $0xe1] sm:$0xff] %vm8089, %v8355
  %8407 = vst.msk [vmem:[%s8393 + $0xf1] sm:$0xff] %vm8089, %v8362
  %8408 = vst.msk [vmem:[%s8393 + $0x101] sm:$0xff] %vm8089, %v8369
  %8409 = vst.msk [vmem:[%s8393 + $0x111] sm:$0xff] %vm8089, %v8376
  %v8410 = vld [vmem:[#allocation2] sm:$0xff]
  %v8411 = vld [vmem:[#allocation2 + $0x10] sm:$0xff]
  %v8412 = vld [vmem:[#allocation2 + $0x20] sm:$0xff]
  %v8413 = vld [vmem:[#allocation2 + $0x30] sm:$0xff]
  %v8414 = vld [vmem:[#allocation2 + $0x40] sm:$0xff]
  %v8415 = vld [vmem:[#allocation2 + $0x50] sm:$0xff]
  %v8416 = vld [vmem:[#allocation2 + $0x60] sm:$0xff]
  %v8417 = vld [vmem:[#allocation2 + $0x70] sm:$0xff]
  %v8418 = vld [vmem:[#allocation2 + $0xa0] sm:$0xff]
  %v8419 = vld [vmem:[#allocation2 + $0xb0] sm:$0xff]
  %v8420 = vld [vmem:[#allocation2 + $0xc0] sm:$0xff]
  %v8421 = vld [vmem:[#allocation2 + $0xd0] sm:$0xff]
  %v8422 = vld [vmem:[#allocation2 + $0xe0] sm:$0xff]
  %v8423 = vld [vmem:[#allocation2 + $0xf0] sm:$0xff]
  %v8424 = vld [vmem:[#allocation2 + $0x100] sm:$0xff]
  %v8425 = vld [vmem:[#allocation2 + $0x110] sm:$0xff]
  %v8426 = vld [vmem:[%s4] sm:$0xff]
  %v8427 = vld [vmem:[%s4 + $0x8] sm:$0xff]
  %v8428 = vld [vmem:[#allocation2 + $0x1] sm:$0xff]
  %v8429 = vld [vmem:[#allocation2 + $0x11] sm:$0xff]
  %v8430 = vld [vmem:[#allocation2 + $0x21] sm:$0xff]
  %v8431 = vld [vmem:[#allocation2 + $0x31] sm:$0xff]
  %v8432 = vld [vmem:[#allocation2 + $0x41] sm:$0xff]
  %v8433 = vld [vmem:[#allocation2 + $0x51] sm:$0xff]
  %v8434 = vld [vmem:[#allocation2 + $0x61] sm:$0xff]
  %v8435 = vld [vmem:[#allocation2 + $0x71] sm:$0xff]
  %v8436 = vld [vmem:[#allocation2 + $0xa1] sm:$0xff]
  %v8437 = vld [vmem:[#allocation2 + $0xb1] sm:$0xff]
  %v8438 = vld [vmem:[#allocation2 + $0xc1] sm:$0xff]
  %v8439 = vld [vmem:[#allocation2 + $0xd1] sm:$0xff]
  %v8440 = vld [vmem:[#allocation2 + $0xe1] sm:$0xff]
  %v8441 = vld [vmem:[#allocation2 + $0xf1] sm:$0xff]
  %v8442 = vld [vmem:[#allocation2 + $0x101] sm:$0xff]
  %v8443 = vld [vmem:[#allocation2 + $0x111] sm:$0xff]
  %s8444 = scalar_lea.vmem %s4, 16
  %v8445 = vld [vmem:[%s8444] sm:$0xff]
  %v8446 = vld [vmem:[%s8444 + $0x8] sm:$0xff]
  %v8448 = vsel %vm8089, %v8428, 0
  %v8451 = vsel %vm8089, %v8429, 0
  %v8454 = vsel %vm8089, %v8430, 0
  %v8457 = vsel %vm8089, %v8431, 0
  %v8460 = vsel %vm8089, %v8432, 0
  %v8463 = vsel %vm8089, %v8433, 0
  %v8466 = vsel %vm8089, %v8434, 0
  %v8469 = vsel %vm8089, %v8435, 0
  %v8472 = vsel %vm8089, %v8436, 0
  %v8475 = vsel %vm8089, %v8437, 0
  %v8478 = vsel %vm8089, %v8438, 0
  %v8481 = vsel %vm8089, %v8439, 0
  %v8484 = vsel %vm8089, %v8440, 0
  %v8487 = vsel %vm8089, %v8441, 0
  %v8490 = vsel %vm8089, %v8442, 0
  %v8493 = vsel %vm8089, %v8443, 0
  %8495 = vmatprep.subr.mxu0 0.0
  %8496 = vmatpush1.msra.mxu0 %v8445
  %8497 = vmatprep.subr.mxu0 0.0
  %8498 = vmatpush1.msra.mxu0 %v8446
  %8499 = vmatprep.subr.mxu0 0.0
  %8500 = vmatpush1.msra.mxu0 0.0
  %8501 = vmatprep.subr.mxu0 0.0
  %8502 = vmatpush1.msra.mxu0 0.0
  %8503 = vmatprep.subr.mxu0 0.0
  %8504 = vmatpush1.msra.mxu0 0.0
  %8505 = vmatprep.subr.mxu0 0.0
  %8506 = vmatpush1.msra.mxu0 0.0
  %8507 = vmatprep.subr.mxu0 0.0
  %8508 = vmatpush1.msra.mxu0 0.0
  %8509 = vmatprep.subr.mxu0 0.0
  %8510 = vmatpush1.msra.mxu0 0.0
  %8511 = vmatprep.subr.mxu0 0.0
  %8512 = vmatpush1.msra.mxu0 0.0
  %8513 = vmatprep.subr.mxu0 0.0
  %8514 = vmatpush1.msra.mxu0 0.0
  %8515 = vmatprep.subr.mxu0 0.0
  %8516 = vmatpush1.msra.mxu0 0.0
  %8517 = vmatprep.subr.mxu0 0.0
  %8518 = vmatpush1.msra.mxu0 0.0
  %8519 = vmatprep.subr.mxu0 0.0
  %8520 = vmatpush1.msra.mxu0 0.0
  %8521 = vmatprep.subr.mxu0 0.0
  %8522 = vmatpush1.msra.mxu0 0.0
  %8523 = vmatprep.subr.mxu0 0.0
  %8524 = vmatpush1.msra.mxu0 0.0
  %8525 = vmatprep.subr.mxu0 0.0
  %8526 = vmatpush1.msra.mxu0 0.0
  %8527 = vmatprep.subr.mxu0 0.0
  %8528 = vmatpush1.msra.mxu0 0.0
  %8529 = vmatprep.subr.mxu0 0.0
  %8530 = vmatpush1.msra.mxu0 0.0
  %8531 = vmatprep.subr.mxu0 0.0
  %8532 = vmatpush1.msra.mxu0 0.0
  %8533 = vmatprep.subr.mxu0 0.0
  %8534 = vmatpush1.msra.mxu0 0.0
  %8535 = vmatprep.subr.mxu0 0.0
  %8536 = vmatpush1.msra.mxu0 0.0
  %8537 = vmatprep.subr.mxu0 0.0
  %8538 = vmatpush1.msra.mxu0 0.0
  %8539 = vmatprep.subr.mxu0 0.0
  %8540 = vmatpush1.msra.mxu0 0.0
  %8541 = vmatprep.subr.mxu0 0.0
  %8542 = vmatpush1.msra.mxu0 0.0
  %8543 = vmatprep.subr.mxu0 0.0
  %8544 = vmatpush1.msra.mxu0 0.0
  %8545 = vmatprep.subr.mxu0 0.0
  %8546 = vmatpush1.msra.mxu0 0.0
  %8547 = vmatprep.subr.mxu0 0.0
  %8548 = vmatpush1.msra.mxu0 0.0
  %8549 = vmatprep.subr.mxu0 0.0
  %8550 = vmatpush1.msra.mxu0 0.0
  %8551 = vmatprep.subr.mxu0 0.0
  %8552 = vmatpush1.msra.mxu0 0.0
  %8553 = vmatprep.subr.mxu0 0.0
  %8554 = vmatpush1.msra.mxu0 0.0
  %8555 = vmatprep.subr.mxu0 0.0
  %8556 = vmatpush1.msra.mxu0 0.0
  %8557 = vmatprep.subr.mxu0 0.0
  %8558 = vmatpush1.msra.mxu0 0.0
  %8559 = vmatprep.mubr.f32.mxu0 0.0
  %8560 = vmatmul.mubr.f32.gmra.mrb[0].mxu0 %v8448
  %v8561 = vpop.f32.mrb[0].mxu0
  %v8562 = vadd.f32 0.0, %v8561
  %v8563 = vpop.f32.mrb[0].mxu0
  %8564 = vmatprep.mubr.f32.mxu0 0.0
  %8565 = vmatmul.mubr.f32.gmra.mrb[0].mxu0 %v8451
  %v8566 = vpop.f32.mrb[0].mxu0
  %v8567 = vadd.f32 0.0, %v8566
  %v8568 = vpop.f32.mrb[0].mxu0
  %8569 = vmatprep.mubr.f32.mxu0 0.0
  %8570 = vmatmul.mubr.f32.gmra.mrb[0].mxu0 %v8454
  %v8571 = vpop.f32.mrb[0].mxu0
  %v8572 = vadd.f32 0.0, %v8571
  %v8573 = vpop.f32.mrb[0].mxu0
  %8574 = vmatprep.mubr.f32.mxu0 0.0
  %8575 = vmatmul.mubr.f32.gmra.mrb[0].mxu0 %v8457
  %v8576 = vpop.f32.mrb[0].mxu0
  %v8577 = vadd.f32 0.0, %v8576
  %v8578 = vpop.f32.mrb[0].mxu0
  %8579 = vmatprep.mubr.f32.mxu0 0.0
  %8580 = vmatmul.mubr.f32.gmra.mrb[0].mxu0 %v8460
  %v8581 = vpop.f32.mrb[0].mxu0
  %v8582 = vadd.f32 0.0, %v8581
  %v8583 = vpop.f32.mrb[0].mxu0
  %8584 = vmatprep.mubr.f32.mxu0 0.0
  %8585 = vmatmul.mubr.f32.gmra.mrb[0].mxu0 %v8463
  %v8586 = vpop.f32.mrb[0].mxu0
  %v8587 = vadd.f32 0.0, %v8586
  %v8588 = vpop.f32.mrb[0].mxu0
  %8589 = vmatprep.mubr.f32.mxu0 0.0
  %8590 = vmatmul.mubr.f32.gmra.mrb[0].mxu0 %v8466
  %v8591 = vpop.f32.mrb[0].mxu0
  %v8592 = vadd.f32 0.0, %v8591
  %v8593 = vpop.f32.mrb[0].mxu0
  %8594 = vmatprep.mubr.f32.mxu0 0.0
  %8595 = vmatmul.mubr.f32.gmra.mrb[0].mxu0 %v8469
  %v8596 = vpop.f32.mrb[0].mxu0
  %v8597 = vadd.f32 0.0, %v8596
  %v8598 = vpop.f32.mrb[0].mxu0
  %8599 = vmatprep.mubr.f32.mxu0 0.0
  %8600 = vmatmul.mubr.f32.gmra.mrb[0].mxu0 %v8472
  %v8601 = vpop.f32.mrb[0].mxu0
  %v8602 = vadd.f32 0.0, %v8601
  %v8603 = vpop.f32.mrb[0].mxu0
  %8604 = vmatprep.mubr.f32.mxu0 0.0
  %8605 = vmatmul.mubr.f32.gmra.mrb[0].mxu0 %v8475
  %v8606 = vpop.f32.mrb[0].mxu0
  %v8607 = vadd.f32 0.0, %v8606
  %v8608 = vpop.f32.mrb[0].mxu0
  %8609 = vmatprep.mubr.f32.mxu0 0.0
  %8610 = vmatmul.mubr.f32.gmra.mrb[0].mxu0 %v8478
  %v8611 = vpop.f32.mrb[0].mxu0
  %v8612 = vadd.f32 0.0, %v8611
  %v8613 = vpop.f32.mrb[0].mxu0
  %8614 = vmatprep.mubr.f32.mxu0 0.0
  %8615 = vmatmul.mubr.f32.gmra.mrb[0].mxu0 %v8481
  %v8616 = vpop.f32.mrb[0].mxu0
  %v8617 = vadd.f32 0.0, %v8616
  %v8618 = vpop.f32.mrb[0].mxu0
  %8619 = vmatprep.mubr.f32.mxu0 0.0
  %8620 = vmatmul.mubr.f32.gmra.mrb[0].mxu0 %v8484
  %v8621 = vpop.f32.mrb[0].mxu0
  %v8622 = vadd.f32 0.0, %v8621
  %v8623 = vpop.f32.mrb[0].mxu0
  %8624 = vmatprep.mubr.f32.mxu0 0.0
  %8625 = vmatmul.mubr.f32.gmra.mrb[0].mxu0 %v8487
  %v8626 = vpop.f32.mrb[0].mxu0
  %v8627 = vadd.f32 0.0, %v8626
  %v8628 = vpop.f32.mrb[0].mxu0
  %8629 = vmatprep.mubr.f32.mxu0 0.0
  %8630 = vmatmul.mubr.f32.gmra.mrb[0].mxu0 %v8490
  %v8631 = vpop.f32.mrb[0].mxu0
  %v8632 = vadd.f32 0.0, %v8631
  %v8633 = vpop.f32.mrb[0].mxu0
  %8634 = vmatprep.mubr.f32.mxu0 0.0
  %8635 = vmatmul.mubr.f32.gmra.mrb[0].mxu0 %v8493
  %v8636 = vpop.f32.mrb[0].mxu0
  %v8637 = vadd.f32 0.0, %v8636
  %v8638 = vpop.f32.mrb[0].mxu0
  %8639 = vdwg.mxu0
  %v8641 = vsel %vm8089, %v8410, 0
  %v8644 = vsel %vm8089, %v8411, 0
  %v8647 = vsel %vm8089, %v8412, 0
  %v8650 = vsel %vm8089, %v8413, 0
  %v8653 = vsel %vm8089, %v8414, 0
  %v8656 = vsel %vm8089, %v8415, 0
  %v8659 = vsel %vm8089, %v8416, 0
  %v8662 = vsel %vm8089, %v8417, 0
  %v8665 = vsel %vm8089, %v8418, 0
  %v8668 = vsel %vm8089, %v8419, 0
  %v8671 = vsel %vm8089, %v8420, 0
  %v8674 = vsel %vm8089, %v8421, 0
  %v8677 = vsel %vm8089, %v8422, 0
  %v8680 = vsel %vm8089, %v8423, 0
  %v8683 = vsel %vm8089, %v8424, 0
  %v8686 = vsel %vm8089, %v8425, 0
  %8688 = vmatprep.subr.mxu0 0.0
  %8689 = vmatpush1.msra.mxu0 %v8426
  %8690 = vmatprep.subr.mxu0 0.0
  %8691 = vmatpush1.msra.mxu0 %v8427
  %8692 = vmatprep.subr.mxu0 0.0
  %8693 = vmatpush1.msra.mxu0 0.0
  %8694 = vmatprep.subr.mxu0 0.0
  %8695 = vmatpush1.msra.mxu0 0.0
  %8696 = vmatprep.subr.mxu0 0.0
  %8697 = vmatpush1.msra.mxu0 0.0
  %8698 = vmatprep.subr.mxu0 0.0
  %8699 = vmatpush1.msra.mxu0 0.0
  %8700 = vmatprep.subr.mxu0 0.0
  %8701 = vmatpush1.msra.mxu0 0.0
  %8702 = vmatprep.subr.mxu0 0.0
  %8703 = vmatpush1.msra.mxu0 0.0
  %8704 = vmatprep.subr.mxu0 0.0
  %8705 = vmatpush1.msra.mxu0 0.0
  %8706 = vmatprep.subr.mxu0 0.0
  %8707 = vmatpush1.msra.mxu0 0.0
  %8708 = vmatprep.subr.mxu0 0.0
  %8709 = vmatpush1.msra.mxu0 0.0
  %8710 = vmatprep.subr.mxu0 0.0
  %8711 = vmatpush1.msra.mxu0 0.0
  %8712 = vmatprep.subr.mxu0 0.0
  %8713 = vmatpush1.msra.mxu0 0.0
  %8714 = vmatprep.subr.mxu0 0.0
  %8715 = vmatpush1.msra.mxu0 0.0
  %8716 = vmatprep.subr.mxu0 0.0
  %8717 = vmatpush1.msra.mxu0 0.0
  %8718 = vmatprep.subr.mxu0 0.0
  %8719 = vmatpush1.msra.mxu0 0.0
  %8720 = vmatprep.subr.mxu0 0.0
  %8721 = vmatpush1.msra.mxu0 0.0
  %8722 = vmatprep.subr.mxu0 0.0
  %8723 = vmatpush1.msra.mxu0 0.0
  %8724 = vmatprep.subr.mxu0 0.0
  %8725 = vmatpush1.msra.mxu0 0.0
  %8726 = vmatprep.subr.mxu0 0.0
  %8727 = vmatpush1.msra.mxu0 0.0
  %8728 = vmatprep.subr.mxu0 0.0
  %8729 = vmatpush1.msra.mxu0 0.0
  %8730 = vmatprep.subr.mxu0 0.0
  %8731 = vmatpush1.msra.mxu0 0.0
  %8732 = vmatprep.subr.mxu0 0.0
  %8733 = vmatpush1.msra.mxu0 0.0
  %8734 = vmatprep.subr.mxu0 0.0
  %8735 = vmatpush1.msra.mxu0 0.0
  %8736 = vmatprep.subr.mxu0 0.0
  %8737 = vmatpush1.msra.mxu0 0.0
  %8738 = vmatprep.subr.mxu0 0.0
  %8739 = vmatpush1.msra.mxu0 0.0
  %8740 = vmatprep.subr.mxu0 0.0
  %8741 = vmatpush1.msra.mxu0 0.0
  %8742 = vmatprep.subr.mxu0 0.0
  %8743 = vmatpush1.msra.mxu0 0.0
  %8744 = vmatprep.subr.mxu0 0.0
  %8745 = vmatpush1.msra.mxu0 0.0
  %8746 = vmatprep.subr.mxu0 0.0
  %8747 = vmatpush1.msra.mxu0 0.0
  %8748 = vmatprep.subr.mxu0 0.0
  %8749 = vmatpush1.msra.mxu0 0.0
  %8750 = vmatprep.subr.mxu0 0.0
  %8751 = vmatpush1.msra.mxu0 0.0
  %8752 = vmatprep.mubr.f32.mxu0 0.0
  %8753 = vmatmul.mubr.f32.gmra.mrb[0].mxu0 %v8641
  %v8754 = vpop.f32.mrb[0].mxu0
  %v8755 = vadd.f32 %v8562, %v8754
  %v8756 = vpop.f32.mrb[0].mxu0
  %8757 = vmatprep.mubr.f32.mxu0 0.0
  %8758 = vmatmul.mubr.f32.gmra.mrb[0].mxu0 %v8644
  %v8759 = vpop.f32.mrb[0].mxu0
  %v8760 = vadd.f32 %v8567, %v8759
  %v8761 = vpop.f32.mrb[0].mxu0
  %8762 = vmatprep.mubr.f32.mxu0 0.0
  %8763 = vmatmul.mubr.f32.gmra.mrb[0].mxu0 %v8647
  %v8764 = vpop.f32.mrb[0].mxu0
  %v8765 = vadd.f32 %v8572, %v8764
  %v8766 = vpop.f32.mrb[0].mxu0
  %8767 = vmatprep.mubr.f32.mxu0 0.0
  %8768 = vmatmul.mubr.f32.gmra.mrb[0].mxu0 %v8650
  %v8769 = vpop.f32.mrb[0].mxu0
  %v8770 = vadd.f32 %v8577, %v8769
  %v8771 = vpop.f32.mrb[0].mxu0
  %8772 = vmatprep.mubr.f32.mxu0 0.0
  %8773 = vmatmul.mubr.f32.gmra.mrb[0].mxu0 %v8653
  %v8774 = vpop.f32.mrb[0].mxu0
  %v8775 = vadd.f32 %v8582, %v8774
  %v8776 = vpop.f32.mrb[0].mxu0
  %8777 = vmatprep.mubr.f32.mxu0 0.0
  %8778 = vmatmul.mubr.f32.gmra.mrb[0].mxu0 %v8656
  %v8779 = vpop.f32.mrb[0].mxu0
  %v8780 = vadd.f32 %v8587, %v8779
  %v8781 = vpop.f32.mrb[0].mxu0
  %8782 = vmatprep.mubr.f32.mxu0 0.0
  %8783 = vmatmul.mubr.f32.gmra.mrb[0].mxu0 %v8659
  %v8784 = vpop.f32.mrb[0].mxu0
  %v8785 = vadd.f32 %v8592, %v8784
  %v8786 = vpop.f32.mrb[0].mxu0
  %8787 = vmatprep.mubr.f32.mxu0 0.0
  %8788 = vmatmul.mubr.f32.gmra.mrb[0].mxu0 %v8662
  %v8789 = vpop.f32.mrb[0].mxu0
  %v8790 = vadd.f32 %v8597, %v8789
  %v8791 = vpop.f32.mrb[0].mxu0
  %8792 = vmatprep.mubr.f32.mxu0 0.0
  %8793 = vmatmul.mubr.f32.gmra.mrb[0].mxu0 %v8665
  %v8794 = vpop.f32.mrb[0].mxu0
  %v8795 = vadd.f32 %v8602, %v8794
  %v8796 = vpop.f32.mrb[0].mxu0
  %8797 = vmatprep.mubr.f32.mxu0 0.0
  %8798 = vmatmul.mubr.f32.gmra.mrb[0].mxu0 %v8668
  %v8799 = vpop.f32.mrb[0].mxu0
  %v8800 = vadd.f32 %v8607, %v8799
  %v8801 = vpop.f32.mrb[0].mxu0
  %8802 = vmatprep.mubr.f32.mxu0 0.0
  %8803 = vmatmul.mubr.f32.gmra.mrb[0].mxu0 %v8671
  %v8804 = vpop.f32.mrb[0].mxu0
  %v8805 = vadd.f32 %v8612, %v8804
  %v8806 = vpop.f32.mrb[0].mxu0
  %8807 = vmatprep.mubr.f32.mxu0 0.0
  %8808 = vmatmul.mubr.f32.gmra.mrb[0].mxu0 %v8674
  %v8809 = vpop.f32.mrb[0].mxu0
  %v8810 = vadd.f32 %v8617, %v8809
  %v8811 = vpop.f32.mrb[0].mxu0
  %8812 = vmatprep.mubr.f32.mxu0 0.0
  %8813 = vmatmul.mubr.f32.gmra.mrb[0].mxu0 %v8677
  %v8814 = vpop.f32.mrb[0].mxu0
  %v8815 = vadd.f32 %v8622, %v8814
  %v8816 = vpop.f32.mrb[0].mxu0
  %8817 = vmatprep.mubr.f32.mxu0 0.0
  %8818 = vmatmul.mubr.f32.gmra.mrb[0].mxu0 %v8680
  %v8819 = vpop.f32.mrb[0].mxu0
  %v8820 = vadd.f32 %v8627, %v8819
  %v8821 = vpop.f32.mrb[0].mxu0
  %8822 = vmatprep.mubr.f32.mxu0 0.0
  %8823 = vmatmul.mubr.f32.gmra.mrb[0].mxu0 %v8683
  %v8824 = vpop.f32.mrb[0].mxu0
  %v8825 = vadd.f32 %v8632, %v8824
  %v8826 = vpop.f32.mrb[0].mxu0
  %8827 = vmatprep.mubr.f32.mxu0 0.0
  %8828 = vmatmul.mubr.f32.gmra.mrb[0].mxu0 %v8686
  %v8829 = vpop.f32.mrb[0].mxu0
  %v8830 = vadd.f32 %v8637, %v8829
  %v8831 = vpop.f32.mrb[0].mxu0
  %8832 = vdwg.mxu0
  %v8833 = vld [vmem:[#allocation2 + $0x2] sm:$0xff]
  %v8834 = vld [vmem:[#allocation2 + $0x12] sm:$0xff]
  %v8835 = vld [vmem:[#allocation2 + $0x22] sm:$0xff]
  %v8836 = vld [vmem:[#allocation2 + $0x32] sm:$0xff]
  %v8837 = vld [vmem:[#allocation2 + $0x42] sm:$0xff]
  %v8838 = vld [vmem:[#allocation2 + $0x52] sm:$0xff]
  %v8839 = vld [vmem:[#allocation2 + $0x62] sm:$0xff]
  %v8840 = vld [vmem:[#allocation2 + $0x72] sm:$0xff]
  %v8841 = vld [vmem:[#allocation2 + $0xa2] sm:$0xff]
  %v8842 = vld [vmem:[#allocation2 + $0xb2] sm:$0xff]
  %v8843 = vld [vmem:[#allocation2 + $0xc2] sm:$0xff]
  %v8844 = vld [vmem:[#allocation2 + $0xd2] sm:$0xff]
  %v8845 = vld [vmem:[#allocation2 + $0xe2] sm:$0xff]
  %v8846 = vld [vmem:[#allocation2 + $0xf2] sm:$0xff]
  %v8847 = vld [vmem:[#allocation2 + $0x102] sm:$0xff]
  %v8848 = vld [vmem:[#allocation2 + $0x112] sm:$0xff]
  %s8849 = scalar_lea.vmem %s4, 32
  %v8850 = vld [vmem:[%s8849] sm:$0xff]
  %v8851 = vld [vmem:[%s8849 + $0x8] sm:$0xff]
  %v8853 = vsel %vm8089, %v8833, 0
  %v8856 = vsel %vm8089, %v8834, 0
  %v8859 = vsel %vm8089, %v8835, 0
  %v8862 = vsel %vm8089, %v8836, 0
  %v8865 = vsel %vm8089, %v8837, 0
  %v8868 = vsel %vm8089, %v8838, 0
  %v8871 = vsel %vm8089, %v8839, 0
  %v8874 = vsel %vm8089, %v8840, 0
  %v8877 = vsel %vm8089, %v8841, 0
  %v8880 = vsel %vm8089, %v8842, 0
  %v8883 = vsel %vm8089, %v8843, 0
  %v8886 = vsel %vm8089, %v8844, 0
  %v8889 = vsel %vm8089, %v8845, 0
  %v8892 = vsel %vm8089, %v8846, 0
  %v8895 = vsel %vm8089, %v8847, 0
  %v8898 = vsel %vm8089, %v8848, 0
  %8900 = vmatprep.subr.mxu0 0.0
  %8901 = vmatpush1.msra.mxu0 %v8850
  %8902 = vmatprep.subr.mxu0 0.0
  %8903 = vmatpush1.msra.mxu0 %v8851
  %8904 = vmatprep.subr.mxu0 0.0
  %8905 = vmatpush1.msra.mxu0 0.0
  %8906 = vmatprep.subr.mxu0 0.0
  %8907 = vmatpush1.msra.mxu0 0.0
  %8908 = vmatprep.subr.mxu0 0.0
  %8909 = vmatpush1.msra.mxu0 0.0
  %8910 = vmatprep.subr.mxu0 0.0
  %8911 = vmatpush1.msra.mxu0 0.0
  %8912 = vmatprep.subr.mxu0 0.0
  %8913 = vmatpush1.msra.mxu0 0.0
  %8914 = vmatprep.subr.mxu0 0.0
  %8915 = vmatpush1.msra.mxu0 0.0
  %8916 = vmatprep.subr.mxu0 0.0
  %8917 = vmatpush1.msra.mxu0 0.0
  %8918 = vmatprep.subr.mxu0 0.0
  %8919 = vmatpush1.msra.mxu0 0.0
  %8920 = vmatprep.subr.mxu0 0.0
  %8921 = vmatpush1.msra.mxu0 0.0
  %8922 = vmatprep.subr.mxu0 0.0
  %8923 = vmatpush1.msra.mxu0 0.0
  %8924 = vmatprep.subr.mxu0 0.0
  %8925 = vmatpush1.msra.mxu0 0.0
  %8926 = vmatprep.subr.mxu0 0.0
  %8927 = vmatpush1.msra.mxu0 0.0
  %8928 = vmatprep.subr.mxu0 0.0
  %8929 = vmatpush1.msra.mxu0 0.0
  %8930 = vmatprep.subr.mxu0 0.0
  %8931 = vmatpush1.msra.mxu0 0.0
  %8932 = vmatprep.subr.mxu0 0.0
  %8933 = vmatpush1.msra.mxu0 0.0
  %8934 = vmatprep.subr.mxu0 0.0
  %8935 = vmatpush1.msra.mxu0 0.0
  %8936 = vmatprep.subr.mxu0 0.0
  %8937 = vmatpush1.msra.mxu0 0.0
  %8938 = vmatprep.subr.mxu0 0.0
  %8939 = vmatpush1.msra.mxu0 0.0
  %8940 = vmatprep.subr.mxu0 0.0
  %8941 = vmatpush1.msra.mxu0 0.0
  %8942 = vmatprep.subr.mxu0 0.0
  %8943 = vmatpush1.msra.mxu0 0.0
  %8944 = vmatprep.subr.mxu0 0.0
  %8945 = vmatpush1.msra.mxu0 0.0
  %8946 = vmatprep.subr.mxu0 0.0
  %8947 = vmatpush1.msra.mxu0 0.0
  %8948 = vmatprep.subr.mxu0 0.0
  %8949 = vmatpush1.msra.mxu0 0.0
  %8950 = vmatprep.subr.mxu0 0.0
  %8951 = vmatpush1.msra.mxu0 0.0
  %8952 = vmatprep.subr.mxu0 0.0
  %8953 = vmatpush1.msra.mxu0 0.0
  %8954 = vmatprep.subr.mxu0 0.0
  %8955 = vmatpush1.msra.mxu0 0.0
  %8956 = vmatprep.subr.mxu0 0.0
  %8957 = vmatpush1.msra.mxu0 0.0
  %8958 = vmatprep.subr.mxu0 0.0
  %8959 = vmatpush1.msra.mxu0 0.0
  %8960 = vmatprep.subr.mxu0 0.0
  %8961 = vmatpush1.msra.mxu0 0.0
  %8962 = vmatprep.subr.mxu0 0.0
  %8963 = vmatpush1.msra.mxu0 0.0
  %8964 = vmatprep.mubr.f32.mxu0 0.0
  %8965 = vmatmul.mubr.f32.gmra.mrb[0].mxu0 %v8853
  %v8966 = vpop.f32.mrb[0].mxu0
  %v8967 = vadd.f32 0.0, %v8966
  %v8968 = vpop.f32.mrb[0].mxu0
  %8969 = vmatprep.mubr.f32.mxu0 0.0
  %8970 = vmatmul.mubr.f32.gmra.mrb[0].mxu0 %v8856
  %v8971 = vpop.f32.mrb[0].mxu0
  %v8972 = vadd.f32 0.0, %v8971
  %v8973 = vpop.f32.mrb[0].mxu0
  %8974 = vmatprep.mubr.f32.mxu0 0.0
  %8975 = vmatmul.mubr.f32.gmra.mrb[0].mxu0 %v8859
  %v8976 = vpop.f32.mrb[0].mxu0
  %v8977 = vadd.f32 0.0, %v8976
  %v8978 = vpop.f32.mrb[0].mxu0
  %8979 = vmatprep.mubr.f32.mxu0 0.0
  %8980 = vmatmul.mubr.f32.gmra.mrb[0].mxu0 %v8862
  %v8981 = vpop.f32.mrb[0].mxu0
  %v8982 = vadd.f32 0.0, %v8981
  %v8983 = vpop.f32.mrb[0].mxu0
  %8984 = vmatprep.mubr.f32.mxu0 0.0
  %8985 = vmatmul.mubr.f32.gmra.mrb[0].mxu0 %v8865
  %v8986 = vpop.f32.mrb[0].mxu0
  %v8987 = vadd.f32 0.0, %v8986
  %v8988 = vpop.f32.mrb[0].mxu0
  %8989 = vmatprep.mubr.f32.mxu0 0.0
  %8990 = vmatmul.mubr.f32.gmra.mrb[0].mxu0 %v8868
  %v8991 = vpop.f32.mrb[0].mxu0
  %v8992 = vadd.f32 0.0, %v8991
  %v8993 = vpop.f32.mrb[0].mxu0
  %8994 = vmatprep.mubr.f32.mxu0 0.0
  %8995 = vmatmul.mubr.f32.gmra.mrb[0].mxu0 %v8871
  %v8996 = vpop.f32.mrb[0].mxu0
  %v8997 = vadd.f32 0.0, %v8996
  %v8998 = vpop.f32.mrb[0].mxu0
  %8999 = vmatprep.mubr.f32.mxu0 0.0
  %9000 = vmatmul.mubr.f32.gmra.mrb[0].mxu0 %v8874
  %v9001 = vpop.f32.mrb[0].mxu0
  %v9002 = vadd.f32 0.0, %v9001
  %v9003 = vpop.f32.mrb[0].mxu0
  %9004 = vmatprep.mubr.f32.mxu0 0.0
  %9005 = vmatmul.mubr.f32.gmra.mrb[0].mxu0 %v8877
  %v9006 = vpop.f32.mrb[0].mxu0
  %v9007 = vadd.f32 0.0, %v9006
  %v9008 = vpop.f32.mrb[0].mxu0
  %9009 = vmatprep.mubr.f32.mxu0 0.0
  %9010 = vmatmul.mubr.f32.gmra.mrb[0].mxu0 %v8880
  %v9011 = vpop.f32.mrb[0].mxu0
  %v9012 = vadd.f32 0.0, %v9011
  %v9013 = vpop.f32.mrb[0].mxu0
  %9014 = vmatprep.mubr.f32.mxu0 0.0
  %9015 = vmatmul.mubr.f32.gmra.mrb[0].mxu0 %v8883
  %v9016 = vpop.f32.mrb[0].mxu0
  %v9017 = vadd.f32 0.0, %v9016
  %v9018 = vpop.f32.mrb[0].mxu0
  %9019 = vmatprep.mubr.f32.mxu0 0.0
  %9020 = vmatmul.mubr.f32.gmra.mrb[0].mxu0 %v8886
  %v9021 = vpop.f32.mrb[0].mxu0
  %v9022 = vadd.f32 0.0, %v9021
  %v9023 = vpop.f32.mrb[0].mxu0
  %9024 = vmatprep.mubr.f32.mxu0 0.0
  %9025 = vmatmul.mubr.f32.gmra.mrb[0].mxu0 %v8889
  %v9026 = vpop.f32.mrb[0].mxu0
  %v9027 = vadd.f32 0.0, %v9026
  %v9028 = vpop.f32.mrb[0].mxu0
  %9029 = vmatprep.mubr.f32.mxu0 0.0
  %9030 = vmatmul.mubr.f32.gmra.mrb[0].mxu0 %v8892
  %v9031 = vpop.f32.mrb[0].mxu0
  %v9032 = vadd.f32 0.0, %v9031
  %v9033 = vpop.f32.mrb[0].mxu0
  %9034 = vmatprep.mubr.f32.mxu0 0.0
  %9035 = vmatmul.mubr.f32.gmra.mrb[0].mxu0 %v8895
  %v9036 = vpop.f32.mrb[0].mxu0
  %v9037 = vadd.f32 0.0, %v9036
  %v9038 = vpop.f32.mrb[0].mxu0
  %9039 = vmatprep.mubr.f32.mxu0 0.0
  %9040 = vmatmul.mubr.f32.gmra.mrb[0].mxu0 %v8898
  %v9041 = vpop.f32.mrb[0].mxu0
  %v9042 = vadd.f32 0.0, %v9041
  %v9043 = vpop.f32.mrb[0].mxu0
  %9044 = vdwg.mxu0
  %v9045 = vadd.f32 %v8755, %v8967
  %v9046 = vadd.f32 %v8760, %v8972
  %v9047 = vadd.f32 %v8765, %v8977
  %v9048 = vadd.f32 %v8770, %v8982
  %v9049 = vadd.f32 %v8775, %v8987
  %v9050 = vadd.f32 %v8780, %v8992
  %v9051 = vadd.f32 %v8785, %v8997
  %v9052 = vadd.f32 %v8790, %v9002
  %v9053 = vadd.f32 %v8795, %v9007
  %v9054 = vadd.f32 %v8800, %v9012
  %v9055 = vadd.f32 %v8805, %v9017
  %v9056 = vadd.f32 %v8810, %v9022
  %v9057 = vadd.f32 %v8815, %v9027
  %v9058 = vadd.f32 %v8820, %v9032
  %v9059 = vadd.f32 %v8825, %v9037
  %v9060 = vadd.f32 %v8830, %v9042
  %v9061 = vld [vmem:[%s8393] sm:$0xff]
  %v9062 = vld [vmem:[%s8393 + $0x10] sm:$0xff]
  %v9063 = vld [vmem:[%s8393 + $0x20] sm:$0xff]
  %v9064 = vld [vmem:[%s8393 + $0x30] sm:$0xff]
  %v9065 = vld [vmem:[%s8393 + $0x40] sm:$0xff]
  %v9066 = vld [vmem:[%s8393 + $0x50] sm:$0xff]
  %v9067 = vld [vmem:[%s8393 + $0x60] sm:$0xff]
  %v9068 = vld [vmem:[%s8393 + $0x70] sm:$0xff]
  %v9069 = vld [vmem:[%s8393 + $0xa0] sm:$0xff]
  %v9070 = vld [vmem:[%s8393 + $0xb0] sm:$0xff]
  %v9071 = vld [vmem:[%s8393 + $0xc0] sm:$0xff]
  %v9072 = vld [vmem:[%s8393 + $0xd0] sm:$0xff]
  %v9073 = vld [vmem:[%s8393 + $0xe0] sm:$0xff]
  %v9074 = vld [vmem:[%s8393 + $0xf0] sm:$0xff]
  %v9075 = vld [vmem:[%s8393 + $0x100] sm:$0xff]
  %v9076 = vld [vmem:[%s8393 + $0x110] sm:$0xff]
  %s9077 = scalar_lea.vmem %s4, 48
  %v9078 = vld [vmem:[%s9077] sm:$0xff]
  %v9079 = vld [vmem:[%s9077 + $0x8] sm:$0xff]
  %v9081 = vsel %vm8089, %v9061, 0
  %v9084 = vsel %vm8089, %v9062, 0
  %v9087 = vsel %vm8089, %v9063, 0
  %v9090 = vsel %vm8089, %v9064, 0
  %v9093 = vsel %vm8089, %v9065, 0
  %v9096 = vsel %vm8089, %v9066, 0
  %v9099 = vsel %vm8089, %v9067, 0
  %v9102 = vsel %vm8089, %v9068, 0
  %v9105 = vsel %vm8089, %v9069, 0
  %v9108 = vsel %vm8089, %v9070, 0
  %v9111 = vsel %vm8089, %v9071, 0
  %v9114 = vsel %vm8089, %v9072, 0
  %v9117 = vsel %vm8089, %v9073, 0
  %v9120 = vsel %vm8089, %v9074, 0
  %v9123 = vsel %vm8089, %v9075, 0
  %v9126 = vsel %vm8089, %v9076, 0
  %9128 = vmatprep.subr.mxu0 0.0
  %9129 = vmatpush1.msra.mxu0 %v9078
  %9130 = vmatprep.subr.mxu0 0.0
  %9131 = vmatpush1.msra.mxu0 %v9079
  %9132 = vmatprep.subr.mxu0 0.0
  %9133 = vmatpush1.msra.mxu0 0.0
  %9134 = vmatprep.subr.mxu0 0.0
  %9135 = vmatpush1.msra.mxu0 0.0
  %9136 = vmatprep.subr.mxu0 0.0
  %9137 = vmatpush1.msra.mxu0 0.0
  %9138 = vmatprep.subr.mxu0 0.0
  %9139 = vmatpush1.msra.mxu0 0.0
  %9140 = vmatprep.subr.mxu0 0.0
  %9141 = vmatpush1.msra.mxu0 0.0
  %9142 = vmatprep.subr.mxu0 0.0
  %9143 = vmatpush1.msra.mxu0 0.0
  %9144 = vmatprep.subr.mxu0 0.0
  %9145 = vmatpush1.msra.mxu0 0.0
  %9146 = vmatprep.subr.mxu0 0.0
  %9147 = vmatpush1.msra.mxu0 0.0
  %9148 = vmatprep.subr.mxu0 0.0
  %9149 = vmatpush1.msra.mxu0 0.0
  %9150 = vmatprep.subr.mxu0 0.0
  %9151 = vmatpush1.msra.mxu0 0.0
  %9152 = vmatprep.subr.mxu0 0.0
  %9153 = vmatpush1.msra.mxu0 0.0
  %9154 = vmatprep.subr.mxu0 0.0
  %9155 = vmatpush1.msra.mxu0 0.0
  %9156 = vmatprep.subr.mxu0 0.0
  %9157 = vmatpush1.msra.mxu0 0.0
  %9158 = vmatprep.subr.mxu0 0.0
  %9159 = vmatpush1.msra.mxu0 0.0
  %9160 = vmatprep.subr.mxu0 0.0
  %9161 = vmatpush1.msra.mxu0 0.0
  %9162 = vmatprep.subr.mxu0 0.0
  %9163 = vmatpush1.msra.mxu0 0.0
  %9164 = vmatprep.subr.mxu0 0.0
  %9165 = vmatpush1.msra.mxu0 0.0
  %9166 = vmatprep.subr.mxu0 0.0
  %9167 = vmatpush1.msra.mxu0 0.0
  %9168 = vmatprep.subr.mxu0 0.0
  %9169 = vmatpush1.msra.mxu0 0.0
  %9170 = vmatprep.subr.mxu0 0.0
  %9171 = vmatpush1.msra.mxu0 0.0
  %9172 = vmatprep.subr.mxu0 0.0
  %9173 = vmatpush1.msra.mxu0 0.0
  %9174 = vmatprep.subr.mxu0 0.0
  %9175 = vmatpush1.msra.mxu0 0.0
  %9176 = vmatprep.subr.mxu0 0.0
  %9177 = vmatpush1.msra.mxu0 0.0
  %9178 = vmatprep.subr.mxu0 0.0
  %9179 = vmatpush1.msra.mxu0 0.0
  %9180 = vmatprep.subr.mxu0 0.0
  %9181 = vmatpush1.msra.mxu0 0.0
  %9182 = vmatprep.subr.mxu0 0.0
  %9183 = vmatpush1.msra.mxu0 0.0
  %9184 = vmatprep.subr.mxu0 0.0
  %9185 = vmatpush1.msra.mxu0 0.0
  %9186 = vmatprep.subr.mxu0 0.0
  %9187 = vmatpush1.msra.mxu0 0.0
  %9188 = vmatprep.subr.mxu0 0.0
  %9189 = vmatpush1.msra.mxu0 0.0
  %9190 = vmatprep.subr.mxu0 0.0
  %9191 = vmatpush1.msra.mxu0 0.0
  %9192 = vmatprep.mubr.f32.mxu0 0.0
  %9193 = vmatmul.mubr.f32.gmra.mrb[0].mxu0 %v9081
  %v9194 = vpop.f32.mrb[0].mxu0
  %v9195 = vadd.f32 0.0, %v9194
  %v9196 = vpop.f32.mrb[0].mxu0
  %9197 = vmatprep.mubr.f32.mxu0 0.0
  %9198 = vmatmul.mubr.f32.gmra.mrb[0].mxu0 %v9084
  %v9199 = vpop.f32.mrb[0].mxu0
  %v9200 = vadd.f32 0.0, %v9199
  %v9201 = vpop.f32.mrb[0].mxu0
  %9202 = vmatprep.mubr.f32.mxu0 0.0
  %9203 = vmatmul.mubr.f32.gmra.mrb[0].mxu0 %v9087
  %v9204 = vpop.f32.mrb[0].mxu0
  %v9205 = vadd.f32 0.0, %v9204
  %v9206 = vpop.f32.mrb[0].mxu0
  %9207 = vmatprep.mubr.f32.mxu0 0.0
  %9208 = vmatmul.mubr.f32.gmra.mrb[0].mxu0 %v9090
  %v9209 = vpop.f32.mrb[0].mxu0
  %v9210 = vadd.f32 0.0, %v9209
  %v9211 = vpop.f32.mrb[0].mxu0
  %9212 = vmatprep.mubr.f32.mxu0 0.0
  %9213 = vmatmul.mubr.f32.gmra.mrb[0].mxu0 %v9093
  %v9214 = vpop.f32.mrb[0].mxu0
  %v9215 = vadd.f32 0.0, %v9214
  %v9216 = vpop.f32.mrb[0].mxu0
  %9217 = vmatprep.mubr.f32.mxu0 0.0
  %9218 = vmatmul.mubr.f32.gmra.mrb[0].mxu0 %v9096
  %v9219 = vpop.f32.mrb[0].mxu0
  %v9220 = vadd.f32 0.0, %v9219
  %v9221 = vpop.f32.mrb[0].mxu0
  %9222 = vmatprep.mubr.f32.mxu0 0.0
  %9223 = vmatmul.mubr.f32.gmra.mrb[0].mxu0 %v9099
  %v9224 = vpop.f32.mrb[0].mxu0
  %v9225 = vadd.f32 0.0, %v9224
  %v9226 = vpop.f32.mrb[0].mxu0
  %9227 = vmatprep.mubr.f32.mxu0 0.0
  %9228 = vmatmul.mubr.f32.gmra.mrb[0].mxu0 %v9102
  %v9229 = vpop.f32.mrb[0].mxu0
  %v9230 = vadd.f32 0.0, %v9229
  %v9231 = vpop.f32.mrb[0].mxu0
  %9232 = vmatprep.mubr.f32.mxu0 0.0
  %9233 = vmatmul.mubr.f32.gmra.mrb[0].mxu0 %v9105
  %v9234 = vpop.f32.mrb[0].mxu0
  %v9235 = vadd.f32 0.0, %v9234
  %v9236 = vpop.f32.mrb[0].mxu0
  %9237 = vmatprep.mubr.f32.mxu0 0.0
  %9238 = vmatmul.mubr.f32.gmra.mrb[0].mxu0 %v9108
  %v9239 = vpop.f32.mrb[0].mxu0
  %v9240 = vadd.f32 0.0, %v9239
  %v9241 = vpop.f32.mrb[0].mxu0
  %9242 = vmatprep.mubr.f32.mxu0 0.0
  %9243 = vmatmul.mubr.f32.gmra.mrb[0].mxu0 %v9111
  %v9244 = vpop.f32.mrb[0].mxu0
  %v9245 = vadd.f32 0.0, %v9244
  %v9246 = vpop.f32.mrb[0].mxu0
  %9247 = vmatprep.mubr.f32.mxu0 0.0
  %9248 = vmatmul.mubr.f32.gmra.mrb[0].mxu0 %v9114
  %v9249 = vpop.f32.mrb[0].mxu0
  %v9250 = vadd.f32 0.0, %v9249
  %v9251 = vpop.f32.mrb[0].mxu0
  %9252 = vmatprep.mubr.f32.mxu0 0.0
  %9253 = vmatmul.mubr.f32.gmra.mrb[0].mxu0 %v9117
  %v9254 = vpop.f32.mrb[0].mxu0
  %v9255 = vadd.f32 0.0, %v9254
  %v9256 = vpop.f32.mrb[0].mxu0
  %9257 = vmatprep.mubr.f32.mxu0 0.0
  %9258 = vmatmul.mubr.f32.gmra.mrb[0].mxu0 %v9120
  %v9259 = vpop.f32.mrb[0].mxu0
  %v9260 = vadd.f32 0.0, %v9259
  %v9261 = vpop.f32.mrb[0].mxu0
  %9262 = vmatprep.mubr.f32.mxu0 0.0
  %9263 = vmatmul.mubr.f32.gmra.mrb[0].mxu0 %v9123
  %v9264 = vpop.f32.mrb[0].mxu0
  %v9265 = vadd.f32 0.0, %v9264
  %v9266 = vpop.f32.mrb[0].mxu0
  %9267 = vmatprep.mubr.f32.mxu0 0.0
  %9268 = vmatmul.mubr.f32.gmra.mrb[0].mxu0 %v9126
  %v9269 = vpop.f32.mrb[0].mxu0
  %v9270 = vadd.f32 0.0, %v9269
  %v9271 = vpop.f32.mrb[0].mxu0
  %9272 = vdwg.mxu0
  %v9273 = vadd.f32 %v9045, %v9195
  %v9274 = vadd.f32 %v9046, %v9200
  %v9275 = vadd.f32 %v9047, %v9205
  %v9276 = vadd.f32 %v9048, %v9210
  %v9277 = vadd.f32 %v9049, %v9215
  %v9278 = vadd.f32 %v9050, %v9220
  %v9279 = vadd.f32 %v9051, %v9225
  %v9280 = vadd.f32 %v9052, %v9230
  %v9281 = vadd.f32 %v9053, %v9235
  %v9282 = vadd.f32 %v9054, %v9240
  %v9283 = vadd.f32 %v9055, %v9245
  %v9284 = vadd.f32 %v9056, %v9250
  %v9285 = vadd.f32 %v9057, %v9255
  %v9286 = vadd.f32 %v9058, %v9260
  %v9287 = vadd.f32 %v9059, %v9265
  %v9288 = vadd.f32 %v9060, %v9270
  %v9289 = vld [vmem:[%s8393 + $0x1] sm:$0xff]
  %v9290 = vld [vmem:[%s8393 + $0x11] sm:$0xff]
  %v9291 = vld [vmem:[%s8393 + $0x21] sm:$0xff]
  %v9292 = vld [vmem:[%s8393 + $0x31] sm:$0xff]
  %v9293 = vld [vmem:[%s8393 + $0x41] sm:$0xff]
  %v9294 = vld [vmem:[%s8393 + $0x51] sm:$0xff]
  %v9295 = vld [vmem:[%s8393 + $0x61] sm:$0xff]
  %v9296 = vld [vmem:[%s8393 + $0x71] sm:$0xff]
  %v9297 = vld [vmem:[%s8393 + $0xa1] sm:$0xff]
  %v9298 = vld [vmem:[%s8393 + $0xb1] sm:$0xff]
  %v9299 = vld [vmem:[%s8393 + $0xc1] sm:$0xff]
  %v9300 = vld [vmem:[%s8393 + $0xd1] sm:$0xff]
  %v9301 = vld [vmem:[%s8393 + $0xe1] sm:$0xff]
  %v9302 = vld [vmem:[%s8393 + $0xf1] sm:$0xff]
  %v9303 = vld [vmem:[%s8393 + $0x101] sm:$0xff]
  %v9304 = vld [vmem:[%s8393 + $0x111] sm:$0xff]
  %s9305 = scalar_lea.vmem %s4, 64
  %v9306 = vld [vmem:[%s9305] sm:$0xff]
  %v9307 = vld [vmem:[%s9305 + $0x8] sm:$0xff]
  %v9309 = vsel %vm8089, %v9289, 0
  %v9312 = vsel %vm8089, %v9290, 0
  %v9315 = vsel %vm8089, %v9291, 0
  %v9318 = vsel %vm8089, %v9292, 0
  %v9321 = vsel %vm8089, %v9293, 0
  %v9324 = vsel %vm8089, %v9294, 0
  %v9327 = vsel %vm8089, %v9295, 0
  %v9330 = vsel %vm8089, %v9296, 0
  %v9333 = vsel %vm8089, %v9297, 0
  %v9336 = vsel %vm8089, %v9298, 0
  %v9339 = vsel %vm8089, %v9299, 0
  %v9342 = vsel %vm8089, %v9300, 0
  %v9345 = vsel %vm8089, %v9301, 0
  %v9348 = vsel %vm8089, %v9302, 0
  %v9351 = vsel %vm8089, %v9303, 0
  %v9354 = vsel %vm8089, %v9304, 0
  %9356 = vmatprep.subr.mxu0 0.0
  %9357 = vmatpush1.msra.mxu0 %v9306
  %9358 = vmatprep.subr.mxu0 0.0
  %9359 = vmatpush1.msra.mxu0 %v9307
  %9360 = vmatprep.subr.mxu0 0.0
  %9361 = vmatpush1.msra.mxu0 0.0
  %9362 = vmatprep.subr.mxu0 0.0
  %9363 = vmatpush1.msra.mxu0 0.0
  %9364 = vmatprep.subr.mxu0 0.0
  %9365 = vmatpush1.msra.mxu0 0.0
  %9366 = vmatprep.subr.mxu0 0.0
  %9367 = vmatpush1.msra.mxu0 0.0
  %9368 = vmatprep.subr.mxu0 0.0
  %9369 = vmatpush1.msra.mxu0 0.0
  %9370 = vmatprep.subr.mxu0 0.0
  %9371 = vmatpush1.msra.mxu0 0.0
  %9372 = vmatprep.subr.mxu0 0.0
  %9373 = vmatpush1.msra.mxu0 0.0
  %9374 = vmatprep.subr.mxu0 0.0
  %9375 = vmatpush1.msra.mxu0 0.0
  %9376 = vmatprep.subr.mxu0 0.0
  %9377 = vmatpush1.msra.mxu0 0.0
  %9378 = vmatprep.subr.mxu0 0.0
  %9379 = vmatpush1.msra.mxu0 0.0
  %9380 = vmatprep.subr.mxu0 0.0
  %9381 = vmatpush1.msra.mxu0 0.0
  %9382 = vmatprep.subr.mxu0 0.0
  %9383 = vmatpush1.msra.mxu0 0.0
  %9384 = vmatprep.subr.mxu0 0.0
  %9385 = vmatpush1.msra.mxu0 0.0
  %9386 = vmatprep.subr.mxu0 0.0
  %9387 = vmatpush1.msra.mxu0 0.0
  %9388 = vmatprep.subr.mxu0 0.0
  %9389 = vmatpush1.msra.mxu0 0.0
  %9390 = vmatprep.subr.mxu0 0.0
  %9391 = vmatpush1.msra.mxu0 0.0
  %9392 = vmatprep.subr.mxu0 0.0
  %9393 = vmatpush1.msra.mxu0 0.0
  %9394 = vmatprep.subr.mxu0 0.0
  %9395 = vmatpush1.msra.mxu0 0.0
  %9396 = vmatprep.subr.mxu0 0.0
  %9397 = vmatpush1.msra.mxu0 0.0
  %9398 = vmatprep.subr.mxu0 0.0
  %9399 = vmatpush1.msra.mxu0 0.0
  %9400 = vmatprep.subr.mxu0 0.0
  %9401 = vmatpush1.msra.mxu0 0.0
  %9402 = vmatprep.subr.mxu0 0.0
  %9403 = vmatpush1.msra.mxu0 0.0
  %9404 = vmatprep.subr.mxu0 0.0
  %9405 = vmatpush1.msra.mxu0 0.0
  %9406 = vmatprep.subr.mxu0 0.0
  %9407 = vmatpush1.msra.mxu0 0.0
  %9408 = vmatprep.subr.mxu0 0.0
  %9409 = vmatpush1.msra.mxu0 0.0
  %9410 = vmatprep.subr.mxu0 0.0
  %9411 = vmatpush1.msra.mxu0 0.0
  %9412 = vmatprep.subr.mxu0 0.0
  %9413 = vmatpush1.msra.mxu0 0.0
  %9414 = vmatprep.subr.mxu0 0.0
  %9415 = vmatpush1.msra.mxu0 0.0
  %9416 = vmatprep.subr.mxu0 0.0
  %9417 = vmatpush1.msra.mxu0 0.0
  %9418 = vmatprep.subr.mxu0 0.0
  %9419 = vmatpush1.msra.mxu0 0.0
  %9420 = vmatprep.mubr.f32.mxu0 0.0
  %9421 = vmatmul.mubr.f32.gmra.mrb[0].mxu0 %v9309
  %v9422 = vpop.f32.mrb[0].mxu0
  %v9423 = vadd.f32 0.0, %v9422
  %v9424 = vpop.f32.mrb[0].mxu0
  %9425 = vmatprep.mubr.f32.mxu0 0.0
  %9426 = vmatmul.mubr.f32.gmra.mrb[0].mxu0 %v9312
  %v9427 = vpop.f32.mrb[0].mxu0
  %v9428 = vadd.f32 0.0, %v9427
  %v9429 = vpop.f32.mrb[0].mxu0
  %9430 = vmatprep.mubr.f32.mxu0 0.0
  %9431 = vmatmul.mubr.f32.gmra.mrb[0].mxu0 %v9315
  %v9432 = vpop.f32.mrb[0].mxu0
  %v9433 = vadd.f32 0.0, %v9432
  %v9434 = vpop.f32.mrb[0].mxu0
  %9435 = vmatprep.mubr.f32.mxu0 0.0
  %9436 = vmatmul.mubr.f32.gmra.mrb[0].mxu0 %v9318
  %v9437 = vpop.f32.mrb[0].mxu0
  %v9438 = vadd.f32 0.0, %v9437
  %v9439 = vpop.f32.mrb[0].mxu0
  %9440 = vmatprep.mubr.f32.mxu0 0.0
  %9441 = vmatmul.mubr.f32.gmra.mrb[0].mxu0 %v9321
  %v9442 = vpop.f32.mrb[0].mxu0
  %v9443 = vadd.f32 0.0, %v9442
  %v9444 = vpop.f32.mrb[0].mxu0
  %9445 = vmatprep.mubr.f32.mxu0 0.0
  %9446 = vmatmul.mubr.f32.gmra.mrb[0].mxu0 %v9324
  %v9447 = vpop.f32.mrb[0].mxu0
  %v9448 = vadd.f32 0.0, %v9447
  %v9449 = vpop.f32.mrb[0].mxu0
  %9450 = vmatprep.mubr.f32.mxu0 0.0
  %9451 = vmatmul.mubr.f32.gmra.mrb[0].mxu0 %v9327
  %v9452 = vpop.f32.mrb[0].mxu0
  %v9453 = vadd.f32 0.0, %v9452
  %v9454 = vpop.f32.mrb[0].mxu0
  %9455 = vmatprep.mubr.f32.mxu0 0.0
  %9456 = vmatmul.mubr.f32.gmra.mrb[0].mxu0 %v9330
  %v9457 = vpop.f32.mrb[0].mxu0
  %v9458 = vadd.f32 0.0, %v9457
  %v9459 = vpop.f32.mrb[0].mxu0
  %9460 = vmatprep.mubr.f32.mxu0 0.0
  %9461 = vmatmul.mubr.f32.gmra.mrb[0].mxu0 %v9333
  %v9462 = vpop.f32.mrb[0].mxu0
  %v9463 = vadd.f32 0.0, %v9462
  %v9464 = vpop.f32.mrb[0].mxu0
  %9465 = vmatprep.mubr.f32.mxu0 0.0
  %9466 = vmatmul.mubr.f32.gmra.mrb[0].mxu0 %v9336
  %v9467 = vpop.f32.mrb[0].mxu0
  %v9468 = vadd.f32 0.0, %v9467
  %v9469 = vpop.f32.mrb[0].mxu0
  %9470 = vmatprep.mubr.f32.mxu0 0.0
  %9471 = vmatmul.mubr.f32.gmra.mrb[0].mxu0 %v9339
  %v9472 = vpop.f32.mrb[0].mxu0
  %v9473 = vadd.f32 0.0, %v9472
  %v9474 = vpop.f32.mrb[0].mxu0
  %9475 = vmatprep.mubr.f32.mxu0 0.0
  %9476 = vmatmul.mubr.f32.gmra.mrb[0].mxu0 %v9342
  %v9477 = vpop.f32.mrb[0].mxu0
  %v9478 = vadd.f32 0.0, %v9477
  %v9479 = vpop.f32.mrb[0].mxu0
  %9480 = vmatprep.mubr.f32.mxu0 0.0
  %9481 = vmatmul.mubr.f32.gmra.mrb[0].mxu0 %v9345
  %v9482 = vpop.f32.mrb[0].mxu0
  %v9483 = vadd.f32 0.0, %v9482
  %v9484 = vpop.f32.mrb[0].mxu0
  %9485 = vmatprep.mubr.f32.mxu0 0.0
  %9486 = vmatmul.mubr.f32.gmra.mrb[0].mxu0 %v9348
  %v9487 = vpop.f32.mrb[0].mxu0
  %v9488 = vadd.f32 0.0, %v9487
  %v9489 = vpop.f32.mrb[0].mxu0
  %9490 = vmatprep.mubr.f32.mxu0 0.0
  %9491 = vmatmul.mubr.f32.gmra.mrb[0].mxu0 %v9351
  %v9492 = vpop.f32.mrb[0].mxu0
  %v9493 = vadd.f32 0.0, %v9492
  %v9494 = vpop.f32.mrb[0].mxu0
  %9495 = vmatprep.mubr.f32.mxu0 0.0
  %9496 = vmatmul.mubr.f32.gmra.mrb[0].mxu0 %v9354
  %v9497 = vpop.f32.mrb[0].mxu0
  %v9498 = vadd.f32 0.0, %v9497
  %v9499 = vpop.f32.mrb[0].mxu0
  %9500 = vdwg.mxu0
  %v9501 = vadd.f32 %v9273, %v9423
  %v9502 = vadd.f32 %v9274, %v9428
  %v9503 = vadd.f32 %v9275, %v9433
  %v9504 = vadd.f32 %v9276, %v9438
  %v9505 = vadd.f32 %v9277, %v9443
  %v9506 = vadd.f32 %v9278, %v9448
  %v9507 = vadd.f32 %v9279, %v9453
  %v9508 = vadd.f32 %v9280, %v9458
  %v9509 = vadd.f32 %v9281, %v9463
  %v9510 = vadd.f32 %v9282, %v9468
  %v9511 = vadd.f32 %v9283, %v9473
  %v9512 = vadd.f32 %v9284, %v9478
  %v9513 = vadd.f32 %v9285, %v9483
  %v9514 = vadd.f32 %v9286, %v9488
  %v9515 = vadd.f32 %v9287, %v9493
  %v9516 = vadd.f32 %v9288, %v9498
  %v9517 = vld [vmem:[%s8393 + $0x2] sm:$0xff]
  %v9518 = vld [vmem:[%s8393 + $0x12] sm:$0xff]
  %v9519 = vld [vmem:[%s8393 + $0x22] sm:$0xff]
  %v9520 = vld [vmem:[%s8393 + $0x32] sm:$0xff]
  %v9521 = vld [vmem:[%s8393 + $0x42] sm:$0xff]
  %v9522 = vld [vmem:[%s8393 + $0x52] sm:$0xff]
  %v9523 = vld [vmem:[%s8393 + $0x62] sm:$0xff]
  %v9524 = vld [vmem:[%s8393 + $0x72] sm:$0xff]
  %v9525 = vld [vmem:[%s8393 + $0xa2] sm:$0xff]
  %v9526 = vld [vmem:[%s8393 + $0xb2] sm:$0xff]
  %v9527 = vld [vmem:[%s8393 + $0xc2] sm:$0xff]
  %v9528 = vld [vmem:[%s8393 + $0xd2] sm:$0xff]
  %v9529 = vld [vmem:[%s8393 + $0xe2] sm:$0xff]
  %v9530 = vld [vmem:[%s8393 + $0xf2] sm:$0xff]
  %v9531 = vld [vmem:[%s8393 + $0x102] sm:$0xff]
  %v9532 = vld [vmem:[%s8393 + $0x112] sm:$0xff]
  %s9533 = scalar_lea.vmem %s4, 80
  %v9534 = vld [vmem:[%s9533] sm:$0xff]
  %v9535 = vld [vmem:[%s9533 + $0x8] sm:$0xff]
  %v9537 = vsel %vm8089, %v9517, 0
  %v9540 = vsel %vm8089, %v9518, 0
  %v9543 = vsel %vm8089, %v9519, 0
  %v9546 = vsel %vm8089, %v9520, 0
  %v9549 = vsel %vm8089, %v9521, 0
  %v9552 = vsel %vm8089, %v9522, 0
  %v9555 = vsel %vm8089, %v9523, 0
  %v9558 = vsel %vm8089, %v9524, 0
  %v9561 = vsel %vm8089, %v9525, 0
  %v9564 = vsel %vm8089, %v9526, 0
  %v9567 = vsel %vm8089, %v9527, 0
  %v9570 = vsel %vm8089, %v9528, 0
  %v9573 = vsel %vm8089, %v9529, 0
  %v9576 = vsel %vm8089, %v9530, 0
  %v9579 = vsel %vm8089, %v9531, 0
  %v9582 = vsel %vm8089, %v9532, 0
  %9584 = vmatprep.subr.mxu0 0.0
  %9585 = vmatpush1.msra.mxu0 %v9534
  %9586 = vmatprep.subr.mxu0 0.0
  %9587 = vmatpush1.msra.mxu0 %v9535
  %9588 = vmatprep.subr.mxu0 0.0
  %9589 = vmatpush1.msra.mxu0 0.0
  %9590 = vmatprep.subr.mxu0 0.0
  %9591 = vmatpush1.msra.mxu0 0.0
  %9592 = vmatprep.subr.mxu0 0.0
  %9593 = vmatpush1.msra.mxu0 0.0
  %9594 = vmatprep.subr.mxu0 0.0
  %9595 = vmatpush1.msra.mxu0 0.0
  %9596 = vmatprep.subr.mxu0 0.0
  %9597 = vmatpush1.msra.mxu0 0.0
  %9598 = vmatprep.subr.mxu0 0.0
  %9599 = vmatpush1.msra.mxu0 0.0
  %9600 = vmatprep.subr.mxu0 0.0
  %9601 = vmatpush1.msra.mxu0 0.0
  %9602 = vmatprep.subr.mxu0 0.0
  %9603 = vmatpush1.msra.mxu0 0.0
  %9604 = vmatprep.subr.mxu0 0.0
  %9605 = vmatpush1.msra.mxu0 0.0
  %9606 = vmatprep.subr.mxu0 0.0
  %9607 = vmatpush1.msra.mxu0 0.0
  %9608 = vmatprep.subr.mxu0 0.0
  %9609 = vmatpush1.msra.mxu0 0.0
  %9610 = vmatprep.subr.mxu0 0.0
  %9611 = vmatpush1.msra.mxu0 0.0
  %9612 = vmatprep.subr.mxu0 0.0
  %9613 = vmatpush1.msra.mxu0 0.0
  %9614 = vmatprep.subr.mxu0 0.0
  %9615 = vmatpush1.msra.mxu0 0.0
  %9616 = vmatprep.subr.mxu0 0.0
  %9617 = vmatpush1.msra.mxu0 0.0
  %9618 = vmatprep.subr.mxu0 0.0
  %9619 = vmatpush1.msra.mxu0 0.0
  %9620 = vmatprep.subr.mxu0 0.0
  %9621 = vmatpush1.msra.mxu0 0.0
  %9622 = vmatprep.subr.mxu0 0.0
  %9623 = vmatpush1.msra.mxu0 0.0
  %9624 = vmatprep.subr.mxu0 0.0
  %9625 = vmatpush1.msra.mxu0 0.0
  %9626 = vmatprep.subr.mxu0 0.0
  %9627 = vmatpush1.msra.mxu0 0.0
  %9628 = vmatprep.subr.mxu0 0.0
  %9629 = vmatpush1.msra.mxu0 0.0
  %9630 = vmatprep.subr.mxu0 0.0
  %9631 = vmatpush1.msra.mxu0 0.0
  %9632 = vmatprep.subr.mxu0 0.0
  %9633 = vmatpush1.msra.mxu0 0.0
  %9634 = vmatprep.subr.mxu0 0.0
  %9635 = vmatpush1.msra.mxu0 0.0
  %9636 = vmatprep.subr.mxu0 0.0
  %9637 = vmatpush1.msra.mxu0 0.0
  %9638 = vmatprep.subr.mxu0 0.0
  %9639 = vmatpush1.msra.mxu0 0.0
  %9640 = vmatprep.subr.mxu0 0.0
  %9641 = vmatpush1.msra.mxu0 0.0
  %9642 = vmatprep.subr.mxu0 0.0
  %9643 = vmatpush1.msra.mxu0 0.0
  %9644 = vmatprep.subr.mxu0 0.0
  %9645 = vmatpush1.msra.mxu0 0.0
  %9646 = vmatprep.subr.mxu0 0.0
  %9647 = vmatpush1.msra.mxu0 0.0
  %9648 = vmatprep.mubr.f32.mxu0 0.0
  %9649 = vmatmul.mubr.f32.gmra.mrb[0].mxu0 %v9537
  %v9650 = vpop.f32.mrb[0].mxu0
  %v9651 = vadd.f32 0.0, %v9650
  %v9652 = vpop.f32.mrb[0].mxu0
  %9653 = vmatprep.mubr.f32.mxu0 0.0
  %9654 = vmatmul.mubr.f32.gmra.mrb[0].mxu0 %v9540
  %v9655 = vpop.f32.mrb[0].mxu0
  %v9656 = vadd.f32 0.0, %v9655
  %v9657 = vpop.f32.mrb[0].mxu0
  %9658 = vmatprep.mubr.f32.mxu0 0.0
  %9659 = vmatmul.mubr.f32.gmra.mrb[0].mxu0 %v9543
  %v9660 = vpop.f32.mrb[0].mxu0
  %v9661 = vadd.f32 0.0, %v9660
  %v9662 = vpop.f32.mrb[0].mxu0
  %9663 = vmatprep.mubr.f32.mxu0 0.0
  %9664 = vmatmul.mubr.f32.gmra.mrb[0].mxu0 %v9546
  %v9665 = vpop.f32.mrb[0].mxu0
  %v9666 = vadd.f32 0.0, %v9665
  %v9667 = vpop.f32.mrb[0].mxu0
  %9668 = vmatprep.mubr.f32.mxu0 0.0
  %9669 = vmatmul.mubr.f32.gmra.mrb[0].mxu0 %v9549
  %v9670 = vpop.f32.mrb[0].mxu0
  %v9671 = vadd.f32 0.0, %v9670
  %v9672 = vpop.f32.mrb[0].mxu0
  %9673 = vmatprep.mubr.f32.mxu0 0.0
  %9674 = vmatmul.mubr.f32.gmra.mrb[0].mxu0 %v9552
  %v9675 = vpop.f32.mrb[0].mxu0
  %v9676 = vadd.f32 0.0, %v9675
  %v9677 = vpop.f32.mrb[0].mxu0
  %9678 = vmatprep.mubr.f32.mxu0 0.0
  %9679 = vmatmul.mubr.f32.gmra.mrb[0].mxu0 %v9555
  %v9680 = vpop.f32.mrb[0].mxu0
  %v9681 = vadd.f32 0.0, %v9680
  %v9682 = vpop.f32.mrb[0].mxu0
  %9683 = vmatprep.mubr.f32.mxu0 0.0
  %9684 = vmatmul.mubr.f32.gmra.mrb[0].mxu0 %v9558
  %v9685 = vpop.f32.mrb[0].mxu0
  %v9686 = vadd.f32 0.0, %v9685
  %v9687 = vpop.f32.mrb[0].mxu0
  %9688 = vmatprep.mubr.f32.mxu0 0.0
  %9689 = vmatmul.mubr.f32.gmra.mrb[0].mxu0 %v9561
  %v9690 = vpop.f32.mrb[0].mxu0
  %v9691 = vadd.f32 0.0, %v9690
  %v9692 = vpop.f32.mrb[0].mxu0
  %9693 = vmatprep.mubr.f32.mxu0 0.0
  %9694 = vmatmul.mubr.f32.gmra.mrb[0].mxu0 %v9564
  %v9695 = vpop.f32.mrb[0].mxu0
  %v9696 = vadd.f32 0.0, %v9695
  %v9697 = vpop.f32.mrb[0].mxu0
  %9698 = vmatprep.mubr.f32.mxu0 0.0
  %9699 = vmatmul.mubr.f32.gmra.mrb[0].mxu0 %v9567
  %v9700 = vpop.f32.mrb[0].mxu0
  %v9701 = vadd.f32 0.0, %v9700
  %v9702 = vpop.f32.mrb[0].mxu0
  %9703 = vmatprep.mubr.f32.mxu0 0.0
  %9704 = vmatmul.mubr.f32.gmra.mrb[0].mxu0 %v9570
  %v9705 = vpop.f32.mrb[0].mxu0
  %v9706 = vadd.f32 0.0, %v9705
  %v9707 = vpop.f32.mrb[0].mxu0
  %9708 = vmatprep.mubr.f32.mxu0 0.0
  %9709 = vmatmul.mubr.f32.gmra.mrb[0].mxu0 %v9573
  %v9710 = vpop.f32.mrb[0].mxu0
  %v9711 = vadd.f32 0.0, %v9710
  %v9712 = vpop.f32.mrb[0].mxu0
  %9713 = vmatprep.mubr.f32.mxu0 0.0
  %9714 = vmatmul.mubr.f32.gmra.mrb[0].mxu0 %v9576
  %v9715 = vpop.f32.mrb[0].mxu0
  %v9716 = vadd.f32 0.0, %v9715
  %v9717 = vpop.f32.mrb[0].mxu0
  %9718 = vmatprep.mubr.f32.mxu0 0.0
  %9719 = vmatmul.mubr.f32.gmra.mrb[0].mxu0 %v9579
  %v9720 = vpop.f32.mrb[0].mxu0
  %v9721 = vadd.f32 0.0, %v9720
  %v9722 = vpop.f32.mrb[0].mxu0
  %9723 = vmatprep.mubr.f32.mxu0 0.0
  %9724 = vmatmul.mubr.f32.gmra.mrb[0].mxu0 %v9582
  %v9725 = vpop.f32.mrb[0].mxu0
  %v9726 = vadd.f32 0.0, %v9725
  %v9727 = vpop.f32.mrb[0].mxu0
  %9728 = vdwg.mxu0
  %v9729 = vadd.f32 %v9501, %v9651
  %v9730 = vadd.f32 %v9502, %v9656
  %v9731 = vadd.f32 %v9503, %v9661
  %v9732 = vadd.f32 %v9504, %v9666
  %v9733 = vadd.f32 %v9505, %v9671
  %v9734 = vadd.f32 %v9506, %v9676
  %v9735 = vadd.f32 %v9507, %v9681
  %v9736 = vadd.f32 %v9508, %v9686
  %v9737 = vadd.f32 %v9509, %v9691
  %v9738 = vadd.f32 %v9510, %v9696
  %v9739 = vadd.f32 %v9511, %v9701
  %v9740 = vadd.f32 %v9512, %v9706
  %v9741 = vadd.f32 %v9513, %v9711
  %v9742 = vadd.f32 %v9514, %v9716
  %v9743 = vadd.f32 %v9515, %v9721
  %v9744 = vadd.f32 %v9516, %v9726
  %s9745 = scalar_lea.vmem [#allocation2], 32
  %v9746 = vld [vmem:[%s9745] sm:$0xff]
  %v9747 = vld [vmem:[%s9745 + $0x10] sm:$0xff]
  %v9748 = vld [vmem:[%s9745 + $0x20] sm:$0xff]
  %v9749 = vld [vmem:[%s9745 + $0x30] sm:$0xff]
  %v9750 = vld [vmem:[%s9745 + $0x40] sm:$0xff]
  %v9751 = vld [vmem:[%s9745 + $0x50] sm:$0xff]
  %v9752 = vld [vmem:[%s9745 + $0x60] sm:$0xff]
  %v9753 = vld [vmem:[%s9745 + $0x70] sm:$0xff]
  %v9754 = vld [vmem:[%s9745 + $0xa0] sm:$0xff]
  %v9755 = vld [vmem:[%s9745 + $0xb0] sm:$0xff]
  %v9756 = vld [vmem:[%s9745 + $0xc0] sm:$0xff]
  %v9757 = vld [vmem:[%s9745 + $0xd0] sm:$0xff]
  %v9758 = vld [vmem:[%s9745 + $0xe0] sm:$0xff]
  %v9759 = vld [vmem:[%s9745 + $0xf0] sm:$0xff]
  %v9760 = vld [vmem:[%s9745 + $0x100] sm:$0xff]
  %v9761 = vld [vmem:[%s9745 + $0x110] sm:$0xff]
  %s9762 = scalar_lea.vmem %s4, 96
  %v9763 = vld [vmem:[%s9762] sm:$0xff]
  %v9764 = vld [vmem:[%s9762 + $0x8] sm:$0xff]
  %v9766 = vsel %vm8089, %v9746, 0
  %v9769 = vsel %vm8089, %v9747, 0
  %v9772 = vsel %vm8089, %v9748, 0
  %v9775 = vsel %vm8089, %v9749, 0
  %v9778 = vsel %vm8089, %v9750, 0
  %v9781 = vsel %vm8089, %v9751, 0
  %v9784 = vsel %vm8089, %v9752, 0
  %v9787 = vsel %vm8089, %v9753, 0
  %v9790 = vsel %vm8089, %v9754, 0
  %v9793 = vsel %vm8089, %v9755, 0
  %v9796 = vsel %vm8089, %v9756, 0
  %v9799 = vsel %vm8089, %v9757, 0
  %v9802 = vsel %vm8089, %v9758, 0
  %v9805 = vsel %vm8089, %v9759, 0
  %v9808 = vsel %vm8089, %v9760, 0
  %v9811 = vsel %vm8089, %v9761, 0
  %9813 = vmatprep.subr.mxu0 0.0
  %9814 = vmatpush1.msra.mxu0 %v9763
  %9815 = vmatprep.subr.mxu0 0.0
  %9816 = vmatpush1.msra.mxu0 %v9764
  %9817 = vmatprep.subr.mxu0 0.0
  %9818 = vmatpush1.msra.mxu0 0.0
  %9819 = vmatprep.subr.mxu0 0.0
  %9820 = vmatpush1.msra.mxu0 0.0
  %9821 = vmatprep.subr.mxu0 0.0
  %9822 = vmatpush1.msra.mxu0 0.0
  %9823 = vmatprep.subr.mxu0 0.0
  %9824 = vmatpush1.msra.mxu0 0.0
  %9825 = vmatprep.subr.mxu0 0.0
  %9826 = vmatpush1.msra.mxu0 0.0
  %9827 = vmatprep.subr.mxu0 0.0
  %9828 = vmatpush1.msra.mxu0 0.0
  %9829 = vmatprep.subr.mxu0 0.0
  %9830 = vmatpush1.msra.mxu0 0.0
  %9831 = vmatprep.subr.mxu0 0.0
  %9832 = vmatpush1.msra.mxu0 0.0
  %9833 = vmatprep.subr.mxu0 0.0
  %9834 = vmatpush1.msra.mxu0 0.0
  %9835 = vmatprep.subr.mxu0 0.0
  %9836 = vmatpush1.msra.mxu0 0.0
  %9837 = vmatprep.subr.mxu0 0.0
  %9838 = vmatpush1.msra.mxu0 0.0
  %9839 = vmatprep.subr.mxu0 0.0
  %9840 = vmatpush1.msra.mxu0 0.0
  %9841 = vmatprep.subr.mxu0 0.0
  %9842 = vmatpush1.msra.mxu0 0.0
  %9843 = vmatprep.subr.mxu0 0.0
  %9844 = vmatpush1.msra.mxu0 0.0
  %9845 = vmatprep.subr.mxu0 0.0
  %9846 = vmatpush1.msra.mxu0 0.0
  %9847 = vmatprep.subr.mxu0 0.0
  %9848 = vmatpush1.msra.mxu0 0.0
  %9849 = vmatprep.subr.mxu0 0.0
  %9850 = vmatpush1.msra.mxu0 0.0
  %9851 = vmatprep.subr.mxu0 0.0
  %9852 = vmatpush1.msra.mxu0 0.0
  %9853 = vmatprep.subr.mxu0 0.0
  %9854 = vmatpush1.msra.mxu0 0.0
  %9855 = vmatprep.subr.mxu0 0.0
  %9856 = vmatpush1.msra.mxu0 0.0
  %9857 = vmatprep.subr.mxu0 0.0
  %9858 = vmatpush1.msra.mxu0 0.0
  %9859 = vmatprep.subr.mxu0 0.0
  %9860 = vmatpush1.msra.mxu0 0.0
  %9861 = vmatprep.subr.mxu0 0.0
  %9862 = vmatpush1.msra.mxu0 0.0
  %9863 = vmatprep.subr.mxu0 0.0
  %9864 = vmatpush1.msra.mxu0 0.0
  %9865 = vmatprep.subr.mxu0 0.0
  %9866 = vmatpush1.msra.mxu0 0.0
  %9867 = vmatprep.subr.mxu0 0.0
  %9868 = vmatpush1.msra.mxu0 0.0
  %9869 = vmatprep.subr.mxu0 0.0
  %9870 = vmatpush1.msra.mxu0 0.0
  %9871 = vmatprep.subr.mxu0 0.0
  %9872 = vmatpush1.msra.mxu0 0.0
  %9873 = vmatprep.subr.mxu0 0.0
  %9874 = vmatpush1.msra.mxu0 0.0
  %9875 = vmatprep.subr.mxu0 0.0
  %9876 = vmatpush1.msra.mxu0 0.0
  %9877 = vmatprep.mubr.f32.mxu0 0.0
  %9878 = vmatmul.mubr.f32.gmra.mrb[0].mxu0 %v9766
  %v9879 = vpop.f32.mrb[0].mxu0
  %v9880 = vadd.f32 0.0, %v9879
  %v9881 = vpop.f32.mrb[0].mxu0
  %9882 = vmatprep.mubr.f32.mxu0 0.0
  %9883 = vmatmul.mubr.f32.gmra.mrb[0].mxu0 %v9769
  %v9884 = vpop.f32.mrb[0].mxu0
  %v9885 = vadd.f32 0.0, %v9884
  %v9886 = vpop.f32.mrb[0].mxu0
  %9887 = vmatprep.mubr.f32.mxu0 0.0
  %9888 = vmatmul.mubr.f32.gmra.mrb[0].mxu0 %v9772
  %v9889 = vpop.f32.mrb[0].mxu0
  %v9890 = vadd.f32 0.0, %v9889
  %v9891 = vpop.f32.mrb[0].mxu0
  %9892 = vmatprep.mubr.f32.mxu0 0.0
  %9893 = vmatmul.mubr.f32.gmra.mrb[0].mxu0 %v9775
  %v9894 = vpop.f32.mrb[0].mxu0
  %v9895 = vadd.f32 0.0, %v9894
  %v9896 = vpop.f32.mrb[0].mxu0
  %9897 = vmatprep.mubr.f32.mxu0 0.0
  %9898 = vmatmul.mubr.f32.gmra.mrb[0].mxu0 %v9778
  %v9899 = vpop.f32.mrb[0].mxu0
  %v9900 = vadd.f32 0.0, %v9899
  %v9901 = vpop.f32.mrb[0].mxu0
  %9902 = vmatprep.mubr.f32.mxu0 0.0
  %9903 = vmatmul.mubr.f32.gmra.mrb[0].mxu0 %v9781
  %v9904 = vpop.f32.mrb[0].mxu0
  %v9905 = vadd.f32 0.0, %v9904
  %v9906 = vpop.f32.mrb[0].mxu0
  %9907 = vmatprep.mubr.f32.mxu0 0.0
  %9908 = vmatmul.mubr.f32.gmra.mrb[0].mxu0 %v9784
  %v9909 = vpop.f32.mrb[0].mxu0
  %v9910 = vadd.f32 0.0, %v9909
  %v9911 = vpop.f32.mrb[0].mxu0
  %9912 = vmatprep.mubr.f32.mxu0 0.0
  %9913 = vmatmul.mubr.f32.gmra.mrb[0].mxu0 %v9787
  %v9914 = vpop.f32.mrb[0].mxu0
  %v9915 = vadd.f32 0.0, %v9914
  %v9916 = vpop.f32.mrb[0].mxu0
  %9917 = vmatprep.mubr.f32.mxu0 0.0
  %9918 = vmatmul.mubr.f32.gmra.mrb[0].mxu0 %v9790
  %v9919 = vpop.f32.mrb[0].mxu0
  %v9920 = vadd.f32 0.0, %v9919
  %v9921 = vpop.f32.mrb[0].mxu0
  %9922 = vmatprep.mubr.f32.mxu0 0.0
  %9923 = vmatmul.mubr.f32.gmra.mrb[0].mxu0 %v9793
  %v9924 = vpop.f32.mrb[0].mxu0
  %v9925 = vadd.f32 0.0, %v9924
  %v9926 = vpop.f32.mrb[0].mxu0
  %9927 = vmatprep.mubr.f32.mxu0 0.0
  %9928 = vmatmul.mubr.f32.gmra.mrb[0].mxu0 %v9796
  %v9929 = vpop.f32.mrb[0].mxu0
  %v9930 = vadd.f32 0.0, %v9929
  %v9931 = vpop.f32.mrb[0].mxu0
  %9932 = vmatprep.mubr.f32.mxu0 0.0
  %9933 = vmatmul.mubr.f32.gmra.mrb[0].mxu0 %v9799
  %v9934 = vpop.f32.mrb[0].mxu0
  %v9935 = vadd.f32 0.0, %v9934
  %v9936 = vpop.f32.mrb[0].mxu0
  %9937 = vmatprep.mubr.f32.mxu0 0.0
  %9938 = vmatmul.mubr.f32.gmra.mrb[0].mxu0 %v9802
  %v9939 = vpop.f32.mrb[0].mxu0
  %v9940 = vadd.f32 0.0, %v9939
  %v9941 = vpop.f32.mrb[0].mxu0
  %9942 = vmatprep.mubr.f32.mxu0 0.0
  %9943 = vmatmul.mubr.f32.gmra.mrb[0].mxu0 %v9805
  %v9944 = vpop.f32.mrb[0].mxu0
  %v9945 = vadd.f32 0.0, %v9944
  %v9946 = vpop.f32.mrb[0].mxu0
  %9947 = vmatprep.mubr.f32.mxu0 0.0
  %9948 = vmatmul.mubr.f32.gmra.mrb[0].mxu0 %v9808
  %v9949 = vpop.f32.mrb[0].mxu0
  %v9950 = vadd.f32 0.0, %v9949
  %v9951 = vpop.f32.mrb[0].mxu0
  %9952 = vmatprep.mubr.f32.mxu0 0.0
  %9953 = vmatmul.mubr.f32.gmra.mrb[0].mxu0 %v9811
  %v9954 = vpop.f32.mrb[0].mxu0
  %v9955 = vadd.f32 0.0, %v9954
  %v9956 = vpop.f32.mrb[0].mxu0
  %9957 = vdwg.mxu0
  %v9958 = vadd.f32 %v9729, %v9880
  %v9959 = vadd.f32 %v9730, %v9885
  %v9960 = vadd.f32 %v9731, %v9890
  %v9961 = vadd.f32 %v9732, %v9895
  %v9962 = vadd.f32 %v9733, %v9900
  %v9963 = vadd.f32 %v9734, %v9905
  %v9964 = vadd.f32 %v9735, %v9910
  %v9965 = vadd.f32 %v9736, %v9915
  %v9966 = vadd.f32 %v9737, %v9920
  %v9967 = vadd.f32 %v9738, %v9925
  %v9968 = vadd.f32 %v9739, %v9930
  %v9969 = vadd.f32 %v9740, %v9935
  %v9970 = vadd.f32 %v9741, %v9940
  %v9971 = vadd.f32 %v9742, %v9945
  %v9972 = vadd.f32 %v9743, %v9950
  %v9973 = vadd.f32 %v9744, %v9955
  %v9974 = vld [vmem:[%s9745 + $0x1] sm:$0xff]
  %v9975 = vld [vmem:[%s9745 + $0x11] sm:$0xff]
  %v9976 = vld [vmem:[%s9745 + $0x21] sm:$0xff]
  %v9977 = vld [vmem:[%s9745 + $0x31] sm:$0xff]
  %v9978 = vld [vmem:[%s9745 + $0x41] sm:$0xff]
  %v9979 = vld [vmem:[%s9745 + $0x51] sm:$0xff]
  %v9980 = vld [vmem:[%s9745 + $0x61] sm:$0xff]
  %v9981 = vld [vmem:[%s9745 + $0x71] sm:$0xff]
  %v9982 = vld [vmem:[%s9745 + $0xa1] sm:$0xff]
  %v9983 = vld [vmem:[%s9745 + $0xb1] sm:$0xff]
  %v9984 = vld [vmem:[%s9745 + $0xc1] sm:$0xff]
  %v9985 = vld [vmem:[%s9745 + $0xd1] sm:$0xff]
  %v9986 = vld [vmem:[%s9745 + $0xe1] sm:$0xff]
  %v9987 = vld [vmem:[%s9745 + $0xf1] sm:$0xff]
  %v9988 = vld [vmem:[%s9745 + $0x101] sm:$0xff]
  %v9989 = vld [vmem:[%s9745 + $0x111] sm:$0xff]
  %s9990 = scalar_lea.vmem %s4, 112
  %v9991 = vld [vmem:[%s9990] sm:$0xff]
  %v9992 = vld [vmem:[%s9990 + $0x8] sm:$0xff]
  %v9994 = vsel %vm8089, %v9974, 0
  %v9997 = vsel %vm8089, %v9975, 0
  %v10000 = vsel %vm8089, %v9976, 0
  %v10003 = vsel %vm8089, %v9977, 0
  %v10006 = vsel %vm8089, %v9978, 0
  %v10009 = vsel %vm8089, %v9979, 0
  %v10012 = vsel %vm8089, %v9980, 0
  %v10015 = vsel %vm8089, %v9981, 0
  %v10018 = vsel %vm8089, %v9982, 0
  %v10021 = vsel %vm8089, %v9983, 0
  %v10024 = vsel %vm8089, %v9984, 0
  %v10027 = vsel %vm8089, %v9985, 0
  %v10030 = vsel %vm8089, %v9986, 0
  %v10033 = vsel %vm8089, %v9987, 0
  %v10036 = vsel %vm8089, %v9988, 0
  %v10039 = vsel %vm8089, %v9989, 0
  %10041 = vmatprep.subr.mxu0 0.0
  %10042 = vmatpush1.msra.mxu0 %v9991
  %10043 = vmatprep.subr.mxu0 0.0
  %10044 = vmatpush1.msra.mxu0 %v9992
  %10045 = vmatprep.subr.mxu0 0.0
  %10046 = vmatpush1.msra.mxu0 0.0
  %10047 = vmatprep.subr.mxu0 0.0
  %10048 = vmatpush1.msra.mxu0 0.0
  %10049 = vmatprep.subr.mxu0 0.0
  %10050 = vmatpush1.msra.mxu0 0.0
  %10051 = vmatprep.subr.mxu0 0.0
  %10052 = vmatpush1.msra.mxu0 0.0
  %10053 = vmatprep.subr.mxu0 0.0
  %10054 = vmatpush1.msra.mxu0 0.0
  %10055 = vmatprep.subr.mxu0 0.0
  %10056 = vmatpush1.msra.mxu0 0.0
  %10057 = vmatprep.subr.mxu0 0.0
  %10058 = vmatpush1.msra.mxu0 0.0
  %10059 = vmatprep.subr.mxu0 0.0
  %10060 = vmatpush1.msra.mxu0 0.0
  %10061 = vmatprep.subr.mxu0 0.0
  %10062 = vmatpush1.msra.mxu0 0.0
  %10063 = vmatprep.subr.mxu0 0.0
  %10064 = vmatpush1.msra.mxu0 0.0
  %10065 = vmatprep.subr.mxu0 0.0
  %10066 = vmatpush1.msra.mxu0 0.0
  %10067 = vmatprep.subr.mxu0 0.0
  %10068 = vmatpush1.msra.mxu0 0.0
  %10069 = vmatprep.subr.mxu0 0.0
  %10070 = vmatpush1.msra.mxu0 0.0
  %10071 = vmatprep.subr.mxu0 0.0
  %10072 = vmatpush1.msra.mxu0 0.0
  %10073 = vmatprep.subr.mxu0 0.0
  %10074 = vmatpush1.msra.mxu0 0.0
  %10075 = vmatprep.subr.mxu0 0.0
  %10076 = vmatpush1.msra.mxu0 0.0
  %10077 = vmatprep.subr.mxu0 0.0
  %10078 = vmatpush1.msra.mxu0 0.0
  %10079 = vmatprep.subr.mxu0 0.0
  %10080 = vmatpush1.msra.mxu0 0.0
  %10081 = vmatprep.subr.mxu0 0.0
  %10082 = vmatpush1.msra.mxu0 0.0
  %10083 = vmatprep.subr.mxu0 0.0
  %10084 = vmatpush1.msra.mxu0 0.0
  %10085 = vmatprep.subr.mxu0 0.0
  %10086 = vmatpush1.msra.mxu0 0.0
  %10087 = vmatprep.subr.mxu0 0.0
  %10088 = vmatpush1.msra.mxu0 0.0
  %10089 = vmatprep.subr.mxu0 0.0
  %10090 = vmatpush1.msra.mxu0 0.0
  %10091 = vmatprep.subr.mxu0 0.0
  %10092 = vmatpush1.msra.mxu0 0.0
  %10093 = vmatprep.subr.mxu0 0.0
  %10094 = vmatpush1.msra.mxu0 0.0
  %10095 = vmatprep.subr.mxu0 0.0
  %10096 = vmatpush1.msra.mxu0 0.0
  %10097 = vmatprep.subr.mxu0 0.0
  %10098 = vmatpush1.msra.mxu0 0.0
  %10099 = vmatprep.subr.mxu0 0.0
  %10100 = vmatpush1.msra.mxu0 0.0
  %10101 = vmatprep.subr.mxu0 0.0
  %10102 = vmatpush1.msra.mxu0 0.0
  %10103 = vmatprep.subr.mxu0 0.0
  %10104 = vmatpush1.msra.mxu0 0.0
  %10105 = vmatprep.mubr.f32.mxu0 0.0
  %10106 = vmatmul.mubr.f32.gmra.mrb[0].mxu0 %v9994
  %v10107 = vpop.f32.mrb[0].mxu0
  %v10108 = vadd.f32 0.0, %v10107
  %v10109 = vpop.f32.mrb[0].mxu0
  %10110 = vmatprep.mubr.f32.mxu0 0.0
  %10111 = vmatmul.mubr.f32.gmra.mrb[0].mxu0 %v9997
  %v10112 = vpop.f32.mrb[0].mxu0
  %v10113 = vadd.f32 0.0, %v10112
  %v10114 = vpop.f32.mrb[0].mxu0
  %10115 = vmatprep.mubr.f32.mxu0 0.0
  %10116 = vmatmul.mubr.f32.gmra.mrb[0].mxu0 %v10000
  %v10117 = vpop.f32.mrb[0].mxu0
  %v10118 = vadd.f32 0.0, %v10117
  %v10119 = vpop.f32.mrb[0].mxu0
  %10120 = vmatprep.mubr.f32.mxu0 0.0
  %10121 = vmatmul.mubr.f32.gmra.mrb[0].mxu0 %v10003
  %v10122 = vpop.f32.mrb[0].mxu0
  %v10123 = vadd.f32 0.0, %v10122
  %v10124 = vpop.f32.mrb[0].mxu0
  %10125 = vmatprep.mubr.f32.mxu0 0.0
  %10126 = vmatmul.mubr.f32.gmra.mrb[0].mxu0 %v10006
  %v10127 = vpop.f32.mrb[0].mxu0
  %v10128 = vadd.f32 0.0, %v10127
  %v10129 = vpop.f32.mrb[0].mxu0
  %10130 = vmatprep.mubr.f32.mxu0 0.0
  %10131 = vmatmul.mubr.f32.gmra.mrb[0].mxu0 %v10009
  %v10132 = vpop.f32.mrb[0].mxu0
  %v10133 = vadd.f32 0.0, %v10132
  %v10134 = vpop.f32.mrb[0].mxu0
  %10135 = vmatprep.mubr.f32.mxu0 0.0
  %10136 = vmatmul.mubr.f32.gmra.mrb[0].mxu0 %v10012
  %v10137 = vpop.f32.mrb[0].mxu0
  %v10138 = vadd.f32 0.0, %v10137
  %v10139 = vpop.f32.mrb[0].mxu0
  %10140 = vmatprep.mubr.f32.mxu0 0.0
  %10141 = vmatmul.mubr.f32.gmra.mrb[0].mxu0 %v10015
  %v10142 = vpop.f32.mrb[0].mxu0
  %v10143 = vadd.f32 0.0, %v10142
  %v10144 = vpop.f32.mrb[0].mxu0
  %10145 = vmatprep.mubr.f32.mxu0 0.0
  %10146 = vmatmul.mubr.f32.gmra.mrb[0].mxu0 %v10018
  %v10147 = vpop.f32.mrb[0].mxu0
  %v10148 = vadd.f32 0.0, %v10147
  %v10149 = vpop.f32.mrb[0].mxu0
  %10150 = vmatprep.mubr.f32.mxu0 0.0
  %10151 = vmatmul.mubr.f32.gmra.mrb[0].mxu0 %v10021
  %v10152 = vpop.f32.mrb[0].mxu0
  %v10153 = vadd.f32 0.0, %v10152
  %v10154 = vpop.f32.mrb[0].mxu0
  %10155 = vmatprep.mubr.f32.mxu0 0.0
  %10156 = vmatmul.mubr.f32.gmra.mrb[0].mxu0 %v10024
  %v10157 = vpop.f32.mrb[0].mxu0
  %v10158 = vadd.f32 0.0, %v10157
  %v10159 = vpop.f32.mrb[0].mxu0
  %10160 = vmatprep.mubr.f32.mxu0 0.0
  %10161 = vmatmul.mubr.f32.gmra.mrb[0].mxu0 %v10027
  %v10162 = vpop.f32.mrb[0].mxu0
  %v10163 = vadd.f32 0.0, %v10162
  %v10164 = vpop.f32.mrb[0].mxu0
  %10165 = vmatprep.mubr.f32.mxu0 0.0
  %10166 = vmatmul.mubr.f32.gmra.mrb[0].mxu0 %v10030
  %v10167 = vpop.f32.mrb[0].mxu0
  %v10168 = vadd.f32 0.0, %v10167
  %v10169 = vpop.f32.mrb[0].mxu0
  %10170 = vmatprep.mubr.f32.mxu0 0.0
  %10171 = vmatmul.mubr.f32.gmra.mrb[0].mxu0 %v10033
  %v10172 = vpop.f32.mrb[0].mxu0
  %v10173 = vadd.f32 0.0, %v10172
  %v10174 = vpop.f32.mrb[0].mxu0
  %10175 = vmatprep.mubr.f32.mxu0 0.0
  %10176 = vmatmul.mubr.f32.gmra.mrb[0].mxu0 %v10036
  %v10177 = vpop.f32.mrb[0].mxu0
  %v10178 = vadd.f32 0.0, %v10177
  %v10179 = vpop.f32.mrb[0].mxu0
  %10180 = vmatprep.mubr.f32.mxu0 0.0
  %10181 = vmatmul.mubr.f32.gmra.mrb[0].mxu0 %v10039
  %v10182 = vpop.f32.mrb[0].mxu0
  %v10183 = vadd.f32 0.0, %v10182
  %v10184 = vpop.f32.mrb[0].mxu0
  %10185 = vdwg.mxu0
  %v10186 = vadd.f32 %v9958, %v10108
  %v10187 = vadd.f32 %v9959, %v10113
  %v10188 = vadd.f32 %v9960, %v10118
  %v10189 = vadd.f32 %v9961, %v10123
  %v10190 = vadd.f32 %v9962, %v10128
  %v10191 = vadd.f32 %v9963, %v10133
  %v10192 = vadd.f32 %v9964, %v10138
  %v10193 = vadd.f32 %v9965, %v10143
  %v10194 = vadd.f32 %v9966, %v10148
  %v10195 = vadd.f32 %v9967, %v10153
  %v10196 = vadd.f32 %v9968, %v10158
  %v10197 = vadd.f32 %v9969, %v10163
  %v10198 = vadd.f32 %v9970, %v10168
  %v10199 = vadd.f32 %v9971, %v10173
  %v10200 = vadd.f32 %v9972, %v10178
  %v10201 = vadd.f32 %v9973, %v10183
  %v10202 = vld [vmem:[%s9745 + $0x2] sm:$0xff]
  %v10203 = vld [vmem:[%s9745 + $0x12] sm:$0xff]
  %v10204 = vld [vmem:[%s9745 + $0x22] sm:$0xff]
  %v10205 = vld [vmem:[%s9745 + $0x32] sm:$0xff]
  %v10206 = vld [vmem:[%s9745 + $0x42] sm:$0xff]
  %v10207 = vld [vmem:[%s9745 + $0x52] sm:$0xff]
  %v10208 = vld [vmem:[%s9745 + $0x62] sm:$0xff]
  %v10209 = vld [vmem:[%s9745 + $0x72] sm:$0xff]
  %v10210 = vld [vmem:[%s9745 + $0xa2] sm:$0xff]
  %v10211 = vld [vmem:[%s9745 + $0xb2] sm:$0xff]
  %v10212 = vld [vmem:[%s9745 + $0xc2] sm:$0xff]
  %v10213 = vld [vmem:[%s9745 + $0xd2] sm:$0xff]
  %v10214 = vld [vmem:[%s9745 + $0xe2] sm:$0xff]
  %v10215 = vld [vmem:[%s9745 + $0xf2] sm:$0xff]
  %v10216 = vld [vmem:[%s9745 + $0x102] sm:$0xff]
  %v10217 = vld [vmem:[%s9745 + $0x112] sm:$0xff]
  %s10218 = scalar_lea.vmem %s4, 128
  %v10219 = vld [vmem:[%s10218] sm:$0xff]
  %v10220 = vld [vmem:[%s10218 + $0x8] sm:$0xff]
  %v10222 = vsel %vm8089, %v10202, 0
  %v10225 = vsel %vm8089, %v10203, 0
  %v10228 = vsel %vm8089, %v10204, 0
  %v10231 = vsel %vm8089, %v10205, 0
  %v10234 = vsel %vm8089, %v10206, 0
  %v10237 = vsel %vm8089, %v10207, 0
  %v10240 = vsel %vm8089, %v10208, 0
  %v10243 = vsel %vm8089, %v10209, 0
  %v10246 = vsel %vm8089, %v10210, 0
  %v10249 = vsel %vm8089, %v10211, 0
  %v10252 = vsel %vm8089, %v10212, 0
  %v10255 = vsel %vm8089, %v10213, 0
  %v10258 = vsel %vm8089, %v10214, 0
  %v10261 = vsel %vm8089, %v10215, 0
  %v10264 = vsel %vm8089, %v10216, 0
  %v10267 = vsel %vm8089, %v10217, 0
  %10269 = vmatprep.subr.mxu0 0.0
  %10270 = vmatpush1.msra.mxu0 %v10219
  %10271 = vmatprep.subr.mxu0 0.0
  %10272 = vmatpush1.msra.mxu0 %v10220
  %10273 = vmatprep.subr.mxu0 0.0
  %10274 = vmatpush1.msra.mxu0 0.0
  %10275 = vmatprep.subr.mxu0 0.0
  %10276 = vmatpush1.msra.mxu0 0.0
  %10277 = vmatprep.subr.mxu0 0.0
  %10278 = vmatpush1.msra.mxu0 0.0
  %10279 = vmatprep.subr.mxu0 0.0
  %10280 = vmatpush1.msra.mxu0 0.0
  %10281 = vmatprep.subr.mxu0 0.0
  %10282 = vmatpush1.msra.mxu0 0.0
  %10283 = vmatprep.subr.mxu0 0.0
  %10284 = vmatpush1.msra.mxu0 0.0
  %10285 = vmatprep.subr.mxu0 0.0
  %10286 = vmatpush1.msra.mxu0 0.0
  %10287 = vmatprep.subr.mxu0 0.0
  %10288 = vmatpush1.msra.mxu0 0.0
  %10289 = vmatprep.subr.mxu0 0.0
  %10290 = vmatpush1.msra.mxu0 0.0
  %10291 = vmatprep.subr.mxu0 0.0
  %10292 = vmatpush1.msra.mxu0 0.0
  %10293 = vmatprep.subr.mxu0 0.0
  %10294 = vmatpush1.msra.mxu0 0.0
  %10295 = vmatprep.subr.mxu0 0.0
  %10296 = vmatpush1.msra.mxu0 0.0
  %10297 = vmatprep.subr.mxu0 0.0
  %10298 = vmatpush1.msra.mxu0 0.0
  %10299 = vmatprep.subr.mxu0 0.0
  %10300 = vmatpush1.msra.mxu0 0.0
  %10301 = vmatprep.subr.mxu0 0.0
  %10302 = vmatpush1.msra.mxu0 0.0
  %10303 = vmatprep.subr.mxu0 0.0
  %10304 = vmatpush1.msra.mxu0 0.0
  %10305 = vmatprep.subr.mxu0 0.0
  %10306 = vmatpush1.msra.mxu0 0.0
  %10307 = vmatprep.subr.mxu0 0.0
  %10308 = vmatpush1.msra.mxu0 0.0
  %10309 = vmatprep.subr.mxu0 0.0
  %10310 = vmatpush1.msra.mxu0 0.0
  %10311 = vmatprep.subr.mxu0 0.0
  %10312 = vmatpush1.msra.mxu0 0.0
  %10313 = vmatprep.subr.mxu0 0.0
  %10314 = vmatpush1.msra.mxu0 0.0
  %10315 = vmatprep.subr.mxu0 0.0
  %10316 = vmatpush1.msra.mxu0 0.0
  %10317 = vmatprep.subr.mxu0 0.0
  %10318 = vmatpush1.msra.mxu0 0.0
  %10319 = vmatprep.subr.mxu0 0.0
  %10320 = vmatpush1.msra.mxu0 0.0
  %10321 = vmatprep.subr.mxu0 0.0
  %10322 = vmatpush1.msra.mxu0 0.0
  %10323 = vmatprep.subr.mxu0 0.0
  %10324 = vmatpush1.msra.mxu0 0.0
  %10325 = vmatprep.subr.mxu0 0.0
  %10326 = vmatpush1.msra.mxu0 0.0
  %10327 = vmatprep.subr.mxu0 0.0
  %10328 = vmatpush1.msra.mxu0 0.0
  %10329 = vmatprep.subr.mxu0 0.0
  %10330 = vmatpush1.msra.mxu0 0.0
  %10331 = vmatprep.subr.mxu0 0.0
  %10332 = vmatpush1.msra.mxu0 0.0
  %10333 = vmatprep.mubr.f32.mxu0 0.0
  %10334 = vmatmul.mubr.f32.gmra.mrb[0].mxu0 %v10222
  %v10335 = vpop.f32.mrb[0].mxu0
  %v10336 = vadd.f32 0.0, %v10335
  %v10337 = vpop.f32.mrb[0].mxu0
  %10338 = vmatprep.mubr.f32.mxu0 0.0
  %10339 = vmatmul.mubr.f32.gmra.mrb[0].mxu0 %v10225
  %v10340 = vpop.f32.mrb[0].mxu0
  %v10341 = vadd.f32 0.0, %v10340
  %v10342 = vpop.f32.mrb[0].mxu0
  %10343 = vmatprep.mubr.f32.mxu0 0.0
  %10344 = vmatmul.mubr.f32.gmra.mrb[0].mxu0 %v10228
  %v10345 = vpop.f32.mrb[0].mxu0
  %v10346 = vadd.f32 0.0, %v10345
  %v10347 = vpop.f32.mrb[0].mxu0
  %10348 = vmatprep.mubr.f32.mxu0 0.0
  %10349 = vmatmul.mubr.f32.gmra.mrb[0].mxu0 %v10231
  %v10350 = vpop.f32.mrb[0].mxu0
  %v10351 = vadd.f32 0.0, %v10350
  %v10352 = vpop.f32.mrb[0].mxu0
  %10353 = vmatprep.mubr.f32.mxu0 0.0
  %10354 = vmatmul.mubr.f32.gmra.mrb[0].mxu0 %v10234
  %v10355 = vpop.f32.mrb[0].mxu0
  %v10356 = vadd.f32 0.0, %v10355
  %v10357 = vpop.f32.mrb[0].mxu0
  %10358 = vmatprep.mubr.f32.mxu0 0.0
  %10359 = vmatmul.mubr.f32.gmra.mrb[0].mxu0 %v10237
  %v10360 = vpop.f32.mrb[0].mxu0
  %v10361 = vadd.f32 0.0, %v10360
  %v10362 = vpop.f32.mrb[0].mxu0
  %10363 = vmatprep.mubr.f32.mxu0 0.0
  %10364 = vmatmul.mubr.f32.gmra.mrb[0].mxu0 %v10240
  %v10365 = vpop.f32.mrb[0].mxu0
  %v10366 = vadd.f32 0.0, %v10365
  %v10367 = vpop.f32.mrb[0].mxu0
  %10368 = vmatprep.mubr.f32.mxu0 0.0
  %10369 = vmatmul.mubr.f32.gmra.mrb[0].mxu0 %v10243
  %v10370 = vpop.f32.mrb[0].mxu0
  %v10371 = vadd.f32 0.0, %v10370
  %v10372 = vpop.f32.mrb[0].mxu0
  %10373 = vmatprep.mubr.f32.mxu0 0.0
  %10374 = vmatmul.mubr.f32.gmra.mrb[0].mxu0 %v10246
  %v10375 = vpop.f32.mrb[0].mxu0
  %v10376 = vadd.f32 0.0, %v10375
  %v10377 = vpop.f32.mrb[0].mxu0
  %10378 = vmatprep.mubr.f32.mxu0 0.0
  %10379 = vmatmul.mubr.f32.gmra.mrb[0].mxu0 %v10249
  %v10380 = vpop.f32.mrb[0].mxu0
  %v10381 = vadd.f32 0.0, %v10380
  %v10382 = vpop.f32.mrb[0].mxu0
  %10383 = vmatprep.mubr.f32.mxu0 0.0
  %10384 = vmatmul.mubr.f32.gmra.mrb[0].mxu0 %v10252
  %v10385 = vpop.f32.mrb[0].mxu0
  %v10386 = vadd.f32 0.0, %v10385
  %v10387 = vpop.f32.mrb[0].mxu0
  %10388 = vmatprep.mubr.f32.mxu0 0.0
  %10389 = vmatmul.mubr.f32.gmra.mrb[0].mxu0 %v10255
  %v10390 = vpop.f32.mrb[0].mxu0
  %v10391 = vadd.f32 0.0, %v10390
  %v10392 = vpop.f32.mrb[0].mxu0
  %10393 = vmatprep.mubr.f32.mxu0 0.0
  %10394 = vmatmul.mubr.f32.gmra.mrb[0].mxu0 %v10258
  %v10395 = vpop.f32.mrb[0].mxu0
  %v10396 = vadd.f32 0.0, %v10395
  %v10397 = vpop.f32.mrb[0].mxu0
  %10398 = vmatprep.mubr.f32.mxu0 0.0
  %10399 = vmatmul.mubr.f32.gmra.mrb[0].mxu0 %v10261
  %v10400 = vpop.f32.mrb[0].mxu0
  %v10401 = vadd.f32 0.0, %v10400
  %v10402 = vpop.f32.mrb[0].mxu0
  %10403 = vmatprep.mubr.f32.mxu0 0.0
  %10404 = vmatmul.mubr.f32.gmra.mrb[0].mxu0 %v10264
  %v10405 = vpop.f32.mrb[0].mxu0
  %v10406 = vadd.f32 0.0, %v10405
  %v10407 = vpop.f32.mrb[0].mxu0
  %10408 = vmatprep.mubr.f32.mxu0 0.0
  %10409 = vmatmul.mubr.f32.gmra.mrb[0].mxu0 %v10267
  %v10410 = vpop.f32.mrb[0].mxu0
  %v10411 = vadd.f32 0.0, %v10410
  %v10412 = vpop.f32.mrb[0].mxu0
  %10413 = vdwg.mxu0
  %v10414 = vadd.f32 %v10186, %v10336
  %v10415 = vadd.f32 %v10187, %v10341
  %v10416 = vadd.f32 %v10188, %v10346
  %v10417 = vadd.f32 %v10189, %v10351
  %v10418 = vadd.f32 %v10190, %v10356
  %v10419 = vadd.f32 %v10191, %v10361
  %v10420 = vadd.f32 %v10192, %v10366
  %v10421 = vadd.f32 %v10193, %v10371
  %v10422 = vadd.f32 %v10194, %v10376
  %v10423 = vadd.f32 %v10195, %v10381
  %v10424 = vadd.f32 %v10196, %v10386
  %v10425 = vadd.f32 %v10197, %v10391
  %v10426 = vadd.f32 %v10198, %v10396
  %v10427 = vadd.f32 %v10199, %v10401
  %v10428 = vadd.f32 %v10200, %v10406
  %v10429 = vadd.f32 %v10201, %v10411
  %v10430 = vld [vmem:[%s5] sm:$0x1]
  %v10432 = vlaneseq
  %v10433 = vshrl.u32 %v10432, 7
  %v10434 = vsub.s32 0, %v10433
  %v10435 = vrot.slane %v10430, %v10434
  %v10437 = vadd.f32 %v10414, %v10435
  %v10438 = vadd.f32 %v10415, %v10435
  %v10439 = vadd.f32 %v10416, %v10435
  %v10440 = vadd.f32 %v10417, %v10435
  %v10441 = vadd.f32 %v10418, %v10435
  %v10442 = vadd.f32 %v10419, %v10435
  %v10443 = vadd.f32 %v10420, %v10435
  %v10444 = vadd.f32 %v10421, %v10435
  %v10445 = vadd.f32 %v10422, %v10435
  %v10446 = vadd.f32 %v10423, %v10435
  %v10447 = vadd.f32 %v10424, %v10435
  %v10448 = vadd.f32 %v10425, %v10435
  %v10449 = vadd.f32 %v10426, %v10435
  %v10450 = vadd.f32 %v10427, %v10435
  %v10451 = vadd.f32 %v10428, %v10435
  %v10452 = vadd.f32 %v10429, %v10435
  %v10453 = vmax.f32 %v10437, 0.0
  %v10454 = vmax.f32 %v10438, 0.0
  %v10455 = vmax.f32 %v10439, 0.0
  %v10456 = vmax.f32 %v10440, 0.0
  %v10457 = vmax.f32 %v10441, 0.0
  %v10458 = vmax.f32 %v10442, 0.0
  %v10459 = vmax.f32 %v10443, 0.0
  %v10460 = vmax.f32 %v10444, 0.0
  %v10461 = vmax.f32 %v10445, 0.0
  %v10462 = vmax.f32 %v10446, 0.0
  %v10463 = vmax.f32 %v10447, 0.0
  %v10464 = vmax.f32 %v10448, 0.0
  %v10465 = vmax.f32 %v10449, 0.0
  %v10466 = vmax.f32 %v10450, 0.0
  %v10467 = vmax.f32 %v10451, 0.0
  %v10468 = vmax.f32 %v10452, 0.0
  %v10469 = vmax.f32 %v10453, %v10454
  %v10470 = vmax.f32 %v10455, %v10456
  %v10471 = vmax.f32 %v10457, %v10458
  %v10472 = vmax.f32 %v10459, %v10460
  %v10473 = vmax.f32 %v10461, %v10462
  %v10474 = vmax.f32 %v10463, %v10464
  %v10475 = vmax.f32 %v10465, %v10466
  %v10476 = vmax.f32 %v10467, %v10468
  %v10485 = vcombine.high %v10469, %v10469
  %v10487 = vunpack.c.l.s4 1983009808
  %v10488 = vunpack.c.0.s8 %v10487
  %v10489 = vlaneseq
  %v10490 = vshrl.u32 %v10489, 7
  %v10491 = vsub.s32 %v10488, %v10490
  %v10492 = vrot.slane %v10469, %v10491
  %v10494 = vunpack.c.l.s4 1983009808
  %v10495 = vunpack.c.0.s8 %v10494
  %v10496 = vlaneseq
  %v10497 = vshrl.u32 %v10496, 7
  %v10498 = vsub.s32 %v10495, %v10497
  %v10499 = vrot.slane %v10485, %v10498
  %v10500 = vcombine.high %v10492, %v10492
  %v10501 = vcombine.high %v10499, %v10499
  %v10502 = vcombine.high %v10470, %v10470
  %v10504 = vunpack.c.l.s4 1983009808
  %v10505 = vunpack.c.0.s8 %v10504
  %v10506 = vlaneseq
  %v10507 = vshrl.u32 %v10506, 7
  %v10508 = vsub.s32 %v10505, %v10507
  %v10509 = vrot.slane %v10470, %v10508
  %v10511 = vunpack.c.l.s4 1983009808
  %v10512 = vunpack.c.0.s8 %v10511
  %v10513 = vlaneseq
  %v10514 = vshrl.u32 %v10513, 7
  %v10515 = vsub.s32 %v10512, %v10514
  %v10516 = vrot.slane %v10502, %v10515
  %v10517 = vcombine.high %v10509, %v10509
  %v10518 = vcombine.high %v10516, %v10516
  %v10519 = vcombine.high %v10471, %v10471
  %v10521 = vunpack.c.l.s4 1983009808
  %v10522 = vunpack.c.0.s8 %v10521
  %v10523 = vlaneseq
  %v10524 = vshrl.u32 %v10523, 7
  %v10525 = vsub.s32 %v10522, %v10524
  %v10526 = vrot.slane %v10471, %v10525
  %v10528 = vunpack.c.l.s4 1983009808
  %v10529 = vunpack.c.0.s8 %v10528
  %v10530 = vlaneseq
  %v10531 = vshrl.u32 %v10530, 7
  %v10532 = vsub.s32 %v10529, %v10531
  %v10533 = vrot.slane %v10519, %v10532
  %v10534 = vcombine.high %v10526, %v10526
  %v10535 = vcombine.high %v10533, %v10533
  %v10536 = vcombine.high %v10472, %v10472
  %v10538 = vunpack.c.l.s4 1983009808
  %v10539 = vunpack.c.0.s8 %v10538
  %v10540 = vlaneseq
  %v10541 = vshrl.u32 %v10540, 7
  %v10542 = vsub.s32 %v10539, %v10541
  %v10543 = vrot.slane %v10472, %v10542
  %v10545 = vunpack.c.l.s4 1983009808
  %v10546 = vunpack.c.0.s8 %v10545
  %v10547 = vlaneseq
  %v10548 = vshrl.u32 %v10547, 7
  %v10549 = vsub.s32 %v10546, %v10548
  %v10550 = vrot.slane %v10536, %v10549
  %v10551 = vcombine.high %v10543, %v10543
  %v10552 = vcombine.high %v10550, %v10550
  %v10553 = vcombine.high %v10473, %v10473
  %v10555 = vunpack.c.l.s4 1983009808
  %v10556 = vunpack.c.0.s8 %v10555
  %v10557 = vlaneseq
  %v10558 = vshrl.u32 %v10557, 7
  %v10559 = vsub.s32 %v10556, %v10558
  %v10560 = vrot.slane %v10473, %v10559
  %v10562 = vunpack.c.l.s4 1983009808
  %v10563 = vunpack.c.0.s8 %v10562
  %v10564 = vlaneseq
  %v10565 = vshrl.u32 %v10564, 7
  %v10566 = vsub.s32 %v10563, %v10565
  %v10567 = vrot.slane %v10553, %v10566
  %v10568 = vcombine.high %v10560, %v10560
  %v10569 = vcombine.high %v10567, %v10567
  %v10570 = vcombine.high %v10474, %v10474
  %v10572 = vunpack.c.l.s4 1983009808
  %v10573 = vunpack.c.0.s8 %v10572
  %v10574 = vlaneseq
  %v10575 = vshrl.u32 %v10574, 7
  %v10576 = vsub.s32 %v10573, %v10575
  %v10577 = vrot.slane %v10474, %v10576
  %v10579 = vunpack.c.l.s4 1983009808
  %v10580 = vunpack.c.0.s8 %v10579
  %v10581 = vlaneseq
  %v10582 = vshrl.u32 %v10581, 7
  %v10583 = vsub.s32 %v10580, %v10582
  %v10584 = vrot.slane %v10570, %v10583
  %v10585 = vcombine.high %v10577, %v10577
  %v10586 = vcombine.high %v10584, %v10584
  %v10587 = vcombine.high %v10475, %v10475
  %v10589 = vunpack.c.l.s4 1983009808
  %v10590 = vunpack.c.0.s8 %v10589
  %v10591 = vlaneseq
  %v10592 = vshrl.u32 %v10591, 7
  %v10593 = vsub.s32 %v10590, %v10592
  %v10594 = vrot.slane %v10475, %v10593
  %v10596 = vunpack.c.l.s4 1983009808
  %v10597 = vunpack.c.0.s8 %v10596
  %v10598 = vlaneseq
  %v10599 = vshrl.u32 %v10598, 7
  %v10600 = vsub.s32 %v10597, %v10599
  %v10601 = vrot.slane %v10587, %v10600
  %v10602 = vcombine.high %v10594, %v10594
  %v10603 = vcombine.high %v10601, %v10601
  %v10604 = vcombine.high %v10476, %v10476
  %v10606 = vunpack.c.l.s4 1983009808
  %v10607 = vunpack.c.0.s8 %v10606
  %v10608 = vlaneseq
  %v10609 = vshrl.u32 %v10608, 7
  %v10610 = vsub.s32 %v10607, %v10609
  %v10611 = vrot.slane %v10476, %v10610
  %v10613 = vunpack.c.l.s4 1983009808
  %v10614 = vunpack.c.0.s8 %v10613
  %v10615 = vlaneseq
  %v10616 = vshrl.u32 %v10615, 7
  %v10617 = vsub.s32 %v10614, %v10616
  %v10618 = vrot.slane %v10604, %v10617
  %v10619 = vcombine.high %v10611, %v10611
  %v10620 = vcombine.high %v10618, %v10618
  %vm10653 = vcmask 254976
  %v10654 = vsel %vm10653, %v10492, -inf
  %v10655 = vrot.slane %v10654, 4
  %v10656 = vmax.f32 %v10654, %v10655
  %v10657 = vrot.slane %v10656, 2
  %v10658 = vmax.f32 %v10656, %v10657
  %v10659 = vrot.slane %v10658, 1
  %v10660 = vmax.f32 %v10658, %v10659
  %v10661 = vsel %vm10653, %v10500, -inf
  %v10662 = vrot.slane %v10661, 4
  %v10663 = vmax.f32 %v10661, %v10662
  %v10664 = vrot.slane %v10663, 2
  %v10665 = vmax.f32 %v10663, %v10664
  %v10666 = vrot.slane %v10665, 1
  %v10667 = vmax.f32 %v10665, %v10666
  %v10668 = vsel %vm10653, %v10499, -inf
  %v10669 = vrot.slane %v10668, 4
  %v10670 = vmax.f32 %v10668, %v10669
  %v10671 = vrot.slane %v10670, 2
  %v10672 = vmax.f32 %v10670, %v10671
  %v10673 = vrot.slane %v10672, 1
  %v10674 = vmax.f32 %v10672, %v10673
  %v10675 = vsel %vm10653, %v10501, -inf
  %v10676 = vrot.slane %v10675, 4
  %v10677 = vmax.f32 %v10675, %v10676
  %v10678 = vrot.slane %v10677, 2
  %v10679 = vmax.f32 %v10677, %v10678
  %v10680 = vrot.slane %v10679, 1
  %v10681 = vmax.f32 %v10679, %v10680
  %v10682 = vsel %vm10653, %v10509, -inf
  %v10683 = vrot.slane %v10682, 4
  %v10684 = vmax.f32 %v10682, %v10683
  %v10685 = vrot.slane %v10684, 2
  %v10686 = vmax.f32 %v10684, %v10685
  %v10687 = vrot.slane %v10686, 1
  %v10688 = vmax.f32 %v10686, %v10687
  %v10689 = vsel %vm10653, %v10517, -inf
  %v10690 = vrot.slane %v10689, 4
  %v10691 = vmax.f32 %v10689, %v10690
  %v10692 = vrot.slane %v10691, 2
  %v10693 = vmax.f32 %v10691, %v10692
  %v10694 = vrot.slane %v10693, 1
  %v10695 = vmax.f32 %v10693, %v10694
  %v10696 = vsel %vm10653, %v10516, -inf
  %v10697 = vrot.slane %v10696, 4
  %v10698 = vmax.f32 %v10696, %v10697
  %v10699 = vrot.slane %v10698, 2
  %v10700 = vmax.f32 %v10698, %v10699
  %v10701 = vrot.slane %v10700, 1
  %v10702 = vmax.f32 %v10700, %v10701
  %v10703 = vsel %vm10653, %v10518, -inf
  %v10704 = vrot.slane %v10703, 4
  %v10705 = vmax.f32 %v10703, %v10704
  %v10706 = vrot.slane %v10705, 2
  %v10707 = vmax.f32 %v10705, %v10706
  %v10708 = vrot.slane %v10707, 1
  %v10709 = vmax.f32 %v10707, %v10708
  %v10710 = vsel %vm10653, %v10526, -inf
  %v10711 = vrot.slane %v10710, 4
  %v10712 = vmax.f32 %v10710, %v10711
  %v10713 = vrot.slane %v10712, 2
  %v10714 = vmax.f32 %v10712, %v10713
  %v10715 = vrot.slane %v10714, 1
  %v10716 = vmax.f32 %v10714, %v10715
  %v10717 = vsel %vm10653, %v10534, -inf
  %v10718 = vrot.slane %v10717, 4
  %v10719 = vmax.f32 %v10717, %v10718
  %v10720 = vrot.slane %v10719, 2
  %v10721 = vmax.f32 %v10719, %v10720
  %v10722 = vrot.slane %v10721, 1
  %v10723 = vmax.f32 %v10721, %v10722
  %v10724 = vsel %vm10653, %v10533, -inf
  %v10725 = vrot.slane %v10724, 4
  %v10726 = vmax.f32 %v10724, %v10725
  %v10727 = vrot.slane %v10726, 2
  %v10728 = vmax.f32 %v10726, %v10727
  %v10729 = vrot.slane %v10728, 1
  %v10730 = vmax.f32 %v10728, %v10729
  %v10731 = vsel %vm10653, %v10535, -inf
  %v10732 = vrot.slane %v10731, 4
  %v10733 = vmax.f32 %v10731, %v10732
  %v10734 = vrot.slane %v10733, 2
  %v10735 = vmax.f32 %v10733, %v10734
  %v10736 = vrot.slane %v10735, 1
  %v10737 = vmax.f32 %v10735, %v10736
  %v10738 = vsel %vm10653, %v10543, -inf
  %v10739 = vrot.slane %v10738, 4
  %v10740 = vmax.f32 %v10738, %v10739
  %v10741 = vrot.slane %v10740, 2
  %v10742 = vmax.f32 %v10740, %v10741
  %v10743 = vrot.slane %v10742, 1
  %v10744 = vmax.f32 %v10742, %v10743
  %v10745 = vsel %vm10653, %v10551, -inf
  %v10746 = vrot.slane %v10745, 4
  %v10747 = vmax.f32 %v10745, %v10746
  %v10748 = vrot.slane %v10747, 2
  %v10749 = vmax.f32 %v10747, %v10748
  %v10750 = vrot.slane %v10749, 1
  %v10751 = vmax.f32 %v10749, %v10750
  %v10752 = vsel %vm10653, %v10550, -inf
  %v10753 = vrot.slane %v10752, 4
  %v10754 = vmax.f32 %v10752, %v10753
  %v10755 = vrot.slane %v10754, 2
  %v10756 = vmax.f32 %v10754, %v10755
  %v10757 = vrot.slane %v10756, 1
  %v10758 = vmax.f32 %v10756, %v10757
  %v10759 = vsel %vm10653, %v10552, -inf
  %v10760 = vrot.slane %v10759, 4
  %v10761 = vmax.f32 %v10759, %v10760
  %v10762 = vrot.slane %v10761, 2
  %v10763 = vmax.f32 %v10761, %v10762
  %v10764 = vrot.slane %v10763, 1
  %v10765 = vmax.f32 %v10763, %v10764
  %v10766 = vsel %vm10653, %v10560, -inf
  %v10767 = vrot.slane %v10766, 4
  %v10768 = vmax.f32 %v10766, %v10767
  %v10769 = vrot.slane %v10768, 2
  %v10770 = vmax.f32 %v10768, %v10769
  %v10771 = vrot.slane %v10770, 1
  %v10772 = vmax.f32 %v10770, %v10771
  %v10773 = vsel %vm10653, %v10568, -inf
  %v10774 = vrot.slane %v10773, 4
  %v10775 = vmax.f32 %v10773, %v10774
  %v10776 = vrot.slane %v10775, 2
  %v10777 = vmax.f32 %v10775, %v10776
  %v10778 = vrot.slane %v10777, 1
  %v10779 = vmax.f32 %v10777, %v10778
  %v10780 = vsel %vm10653, %v10567, -inf
  %v10781 = vrot.slane %v10780, 4
  %v10782 = vmax.f32 %v10780, %v10781
  %v10783 = vrot.slane %v10782, 2
  %v10784 = vmax.f32 %v10782, %v10783
  %v10785 = vrot.slane %v10784, 1
  %v10786 = vmax.f32 %v10784, %v10785
  %v10787 = vsel %vm10653, %v10569, -inf
  %v10788 = vrot.slane %v10787, 4
  %v10789 = vmax.f32 %v10787, %v10788
  %v10790 = vrot.slane %v10789, 2
  %v10791 = vmax.f32 %v10789, %v10790
  %v10792 = vrot.slane %v10791, 1
  %v10793 = vmax.f32 %v10791, %v10792
  %v10794 = vsel %vm10653, %v10577, -inf
  %v10795 = vrot.slane %v10794, 4
  %v10796 = vmax.f32 %v10794, %v10795
  %v10797 = vrot.slane %v10796, 2
  %v10798 = vmax.f32 %v10796, %v10797
  %v10799 = vrot.slane %v10798, 1
  %v10800 = vmax.f32 %v10798, %v10799
  %v10801 = vsel %vm10653, %v10585, -inf
  %v10802 = vrot.slane %v10801, 4
  %v10803 = vmax.f32 %v10801, %v10802
  %v10804 = vrot.slane %v10803, 2
  %v10805 = vmax.f32 %v10803, %v10804
  %v10806 = vrot.slane %v10805, 1
  %v10807 = vmax.f32 %v10805, %v10806
  %v10808 = vsel %vm10653, %v10584, -inf
  %v10809 = vrot.slane %v10808, 4
  %v10810 = vmax.f32 %v10808, %v10809
  %v10811 = vrot.slane %v10810, 2
  %v10812 = vmax.f32 %v10810, %v10811
  %v10813 = vrot.slane %v10812, 1
  %v10814 = vmax.f32 %v10812, %v10813
  %v10815 = vsel %vm10653, %v10586, -inf
  %v10816 = vrot.slane %v10815, 4
  %v10817 = vmax.f32 %v10815, %v10816
  %v10818 = vrot.slane %v10817, 2
  %v10819 = vmax.f32 %v10817, %v10818
  %v10820 = vrot.slane %v10819, 1
  %v10821 = vmax.f32 %v10819, %v10820
  %v10822 = vsel %vm10653, %v10594, -inf
  %v10823 = vrot.slane %v10822, 4
  %v10824 = vmax.f32 %v10822, %v10823
  %v10825 = vrot.slane %v10824, 2
  %v10826 = vmax.f32 %v10824, %v10825
  %v10827 = vrot.slane %v10826, 1
  %v10828 = vmax.f32 %v10826, %v10827
  %v10829 = vsel %vm10653, %v10602, -inf
  %v10830 = vrot.slane %v10829, 4
  %v10831 = vmax.f32 %v10829, %v10830
  %v10832 = vrot.slane %v10831, 2
  %v10833 = vmax.f32 %v10831, %v10832
  %v10834 = vrot.slane %v10833, 1
  %v10835 = vmax.f32 %v10833, %v10834
  %v10836 = vsel %vm10653, %v10601, -inf
  %v10837 = vrot.slane %v10836, 4
  %v10838 = vmax.f32 %v10836, %v10837
  %v10839 = vrot.slane %v10838, 2
  %v10840 = vmax.f32 %v10838, %v10839
  %v10841 = vrot.slane %v10840, 1
  %v10842 = vmax.f32 %v10840, %v10841
  %v10843 = vsel %vm10653, %v10603, -inf
  %v10844 = vrot.slane %v10843, 4
  %v10845 = vmax.f32 %v10843, %v10844
  %v10846 = vrot.slane %v10845, 2
  %v10847 = vmax.f32 %v10845, %v10846
  %v10848 = vrot.slane %v10847, 1
  %v10849 = vmax.f32 %v10847, %v10848
  %v10850 = vsel %vm10653, %v10611, -inf
  %v10851 = vrot.slane %v10850, 4
  %v10852 = vmax.f32 %v10850, %v10851
  %v10853 = vrot.slane %v10852, 2
  %v10854 = vmax.f32 %v10852, %v10853
  %v10855 = vrot.slane %v10854, 1
  %v10856 = vmax.f32 %v10854, %v10855
  %v10857 = vsel %vm10653, %v10619, -inf
  %v10858 = vrot.slane %v10857, 4
  %v10859 = vmax.f32 %v10857, %v10858
  %v10860 = vrot.slane %v10859, 2
  %v10861 = vmax.f32 %v10859, %v10860
  %v10862 = vrot.slane %v10861, 1
  %v10863 = vmax.f32 %v10861, %v10862
  %v10864 = vsel %vm10653, %v10618, -inf
  %v10865 = vrot.slane %v10864, 4
  %v10866 = vmax.f32 %v10864, %v10865
  %v10867 = vrot.slane %v10866, 2
  %v10868 = vmax.f32 %v10866, %v10867
  %v10869 = vrot.slane %v10868, 1
  %v10870 = vmax.f32 %v10868, %v10869
  %v10871 = vsel %vm10653, %v10620, -inf
  %v10872 = vrot.slane %v10871, 4
  %v10873 = vmax.f32 %v10871, %v10872
  %v10874 = vrot.slane %v10873, 2
  %v10875 = vmax.f32 %v10873, %v10874
  %v10876 = vrot.slane %v10875, 1
  %v10877 = vmax.f32 %v10875, %v10876
  %vm10878 = vcmask 259072
  %10879 = vst.msk [vmem:[#allocation3] sm:$0x3f] %vm10878, 0.0
  %10880 = vst.msk [vmem:[#allocation3 + $0x8] sm:$0x3f] %vm10878, 0.0
  %10881 = vst.msk [vmem:[#allocation3 + $0x10] sm:$0x3f] %vm10878, 0.0
  %10882 = vst.msk [vmem:[#allocation3 + $0x18] sm:$0x3f] %vm10878, 0.0
  %10883 = vst.msk [vmem:[#allocation3 + $0x20] sm:$0x3f] %vm10878, 0.0
  %10884 = vst.msk [vmem:[#allocation3 + $0x28] sm:$0x3f] %vm10878, 0.0
  %10885 = vst.msk [vmem:[#allocation3 + $0x30] sm:$0x3f] %vm10878, 0.0
  %10886 = vst.msk [vmem:[#allocation3 + $0x38] sm:$0x3f] %vm10878, 0.0
  %10887 = vst.msk [vmem:[#allocation3 + $0x40] sm:$0x3f] %vm10878, 0.0
  %10888 = vst.msk [vmem:[#allocation3 + $0x48] sm:$0x3f] %vm10878, 0.0
  %10889 = vst.msk [vmem:[#allocation3 + $0x50] sm:$0x3f] %vm10878, 0.0
  %10890 = vst.msk [vmem:[#allocation3 + $0x58] sm:$0x3f] %vm10878, 0.0
  %v10923 = vsel %vm8258, %v10667, %v10660
  %v10924 = vsel %vm8260, %v10674, %v10923
  %v10925 = vsel %vm8262, %v10681, %v10924
  %v10926 = vsel %vm8258, %v10695, %v10688
  %v10927 = vsel %vm8260, %v10702, %v10926
  %v10928 = vsel %vm8262, %v10709, %v10927
  %v10929 = vsel %vm8258, %v10723, %v10716
  %v10930 = vsel %vm8260, %v10730, %v10929
  %v10931 = vsel %vm8262, %v10737, %v10930
  %v10932 = vsel %vm8258, %v10751, %v10744
  %v10933 = vsel %vm8260, %v10758, %v10932
  %v10934 = vsel %vm8262, %v10765, %v10933
  %v10935 = vsel %vm8258, %v10779, %v10772
  %v10936 = vsel %vm8260, %v10786, %v10935
  %v10937 = vsel %vm8262, %v10793, %v10936
  %v10938 = vsel %vm8258, %v10807, %v10800
  %v10939 = vsel %vm8260, %v10814, %v10938
  %v10940 = vsel %vm8262, %v10821, %v10939
  %v10941 = vsel %vm8258, %v10835, %v10828
  %v10942 = vsel %vm8260, %v10842, %v10941
  %v10943 = vsel %vm8262, %v10849, %v10942
  %v10944 = vsel %vm8258, %v10863, %v10856
  %v10945 = vsel %vm8260, %v10870, %v10944
  %v10946 = vsel %vm8262, %v10877, %v10945
  %s10955 = scalar_lea.vmem [#allocation3], 8
  %vm10956 = vcmask 257024
  %10957 = vst.msk [vmem:[%s10955 + $0x1] sm:$0xf] %vm10956, %v10925
  %10958 = vst.msk [vmem:[%s10955 + $0x9] sm:$0xf] %vm10956, %v10928
  %10959 = vst.msk [vmem:[%s10955 + $0x11] sm:$0xf] %vm10956, %v10931
  %10960 = vst.msk [vmem:[%s10955 + $0x19] sm:$0xf] %vm10956, %v10934
  %10961 = vst.msk [vmem:[%s10955 + $0x31] sm:$0xf] %vm10956, %v10937
  %10962 = vst.msk [vmem:[%s10955 + $0x39] sm:$0xf] %vm10956, %v10940
  %10963 = vst.msk [vmem:[%s10955 + $0x41] sm:$0xf] %vm10956, %v10943
  %10964 = vst.msk [vmem:[%s10955 + $0x49] sm:$0xf] %vm10956, %v10946
  %v10965 = vld [vmem:[#allocation3] sm:$0xf]
  %v10966 = vld [vmem:[#allocation3 + $0x8] sm:$0xf]
  %v10967 = vld [vmem:[#allocation3 + $0x10] sm:$0xf]
  %v10968 = vld [vmem:[#allocation3 + $0x18] sm:$0xf]
  %v10969 = vld [vmem:[#allocation3 + $0x30] sm:$0xf]
  %v10970 = vld [vmem:[#allocation3 + $0x38] sm:$0xf]
  %v10971 = vld [vmem:[#allocation3 + $0x40] sm:$0xf]
  %v10972 = vld [vmem:[#allocation3 + $0x48] sm:$0xf]
  %v10973 = vld [vmem:[%s6] sm:$0xff]
  %v10974 = vld [vmem:[%s6 + $0x8] sm:$0xff]
  %v10975 = vld [vmem:[%s6 + $0x10] sm:$0xff]
  %v10976 = vld [vmem:[%s6 + $0x18] sm:$0xff]
  %v10977 = vld [vmem:[#allocation3 + $0x1] sm:$0xf]
  %v10978 = vld [vmem:[#allocation3 + $0x9] sm:$0xf]
  %v10979 = vld [vmem:[#allocation3 + $0x11] sm:$0xf]
  %v10980 = vld [vmem:[#allocation3 + $0x19] sm:$0xf]
  %v10981 = vld [vmem:[#allocation3 + $0x31] sm:$0xf]
  %v10982 = vld [vmem:[#allocation3 + $0x39] sm:$0xf]
  %v10983 = vld [vmem:[#allocation3 + $0x41] sm:$0xf]
  %v10984 = vld [vmem:[#allocation3 + $0x49] sm:$0xf]
  %s10985 = scalar_lea.vmem %s6, 32
  %v10986 = vld [vmem:[%s10985] sm:$0xff]
  %v10987 = vld [vmem:[%s10985 + $0x8] sm:$0xff]
  %v10988 = vld [vmem:[%s10985 + $0x10] sm:$0xff]
  %v10989 = vld [vmem:[%s10985 + $0x18] sm:$0xff]
  %v10998 = vcombine.low %v10977, %v10978
  %v10999 = vcombine.low %v10979, %v10980
  %v11000 = vcombine.low %v10981, %v10982
  %v11001 = vcombine.low %v10983, %v10984
  %vm11002 = vcmask 261120
  %v11003 = vsel %vm11002, %v10998, 0
  %v11005 = vsel %vm11002, %v10999, 0
  %v11007 = vsel %vm11002, %v11000, 0
  %v11009 = vsel %vm11002, %v11001, 0
  %11011 = vmatprep.subr.mxu0 0.0
  %11012 = vmatpush1.msra.mxu0 %v10986
  %11013 = vmatprep.subr.mxu0 0.0
  %11014 = vmatpush1.msra.mxu0 %v10987
  %11015 = vmatprep.subr.mxu0 0.0
  %11016 = vmatpush1.msra.mxu0 %v10988
  %11017 = vmatprep.subr.mxu0 0.0
  %11018 = vmatpush1.msra.mxu0 %v10989
  %11019 = vmatprep.subr.mxu0 0.0
  %11020 = vmatpush1.msra.mxu0 0.0
  %11021 = vmatprep.subr.mxu0 0.0
  %11022 = vmatpush1.msra.mxu0 0.0
  %11023 = vmatprep.subr.mxu0 0.0
  %11024 = vmatpush1.msra.mxu0 0.0
  %11025 = vmatprep.subr.mxu0 0.0
  %11026 = vmatpush1.msra.mxu0 0.0
  %11027 = vmatprep.subr.mxu0 0.0
  %11028 = vmatpush1.msra.mxu0 0.0
  %11029 = vmatprep.subr.mxu0 0.0
  %11030 = vmatpush1.msra.mxu0 0.0
  %11031 = vmatprep.subr.mxu0 0.0
  %11032 = vmatpush1.msra.mxu0 0.0
  %11033 = vmatprep.subr.mxu0 0.0
  %11034 = vmatpush1.msra.mxu0 0.0
  %11035 = vmatprep.subr.mxu0 0.0
  %11036 = vmatpush1.msra.mxu0 0.0
  %11037 = vmatprep.subr.mxu0 0.0
  %11038 = vmatpush1.msra.mxu0 0.0
  %11039 = vmatprep.subr.mxu0 0.0
  %11040 = vmatpush1.msra.mxu0 0.0
  %11041 = vmatprep.subr.mxu0 0.0
  %11042 = vmatpush1.msra.mxu0 0.0
  %11043 = vmatprep.subr.mxu0 0.0
  %11044 = vmatpush1.msra.mxu0 0.0
  %11045 = vmatprep.subr.mxu0 0.0
  %11046 = vmatpush1.msra.mxu0 0.0
  %11047 = vmatprep.subr.mxu0 0.0
  %11048 = vmatpush1.msra.mxu0 0.0
  %11049 = vmatprep.subr.mxu0 0.0
  %11050 = vmatpush1.msra.mxu0 0.0
  %11051 = vmatprep.subr.mxu0 0.0
  %11052 = vmatpush1.msra.mxu0 0.0
  %11053 = vmatprep.subr.mxu0 0.0
  %11054 = vmatpush1.msra.mxu0 0.0
  %11055 = vmatprep.subr.mxu0 0.0
  %11056 = vmatpush1.msra.mxu0 0.0
  %11057 = vmatprep.subr.mxu0 0.0
  %11058 = vmatpush1.msra.mxu0 0.0
  %11059 = vmatprep.subr.mxu0 0.0
  %11060 = vmatpush1.msra.mxu0 0.0
  %11061 = vmatprep.subr.mxu0 0.0
  %11062 = vmatpush1.msra.mxu0 0.0
  %11063 = vmatprep.subr.mxu0 0.0
  %11064 = vmatpush1.msra.mxu0 0.0
  %11065 = vmatprep.subr.mxu0 0.0
  %11066 = vmatpush1.msra.mxu0 0.0
  %11067 = vmatprep.subr.mxu0 0.0
  %11068 = vmatpush1.msra.mxu0 0.0
  %11069 = vmatprep.subr.mxu0 0.0
  %11070 = vmatpush1.msra.mxu0 0.0
  %11071 = vmatprep.subr.mxu0 0.0
  %11072 = vmatpush1.msra.mxu0 0.0
  %11073 = vmatprep.subr.mxu0 0.0
  %11074 = vmatpush1.msra.mxu0 0.0
  %11075 = vmatprep.mubr.f32.mxu0 0.0
  %11076 = vmatmul.mubr.f32.gmra.mrb[0].mxu0 %v11003
  %v11077 = vpop.f32.mrb[0].mxu0
  %v11078 = vadd.f32 0.0, %v11077
  %v11079 = vpop.f32.mrb[0].mxu0
  %11080 = vmatprep.mubr.f32.mxu0 0.0
  %11081 = vmatmul.mubr.f32.gmra.mrb[0].mxu0 %v11005
  %v11082 = vpop.f32.mrb[0].mxu0
  %v11083 = vadd.f32 0.0, %v11082
  %v11084 = vpop.f32.mrb[0].mxu0
  %11085 = vmatprep.mubr.f32.mxu0 0.0
  %11086 = vmatmul.mubr.f32.gmra.mrb[0].mxu0 %v11007
  %v11087 = vpop.f32.mrb[0].mxu0
  %v11088 = vadd.f32 0.0, %v11087
  %v11089 = vpop.f32.mrb[0].mxu0
  %11090 = vmatprep.mubr.f32.mxu0 0.0
  %11091 = vmatmul.mubr.f32.gmra.mrb[0].mxu0 %v11009
  %v11092 = vpop.f32.mrb[0].mxu0
  %v11093 = vadd.f32 0.0, %v11092
  %v11094 = vpop.f32.mrb[0].mxu0
  %11095 = vdwg.mxu0
  %v11104 = vcombine.low %v10965, %v10966
  %v11105 = vcombine.low %v10967, %v10968
  %v11106 = vcombine.low %v10969, %v10970
  %v11107 = vcombine.low %v10971, %v10972
  %v11108 = vsel %vm11002, %v11104, 0
  %v11110 = vsel %vm11002, %v11105, 0
  %v11112 = vsel %vm11002, %v11106, 0
  %v11114 = vsel %vm11002, %v11107, 0
  %11116 = vmatprep.subr.mxu0 0.0
  %11117 = vmatpush1.msra.mxu0 %v10973
  %11118 = vmatprep.subr.mxu0 0.0
  %11119 = vmatpush1.msra.mxu0 %v10974
  %11120 = vmatprep.subr.mxu0 0.0
  %11121 = vmatpush1.msra.mxu0 %v10975
  %11122 = vmatprep.subr.mxu0 0.0
  %11123 = vmatpush1.msra.mxu0 %v10976
  %11124 = vmatprep.subr.mxu0 0.0
  %11125 = vmatpush1.msra.mxu0 0.0
  %11126 = vmatprep.subr.mxu0 0.0
  %11127 = vmatpush1.msra.mxu0 0.0
  %11128 = vmatprep.subr.mxu0 0.0
  %11129 = vmatpush1.msra.mxu0 0.0
  %11130 = vmatprep.subr.mxu0 0.0
  %11131 = vmatpush1.msra.mxu0 0.0
  %11132 = vmatprep.subr.mxu0 0.0
  %11133 = vmatpush1.msra.mxu0 0.0
  %11134 = vmatprep.subr.mxu0 0.0
  %11135 = vmatpush1.msra.mxu0 0.0
  %11136 = vmatprep.subr.mxu0 0.0
  %11137 = vmatpush1.msra.mxu0 0.0
  %11138 = vmatprep.subr.mxu0 0.0
  %11139 = vmatpush1.msra.mxu0 0.0
  %11140 = vmatprep.subr.mxu0 0.0
  %11141 = vmatpush1.msra.mxu0 0.0
  %11142 = vmatprep.subr.mxu0 0.0
  %11143 = vmatpush1.msra.mxu0 0.0
  %11144 = vmatprep.subr.mxu0 0.0
  %11145 = vmatpush1.msra.mxu0 0.0
  %11146 = vmatprep.subr.mxu0 0.0
  %11147 = vmatpush1.msra.mxu0 0.0
  %11148 = vmatprep.subr.mxu0 0.0
  %11149 = vmatpush1.msra.mxu0 0.0
  %11150 = vmatprep.subr.mxu0 0.0
  %11151 = vmatpush1.msra.mxu0 0.0
  %11152 = vmatprep.subr.mxu0 0.0
  %11153 = vmatpush1.msra.mxu0 0.0
  %11154 = vmatprep.subr.mxu0 0.0
  %11155 = vmatpush1.msra.mxu0 0.0
  %11156 = vmatprep.subr.mxu0 0.0
  %11157 = vmatpush1.msra.mxu0 0.0
  %11158 = vmatprep.subr.mxu0 0.0
  %11159 = vmatpush1.msra.mxu0 0.0
  %11160 = vmatprep.subr.mxu0 0.0
  %11161 = vmatpush1.msra.mxu0 0.0
  %11162 = vmatprep.subr.mxu0 0.0
  %11163 = vmatpush1.msra.mxu0 0.0
  %11164 = vmatprep.subr.mxu0 0.0
  %11165 = vmatpush1.msra.mxu0 0.0
  %11166 = vmatprep.subr.mxu0 0.0
  %11167 = vmatpush1.msra.mxu0 0.0
  %11168 = vmatprep.subr.mxu0 0.0
  %11169 = vmatpush1.msra.mxu0 0.0
  %11170 = vmatprep.subr.mxu0 0.0
  %11171 = vmatpush1.msra.mxu0 0.0
  %11172 = vmatprep.subr.mxu0 0.0
  %11173 = vmatpush1.msra.mxu0 0.0
  %11174 = vmatprep.subr.mxu0 0.0
  %11175 = vmatpush1.msra.mxu0 0.0
  %11176 = vmatprep.subr.mxu0 0.0
  %11177 = vmatpush1.msra.mxu0 0.0
  %11178 = vmatprep.subr.mxu0 0.0
  %11179 = vmatpush1.msra.mxu0 0.0
  %11180 = vmatprep.mubr.f32.mxu0 0.0
  %11181 = vmatmul.mubr.f32.gmra.mrb[0].mxu0 %v11108
  %v11182 = vpop.f32.mrb[0].mxu0
  %v11183 = vadd.f32 %v11078, %v11182
  %v11184 = vpop.f32.mrb[0].mxu0
  %11185 = vmatprep.mubr.f32.mxu0 0.0
  %11186 = vmatmul.mubr.f32.gmra.mrb[0].mxu0 %v11110
  %v11187 = vpop.f32.mrb[0].mxu0
  %v11188 = vadd.f32 %v11083, %v11187
  %v11189 = vpop.f32.mrb[0].mxu0
  %11190 = vmatprep.mubr.f32.mxu0 0.0
  %11191 = vmatmul.mubr.f32.gmra.mrb[0].mxu0 %v11112
  %v11192 = vpop.f32.mrb[0].mxu0
  %v11193 = vadd.f32 %v11088, %v11192
  %v11194 = vpop.f32.mrb[0].mxu0
  %11195 = vmatprep.mubr.f32.mxu0 0.0
  %11196 = vmatmul.mubr.f32.gmra.mrb[0].mxu0 %v11114
  %v11197 = vpop.f32.mrb[0].mxu0
  %v11198 = vadd.f32 %v11093, %v11197
  %v11199 = vpop.f32.mrb[0].mxu0
  %11200 = vdwg.mxu0
  %v11201 = vld [vmem:[#allocation3 + $0x2] sm:$0xf]
  %v11202 = vld [vmem:[#allocation3 + $0xa] sm:$0xf]
  %v11203 = vld [vmem:[#allocation3 + $0x12] sm:$0xf]
  %v11204 = vld [vmem:[#allocation3 + $0x1a] sm:$0xf]
  %v11205 = vld [vmem:[#allocation3 + $0x32] sm:$0xf]
  %v11206 = vld [vmem:[#allocation3 + $0x3a] sm:$0xf]
  %v11207 = vld [vmem:[#allocation3 + $0x42] sm:$0xf]
  %v11208 = vld [vmem:[#allocation3 + $0x4a] sm:$0xf]
  %s11209 = scalar_lea.vmem %s6, 64
  %v11210 = vld [vmem:[%s11209] sm:$0xff]
  %v11211 = vld [vmem:[%s11209 + $0x8] sm:$0xff]
  %v11212 = vld [vmem:[%s11209 + $0x10] sm:$0xff]
  %v11213 = vld [vmem:[%s11209 + $0x18] sm:$0xff]
  %v11222 = vcombine.low %v11201, %v11202
  %v11223 = vcombine.low %v11203, %v11204
  %v11224 = vcombine.low %v11205, %v11206
  %v11225 = vcombine.low %v11207, %v11208
  %v11226 = vsel %vm11002, %v11222, 0
  %v11228 = vsel %vm11002, %v11223, 0
  %v11230 = vsel %vm11002, %v11224, 0
  %v11232 = vsel %vm11002, %v11225, 0
  %11234 = vmatprep.subr.mxu0 0.0
  %11235 = vmatpush1.msra.mxu0 %v11210
  %11236 = vmatprep.subr.mxu0 0.0
  %11237 = vmatpush1.msra.mxu0 %v11211
  %11238 = vmatprep.subr.mxu0 0.0
  %11239 = vmatpush1.msra.mxu0 %v11212
  %11240 = vmatprep.subr.mxu0 0.0
  %11241 = vmatpush1.msra.mxu0 %v11213
  %11242 = vmatprep.subr.mxu0 0.0
  %11243 = vmatpush1.msra.mxu0 0.0
  %11244 = vmatprep.subr.mxu0 0.0
  %11245 = vmatpush1.msra.mxu0 0.0
  %11246 = vmatprep.subr.mxu0 0.0
  %11247 = vmatpush1.msra.mxu0 0.0
  %11248 = vmatprep.subr.mxu0 0.0
  %11249 = vmatpush1.msra.mxu0 0.0
  %11250 = vmatprep.subr.mxu0 0.0
  %11251 = vmatpush1.msra.mxu0 0.0
  %11252 = vmatprep.subr.mxu0 0.0
  %11253 = vmatpush1.msra.mxu0 0.0
  %11254 = vmatprep.subr.mxu0 0.0
  %11255 = vmatpush1.msra.mxu0 0.0
  %11256 = vmatprep.subr.mxu0 0.0
  %11257 = vmatpush1.msra.mxu0 0.0
  %11258 = vmatprep.subr.mxu0 0.0
  %11259 = vmatpush1.msra.mxu0 0.0
  %11260 = vmatprep.subr.mxu0 0.0
  %11261 = vmatpush1.msra.mxu0 0.0
  %11262 = vmatprep.subr.mxu0 0.0
  %11263 = vmatpush1.msra.mxu0 0.0
  %11264 = vmatprep.subr.mxu0 0.0
  %11265 = vmatpush1.msra.mxu0 0.0
  %11266 = vmatprep.subr.mxu0 0.0
  %11267 = vmatpush1.msra.mxu0 0.0
  %11268 = vmatprep.subr.mxu0 0.0
  %11269 = vmatpush1.msra.mxu0 0.0
  %11270 = vmatprep.subr.mxu0 0.0
  %11271 = vmatpush1.msra.mxu0 0.0
  %11272 = vmatprep.subr.mxu0 0.0
  %11273 = vmatpush1.msra.mxu0 0.0
  %11274 = vmatprep.subr.mxu0 0.0
  %11275 = vmatpush1.msra.mxu0 0.0
  %11276 = vmatprep.subr.mxu0 0.0
  %11277 = vmatpush1.msra.mxu0 0.0
  %11278 = vmatprep.subr.mxu0 0.0
  %11279 = vmatpush1.msra.mxu0 0.0
  %11280 = vmatprep.subr.mxu0 0.0
  %11281 = vmatpush1.msra.mxu0 0.0
  %11282 = vmatprep.subr.mxu0 0.0
  %11283 = vmatpush1.msra.mxu0 0.0
  %11284 = vmatprep.subr.mxu0 0.0
  %11285 = vmatpush1.msra.mxu0 0.0
  %11286 = vmatprep.subr.mxu0 0.0
  %11287 = vmatpush1.msra.mxu0 0.0
  %11288 = vmatprep.subr.mxu0 0.0
  %11289 = vmatpush1.msra.mxu0 0.0
  %11290 = vmatprep.subr.mxu0 0.0
  %11291 = vmatpush1.msra.mxu0 0.0
  %11292 = vmatprep.subr.mxu0 0.0
  %11293 = vmatpush1.msra.mxu0 0.0
  %11294 = vmatprep.subr.mxu0 0.0
  %11295 = vmatpush1.msra.mxu0 0.0
  %11296 = vmatprep.subr.mxu0 0.0
  %11297 = vmatpush1.msra.mxu0 0.0
  %11298 = vmatprep.mubr.f32.mxu0 0.0
  %11299 = vmatmul.mubr.f32.gmra.mrb[0].mxu0 %v11226
  %v11300 = vpop.f32.mrb[0].mxu0
  %v11301 = vadd.f32 0.0, %v11300
  %v11302 = vpop.f32.mrb[0].mxu0
  %11303 = vmatprep.mubr.f32.mxu0 0.0
  %11304 = vmatmul.mubr.f32.gmra.mrb[0].mxu0 %v11228
  %v11305 = vpop.f32.mrb[0].mxu0
  %v11306 = vadd.f32 0.0, %v11305
  %v11307 = vpop.f32.mrb[0].mxu0
  %11308 = vmatprep.mubr.f32.mxu0 0.0
  %11309 = vmatmul.mubr.f32.gmra.mrb[0].mxu0 %v11230
  %v11310 = vpop.f32.mrb[0].mxu0
  %v11311 = vadd.f32 0.0, %v11310
  %v11312 = vpop.f32.mrb[0].mxu0
  %11313 = vmatprep.mubr.f32.mxu0 0.0
  %11314 = vmatmul.mubr.f32.gmra.mrb[0].mxu0 %v11232
  %v11315 = vpop.f32.mrb[0].mxu0
  %v11316 = vadd.f32 0.0, %v11315
  %v11317 = vpop.f32.mrb[0].mxu0
  %11318 = vdwg.mxu0
  %v11319 = vadd.f32 %v11183, %v11301
  %v11320 = vadd.f32 %v11188, %v11306
  %v11321 = vadd.f32 %v11193, %v11311
  %v11322 = vadd.f32 %v11198, %v11316
  %v11323 = vld [vmem:[%s10955] sm:$0xf]
  %v11324 = vld [vmem:[%s10955 + $0x8] sm:$0xf]
  %v11325 = vld [vmem:[%s10955 + $0x10] sm:$0xf]
  %v11326 = vld [vmem:[%s10955 + $0x18] sm:$0xf]
  %v11327 = vld [vmem:[%s10955 + $0x30] sm:$0xf]
  %v11328 = vld [vmem:[%s10955 + $0x38] sm:$0xf]
  %v11329 = vld [vmem:[%s10955 + $0x40] sm:$0xf]
  %v11330 = vld [vmem:[%s10955 + $0x48] sm:$0xf]
  %s11331 = scalar_lea.vmem %s6, 96
  %v11332 = vld [vmem:[%s11331] sm:$0xff]
  %v11333 = vld [vmem:[%s11331 + $0x8] sm:$0xff]
  %v11334 = vld [vmem:[%s11331 + $0x10] sm:$0xff]
  %v11335 = vld [vmem:[%s11331 + $0x18] sm:$0xff]
  %v11344 = vcombine.low %v11323, %v11324
  %v11345 = vcombine.low %v11325, %v11326
  %v11346 = vcombine.low %v11327, %v11328
  %v11347 = vcombine.low %v11329, %v11330
  %v11348 = vsel %vm11002, %v11344, 0
  %v11350 = vsel %vm11002, %v11345, 0
  %v11352 = vsel %vm11002, %v11346, 0
  %v11354 = vsel %vm11002, %v11347, 0
  %11356 = vmatprep.subr.mxu0 0.0
  %11357 = vmatpush1.msra.mxu0 %v11332
  %11358 = vmatprep.subr.mxu0 0.0
  %11359 = vmatpush1.msra.mxu0 %v11333
  %11360 = vmatprep.subr.mxu0 0.0
  %11361 = vmatpush1.msra.mxu0 %v11334
  %11362 = vmatprep.subr.mxu0 0.0
  %11363 = vmatpush1.msra.mxu0 %v11335
  %11364 = vmatprep.subr.mxu0 0.0
  %11365 = vmatpush1.msra.mxu0 0.0
  %11366 = vmatprep.subr.mxu0 0.0
  %11367 = vmatpush1.msra.mxu0 0.0
  %11368 = vmatprep.subr.mxu0 0.0
  %11369 = vmatpush1.msra.mxu0 0.0
  %11370 = vmatprep.subr.mxu0 0.0
  %11371 = vmatpush1.msra.mxu0 0.0
  %11372 = vmatprep.subr.mxu0 0.0
  %11373 = vmatpush1.msra.mxu0 0.0
  %11374 = vmatprep.subr.mxu0 0.0
  %11375 = vmatpush1.msra.mxu0 0.0
  %11376 = vmatprep.subr.mxu0 0.0
  %11377 = vmatpush1.msra.mxu0 0.0
  %11378 = vmatprep.subr.mxu0 0.0
  %11379 = vmatpush1.msra.mxu0 0.0
  %11380 = vmatprep.subr.mxu0 0.0
  %11381 = vmatpush1.msra.mxu0 0.0
  %11382 = vmatprep.subr.mxu0 0.0
  %11383 = vmatpush1.msra.mxu0 0.0
  %11384 = vmatprep.subr.mxu0 0.0
  %11385 = vmatpush1.msra.mxu0 0.0
  %11386 = vmatprep.subr.mxu0 0.0
  %11387 = vmatpush1.msra.mxu0 0.0
  %11388 = vmatprep.subr.mxu0 0.0
  %11389 = vmatpush1.msra.mxu0 0.0
  %11390 = vmatprep.subr.mxu0 0.0
  %11391 = vmatpush1.msra.mxu0 0.0
  %11392 = vmatprep.subr.mxu0 0.0
  %11393 = vmatpush1.msra.mxu0 0.0
  %11394 = vmatprep.subr.mxu0 0.0
  %11395 = vmatpush1.msra.mxu0 0.0
  %11396 = vmatprep.subr.mxu0 0.0
  %11397 = vmatpush1.msra.mxu0 0.0
  %11398 = vmatprep.subr.mxu0 0.0
  %11399 = vmatpush1.msra.mxu0 0.0
  %11400 = vmatprep.subr.mxu0 0.0
  %11401 = vmatpush1.msra.mxu0 0.0
  %11402 = vmatprep.subr.mxu0 0.0
  %11403 = vmatpush1.msra.mxu0 0.0
  %11404 = vmatprep.subr.mxu0 0.0
  %11405 = vmatpush1.msra.mxu0 0.0
  %11406 = vmatprep.subr.mxu0 0.0
  %11407 = vmatpush1.msra.mxu0 0.0
  %11408 = vmatprep.subr.mxu0 0.0
  %11409 = vmatpush1.msra.mxu0 0.0
  %11410 = vmatprep.subr.mxu0 0.0
  %11411 = vmatpush1.msra.mxu0 0.0
  %11412 = vmatprep.subr.mxu0 0.0
  %11413 = vmatpush1.msra.mxu0 0.0
  %11414 = vmatprep.subr.mxu0 0.0
  %11415 = vmatpush1.msra.mxu0 0.0
  %11416 = vmatprep.subr.mxu0 0.0
  %11417 = vmatpush1.msra.mxu0 0.0
  %11418 = vmatprep.subr.mxu0 0.0
  %11419 = vmatpush1.msra.mxu0 0.0
  %11420 = vmatprep.mubr.f32.mxu0 0.0
  %11421 = vmatmul.mubr.f32.gmra.mrb[0].mxu0 %v11348
  %v11422 = vpop.f32.mrb[0].mxu0
  %v11423 = vadd.f32 0.0, %v11422
  %v11424 = vpop.f32.mrb[0].mxu0
  %11425 = vmatprep.mubr.f32.mxu0 0.0
  %11426 = vmatmul.mubr.f32.gmra.mrb[0].mxu0 %v11350
  %v11427 = vpop.f32.mrb[0].mxu0
  %v11428 = vadd.f32 0.0, %v11427
  %v11429 = vpop.f32.mrb[0].mxu0
  %11430 = vmatprep.mubr.f32.mxu0 0.0
  %11431 = vmatmul.mubr.f32.gmra.mrb[0].mxu0 %v11352
  %v11432 = vpop.f32.mrb[0].mxu0
  %v11433 = vadd.f32 0.0, %v11432
  %v11434 = vpop.f32.mrb[0].mxu0
  %11435 = vmatprep.mubr.f32.mxu0 0.0
  %11436 = vmatmul.mubr.f32.gmra.mrb[0].mxu0 %v11354
  %v11437 = vpop.f32.mrb[0].mxu0
  %v11438 = vadd.f32 0.0, %v11437
  %v11439 = vpop.f32.mrb[0].mxu0
  %11440 = vdwg.mxu0
  %v11441 = vadd.f32 %v11319, %v11423
  %v11442 = vadd.f32 %v11320, %v11428
  %v11443 = vadd.f32 %v11321, %v11433
  %v11444 = vadd.f32 %v11322, %v11438
  %v11445 = vld [vmem:[%s10955 + $0x1] sm:$0xf]
  %v11446 = vld [vmem:[%s10955 + $0x9] sm:$0xf]
  %v11447 = vld [vmem:[%s10955 + $0x11] sm:$0xf]
  %v11448 = vld [vmem:[%s10955 + $0x19] sm:$0xf]
  %v11449 = vld [vmem:[%s10955 + $0x31] sm:$0xf]
  %v11450 = vld [vmem:[%s10955 + $0x39] sm:$0xf]
  %v11451 = vld [vmem:[%s10955 + $0x41] sm:$0xf]
  %v11452 = vld [vmem:[%s10955 + $0x49] sm:$0xf]
  %s11453 = scalar_lea.vmem %s6, 128
  %v11454 = vld [vmem:[%s11453] sm:$0xff]
  %v11455 = vld [vmem:[%s11453 + $0x8] sm:$0xff]
  %v11456 = vld [vmem:[%s11453 + $0x10] sm:$0xff]
  %v11457 = vld [vmem:[%s11453 + $0x18] sm:$0xff]
  %v11466 = vcombine.low %v11445, %v11446
  %v11467 = vcombine.low %v11447, %v11448
  %v11468 = vcombine.low %v11449, %v11450
  %v11469 = vcombine.low %v11451, %v11452
  %v11470 = vsel %vm11002, %v11466, 0
  %v11472 = vsel %vm11002, %v11467, 0
  %v11474 = vsel %vm11002, %v11468, 0
  %v11476 = vsel %vm11002, %v11469, 0
  %11478 = vmatprep.subr.mxu0 0.0
  %11479 = vmatpush1.msra.mxu0 %v11454
  %11480 = vmatprep.subr.mxu0 0.0
  %11481 = vmatpush1.msra.mxu0 %v11455
  %11482 = vmatprep.subr.mxu0 0.0
  %11483 = vmatpush1.msra.mxu0 %v11456
  %11484 = vmatprep.subr.mxu0 0.0
  %11485 = vmatpush1.msra.mxu0 %v11457
  %11486 = vmatprep.subr.mxu0 0.0
  %11487 = vmatpush1.msra.mxu0 0.0
  %11488 = vmatprep.subr.mxu0 0.0
  %11489 = vmatpush1.msra.mxu0 0.0
  %11490 = vmatprep.subr.mxu0 0.0
  %11491 = vmatpush1.msra.mxu0 0.0
  %11492 = vmatprep.subr.mxu0 0.0
  %11493 = vmatpush1.msra.mxu0 0.0
  %11494 = vmatprep.subr.mxu0 0.0
  %11495 = vmatpush1.msra.mxu0 0.0
  %11496 = vmatprep.subr.mxu0 0.0
  %11497 = vmatpush1.msra.mxu0 0.0
  %11498 = vmatprep.subr.mxu0 0.0
  %11499 = vmatpush1.msra.mxu0 0.0
  %11500 = vmatprep.subr.mxu0 0.0
  %11501 = vmatpush1.msra.mxu0 0.0
  %11502 = vmatprep.subr.mxu0 0.0
  %11503 = vmatpush1.msra.mxu0 0.0
  %11504 = vmatprep.subr.mxu0 0.0
  %11505 = vmatpush1.msra.mxu0 0.0
  %11506 = vmatprep.subr.mxu0 0.0
  %11507 = vmatpush1.msra.mxu0 0.0
  %11508 = vmatprep.subr.mxu0 0.0
  %11509 = vmatpush1.msra.mxu0 0.0
  %11510 = vmatprep.subr.mxu0 0.0
  %11511 = vmatpush1.msra.mxu0 0.0
  %11512 = vmatprep.subr.mxu0 0.0
  %11513 = vmatpush1.msra.mxu0 0.0
  %11514 = vmatprep.subr.mxu0 0.0
  %11515 = vmatpush1.msra.mxu0 0.0
  %11516 = vmatprep.subr.mxu0 0.0
  %11517 = vmatpush1.msra.mxu0 0.0
  %11518 = vmatprep.subr.mxu0 0.0
  %11519 = vmatpush1.msra.mxu0 0.0
  %11520 = vmatprep.subr.mxu0 0.0
  %11521 = vmatpush1.msra.mxu0 0.0
  %11522 = vmatprep.subr.mxu0 0.0
  %11523 = vmatpush1.msra.mxu0 0.0
  %11524 = vmatprep.subr.mxu0 0.0
  %11525 = vmatpush1.msra.mxu0 0.0
  %11526 = vmatprep.subr.mxu0 0.0
  %11527 = vmatpush1.msra.mxu0 0.0
  %11528 = vmatprep.subr.mxu0 0.0
  %11529 = vmatpush1.msra.mxu0 0.0
  %11530 = vmatprep.subr.mxu0 0.0
  %11531 = vmatpush1.msra.mxu0 0.0
  %11532 = vmatprep.subr.mxu0 0.0
  %11533 = vmatpush1.msra.mxu0 0.0
  %11534 = vmatprep.subr.mxu0 0.0
  %11535 = vmatpush1.msra.mxu0 0.0
  %11536 = vmatprep.subr.mxu0 0.0
  %11537 = vmatpush1.msra.mxu0 0.0
  %11538 = vmatprep.subr.mxu0 0.0
  %11539 = vmatpush1.msra.mxu0 0.0
  %11540 = vmatprep.subr.mxu0 0.0
  %11541 = vmatpush1.msra.mxu0 0.0
  %11542 = vmatprep.mubr.f32.mxu0 0.0
  %11543 = vmatmul.mubr.f32.gmra.mrb[0].mxu0 %v11470
  %v11544 = vpop.f32.mrb[0].mxu0
  %v11545 = vadd.f32 0.0, %v11544
  %v11546 = vpop.f32.mrb[0].mxu0
  %11547 = vmatprep.mubr.f32.mxu0 0.0
  %11548 = vmatmul.mubr.f32.gmra.mrb[0].mxu0 %v11472
  %v11549 = vpop.f32.mrb[0].mxu0
  %v11550 = vadd.f32 0.0, %v11549
  %v11551 = vpop.f32.mrb[0].mxu0
  %11552 = vmatprep.mubr.f32.mxu0 0.0
  %11553 = vmatmul.mubr.f32.gmra.mrb[0].mxu0 %v11474
  %v11554 = vpop.f32.mrb[0].mxu0
  %v11555 = vadd.f32 0.0, %v11554
  %v11556 = vpop.f32.mrb[0].mxu0
  %11557 = vmatprep.mubr.f32.mxu0 0.0
  %11558 = vmatmul.mubr.f32.gmra.mrb[0].mxu0 %v11476
  %v11559 = vpop.f32.mrb[0].mxu0
  %v11560 = vadd.f32 0.0, %v11559
  %v11561 = vpop.f32.mrb[0].mxu0
  %11562 = vdwg.mxu0
  %v11563 = vadd.f32 %v11441, %v11545
  %v11564 = vadd.f32 %v11442, %v11550
  %v11565 = vadd.f32 %v11443, %v11555
  %v11566 = vadd.f32 %v11444, %v11560
  %v11567 = vld [vmem:[%s10955 + $0x2] sm:$0xf]
  %v11568 = vld [vmem:[%s10955 + $0xa] sm:$0xf]
  %v11569 = vld [vmem:[%s10955 + $0x12] sm:$0xf]
  %v11570 = vld [vmem:[%s10955 + $0x1a] sm:$0xf]
  %v11571 = vld [vmem:[%s10955 + $0x32] sm:$0xf]
  %v11572 = vld [vmem:[%s10955 + $0x3a] sm:$0xf]
  %v11573 = vld [vmem:[%s10955 + $0x42] sm:$0xf]
  %v11574 = vld [vmem:[%s10955 + $0x4a] sm:$0xf]
  %s11575 = scalar_lea.vmem %s6, 160
  %v11576 = vld [vmem:[%s11575] sm:$0xff]
  %v11577 = vld [vmem:[%s11575 + $0x8] sm:$0xff]
  %v11578 = vld [vmem:[%s11575 + $0x10] sm:$0xff]
  %v11579 = vld [vmem:[%s11575 + $0x18] sm:$0xff]
  %v11588 = vcombine.low %v11567, %v11568
  %v11589 = vcombine.low %v11569, %v11570
  %v11590 = vcombine.low %v11571, %v11572
  %v11591 = vcombine.low %v11573, %v11574
  %v11592 = vsel %vm11002, %v11588, 0
  %v11594 = vsel %vm11002, %v11589, 0
  %v11596 = vsel %vm11002, %v11590, 0
  %v11598 = vsel %vm11002, %v11591, 0
  %11600 = vmatprep.subr.mxu0 0.0
  %11601 = vmatpush1.msra.mxu0 %v11576
  %11602 = vmatprep.subr.mxu0 0.0
  %11603 = vmatpush1.msra.mxu0 %v11577
  %11604 = vmatprep.subr.mxu0 0.0
  %11605 = vmatpush1.msra.mxu0 %v11578
  %11606 = vmatprep.subr.mxu0 0.0
  %11607 = vmatpush1.msra.mxu0 %v11579
  %11608 = vmatprep.subr.mxu0 0.0
  %11609 = vmatpush1.msra.mxu0 0.0
  %11610 = vmatprep.subr.mxu0 0.0
  %11611 = vmatpush1.msra.mxu0 0.0
  %11612 = vmatprep.subr.mxu0 0.0
  %11613 = vmatpush1.msra.mxu0 0.0
  %11614 = vmatprep.subr.mxu0 0.0
  %11615 = vmatpush1.msra.mxu0 0.0
  %11616 = vmatprep.subr.mxu0 0.0
  %11617 = vmatpush1.msra.mxu0 0.0
  %11618 = vmatprep.subr.mxu0 0.0
  %11619 = vmatpush1.msra.mxu0 0.0
  %11620 = vmatprep.subr.mxu0 0.0
  %11621 = vmatpush1.msra.mxu0 0.0
  %11622 = vmatprep.subr.mxu0 0.0
  %11623 = vmatpush1.msra.mxu0 0.0
  %11624 = vmatprep.subr.mxu0 0.0
  %11625 = vmatpush1.msra.mxu0 0.0
  %11626 = vmatprep.subr.mxu0 0.0
  %11627 = vmatpush1.msra.mxu0 0.0
  %11628 = vmatprep.subr.mxu0 0.0
  %11629 = vmatpush1.msra.mxu0 0.0
  %11630 = vmatprep.subr.mxu0 0.0
  %11631 = vmatpush1.msra.mxu0 0.0
  %11632 = vmatprep.subr.mxu0 0.0
  %11633 = vmatpush1.msra.mxu0 0.0
  %11634 = vmatprep.subr.mxu0 0.0
  %11635 = vmatpush1.msra.mxu0 0.0
  %11636 = vmatprep.subr.mxu0 0.0
  %11637 = vmatpush1.msra.mxu0 0.0
  %11638 = vmatprep.subr.mxu0 0.0
  %11639 = vmatpush1.msra.mxu0 0.0
  %11640 = vmatprep.subr.mxu0 0.0
  %11641 = vmatpush1.msra.mxu0 0.0
  %11642 = vmatprep.subr.mxu0 0.0
  %11643 = vmatpush1.msra.mxu0 0.0
  %11644 = vmatprep.subr.mxu0 0.0
  %11645 = vmatpush1.msra.mxu0 0.0
  %11646 = vmatprep.subr.mxu0 0.0
  %11647 = vmatpush1.msra.mxu0 0.0
  %11648 = vmatprep.subr.mxu0 0.0
  %11649 = vmatpush1.msra.mxu0 0.0
  %11650 = vmatprep.subr.mxu0 0.0
  %11651 = vmatpush1.msra.mxu0 0.0
  %11652 = vmatprep.subr.mxu0 0.0
  %11653 = vmatpush1.msra.mxu0 0.0
  %11654 = vmatprep.subr.mxu0 0.0
  %11655 = vmatpush1.msra.mxu0 0.0
  %11656 = vmatprep.subr.mxu0 0.0
  %11657 = vmatpush1.msra.mxu0 0.0
  %11658 = vmatprep.subr.mxu0 0.0
  %11659 = vmatpush1.msra.mxu0 0.0
  %11660 = vmatprep.subr.mxu0 0.0
  %11661 = vmatpush1.msra.mxu0 0.0
  %11662 = vmatprep.subr.mxu0 0.0
  %11663 = vmatpush1.msra.mxu0 0.0
  %11664 = vmatprep.mubr.f32.mxu0 0.0
  %11665 = vmatmul.mubr.f32.gmra.mrb[0].mxu0 %v11592
  %v11666 = vpop.f32.mrb[0].mxu0
  %v11667 = vadd.f32 0.0, %v11666
  %v11668 = vpop.f32.mrb[0].mxu0
  %11669 = vmatprep.mubr.f32.mxu0 0.0
  %11670 = vmatmul.mubr.f32.gmra.mrb[0].mxu0 %v11594
  %v11671 = vpop.f32.mrb[0].mxu0
  %v11672 = vadd.f32 0.0, %v11671
  %v11673 = vpop.f32.mrb[0].mxu0
  %11674 = vmatprep.mubr.f32.mxu0 0.0
  %11675 = vmatmul.mubr.f32.gmra.mrb[0].mxu0 %v11596
  %v11676 = vpop.f32.mrb[0].mxu0
  %v11677 = vadd.f32 0.0, %v11676
  %v11678 = vpop.f32.mrb[0].mxu0
  %11679 = vmatprep.mubr.f32.mxu0 0.0
  %11680 = vmatmul.mubr.f32.gmra.mrb[0].mxu0 %v11598
  %v11681 = vpop.f32.mrb[0].mxu0
  %v11682 = vadd.f32 0.0, %v11681
  %v11683 = vpop.f32.mrb[0].mxu0
  %11684 = vdwg.mxu0
  %v11685 = vadd.f32 %v11563, %v11667
  %v11686 = vadd.f32 %v11564, %v11672
  %v11687 = vadd.f32 %v11565, %v11677
  %v11688 = vadd.f32 %v11566, %v11682
  %s11689 = scalar_lea.vmem [#allocation3], 16
  %v11690 = vld [vmem:[%s11689] sm:$0xf]
  %v11691 = vld [vmem:[%s11689 + $0x8] sm:$0xf]
  %v11692 = vld [vmem:[%s11689 + $0x10] sm:$0xf]
  %v11693 = vld [vmem:[%s11689 + $0x18] sm:$0xf]
  %v11694 = vld [vmem:[%s11689 + $0x30] sm:$0xf]
  %v11695 = vld [vmem:[%s11689 + $0x38] sm:$0xf]
  %v11696 = vld [vmem:[%s11689 + $0x40] sm:$0xf]
  %v11697 = vld [vmem:[%s11689 + $0x48] sm:$0xf]
  %s11698 = scalar_lea.vmem %s6, 192
  %v11699 = vld [vmem:[%s11698] sm:$0xff]
  %v11700 = vld [vmem:[%s11698 + $0x8] sm:$0xff]
  %v11701 = vld [vmem:[%s11698 + $0x10] sm:$0xff]
  %v11702 = vld [vmem:[%s11698 + $0x18] sm:$0xff]
  %v11711 = vcombine.low %v11690, %v11691
  %v11712 = vcombine.low %v11692, %v11693
  %v11713 = vcombine.low %v11694, %v11695
  %v11714 = vcombine.low %v11696, %v11697
  %v11715 = vsel %vm11002, %v11711, 0
  %v11717 = vsel %vm11002, %v11712, 0
  %v11719 = vsel %vm11002, %v11713, 0
  %v11721 = vsel %vm11002, %v11714, 0
  %11723 = vmatprep.subr.mxu0 0.0
  %11724 = vmatpush1.msra.mxu0 %v11699
  %11725 = vmatprep.subr.mxu0 0.0
  %11726 = vmatpush1.msra.mxu0 %v11700
  %11727 = vmatprep.subr.mxu0 0.0
  %11728 = vmatpush1.msra.mxu0 %v11701
  %11729 = vmatprep.subr.mxu0 0.0
  %11730 = vmatpush1.msra.mxu0 %v11702
  %11731 = vmatprep.subr.mxu0 0.0
  %11732 = vmatpush1.msra.mxu0 0.0
  %11733 = vmatprep.subr.mxu0 0.0
  %11734 = vmatpush1.msra.mxu0 0.0
  %11735 = vmatprep.subr.mxu0 0.0
  %11736 = vmatpush1.msra.mxu0 0.0
  %11737 = vmatprep.subr.mxu0 0.0
  %11738 = vmatpush1.msra.mxu0 0.0
  %11739 = vmatprep.subr.mxu0 0.0
  %11740 = vmatpush1.msra.mxu0 0.0
  %11741 = vmatprep.subr.mxu0 0.0
  %11742 = vmatpush1.msra.mxu0 0.0
  %11743 = vmatprep.subr.mxu0 0.0
  %11744 = vmatpush1.msra.mxu0 0.0
  %11745 = vmatprep.subr.mxu0 0.0
  %11746 = vmatpush1.msra.mxu0 0.0
  %11747 = vmatprep.subr.mxu0 0.0
  %11748 = vmatpush1.msra.mxu0 0.0
  %11749 = vmatprep.subr.mxu0 0.0
  %11750 = vmatpush1.msra.mxu0 0.0
  %11751 = vmatprep.subr.mxu0 0.0
  %11752 = vmatpush1.msra.mxu0 0.0
  %11753 = vmatprep.subr.mxu0 0.0
  %11754 = vmatpush1.msra.mxu0 0.0
  %11755 = vmatprep.subr.mxu0 0.0
  %11756 = vmatpush1.msra.mxu0 0.0
  %11757 = vmatprep.subr.mxu0 0.0
  %11758 = vmatpush1.msra.mxu0 0.0
  %11759 = vmatprep.subr.mxu0 0.0
  %11760 = vmatpush1.msra.mxu0 0.0
  %11761 = vmatprep.subr.mxu0 0.0
  %11762 = vmatpush1.msra.mxu0 0.0
  %11763 = vmatprep.subr.mxu0 0.0
  %11764 = vmatpush1.msra.mxu0 0.0
  %11765 = vmatprep.subr.mxu0 0.0
  %11766 = vmatpush1.msra.mxu0 0.0
  %11767 = vmatprep.subr.mxu0 0.0
  %11768 = vmatpush1.msra.mxu0 0.0
  %11769 = vmatprep.subr.mxu0 0.0
  %11770 = vmatpush1.msra.mxu0 0.0
  %11771 = vmatprep.subr.mxu0 0.0
  %11772 = vmatpush1.msra.mxu0 0.0
  %11773 = vmatprep.subr.mxu0 0.0
  %11774 = vmatpush1.msra.mxu0 0.0
  %11775 = vmatprep.subr.mxu0 0.0
  %11776 = vmatpush1.msra.mxu0 0.0
  %11777 = vmatprep.subr.mxu0 0.0
  %11778 = vmatpush1.msra.mxu0 0.0
  %11779 = vmatprep.subr.mxu0 0.0
  %11780 = vmatpush1.msra.mxu0 0.0
  %11781 = vmatprep.subr.mxu0 0.0
  %11782 = vmatpush1.msra.mxu0 0.0
  %11783 = vmatprep.subr.mxu0 0.0
  %11784 = vmatpush1.msra.mxu0 0.0
  %11785 = vmatprep.subr.mxu0 0.0
  %11786 = vmatpush1.msra.mxu0 0.0
  %11787 = vmatprep.mubr.f32.mxu0 0.0
  %11788 = vmatmul.mubr.f32.gmra.mrb[0].mxu0 %v11715
  %v11789 = vpop.f32.mrb[0].mxu0
  %v11790 = vadd.f32 0.0, %v11789
  %v11791 = vpop.f32.mrb[0].mxu0
  %11792 = vmatprep.mubr.f32.mxu0 0.0
  %11793 = vmatmul.mubr.f32.gmra.mrb[0].mxu0 %v11717
  %v11794 = vpop.f32.mrb[0].mxu0
  %v11795 = vadd.f32 0.0, %v11794
  %v11796 = vpop.f32.mrb[0].mxu0
  %11797 = vmatprep.mubr.f32.mxu0 0.0
  %11798 = vmatmul.mubr.f32.gmra.mrb[0].mxu0 %v11719
  %v11799 = vpop.f32.mrb[0].mxu0
  %v11800 = vadd.f32 0.0, %v11799
  %v11801 = vpop.f32.mrb[0].mxu0
  %11802 = vmatprep.mubr.f32.mxu0 0.0
  %11803 = vmatmul.mubr.f32.gmra.mrb[0].mxu0 %v11721
  %v11804 = vpop.f32.mrb[0].mxu0
  %v11805 = vadd.f32 0.0, %v11804
  %v11806 = vpop.f32.mrb[0].mxu0
  %11807 = vdwg.mxu0
  %v11808 = vadd.f32 %v11685, %v11790
  %v11809 = vadd.f32 %v11686, %v11795
  %v11810 = vadd.f32 %v11687, %v11800
  %v11811 = vadd.f32 %v11688, %v11805
  %v11812 = vld [vmem:[%s11689 + $0x1] sm:$0xf]
  %v11813 = vld [vmem:[%s11689 + $0x9] sm:$0xf]
  %v11814 = vld [vmem:[%s11689 + $0x11] sm:$0xf]
  %v11815 = vld [vmem:[%s11689 + $0x19] sm:$0xf]
  %v11816 = vld [vmem:[%s11689 + $0x31] sm:$0xf]
  %v11817 = vld [vmem:[%s11689 + $0x39] sm:$0xf]
  %v11818 = vld [vmem:[%s11689 + $0x41] sm:$0xf]
  %v11819 = vld [vmem:[%s11689 + $0x49] sm:$0xf]
  %s11820 = scalar_lea.vmem %s6, 224
  %v11821 = vld [vmem:[%s11820] sm:$0xff]
  %v11822 = vld [vmem:[%s11820 + $0x8] sm:$0xff]
  %v11823 = vld [vmem:[%s11820 + $0x10] sm:$0xff]
  %v11824 = vld [vmem:[%s11820 + $0x18] sm:$0xff]
  %v11833 = vcombine.low %v11812, %v11813
  %v11834 = vcombine.low %v11814, %v11815
  %v11835 = vcombine.low %v11816, %v11817
  %v11836 = vcombine.low %v11818, %v11819
  %v11837 = vsel %vm11002, %v11833, 0
  %v11839 = vsel %vm11002, %v11834, 0
  %v11841 = vsel %vm11002, %v11835, 0
  %v11843 = vsel %vm11002, %v11836, 0
  %11845 = vmatprep.subr.mxu0 0.0
  %11846 = vmatpush1.msra.mxu0 %v11821
  %11847 = vmatprep.subr.mxu0 0.0
  %11848 = vmatpush1.msra.mxu0 %v11822
  %11849 = vmatprep.subr.mxu0 0.0
  %11850 = vmatpush1.msra.mxu0 %v11823
  %11851 = vmatprep.subr.mxu0 0.0
  %11852 = vmatpush1.msra.mxu0 %v11824
  %11853 = vmatprep.subr.mxu0 0.0
  %11854 = vmatpush1.msra.mxu0 0.0
  %11855 = vmatprep.subr.mxu0 0.0
  %11856 = vmatpush1.msra.mxu0 0.0
  %11857 = vmatprep.subr.mxu0 0.0
  %11858 = vmatpush1.msra.mxu0 0.0
  %11859 = vmatprep.subr.mxu0 0.0
  %11860 = vmatpush1.msra.mxu0 0.0
  %11861 = vmatprep.subr.mxu0 0.0
  %11862 = vmatpush1.msra.mxu0 0.0
  %11863 = vmatprep.subr.mxu0 0.0
  %11864 = vmatpush1.msra.mxu0 0.0
  %11865 = vmatprep.subr.mxu0 0.0
  %11866 = vmatpush1.msra.mxu0 0.0
  %11867 = vmatprep.subr.mxu0 0.0
  %11868 = vmatpush1.msra.mxu0 0.0
  %11869 = vmatprep.subr.mxu0 0.0
  %11870 = vmatpush1.msra.mxu0 0.0
  %11871 = vmatprep.subr.mxu0 0.0
  %11872 = vmatpush1.msra.mxu0 0.0
  %11873 = vmatprep.subr.mxu0 0.0
  %11874 = vmatpush1.msra.mxu0 0.0
  %11875 = vmatprep.subr.mxu0 0.0
  %11876 = vmatpush1.msra.mxu0 0.0
  %11877 = vmatprep.subr.mxu0 0.0
  %11878 = vmatpush1.msra.mxu0 0.0
  %11879 = vmatprep.subr.mxu0 0.0
  %11880 = vmatpush1.msra.mxu0 0.0
  %11881 = vmatprep.subr.mxu0 0.0
  %11882 = vmatpush1.msra.mxu0 0.0
  %11883 = vmatprep.subr.mxu0 0.0
  %11884 = vmatpush1.msra.mxu0 0.0
  %11885 = vmatprep.subr.mxu0 0.0
  %11886 = vmatpush1.msra.mxu0 0.0
  %11887 = vmatprep.subr.mxu0 0.0
  %11888 = vmatpush1.msra.mxu0 0.0
  %11889 = vmatprep.subr.mxu0 0.0
  %11890 = vmatpush1.msra.mxu0 0.0
  %11891 = vmatprep.subr.mxu0 0.0
  %11892 = vmatpush1.msra.mxu0 0.0
  %11893 = vmatprep.subr.mxu0 0.0
  %11894 = vmatpush1.msra.mxu0 0.0
  %11895 = vmatprep.subr.mxu0 0.0
  %11896 = vmatpush1.msra.mxu0 0.0
  %11897 = vmatprep.subr.mxu0 0.0
  %11898 = vmatpush1.msra.mxu0 0.0
  %11899 = vmatprep.subr.mxu0 0.0
  %11900 = vmatpush1.msra.mxu0 0.0
  %11901 = vmatprep.subr.mxu0 0.0
  %11902 = vmatpush1.msra.mxu0 0.0
  %11903 = vmatprep.subr.mxu0 0.0
  %11904 = vmatpush1.msra.mxu0 0.0
  %11905 = vmatprep.subr.mxu0 0.0
  %11906 = vmatpush1.msra.mxu0 0.0
  %11907 = vmatprep.subr.mxu0 0.0
  %11908 = vmatpush1.msra.mxu0 0.0
  %11909 = vmatprep.mubr.f32.mxu0 0.0
  %11910 = vmatmul.mubr.f32.gmra.mrb[0].mxu0 %v11837
  %v11911 = vpop.f32.mrb[0].mxu0
  %v11912 = vadd.f32 0.0, %v11911
  %v11913 = vpop.f32.mrb[0].mxu0
  %11914 = vmatprep.mubr.f32.mxu0 0.0
  %11915 = vmatmul.mubr.f32.gmra.mrb[0].mxu0 %v11839
  %v11916 = vpop.f32.mrb[0].mxu0
  %v11917 = vadd.f32 0.0, %v11916
  %v11918 = vpop.f32.mrb[0].mxu0
  %11919 = vmatprep.mubr.f32.mxu0 0.0
  %11920 = vmatmul.mubr.f32.gmra.mrb[0].mxu0 %v11841
  %v11921 = vpop.f32.mrb[0].mxu0
  %v11922 = vadd.f32 0.0, %v11921
  %v11923 = vpop.f32.mrb[0].mxu0
  %11924 = vmatprep.mubr.f32.mxu0 0.0
  %11925 = vmatmul.mubr.f32.gmra.mrb[0].mxu0 %v11843
  %v11926 = vpop.f32.mrb[0].mxu0
  %v11927 = vadd.f32 0.0, %v11926
  %v11928 = vpop.f32.mrb[0].mxu0
  %11929 = vdwg.mxu0
  %v11930 = vadd.f32 %v11808, %v11912
  %v11931 = vadd.f32 %v11809, %v11917
  %v11932 = vadd.f32 %v11810, %v11922
  %v11933 = vadd.f32 %v11811, %v11927
  %v11934 = vld [vmem:[%s11689 + $0x2] sm:$0xf]
  %v11935 = vld [vmem:[%s11689 + $0xa] sm:$0xf]
  %v11936 = vld [vmem:[%s11689 + $0x12] sm:$0xf]
  %v11937 = vld [vmem:[%s11689 + $0x1a] sm:$0xf]
  %v11938 = vld [vmem:[%s11689 + $0x32] sm:$0xf]
  %v11939 = vld [vmem:[%s11689 + $0x3a] sm:$0xf]
  %v11940 = vld [vmem:[%s11689 + $0x42] sm:$0xf]
  %v11941 = vld [vmem:[%s11689 + $0x4a] sm:$0xf]
  %s11942 = scalar_lea.vmem %s6, 256
  %v11943 = vld [vmem:[%s11942] sm:$0xff]
  %v11944 = vld [vmem:[%s11942 + $0x8] sm:$0xff]
  %v11945 = vld [vmem:[%s11942 + $0x10] sm:$0xff]
  %v11946 = vld [vmem:[%s11942 + $0x18] sm:$0xff]
  %v11955 = vcombine.low %v11934, %v11935
  %v11956 = vcombine.low %v11936, %v11937
  %v11957 = vcombine.low %v11938, %v11939
  %v11958 = vcombine.low %v11940, %v11941
  %v11959 = vsel %vm11002, %v11955, 0
  %v11961 = vsel %vm11002, %v11956, 0
  %v11963 = vsel %vm11002, %v11957, 0
  %v11965 = vsel %vm11002, %v11958, 0
  %11967 = vmatprep.subr.mxu0 0.0
  %11968 = vmatpush1.msra.mxu0 %v11943
  %11969 = vmatprep.subr.mxu0 0.0
  %11970 = vmatpush1.msra.mxu0 %v11944
  %11971 = vmatprep.subr.mxu0 0.0
  %11972 = vmatpush1.msra.mxu0 %v11945
  %11973 = vmatprep.subr.mxu0 0.0
  %11974 = vmatpush1.msra.mxu0 %v11946
  %11975 = vmatprep.subr.mxu0 0.0
  %11976 = vmatpush1.msra.mxu0 0.0
  %11977 = vmatprep.subr.mxu0 0.0
  %11978 = vmatpush1.msra.mxu0 0.0
  %11979 = vmatprep.subr.mxu0 0.0
  %11980 = vmatpush1.msra.mxu0 0.0
  %11981 = vmatprep.subr.mxu0 0.0
  %11982 = vmatpush1.msra.mxu0 0.0
  %11983 = vmatprep.subr.mxu0 0.0
  %11984 = vmatpush1.msra.mxu0 0.0
  %11985 = vmatprep.subr.mxu0 0.0
  %11986 = vmatpush1.msra.mxu0 0.0
  %11987 = vmatprep.subr.mxu0 0.0
  %11988 = vmatpush1.msra.mxu0 0.0
  %11989 = vmatprep.subr.mxu0 0.0
  %11990 = vmatpush1.msra.mxu0 0.0
  %11991 = vmatprep.subr.mxu0 0.0
  %11992 = vmatpush1.msra.mxu0 0.0
  %11993 = vmatprep.subr.mxu0 0.0
  %11994 = vmatpush1.msra.mxu0 0.0
  %11995 = vmatprep.subr.mxu0 0.0
  %11996 = vmatpush1.msra.mxu0 0.0
  %11997 = vmatprep.subr.mxu0 0.0
  %11998 = vmatpush1.msra.mxu0 0.0
  %11999 = vmatprep.subr.mxu0 0.0
  %12000 = vmatpush1.msra.mxu0 0.0
  %12001 = vmatprep.subr.mxu0 0.0
  %12002 = vmatpush1.msra.mxu0 0.0
  %12003 = vmatprep.subr.mxu0 0.0
  %12004 = vmatpush1.msra.mxu0 0.0
  %12005 = vmatprep.subr.mxu0 0.0
  %12006 = vmatpush1.msra.mxu0 0.0
  %12007 = vmatprep.subr.mxu0 0.0
  %12008 = vmatpush1.msra.mxu0 0.0
  %12009 = vmatprep.subr.mxu0 0.0
  %12010 = vmatpush1.msra.mxu0 0.0
  %12011 = vmatprep.subr.mxu0 0.0
  %12012 = vmatpush1.msra.mxu0 0.0
  %12013 = vmatprep.subr.mxu0 0.0
  %12014 = vmatpush1.msra.mxu0 0.0
  %12015 = vmatprep.subr.mxu0 0.0
  %12016 = vmatpush1.msra.mxu0 0.0
  %12017 = vmatprep.subr.mxu0 0.0
  %12018 = vmatpush1.msra.mxu0 0.0
  %12019 = vmatprep.subr.mxu0 0.0
  %12020 = vmatpush1.msra.mxu0 0.0
  %12021 = vmatprep.subr.mxu0 0.0
  %12022 = vmatpush1.msra.mxu0 0.0
  %12023 = vmatprep.subr.mxu0 0.0
  %12024 = vmatpush1.msra.mxu0 0.0
  %12025 = vmatprep.subr.mxu0 0.0
  %12026 = vmatpush1.msra.mxu0 0.0
  %12027 = vmatprep.subr.mxu0 0.0
  %12028 = vmatpush1.msra.mxu0 0.0
  %12029 = vmatprep.subr.mxu0 0.0
  %12030 = vmatpush1.msra.mxu0 0.0
  %12031 = vmatprep.mubr.f32.mxu0 0.0
  %12032 = vmatmul.mubr.f32.gmra.mrb[0].mxu0 %v11959
  %v12033 = vpop.f32.mrb[0].mxu0
  %v12034 = vadd.f32 0.0, %v12033
  %v12035 = vpop.f32.mrb[0].mxu0
  %12036 = vmatprep.mubr.f32.mxu0 0.0
  %12037 = vmatmul.mubr.f32.gmra.mrb[0].mxu0 %v11961
  %v12038 = vpop.f32.mrb[0].mxu0
  %v12039 = vadd.f32 0.0, %v12038
  %v12040 = vpop.f32.mrb[0].mxu0
  %12041 = vmatprep.mubr.f32.mxu0 0.0
  %12042 = vmatmul.mubr.f32.gmra.mrb[0].mxu0 %v11963
  %v12043 = vpop.f32.mrb[0].mxu0
  %v12044 = vadd.f32 0.0, %v12043
  %v12045 = vpop.f32.mrb[0].mxu0
  %12046 = vmatprep.mubr.f32.mxu0 0.0
  %12047 = vmatmul.mubr.f32.gmra.mrb[0].mxu0 %v11965
  %v12048 = vpop.f32.mrb[0].mxu0
  %v12049 = vadd.f32 0.0, %v12048
  %v12050 = vpop.f32.mrb[0].mxu0
  %12051 = vdwg.mxu0
  %v12052 = vadd.f32 %v11930, %v12034
  %v12053 = vadd.f32 %v11931, %v12039
  %v12054 = vadd.f32 %v11932, %v12044
  %v12055 = vadd.f32 %v11933, %v12049
  %v12056 = vld [vmem:[%s7] sm:$0x1]
  %v12058 = vlaneseq
  %v12059 = vshrl.u32 %v12058, 7
  %v12060 = vsub.s32 0, %v12059
  %v12061 = vrot.slane %v12056, %v12060
  %v12063 = vadd.f32 %v12052, %v12061
  %v12064 = vadd.f32 %v12053, %v12061
  %v12065 = vadd.f32 %v12054, %v12061
  %v12066 = vadd.f32 %v12055, %v12061
  %v12067 = vmax.f32 %v12063, 0.0
  %v12068 = vmax.f32 %v12064, 0.0
  %v12069 = vmax.f32 %v12065, 0.0
  %v12070 = vmax.f32 %v12066, 0.0
  %vm12071 = vcmask 523264
  %v12072 = vsel %vm12071, %v12067, 0.0
  %v12073 = vsel %vm12071, %v12068, 0.0
  %v12074 = vadd.f32 %v12072, %v12073
  %v12075 = vrot.slane %v12074, 4
  %v12076 = vadd.f32 %v12074, %v12075
  %v12077 = vrot.slane %v12076, 2
  %v12078 = vadd.f32 %v12076, %v12077
  %v12079 = vrot.slane %v12078, 1
  %v12080 = vadd.f32 %v12078, %v12079
  %v12081 = vsel %vm12071, %v12069, 0.0
  %v12082 = vsel %vm12071, %v12070, 0.0
  %v12083 = vadd.f32 %v12081, %v12082
  %v12084 = vrot.slane %v12083, 4
  %v12085 = vadd.f32 %v12083, %v12084
  %v12086 = vrot.slane %v12085, 2
  %v12087 = vadd.f32 %v12085, %v12086
  %v12088 = vrot.slane %v12087, 1
  %v12089 = vadd.f32 %v12087, %v12088
  %v12090 = vmul.f32 %v12080, 0.0625
  %v12091 = vmul.f32 %v12089, 0.0625
  %v12092 = vld [vmem:[%s8] sm:$0xff]
  %v12093 = vld [vmem:[%s8 + $0x8] sm:$0xff]
  %v12094 = vld [vmem:[%s8 + $0x10] sm:$0xff]
  %v12095 = vld [vmem:[%s8 + $0x18] sm:$0xff]
  %v12096 = vld [vmem:[%s8 + $0x20] sm:$0xff]
  %v12097 = vld [vmem:[%s8 + $0x28] sm:$0xff]
  %v12098 = vld [vmem:[%s8 + $0x30] sm:$0xff]
  %v12099 = vld [vmem:[%s8 + $0x38] sm:$0xff]
  %v12100 = vld [vmem:[%s9] sm:$0x1]
  %v12102 = vlaneseq
  %v12103 = vshrl.u32 %v12102, 7
  %v12104 = vsub.s32 0, %v12103
  %v12105 = vrot.slane %v12100, %v12104
  %v12109 = vsel %vm8258, %v12091, %v12090
  %v12110 = vsel %vm12071, %v12109, 0
  %12112 = vmatprep.subr.mxu0 0.0
  %12113 = vmatpush1.msra.mxu0 %v12092
  %12114 = vmatprep.subr.mxu0 0.0
  %12115 = vmatpush1.msra.mxu0 %v12093
  %12116 = vmatprep.subr.mxu0 0.0
  %12117 = vmatpush1.msra.mxu0 %v12094
  %12118 = vmatprep.subr.mxu0 0.0
  %12119 = vmatpush1.msra.mxu0 %v12095
  %12120 = vmatprep.subr.mxu0 0.0
  %12121 = vmatpush1.msra.mxu0 %v12096
  %12122 = vmatprep.subr.mxu0 0.0
  %12123 = vmatpush1.msra.mxu0 %v12097
  %12124 = vmatprep.subr.mxu0 0.0
  %12125 = vmatpush1.msra.mxu0 %v12098
  %12126 = vmatprep.subr.mxu0 0.0
  %12127 = vmatpush1.msra.mxu0 %v12099
  %12128 = vmatprep.subr.mxu0 0.0
  %12129 = vmatpush1.msra.mxu0 0.0
  %12130 = vmatprep.subr.mxu0 0.0
  %12131 = vmatpush1.msra.mxu0 0.0
  %12132 = vmatprep.subr.mxu0 0.0
  %12133 = vmatpush1.msra.mxu0 0.0
  %12134 = vmatprep.subr.mxu0 0.0
  %12135 = vmatpush1.msra.mxu0 0.0
  %12136 = vmatprep.subr.mxu0 0.0
  %12137 = vmatpush1.msra.mxu0 0.0
  %12138 = vmatprep.subr.mxu0 0.0
  %12139 = vmatpush1.msra.mxu0 0.0
  %12140 = vmatprep.subr.mxu0 0.0
  %12141 = vmatpush1.msra.mxu0 0.0
  %12142 = vmatprep.subr.mxu0 0.0
  %12143 = vmatpush1.msra.mxu0 0.0
  %12144 = vmatprep.subr.mxu0 0.0
  %12145 = vmatpush1.msra.mxu0 0.0
  %12146 = vmatprep.subr.mxu0 0.0
  %12147 = vmatpush1.msra.mxu0 0.0
  %12148 = vmatprep.subr.mxu0 0.0
  %12149 = vmatpush1.msra.mxu0 0.0
  %12150 = vmatprep.subr.mxu0 0.0
  %12151 = vmatpush1.msra.mxu0 0.0
  %12152 = vmatprep.subr.mxu0 0.0
  %12153 = vmatpush1.msra.mxu0 0.0
  %12154 = vmatprep.subr.mxu0 0.0
  %12155 = vmatpush1.msra.mxu0 0.0
  %12156 = vmatprep.subr.mxu0 0.0
  %12157 = vmatpush1.msra.mxu0 0.0
  %12158 = vmatprep.subr.mxu0 0.0
  %12159 = vmatpush1.msra.mxu0 0.0
  %12160 = vmatprep.subr.mxu0 0.0
  %12161 = vmatpush1.msra.mxu0 0.0
  %12162 = vmatprep.subr.mxu0 0.0
  %12163 = vmatpush1.msra.mxu0 0.0
  %12164 = vmatprep.subr.mxu0 0.0
  %12165 = vmatpush1.msra.mxu0 0.0
  %12166 = vmatprep.subr.mxu0 0.0
  %12167 = vmatpush1.msra.mxu0 0.0
  %12168 = vmatprep.subr.mxu0 0.0
  %12169 = vmatpush1.msra.mxu0 0.0
  %12170 = vmatprep.subr.mxu0 0.0
  %12171 = vmatpush1.msra.mxu0 0.0
  %12172 = vmatprep.subr.mxu0 0.0
  %12173 = vmatpush1.msra.mxu0 0.0
  %12174 = vmatprep.subr.mxu0 0.0
  %12175 = vmatpush1.msra.mxu0 0.0
  %12176 = vmatprep.mubr.f32.mxu0 0.0
  %12177 = vmatmul.mubr.f32.gmra.mrb[0].mxu0 %v12110
  %v12178 = vpop.f32.mrb[0].mxu0
  %v12179 = vadd.f32 %v12105, %v12178
  %v12180 = vpop.f32.mrb[0].mxu0
  %12181 = vdwg.mxu0
  %v12182 = vld [vmem:[%s1] sm:$0xff]
  %v12183 = vld [vmem:[%s1 + $0x8] sm:$0xff]
  %v12184 = vlaneseq
  %v12185 = vand.u32 %v12184, 127
  %12186 = vset.pattern.permute.xlu0 0
  %12187 = vperm.xlu0 %12186, %v12182
  %v12188 = vpop.permute.xlu0 %12187
  %12189 = vset.pattern.permute.xlu0 0
  %12190 = vperm.xlu0 %12189, %v12183
  %v12191 = vpop.permute.xlu0 %12190
  %vm12192 = vcmp.eq.s32.totalorder %v12188, %v12185
  %vm12193 = vcmp.eq.s32.totalorder %v12191, %v12185
  %v12194 = vsel %vm12192, 1.0, 0.0
  %v12195 = vsel %vm12193, 1.0, 0.0
  %v12196 = vld [vmem:[%s10] sm:$0xff]
  %v12197 = vld [vmem:[%s10 + $0x8] sm:$0xff]
  %v12198 = vld [vmem:[%s10 + $0x10] sm:$0xf]
  %vm12199 = vcmask 162816
  %v12201 = vsel %vm12199, %v12194, 0
  %v12204 = vsel %vm12199, %v12195, 0
  %vm12206 = vcmask 1043456
  %v12208 = vsel %vm12206, %v12198, 0
  %12210 = vmatprep.subr.mxu0 0.0
  %12211 = vmatpush1.msra.mxu0 %v12196
  %12212 = vmatprep.subr.mxu0 0.0
  %12213 = vmatpush1.msra.mxu0 %v12197
  %12214 = vmatprep.subr.mxu0 0.0
  %12215 = vmatpush1.msra.mxu0 %v12208
  %12216 = vmatprep.subr.mxu0 0.0
  %12217 = vmatpush1.msra.mxu0 0.0
  %12218 = vmatprep.subr.mxu0 0.0
  %12219 = vmatpush1.msra.mxu0 0.0
  %12220 = vmatprep.subr.mxu0 0.0
  %12221 = vmatpush1.msra.mxu0 0.0
  %12222 = vmatprep.subr.mxu0 0.0
  %12223 = vmatpush1.msra.mxu0 0.0
  %12224 = vmatprep.subr.mxu0 0.0
  %12225 = vmatpush1.msra.mxu0 0.0
  %12226 = vmatprep.subr.mxu0 0.0
  %12227 = vmatpush1.msra.mxu0 0.0
  %12228 = vmatprep.subr.mxu0 0.0
  %12229 = vmatpush1.msra.mxu0 0.0
  %12230 = vmatprep.subr.mxu0 0.0
  %12231 = vmatpush1.msra.mxu0 0.0
  %12232 = vmatprep.subr.mxu0 0.0
  %12233 = vmatpush1.msra.mxu0 0.0
  %12234 = vmatprep.subr.mxu0 0.0
  %12235 = vmatpush1.msra.mxu0 0.0
  %12236 = vmatprep.subr.mxu0 0.0
  %12237 = vmatpush1.msra.mxu0 0.0
  %12238 = vmatprep.subr.mxu0 0.0
  %12239 = vmatpush1.msra.mxu0 0.0
  %12240 = vmatprep.subr.mxu0 0.0
  %12241 = vmatpush1.msra.mxu0 0.0
  %12242 = vmatprep.subr.mxu0 0.0
  %12243 = vmatpush1.msra.mxu0 0.0
  %12244 = vmatprep.subr.mxu0 0.0
  %12245 = vmatpush1.msra.mxu0 0.0
  %12246 = vmatprep.subr.mxu0 0.0
  %12247 = vmatpush1.msra.mxu0 0.0
  %12248 = vmatprep.subr.mxu0 0.0
  %12249 = vmatpush1.msra.mxu0 0.0
  %12250 = vmatprep.subr.mxu0 0.0
  %12251 = vmatpush1.msra.mxu0 0.0
  %12252 = vmatprep.subr.mxu0 0.0
  %12253 = vmatpush1.msra.mxu0 0.0
  %12254 = vmatprep.subr.mxu0 0.0
  %12255 = vmatpush1.msra.mxu0 0.0
  %12256 = vmatprep.subr.mxu0 0.0
  %12257 = vmatpush1.msra.mxu0 0.0
  %12258 = vmatprep.subr.mxu0 0.0
  %12259 = vmatpush1.msra.mxu0 0.0
  %12260 = vmatprep.subr.mxu0 0.0
  %12261 = vmatpush1.msra.mxu0 0.0
  %12262 = vmatprep.subr.mxu0 0.0
  %12263 = vmatpush1.msra.mxu0 0.0
  %12264 = vmatprep.subr.mxu0 0.0
  %12265 = vmatpush1.msra.mxu0 0.0
  %12266 = vmatprep.subr.mxu0 0.0
  %12267 = vmatpush1.msra.mxu0 0.0
  %12268 = vmatprep.subr.mxu0 0.0
  %12269 = vmatpush1.msra.mxu0 0.0
  %12270 = vmatprep.subr.mxu0 0.0
  %12271 = vmatpush1.msra.mxu0 0.0
  %12272 = vmatprep.subr.mxu0 0.0
  %12273 = vmatpush1.msra.mxu0 0.0
  %12274 = vmatprep.mubr.f32.mxu0 0.0
  %12275 = vmatmul.mubr.f32.gmra.mrb[0].mxu0 %v12201
  %v12276 = vpop.f32.mrb[0].mxu0
  %v12277 = vadd.f32 0.0, %v12276
  %v12278 = vpop.f32.mrb[0].mxu0
  %12279 = vmatprep.mubr.f32.mxu0 0.0
  %12280 = vmatmul.mubr.f32.gmra.mrb[0].mxu0 %v12204
  %v12281 = vpop.f32.mrb[0].mxu0
  %v12282 = vadd.f32 0.0, %v12281
  %v12283 = vpop.f32.mrb[0].mxu0
  %12284 = vdwg.mxu0
  %v12285 = vld [vmem:[%s11] sm:$0xff]
  %v12286 = vld [vmem:[%s11 + $0x8] sm:$0xff]
  %v12287 = vld [vmem:[%s13] sm:$0x1]
  %v12289 = vlaneseq
  %v12290 = vshrl.u32 %v12289, 7
  %v12291 = vsub.s32 0, %v12290
  %v12292 = vrot.slane %v12287, %v12291
  %v12295 = vsel %vm8089, %v12277, 0
  %v12298 = vsel %vm8089, %v12282, 0
  %12300 = vmatprep.subr.mxu0 0.0
  %12301 = vmatpush1.msra.mxu0 %v12285
  %12302 = vmatprep.subr.mxu0 0.0
  %12303 = vmatpush1.msra.mxu0 %v12286
  %12304 = vmatprep.subr.mxu0 0.0
  %12305 = vmatpush1.msra.mxu0 0.0
  %12306 = vmatprep.subr.mxu0 0.0
  %12307 = vmatpush1.msra.mxu0 0.0
  %12308 = vmatprep.subr.mxu0 0.0
  %12309 = vmatpush1.msra.mxu0 0.0
  %12310 = vmatprep.subr.mxu0 0.0
  %12311 = vmatpush1.msra.mxu0 0.0
  %12312 = vmatprep.subr.mxu0 0.0
  %12313 = vmatpush1.msra.mxu0 0.0
  %12314 = vmatprep.subr.mxu0 0.0
  %12315 = vmatpush1.msra.mxu0 0.0
  %12316 = vmatprep.subr.mxu0 0.0
  %12317 = vmatpush1.msra.mxu0 0.0
  %12318 = vmatprep.subr.mxu0 0.0
  %12319 = vmatpush1.msra.mxu0 0.0
  %12320 = vmatprep.subr.mxu0 0.0
  %12321 = vmatpush1.msra.mxu0 0.0
  %12322 = vmatprep.subr.mxu0 0.0
  %12323 = vmatpush1.msra.mxu0 0.0
  %12324 = vmatprep.subr.mxu0 0.0
  %12325 = vmatpush1.msra.mxu0 0.0
  %12326 = vmatprep.subr.mxu0 0.0
  %12327 = vmatpush1.msra.mxu0 0.0
  %12328 = vmatprep.subr.mxu0 0.0
  %12329 = vmatpush1.msra.mxu0 0.0
  %12330 = vmatprep.subr.mxu0 0.0
  %12331 = vmatpush1.msra.mxu0 0.0
  %12332 = vmatprep.subr.mxu0 0.0
  %12333 = vmatpush1.msra.mxu0 0.0
  %12334 = vmatprep.subr.mxu0 0.0
  %12335 = vmatpush1.msra.mxu0 0.0
  %12336 = vmatprep.subr.mxu0 0.0
  %12337 = vmatpush1.msra.mxu0 0.0
  %12338 = vmatprep.subr.mxu0 0.0
  %12339 = vmatpush1.msra.mxu0 0.0
  %12340 = vmatprep.subr.mxu0 0.0
  %12341 = vmatpush1.msra.mxu0 0.0
  %12342 = vmatprep.subr.mxu0 0.0
  %12343 = vmatpush1.msra.mxu0 0.0
  %12344 = vmatprep.subr.mxu0 0.0
  %12345 = vmatpush1.msra.mxu0 0.0
  %12346 = vmatprep.subr.mxu0 0.0
  %12347 = vmatpush1.msra.mxu0 0.0
  %12348 = vmatprep.subr.mxu0 0.0
  %12349 = vmatpush1.msra.mxu0 0.0
  %12350 = vmatprep.subr.mxu0 0.0
  %12351 = vmatpush1.msra.mxu0 0.0
  %12352 = vmatprep.subr.mxu0 0.0
  %12353 = vmatpush1.msra.mxu0 0.0
  %12354 = vmatprep.subr.mxu0 0.0
  %12355 = vmatpush1.msra.mxu0 0.0
  %12356 = vmatprep.subr.mxu0 0.0
  %12357 = vmatpush1.msra.mxu0 0.0
  %12358 = vmatprep.subr.mxu0 0.0
  %12359 = vmatpush1.msra.mxu0 0.0
  %12360 = vmatprep.subr.mxu0 0.0
  %12361 = vmatpush1.msra.mxu0 0.0
  %12362 = vmatprep.subr.mxu0 0.0
  %12363 = vmatpush1.msra.mxu0 0.0
  %12364 = vmatprep.mubr.f32.mxu0 0.0
  %12365 = vmatmul.mubr.f32.gmra.mrb[0].mxu0 %v12295
  %v12366 = vpop.f32.mrb[0].mxu0
  %v12367 = vadd.f32 %v12292, %v12366
  %v12368 = vpop.f32.mrb[0].mxu0
  %12369 = vmatprep.mubr.f32.mxu0 0.0
  %12370 = vmatmul.mubr.f32.gmra.mrb[0].mxu0 %v12298
  %v12371 = vpop.f32.mrb[0].mxu0
  %v12372 = vadd.f32 %v12292, %v12371
  %v12373 = vpop.f32.mrb[0].mxu0
  %12374 = vdwg.mxu0
  %v12375 = vld [vmem:[%s12] sm:$0xff]
  %v12376 = vld [vmem:[%s12 + $0x8] sm:$0xff]
  %v12377 = vld [vmem:[%s12 + $0x10] sm:$0xff]
  %v12378 = vld [vmem:[%s12 + $0x18] sm:$0xff]
  %v12380 = vsel %vm11002, 0.0, 0
  %12382 = vmatprep.subr.mxu0 0.0
  %12383 = vmatpush1.msra.mxu0 %v12375
  %12384 = vmatprep.subr.mxu0 0.0
  %12385 = vmatpush1.msra.mxu0 %v12376
  %12386 = vmatprep.subr.mxu0 0.0
  %12387 = vmatpush1.msra.mxu0 %v12377
  %12388 = vmatprep.subr.mxu0 0.0
  %12389 = vmatpush1.msra.mxu0 %v12378
  %12390 = vmatprep.subr.mxu0 0.0
  %12391 = vmatpush1.msra.mxu0 0.0
  %12392 = vmatprep.subr.mxu0 0.0
  %12393 = vmatpush1.msra.mxu0 0.0
  %12394 = vmatprep.subr.mxu0 0.0
  %12395 = vmatpush1.msra.mxu0 0.0
  %12396 = vmatprep.subr.mxu0 0.0
  %12397 = vmatpush1.msra.mxu0 0.0
  %12398 = vmatprep.subr.mxu0 0.0
  %12399 = vmatpush1.msra.mxu0 0.0
  %12400 = vmatprep.subr.mxu0 0.0
  %12401 = vmatpush1.msra.mxu0 0.0
  %12402 = vmatprep.subr.mxu0 0.0
  %12403 = vmatpush1.msra.mxu0 0.0
  %12404 = vmatprep.subr.mxu0 0.0
  %12405 = vmatpush1.msra.mxu0 0.0
  %12406 = vmatprep.subr.mxu0 0.0
  %12407 = vmatpush1.msra.mxu0 0.0
  %12408 = vmatprep.subr.mxu0 0.0
  %12409 = vmatpush1.msra.mxu0 0.0
  %12410 = vmatprep.subr.mxu0 0.0
  %12411 = vmatpush1.msra.mxu0 0.0
  %12412 = vmatprep.subr.mxu0 0.0
  %12413 = vmatpush1.msra.mxu0 0.0
  %12414 = vmatprep.subr.mxu0 0.0
  %12415 = vmatpush1.msra.mxu0 0.0
  %12416 = vmatprep.subr.mxu0 0.0
  %12417 = vmatpush1.msra.mxu0 0.0
  %12418 = vmatprep.subr.mxu0 0.0
  %12419 = vmatpush1.msra.mxu0 0.0
  %12420 = vmatprep.subr.mxu0 0.0
  %12421 = vmatpush1.msra.mxu0 0.0
  %12422 = vmatprep.subr.mxu0 0.0
  %12423 = vmatpush1.msra.mxu0 0.0
  %12424 = vmatprep.subr.mxu0 0.0
  %12425 = vmatpush1.msra.mxu0 0.0
  %12426 = vmatprep.subr.mxu0 0.0
  %12427 = vmatpush1.msra.mxu0 0.0
  %12428 = vmatprep.subr.mxu0 0.0
  %12429 = vmatpush1.msra.mxu0 0.0
  %12430 = vmatprep.subr.mxu0 0.0
  %12431 = vmatpush1.msra.mxu0 0.0
  %12432 = vmatprep.subr.mxu0 0.0
  %12433 = vmatpush1.msra.mxu0 0.0
  %12434 = vmatprep.subr.mxu0 0.0
  %12435 = vmatpush1.msra.mxu0 0.0
  %12436 = vmatprep.subr.mxu0 0.0
  %12437 = vmatpush1.msra.mxu0 0.0
  %12438 = vmatprep.subr.mxu0 0.0
  %12439 = vmatpush1.msra.mxu0 0.0
  %12440 = vmatprep.subr.mxu0 0.0
  %12441 = vmatpush1.msra.mxu0 0.0
  %12442 = vmatprep.subr.mxu0 0.0
  %12443 = vmatpush1.msra.mxu0 0.0
  %12444 = vmatprep.subr.mxu0 0.0
  %12445 = vmatpush1.msra.mxu0 0.0
  %12446 = vmatprep.mubr.f32.mxu0 0.0
  %12447 = vmatmul.mubr.f32.gmra.mrb[0].mxu0 %v12380
  %v12448 = vpop.f32.mrb[0].mxu0
  %v12449 = vadd.f32 0.0, %v12448
  %v12450 = vpop.f32.mrb[0].mxu0
  %12451 = vdwg.mxu0
  %v12452 = vadd.f32 %v12367, %v12449
  %v12453 = vxor.u32 %v12452, 2147483648
  %v12454 = vmul.f32 %v12453, 1.442695
  %v12455 = vpow.pop %v12454
  %v12456 = vadd.f32 %v12455, 1.0
  %v12457 = vrcp.pop %v12456
  %v12458 = vmul.f32 1.0, %v12457
  %v12459 = vtanh.pop %v12452
  %v12460 = vmul.f32 %v12458, 0.0
  %12462 = vrot.lane.b32.xlu0 %v12459, 64
  %v12463 = vpop.permute.xlu0 %12462
  %v12465 = vmul.f32 %v12458, %v12463
  %12467 = vrot.lane.b32.xlu0 %v12465, 32
  %v12468 = vpop.permute.xlu0 %12467
  %v12470 = vadd.f32 %v12460, %v12468
  %v12471 = vtanh.pop %v12470
  %12473 = vrot.lane.b32.xlu0 %v12471, 64
  %v12474 = vpop.permute.xlu0 %12473
  %v12476 = vmul.f32 %v12458, %v12474
  %12478 = vrot.lane.b32.xlu0 %v12476, 32
  %v12479 = vpop.permute.xlu0 %12478
  %v12480 = vsel %vm11002, %v12479, 0
  %12482 = vmatprep.subr.mxu0 0.0
  %12483 = vmatpush1.msra.mxu0 %v12375
  %12484 = vmatprep.subr.mxu0 0.0
  %12485 = vmatpush1.msra.mxu0 %v12376
  %12486 = vmatprep.subr.mxu0 0.0
  %12487 = vmatpush1.msra.mxu0 %v12377
  %12488 = vmatprep.subr.mxu0 0.0
  %12489 = vmatpush1.msra.mxu0 %v12378
  %12490 = vmatprep.subr.mxu0 0.0
  %12491 = vmatpush1.msra.mxu0 0.0
  %12492 = vmatprep.subr.mxu0 0.0
  %12493 = vmatpush1.msra.mxu0 0.0
  %12494 = vmatprep.subr.mxu0 0.0
  %12495 = vmatpush1.msra.mxu0 0.0
  %12496 = vmatprep.subr.mxu0 0.0
  %12497 = vmatpush1.msra.mxu0 0.0
  %12498 = vmatprep.subr.mxu0 0.0
  %12499 = vmatpush1.msra.mxu0 0.0
  %12500 = vmatprep.subr.mxu0 0.0
  %12501 = vmatpush1.msra.mxu0 0.0
  %12502 = vmatprep.subr.mxu0 0.0
  %12503 = vmatpush1.msra.mxu0 0.0
  %12504 = vmatprep.subr.mxu0 0.0
  %12505 = vmatpush1.msra.mxu0 0.0
  %12506 = vmatprep.subr.mxu0 0.0
  %12507 = vmatpush1.msra.mxu0 0.0
  %12508 = vmatprep.subr.mxu0 0.0
  %12509 = vmatpush1.msra.mxu0 0.0
  %12510 = vmatprep.subr.mxu0 0.0
  %12511 = vmatpush1.msra.mxu0 0.0
  %12512 = vmatprep.subr.mxu0 0.0
  %12513 = vmatpush1.msra.mxu0 0.0
  %12514 = vmatprep.subr.mxu0 0.0
  %12515 = vmatpush1.msra.mxu0 0.0
  %12516 = vmatprep.subr.mxu0 0.0
  %12517 = vmatpush1.msra.mxu0 0.0
  %12518 = vmatprep.subr.mxu0 0.0
  %12519 = vmatpush1.msra.mxu0 0.0
  %12520 = vmatprep.subr.mxu0 0.0
  %12521 = vmatpush1.msra.mxu0 0.0
  %12522 = vmatprep.subr.mxu0 0.0
  %12523 = vmatpush1.msra.mxu0 0.0
  %12524 = vmatprep.subr.mxu0 0.0
  %12525 = vmatpush1.msra.mxu0 0.0
  %12526 = vmatprep.subr.mxu0 0.0
  %12527 = vmatpush1.msra.mxu0 0.0
  %12528 = vmatprep.subr.mxu0 0.0
  %12529 = vmatpush1.msra.mxu0 0.0
  %12530 = vmatprep.subr.mxu0 0.0
  %12531 = vmatpush1.msra.mxu0 0.0
  %12532 = vmatprep.subr.mxu0 0.0
  %12533 = vmatpush1.msra.mxu0 0.0
  %12534 = vmatprep.subr.mxu0 0.0
  %12535 = vmatpush1.msra.mxu0 0.0
  %12536 = vmatprep.subr.mxu0 0.0
  %12537 = vmatpush1.msra.mxu0 0.0
  %12538 = vmatprep.subr.mxu0 0.0
  %12539 = vmatpush1.msra.mxu0 0.0
  %12540 = vmatprep.subr.mxu0 0.0
  %12541 = vmatpush1.msra.mxu0 0.0
  %12542 = vmatprep.subr.mxu0 0.0
  %12543 = vmatpush1.msra.mxu0 0.0
  %12544 = vmatprep.subr.mxu0 0.0
  %12545 = vmatpush1.msra.mxu0 0.0
  %12546 = vmatprep.mubr.f32.mxu0 0.0
  %12547 = vmatmul.mubr.f32.gmra.mrb[0].mxu0 %v12480
  %v12548 = vpop.f32.mrb[0].mxu0
  %v12549 = vadd.f32 0.0, %v12548
  %v12550 = vpop.f32.mrb[0].mxu0
  %12551 = vdwg.mxu0
  %v12553 = vrot.slane %v12549, 6
  %v12555 = vadd.f32 %v12367, %v12553
  %v12556 = vxor.u32 %v12555, 2147483648
  %v12557 = vmul.f32 %v12556, 1.442695
  %v12558 = vpow.pop %v12557
  %v12559 = vadd.f32 %v12558, 1.0
  %v12560 = vrcp.pop %v12559
  %v12561 = vmul.f32 1.0, %v12560
  %v12562 = vtanh.pop %v12555
  %v12564 = vrot.slane %v12470, 6
  %v12566 = vmul.f32 %v12561, %v12564
  %12568 = vrot.lane.b32.xlu0 %v12562, 64
  %v12569 = vpop.permute.xlu0 %12568
  %v12571 = vmul.f32 %v12561, %v12569
  %12573 = vrot.lane.b32.xlu0 %v12571, 32
  %v12574 = vpop.permute.xlu0 %12573
  %v12576 = vadd.f32 %v12566, %v12574
  %v12577 = vtanh.pop %v12576
  %12579 = vrot.lane.b32.xlu0 %v12577, 64
  %v12580 = vpop.permute.xlu0 %12579
  %v12582 = vmul.f32 %v12561, %v12580
  %v12584 = vrot.slane %v12582, 2
  %12585 = vrot.lane.b32.xlu0 %v12584, 32
  %v12586 = vpop.permute.xlu0 %12585
  %v12587 = vsel %vm11002, %v12586, 0
  %12589 = vmatprep.subr.mxu0 0.0
  %12590 = vmatpush1.msra.mxu0 %v12375
  %12591 = vmatprep.subr.mxu0 0.0
  %12592 = vmatpush1.msra.mxu0 %v12376
  %12593 = vmatprep.subr.mxu0 0.0
  %12594 = vmatpush1.msra.mxu0 %v12377
  %12595 = vmatprep.subr.mxu0 0.0
  %12596 = vmatpush1.msra.mxu0 %v12378
  %12597 = vmatprep.subr.mxu0 0.0
  %12598 = vmatpush1.msra.mxu0 0.0
  %12599 = vmatprep.subr.mxu0 0.0
  %12600 = vmatpush1.msra.mxu0 0.0
  %12601 = vmatprep.subr.mxu0 0.0
  %12602 = vmatpush1.msra.mxu0 0.0
  %12603 = vmatprep.subr.mxu0 0.0
  %12604 = vmatpush1.msra.mxu0 0.0
  %12605 = vmatprep.subr.mxu0 0.0
  %12606 = vmatpush1.msra.mxu0 0.0
  %12607 = vmatprep.subr.mxu0 0.0
  %12608 = vmatpush1.msra.mxu0 0.0
  %12609 = vmatprep.subr.mxu0 0.0
  %12610 = vmatpush1.msra.mxu0 0.0
  %12611 = vmatprep.subr.mxu0 0.0
  %12612 = vmatpush1.msra.mxu0 0.0
  %12613 = vmatprep.subr.mxu0 0.0
  %12614 = vmatpush1.msra.mxu0 0.0
  %12615 = vmatprep.subr.mxu0 0.0
  %12616 = vmatpush1.msra.mxu0 0.0
  %12617 = vmatprep.subr.mxu0 0.0
  %12618 = vmatpush1.msra.mxu0 0.0
  %12619 = vmatprep.subr.mxu0 0.0
  %12620 = vmatpush1.msra.mxu0 0.0
  %12621 = vmatprep.subr.mxu0 0.0
  %12622 = vmatpush1.msra.mxu0 0.0
  %12623 = vmatprep.subr.mxu0 0.0
  %12624 = vmatpush1.msra.mxu0 0.0
  %12625 = vmatprep.subr.mxu0 0.0
  %12626 = vmatpush1.msra.mxu0 0.0
  %12627 = vmatprep.subr.mxu0 0.0
  %12628 = vmatpush1.msra.mxu0 0.0
  %12629 = vmatprep.subr.mxu0 0.0
  %12630 = vmatpush1.msra.mxu0 0.0
  %12631 = vmatprep.subr.mxu0 0.0
  %12632 = vmatpush1.msra.mxu0 0.0
  %12633 = vmatprep.subr.mxu0 0.0
  %12634 = vmatpush1.msra.mxu0 0.0
  %12635 = vmatprep.subr.mxu0 0.0
  %12636 = vmatpush1.msra.mxu0 0.0
  %12637 = vmatprep.subr.mxu0 0.0
  %12638 = vmatpush1.msra.mxu0 0.0
  %12639 = vmatprep.subr.mxu0 0.0
  %12640 = vmatpush1.msra.mxu0 0.0
  %12641 = vmatprep.subr.mxu0 0.0
  %12642 = vmatpush1.msra.mxu0 0.0
  %12643 = vmatprep.subr.mxu0 0.0
  %12644 = vmatpush1.msra.mxu0 0.0
  %12645 = vmatprep.subr.mxu0 0.0
  %12646 = vmatpush1.msra.mxu0 0.0
  %12647 = vmatprep.subr.mxu0 0.0
  %12648 = vmatpush1.msra.mxu0 0.0
  %12649 = vmatprep.subr.mxu0 0.0
  %12650 = vmatpush1.msra.mxu0 0.0
  %12651 = vmatprep.subr.mxu0 0.0
  %12652 = vmatpush1.msra.mxu0 0.0
  %12653 = vmatprep.mubr.f32.mxu0 0.0
  %12654 = vmatmul.mubr.f32.gmra.mrb[0].mxu0 %v12587
  %v12655 = vpop.f32.mrb[0].mxu0
  %v12656 = vadd.f32 0.0, %v12655
  %v12657 = vpop.f32.mrb[0].mxu0
  %12658 = vdwg.mxu0
  %v12660 = vrot.slane %v12656, 4
  %v12662 = vadd.f32 %v12367, %v12660
  %v12663 = vxor.u32 %v12662, 2147483648
  %v12664 = vmul.f32 %v12663, 1.442695
  %v12665 = vpow.pop %v12664
  %v12666 = vadd.f32 %v12665, 1.0
  %v12667 = vrcp.pop %v12666
  %v12668 = vmul.f32 1.0, %v12667
  %v12669 = vtanh.pop %v12662
  %v12671 = vrot.slane %v12576, 6
  %v12673 = vmul.f32 %v12668, %v12671
  %12675 = vrot.lane.b32.xlu0 %v12669, 64
  %v12676 = vpop.permute.xlu0 %12675
  %v12678 = vmul.f32 %v12668, %v12676
  %12680 = vrot.lane.b32.xlu0 %v12678, 32
  %v12681 = vpop.permute.xlu0 %12680
  %v12683 = vadd.f32 %v12673, %v12681
  %v12684 = vtanh.pop %v12683
  %12686 = vrot.lane.b32.xlu0 %v12684, 64
  %v12687 = vpop.permute.xlu0 %12686
  %v12689 = vmul.f32 %v12668, %v12687
  %v12691 = vrot.slane %v12689, 4
  %12692 = vrot.lane.b32.xlu0 %v12691, 32
  %v12693 = vpop.permute.xlu0 %12692
  %v12694 = vsel %vm11002, %v12693, 0
  %12696 = vmatprep.subr.mxu0 0.0
  %12697 = vmatpush1.msra.mxu0 %v12375
  %12698 = vmatprep.subr.mxu0 0.0
  %12699 = vmatpush1.msra.mxu0 %v12376
  %12700 = vmatprep.subr.mxu0 0.0
  %12701 = vmatpush1.msra.mxu0 %v12377
  %12702 = vmatprep.subr.mxu0 0.0
  %12703 = vmatpush1.msra.mxu0 %v12378
  %12704 = vmatprep.subr.mxu0 0.0
  %12705 = vmatpush1.msra.mxu0 0.0
  %12706 = vmatprep.subr.mxu0 0.0
  %12707 = vmatpush1.msra.mxu0 0.0
  %12708 = vmatprep.subr.mxu0 0.0
  %12709 = vmatpush1.msra.mxu0 0.0
  %12710 = vmatprep.subr.mxu0 0.0
  %12711 = vmatpush1.msra.mxu0 0.0
  %12712 = vmatprep.subr.mxu0 0.0
  %12713 = vmatpush1.msra.mxu0 0.0
  %12714 = vmatprep.subr.mxu0 0.0
  %12715 = vmatpush1.msra.mxu0 0.0
  %12716 = vmatprep.subr.mxu0 0.0
  %12717 = vmatpush1.msra.mxu0 0.0
  %12718 = vmatprep.subr.mxu0 0.0
  %12719 = vmatpush1.msra.mxu0 0.0
  %12720 = vmatprep.subr.mxu0 0.0
  %12721 = vmatpush1.msra.mxu0 0.0
  %12722 = vmatprep.subr.mxu0 0.0
  %12723 = vmatpush1.msra.mxu0 0.0
  %12724 = vmatprep.subr.mxu0 0.0
  %12725 = vmatpush1.msra.mxu0 0.0
  %12726 = vmatprep.subr.mxu0 0.0
  %12727 = vmatpush1.msra.mxu0 0.0
  %12728 = vmatprep.subr.mxu0 0.0
  %12729 = vmatpush1.msra.mxu0 0.0
  %12730 = vmatprep.subr.mxu0 0.0
  %12731 = vmatpush1.msra.mxu0 0.0
  %12732 = vmatprep.subr.mxu0 0.0
  %12733 = vmatpush1.msra.mxu0 0.0
  %12734 = vmatprep.subr.mxu0 0.0
  %12735 = vmatpush1.msra.mxu0 0.0
  %12736 = vmatprep.subr.mxu0 0.0
  %12737 = vmatpush1.msra.mxu0 0.0
  %12738 = vmatprep.subr.mxu0 0.0
  %12739 = vmatpush1.msra.mxu0 0.0
  %12740 = vmatprep.subr.mxu0 0.0
  %12741 = vmatpush1.msra.mxu0 0.0
  %12742 = vmatprep.subr.mxu0 0.0
  %12743 = vmatpush1.msra.mxu0 0.0
  %12744 = vmatprep.subr.mxu0 0.0
  %12745 = vmatpush1.msra.mxu0 0.0
  %12746 = vmatprep.subr.mxu0 0.0
  %12747 = vmatpush1.msra.mxu0 0.0
  %12748 = vmatprep.subr.mxu0 0.0
  %12749 = vmatpush1.msra.mxu0 0.0
  %12750 = vmatprep.subr.mxu0 0.0
  %12751 = vmatpush1.msra.mxu0 0.0
  %12752 = vmatprep.subr.mxu0 0.0
  %12753 = vmatpush1.msra.mxu0 0.0
  %12754 = vmatprep.subr.mxu0 0.0
  %12755 = vmatpush1.msra.mxu0 0.0
  %12756 = vmatprep.subr.mxu0 0.0
  %12757 = vmatpush1.msra.mxu0 0.0
  %12758 = vmatprep.subr.mxu0 0.0
  %12759 = vmatpush1.msra.mxu0 0.0
  %12760 = vmatprep.mubr.f32.mxu0 0.0
  %12761 = vmatmul.mubr.f32.gmra.mrb[0].mxu0 %v12694
  %v12762 = vpop.f32.mrb[0].mxu0
  %v12763 = vadd.f32 0.0, %v12762
  %v12764 = vpop.f32.mrb[0].mxu0
  %12765 = vdwg.mxu0
  %v12767 = vrot.slane %v12763, 2
  %v12769 = vadd.f32 %v12367, %v12767
  %v12770 = vxor.u32 %v12769, 2147483648
  %v12771 = vmul.f32 %v12770, 1.442695
  %v12772 = vpow.pop %v12771
  %v12773 = vadd.f32 %v12772, 1.0
  %v12774 = vrcp.pop %v12773
  %v12775 = vmul.f32 1.0, %v12774
  %v12776 = vtanh.pop %v12769
  %v12778 = vrot.slane %v12683, 6
  %v12780 = vmul.f32 %v12775, %v12778
  %12782 = vrot.lane.b32.xlu0 %v12776, 64
  %v12783 = vpop.permute.xlu0 %12782
  %v12785 = vmul.f32 %v12775, %v12783
  %12787 = vrot.lane.b32.xlu0 %v12785, 32
  %v12788 = vpop.permute.xlu0 %12787
  %v12790 = vadd.f32 %v12780, %v12788
  %v12791 = vtanh.pop %v12790
  %12793 = vrot.lane.b32.xlu0 %v12791, 64
  %v12794 = vpop.permute.xlu0 %12793
  %v12796 = vmul.f32 %v12775, %v12794
  %v12798 = vrot.slane %v12796, 6
  %12799 = vrot.lane.b32.xlu0 %v12798, 32
  %v12800 = vpop.permute.xlu0 %12799
  %v12801 = vsel %vm11002, %v12800, 0
  %12803 = vmatprep.subr.mxu0 0.0
  %12804 = vmatpush1.msra.mxu0 %v12375
  %12805 = vmatprep.subr.mxu0 0.0
  %12806 = vmatpush1.msra.mxu0 %v12376
  %12807 = vmatprep.subr.mxu0 0.0
  %12808 = vmatpush1.msra.mxu0 %v12377
  %12809 = vmatprep.subr.mxu0 0.0
  %12810 = vmatpush1.msra.mxu0 %v12378
  %12811 = vmatprep.subr.mxu0 0.0
  %12812 = vmatpush1.msra.mxu0 0.0
  %12813 = vmatprep.subr.mxu0 0.0
  %12814 = vmatpush1.msra.mxu0 0.0
  %12815 = vmatprep.subr.mxu0 0.0
  %12816 = vmatpush1.msra.mxu0 0.0
  %12817 = vmatprep.subr.mxu0 0.0
  %12818 = vmatpush1.msra.mxu0 0.0
  %12819 = vmatprep.subr.mxu0 0.0
  %12820 = vmatpush1.msra.mxu0 0.0
  %12821 = vmatprep.subr.mxu0 0.0
  %12822 = vmatpush1.msra.mxu0 0.0
  %12823 = vmatprep.subr.mxu0 0.0
  %12824 = vmatpush1.msra.mxu0 0.0
  %12825 = vmatprep.subr.mxu0 0.0
  %12826 = vmatpush1.msra.mxu0 0.0
  %12827 = vmatprep.subr.mxu0 0.0
  %12828 = vmatpush1.msra.mxu0 0.0
  %12829 = vmatprep.subr.mxu0 0.0
  %12830 = vmatpush1.msra.mxu0 0.0
  %12831 = vmatprep.subr.mxu0 0.0
  %12832 = vmatpush1.msra.mxu0 0.0
  %12833 = vmatprep.subr.mxu0 0.0
  %12834 = vmatpush1.msra.mxu0 0.0
  %12835 = vmatprep.subr.mxu0 0.0
  %12836 = vmatpush1.msra.mxu0 0.0
  %12837 = vmatprep.subr.mxu0 0.0
  %12838 = vmatpush1.msra.mxu0 0.0
  %12839 = vmatprep.subr.mxu0 0.0
  %12840 = vmatpush1.msra.mxu0 0.0
  %12841 = vmatprep.subr.mxu0 0.0
  %12842 = vmatpush1.msra.mxu0 0.0
  %12843 = vmatprep.subr.mxu0 0.0
  %12844 = vmatpush1.msra.mxu0 0.0
  %12845 = vmatprep.subr.mxu0 0.0
  %12846 = vmatpush1.msra.mxu0 0.0
  %12847 = vmatprep.subr.mxu0 0.0
  %12848 = vmatpush1.msra.mxu0 0.0
  %12849 = vmatprep.subr.mxu0 0.0
  %12850 = vmatpush1.msra.mxu0 0.0
  %12851 = vmatprep.subr.mxu0 0.0
  %12852 = vmatpush1.msra.mxu0 0.0
  %12853 = vmatprep.subr.mxu0 0.0
  %12854 = vmatpush1.msra.mxu0 0.0
  %12855 = vmatprep.subr.mxu0 0.0
  %12856 = vmatpush1.msra.mxu0 0.0
  %12857 = vmatprep.subr.mxu0 0.0
  %12858 = vmatpush1.msra.mxu0 0.0
  %12859 = vmatprep.subr.mxu0 0.0
  %12860 = vmatpush1.msra.mxu0 0.0
  %12861 = vmatprep.subr.mxu0 0.0
  %12862 = vmatpush1.msra.mxu0 0.0
  %12863 = vmatprep.subr.mxu0 0.0
  %12864 = vmatpush1.msra.mxu0 0.0
  %12865 = vmatprep.subr.mxu0 0.0
  %12866 = vmatpush1.msra.mxu0 0.0
  %12867 = vmatprep.mubr.f32.mxu0 0.0
  %12868 = vmatmul.mubr.f32.gmra.mrb[0].mxu0 %v12801
  %v12869 = vpop.f32.mrb[0].mxu0
  %v12870 = vadd.f32 0.0, %v12869
  %v12871 = vpop.f32.mrb[0].mxu0
  %12872 = vdwg.mxu0
  %v12873 = vadd.f32 %v12372, %v12870
  %v12874 = vxor.u32 %v12873, 2147483648
  %v12875 = vmul.f32 %v12874, 1.442695
  %v12876 = vpow.pop %v12875
  %v12877 = vadd.f32 %v12876, 1.0
  %v12878 = vrcp.pop %v12877
  %v12879 = vmul.f32 1.0, %v12878
  %v12880 = vtanh.pop %v12873
  %v12882 = vrot.slane %v12790, 6
  %v12884 = vmul.f32 %v12879, %v12882
  %12886 = vrot.lane.b32.xlu0 %v12880, 64
  %v12887 = vpop.permute.xlu0 %12886
  %v12889 = vmul.f32 %v12879, %v12887
  %12891 = vrot.lane.b32.xlu0 %v12889, 32
  %v12892 = vpop.permute.xlu0 %12891
  %v12894 = vadd.f32 %v12884, %v12892
  %v12895 = vtanh.pop %v12894
  %12897 = vrot.lane.b32.xlu0 %v12895, 64
  %v12898 = vpop.permute.xlu0 %12897
  %v12900 = vmul.f32 %v12879, %v12898
  %12902 = vrot.lane.b32.xlu0 %v12900, 32
  %v12903 = vpop.permute.xlu0 %12902
  %v12904 = vsel %vm11002, %v12903, 0
  %12906 = vmatprep.subr.mxu0 0.0
  %12907 = vmatpush1.msra.mxu0 %v12375
  %12908 = vmatprep.subr.mxu0 0.0
  %12909 = vmatpush1.msra.mxu0 %v12376
  %12910 = vmatprep.subr.mxu0 0.0
  %12911 = vmatpush1.msra.mxu0 %v12377
  %12912 = vmatprep.subr.mxu0 0.0
  %12913 = vmatpush1.msra.mxu0 %v12378
  %12914 = vmatprep.subr.mxu0 0.0
  %12915 = vmatpush1.msra.mxu0 0.0
  %12916 = vmatprep.subr.mxu0 0.0
  %12917 = vmatpush1.msra.mxu0 0.0
  %12918 = vmatprep.subr.mxu0 0.0
  %12919 = vmatpush1.msra.mxu0 0.0
  %12920 = vmatprep.subr.mxu0 0.0
  %12921 = vmatpush1.msra.mxu0 0.0
  %12922 = vmatprep.subr.mxu0 0.0
  %12923 = vmatpush1.msra.mxu0 0.0
  %12924 = vmatprep.subr.mxu0 0.0
  %12925 = vmatpush1.msra.mxu0 0.0
  %12926 = vmatprep.subr.mxu0 0.0
  %12927 = vmatpush1.msra.mxu0 0.0
  %12928 = vmatprep.subr.mxu0 0.0
  %12929 = vmatpush1.msra.mxu0 0.0
  %12930 = vmatprep.subr.mxu0 0.0
  %12931 = vmatpush1.msra.mxu0 0.0
  %12932 = vmatprep.subr.mxu0 0.0
  %12933 = vmatpush1.msra.mxu0 0.0
  %12934 = vmatprep.subr.mxu0 0.0
  %12935 = vmatpush1.msra.mxu0 0.0
  %12936 = vmatprep.subr.mxu0 0.0
  %12937 = vmatpush1.msra.mxu0 0.0
  %12938 = vmatprep.subr.mxu0 0.0
  %12939 = vmatpush1.msra.mxu0 0.0
  %12940 = vmatprep.subr.mxu0 0.0
  %12941 = vmatpush1.msra.mxu0 0.0
  %12942 = vmatprep.subr.mxu0 0.0
  %12943 = vmatpush1.msra.mxu0 0.0
  %12944 = vmatprep.subr.mxu0 0.0
  %12945 = vmatpush1.msra.mxu0 0.0
  %12946 = vmatprep.subr.mxu0 0.0
  %12947 = vmatpush1.msra.mxu0 0.0
  %12948 = vmatprep.subr.mxu0 0.0
  %12949 = vmatpush1.msra.mxu0 0.0
  %12950 = vmatprep.subr.mxu0 0.0
  %12951 = vmatpush1.msra.mxu0 0.0
  %12952 = vmatprep.subr.mxu0 0.0
  %12953 = vmatpush1.msra.mxu0 0.0
  %12954 = vmatprep.subr.mxu0 0.0
  %12955 = vmatpush1.msra.mxu0 0.0
  %12956 = vmatprep.subr.mxu0 0.0
  %12957 = vmatpush1.msra.mxu0 0.0
  %12958 = vmatprep.subr.mxu0 0.0
  %12959 = vmatpush1.msra.mxu0 0.0
  %12960 = vmatprep.subr.mxu0 0.0
  %12961 = vmatpush1.msra.mxu0 0.0
  %12962 = vmatprep.subr.mxu0 0.0
  %12963 = vmatpush1.msra.mxu0 0.0
  %12964 = vmatprep.subr.mxu0 0.0
  %12965 = vmatpush1.msra.mxu0 0.0
  %12966 = vmatprep.subr.mxu0 0.0
  %12967 = vmatpush1.msra.mxu0 0.0
  %12968 = vmatprep.subr.mxu0 0.0
  %12969 = vmatpush1.msra.mxu0 0.0
  %12970 = vmatprep.mubr.f32.mxu0 0.0
  %12971 = vmatmul.mubr.f32.gmra.mrb[0].mxu0 %v12904
  %v12972 = vpop.f32.mrb[0].mxu0
  %v12973 = vadd.f32 0.0, %v12972
  %v12974 = vpop.f32.mrb[0].mxu0
  %12975 = vdwg.mxu0
  %v12977 = vrot.slane %v12973, 6
  %v12979 = vadd.f32 %v12372, %v12977
  %v12980 = vxor.u32 %v12979, 2147483648
  %v12981 = vmul.f32 %v12980, 1.442695
  %v12982 = vpow.pop %v12981
  %v12983 = vadd.f32 %v12982, 1.0
  %v12984 = vrcp.pop %v12983
  %v12985 = vmul.f32 1.0, %v12984
  %v12986 = vtanh.pop %v12979
  %v12988 = vrot.slane %v12894, 6
  %v12990 = vmul.f32 %v12985, %v12988
  %12992 = vrot.lane.b32.xlu0 %v12986, 64
  %v12993 = vpop.permute.xlu0 %12992
  %v12995 = vmul.f32 %v12985, %v12993
  %12997 = vrot.lane.b32.xlu0 %v12995, 32
  %v12998 = vpop.permute.xlu0 %12997
  %v13000 = vadd.f32 %v12990, %v12998
  %v13001 = vtanh.pop %v13000
  %13003 = vrot.lane.b32.xlu0 %v13001, 64
  %v13004 = vpop.permute.xlu0 %13003
  %v13006 = vmul.f32 %v12985, %v13004
  %v13008 = vrot.slane %v13006, 2
  %13009 = vrot.lane.b32.xlu0 %v13008, 32
  %v13010 = vpop.permute.xlu0 %13009
  %v13011 = vsel %vm11002, %v13010, 0
  %13013 = vmatprep.subr.mxu0 0.0
  %13014 = vmatpush1.msra.mxu0 %v12375
  %13015 = vmatprep.subr.mxu0 0.0
  %13016 = vmatpush1.msra.mxu0 %v12376
  %13017 = vmatprep.subr.mxu0 0.0
  %13018 = vmatpush1.msra.mxu0 %v12377
  %13019 = vmatprep.subr.mxu0 0.0
  %13020 = vmatpush1.msra.mxu0 %v12378
  %13021 = vmatprep.subr.mxu0 0.0
  %13022 = vmatpush1.msra.mxu0 0.0
  %13023 = vmatprep.subr.mxu0 0.0
  %13024 = vmatpush1.msra.mxu0 0.0
  %13025 = vmatprep.subr.mxu0 0.0
  %13026 = vmatpush1.msra.mxu0 0.0
  %13027 = vmatprep.subr.mxu0 0.0
  %13028 = vmatpush1.msra.mxu0 0.0
  %13029 = vmatprep.subr.mxu0 0.0
  %13030 = vmatpush1.msra.mxu0 0.0
  %13031 = vmatprep.subr.mxu0 0.0
  %13032 = vmatpush1.msra.mxu0 0.0
  %13033 = vmatprep.subr.mxu0 0.0
  %13034 = vmatpush1.msra.mxu0 0.0
  %13035 = vmatprep.subr.mxu0 0.0
  %13036 = vmatpush1.msra.mxu0 0.0
  %13037 = vmatprep.subr.mxu0 0.0
  %13038 = vmatpush1.msra.mxu0 0.0
  %13039 = vmatprep.subr.mxu0 0.0
  %13040 = vmatpush1.msra.mxu0 0.0
  %13041 = vmatprep.subr.mxu0 0.0
  %13042 = vmatpush1.msra.mxu0 0.0
  %13043 = vmatprep.subr.mxu0 0.0
  %13044 = vmatpush1.msra.mxu0 0.0
  %13045 = vmatprep.subr.mxu0 0.0
  %13046 = vmatpush1.msra.mxu0 0.0
  %13047 = vmatprep.subr.mxu0 0.0
  %13048 = vmatpush1.msra.mxu0 0.0
  %13049 = vmatprep.subr.mxu0 0.0
  %13050 = vmatpush1.msra.mxu0 0.0
  %13051 = vmatprep.subr.mxu0 0.0
  %13052 = vmatpush1.msra.mxu0 0.0
  %13053 = vmatprep.subr.mxu0 0.0
  %13054 = vmatpush1.msra.mxu0 0.0
  %13055 = vmatprep.subr.mxu0 0.0
  %13056 = vmatpush1.msra.mxu0 0.0
  %13057 = vmatprep.subr.mxu0 0.0
  %13058 = vmatpush1.msra.mxu0 0.0
  %13059 = vmatprep.subr.mxu0 0.0
  %13060 = vmatpush1.msra.mxu0 0.0
  %13061 = vmatprep.subr.mxu0 0.0
  %13062 = vmatpush1.msra.mxu0 0.0
  %13063 = vmatprep.subr.mxu0 0.0
  %13064 = vmatpush1.msra.mxu0 0.0
  %13065 = vmatprep.subr.mxu0 0.0
  %13066 = vmatpush1.msra.mxu0 0.0
  %13067 = vmatprep.subr.mxu0 0.0
  %13068 = vmatpush1.msra.mxu0 0.0
  %13069 = vmatprep.subr.mxu0 0.0
  %13070 = vmatpush1.msra.mxu0 0.0
  %13071 = vmatprep.subr.mxu0 0.0
  %13072 = vmatpush1.msra.mxu0 0.0
  %13073 = vmatprep.subr.mxu0 0.0
  %13074 = vmatpush1.msra.mxu0 0.0
  %13075 = vmatprep.subr.mxu0 0.0
  %13076 = vmatpush1.msra.mxu0 0.0
  %13077 = vmatprep.mubr.f32.mxu0 0.0
  %13078 = vmatmul.mubr.f32.gmra.mrb[0].mxu0 %v13011
  %v13079 = vpop.f32.mrb[0].mxu0
  %v13080 = vadd.f32 0.0, %v13079
  %v13081 = vpop.f32.mrb[0].mxu0
  %13082 = vdwg.mxu0
  %v13084 = vrot.slane %v13080, 4
  %v13086 = vadd.f32 %v12372, %v13084
  %v13087 = vxor.u32 %v13086, 2147483648
  %v13088 = vmul.f32 %v13087, 1.442695
  %v13089 = vpow.pop %v13088
  %v13090 = vadd.f32 %v13089, 1.0
  %v13091 = vrcp.pop %v13090
  %v13092 = vmul.f32 1.0, %v13091
  %v13093 = vtanh.pop %v13086
  %v13095 = vrot.slane %v13000, 6
  %v13097 = vmul.f32 %v13092, %v13095
  %13099 = vrot.lane.b32.xlu0 %v13093, 64
  %v13100 = vpop.permute.xlu0 %13099
  %v13102 = vmul.f32 %v13092, %v13100
  %13104 = vrot.lane.b32.xlu0 %v13102, 32
  %v13105 = vpop.permute.xlu0 %13104
  %v13107 = vadd.f32 %v13097, %v13105
  %v13108 = vtanh.pop %v13107
  %13110 = vrot.lane.b32.xlu0 %v13108, 64
  %v13111 = vpop.permute.xlu0 %13110
  %v13113 = vmul.f32 %v13092, %v13111
  %v13115 = vrot.slane %v13113, 4
  %13116 = vrot.lane.b32.xlu0 %v13115, 32
  %v13117 = vpop.permute.xlu0 %13116
  %v13118 = vsel %vm11002, %v13117, 0
  %13120 = vmatprep.subr.mxu0 0.0
  %13121 = vmatpush1.msra.mxu0 %v12375
  %13122 = vmatprep.subr.mxu0 0.0
  %13123 = vmatpush1.msra.mxu0 %v12376
  %13124 = vmatprep.subr.mxu0 0.0
  %13125 = vmatpush1.msra.mxu0 %v12377
  %13126 = vmatprep.subr.mxu0 0.0
  %13127 = vmatpush1.msra.mxu0 %v12378
  %13128 = vmatprep.subr.mxu0 0.0
  %13129 = vmatpush1.msra.mxu0 0.0
  %13130 = vmatprep.subr.mxu0 0.0
  %13131 = vmatpush1.msra.mxu0 0.0
  %13132 = vmatprep.subr.mxu0 0.0
  %13133 = vmatpush1.msra.mxu0 0.0
  %13134 = vmatprep.subr.mxu0 0.0
  %13135 = vmatpush1.msra.mxu0 0.0
  %13136 = vmatprep.subr.mxu0 0.0
  %13137 = vmatpush1.msra.mxu0 0.0
  %13138 = vmatprep.subr.mxu0 0.0
  %13139 = vmatpush1.msra.mxu0 0.0
  %13140 = vmatprep.subr.mxu0 0.0
  %13141 = vmatpush1.msra.mxu0 0.0
  %13142 = vmatprep.subr.mxu0 0.0
  %13143 = vmatpush1.msra.mxu0 0.0
  %13144 = vmatprep.subr.mxu0 0.0
  %13145 = vmatpush1.msra.mxu0 0.0
  %13146 = vmatprep.subr.mxu0 0.0
  %13147 = vmatpush1.msra.mxu0 0.0
  %13148 = vmatprep.subr.mxu0 0.0
  %13149 = vmatpush1.msra.mxu0 0.0
  %13150 = vmatprep.subr.mxu0 0.0
  %13151 = vmatpush1.msra.mxu0 0.0
  %13152 = vmatprep.subr.mxu0 0.0
  %13153 = vmatpush1.msra.mxu0 0.0
  %13154 = vmatprep.subr.mxu0 0.0
  %13155 = vmatpush1.msra.mxu0 0.0
  %13156 = vmatprep.subr.mxu0 0.0
  %13157 = vmatpush1.msra.mxu0 0.0
  %13158 = vmatprep.subr.mxu0 0.0
  %13159 = vmatpush1.msra.mxu0 0.0
  %13160 = vmatprep.subr.mxu0 0.0
  %13161 = vmatpush1.msra.mxu0 0.0
  %13162 = vmatprep.subr.mxu0 0.0
  %13163 = vmatpush1.msra.mxu0 0.0
  %13164 = vmatprep.subr.mxu0 0.0
  %13165 = vmatpush1.msra.mxu0 0.0
  %13166 = vmatprep.subr.mxu0 0.0
  %13167 = vmatpush1.msra.mxu0 0.0
  %13168 = vmatprep.subr.mxu0 0.0
  %13169 = vmatpush1.msra.mxu0 0.0
  %13170 = vmatprep.subr.mxu0 0.0
  %13171 = vmatpush1.msra.mxu0 0.0
  %13172 = vmatprep.subr.mxu0 0.0
  %13173 = vmatpush1.msra.mxu0 0.0
  %13174 = vmatprep.subr.mxu0 0.0
  %13175 = vmatpush1.msra.mxu0 0.0
  %13176 = vmatprep.subr.mxu0 0.0
  %13177 = vmatpush1.msra.mxu0 0.0
  %13178 = vmatprep.subr.mxu0 0.0
  %13179 = vmatpush1.msra.mxu0 0.0
  %13180 = vmatprep.subr.mxu0 0.0
  %13181 = vmatpush1.msra.mxu0 0.0
  %13182 = vmatprep.subr.mxu0 0.0
  %13183 = vmatpush1.msra.mxu0 0.0
  %13184 = vmatprep.mubr.f32.mxu0 0.0
  %13185 = vmatmul.mubr.f32.gmra.mrb[0].mxu0 %v13118
  %v13186 = vpop.f32.mrb[0].mxu0
  %v13187 = vadd.f32 0.0, %v13186
  %v13188 = vpop.f32.mrb[0].mxu0
  %13189 = vdwg.mxu0
  %v13191 = vrot.slane %v13187, 2
  %v13193 = vadd.f32 %v12372, %v13191
  %v13194 = vxor.u32 %v13193, 2147483648
  %v13195 = vmul.f32 %v13194, 1.442695
  %v13196 = vpow.pop %v13195
  %v13197 = vadd.f32 %v13196, 1.0
  %v13198 = vrcp.pop %v13197
  %v13199 = vmul.f32 1.0, %v13198
  %v13200 = vtanh.pop %v13193
  %v13202 = vrot.slane %v13107, 6
  %v13204 = vmul.f32 %v13199, %v13202
  %13206 = vrot.lane.b32.xlu0 %v13200, 64
  %v13207 = vpop.permute.xlu0 %13206
  %v13209 = vmul.f32 %v13199, %v13207
  %13211 = vrot.lane.b32.xlu0 %v13209, 32
  %v13212 = vpop.permute.xlu0 %13211
  %v13214 = vadd.f32 %v13204, %v13212
  %v13215 = vtanh.pop %v13214
  %13217 = vrot.lane.b32.xlu0 %v13215, 64
  %v13218 = vpop.permute.xlu0 %13217
  %v13220 = vmul.f32 %v13199, %v13218
  %v13221 = vld [vmem:[%s14] sm:$0xff]
  %v13222 = vld [vmem:[%s14 + $0x8] sm:$0xff]
  %v13223 = vld [vmem:[%s14 + $0x10] sm:$0xff]
  %v13224 = vld [vmem:[%s14 + $0x18] sm:$0xff]
  %v13225 = vld [vmem:[%s14 + $0x20] sm:$0xff]
  %v13226 = vld [vmem:[%s14 + $0x28] sm:$0xff]
  %v13227 = vld [vmem:[%s14 + $0x30] sm:$0xff]
  %v13228 = vld [vmem:[%s14 + $0x38] sm:$0xff]
  %v13229 = vld [vmem:[%s14 + $0x40] sm:$0xff]
  %v13230 = vld [vmem:[%s14 + $0x48] sm:$0xff]
  %v13231 = vld [vmem:[%s14 + $0x50] sm:$0xff]
  %v13232 = vld [vmem:[%s14 + $0x58] sm:$0xff]
  %v13233 = vld [vmem:[%s14 + $0x60] sm:$0xff]
  %v13234 = vld [vmem:[%s14 + $0x68] sm:$0xff]
  %v13235 = vld [vmem:[%s14 + $0x70] sm:$0xff]
  %v13236 = vld [vmem:[%s14 + $0x78] sm:$0xff]
  %v13237 = vld [vmem:[%s15] sm:$0xff]
  %v13238 = vld [vmem:[%s15 + $0x8] sm:$0xff]
  %v13239 = vld [vmem:[%s15 + $0x10] sm:$0xff]
  %v13240 = vld [vmem:[%s15 + $0x18] sm:$0xff]
  %v13242 = vrot.slane %v13220, 6
  %13243 = vrot.lane.b32.xlu0 %v13242, 32
  %v13244 = vpop.permute.xlu0 %13243
  %v13245 = vsel %vm11002, %v13244, 0
  %13247 = vmatprep.subr.mxu0 0.0
  %13248 = vmatpush1.msra.mxu0 %v13237
  %13249 = vmatprep.subr.mxu0 0.0
  %13250 = vmatpush1.msra.mxu0 %v13238
  %13251 = vmatprep.subr.mxu0 0.0
  %13252 = vmatpush1.msra.mxu0 %v13239
  %13253 = vmatprep.subr.mxu0 0.0
  %13254 = vmatpush1.msra.mxu0 %v13240
  %13255 = vmatprep.subr.mxu0 0.0
  %13256 = vmatpush1.msra.mxu0 0.0
  %13257 = vmatprep.subr.mxu0 0.0
  %13258 = vmatpush1.msra.mxu0 0.0
  %13259 = vmatprep.subr.mxu0 0.0
  %13260 = vmatpush1.msra.mxu0 0.0
  %13261 = vmatprep.subr.mxu0 0.0
  %13262 = vmatpush1.msra.mxu0 0.0
  %13263 = vmatprep.subr.mxu0 0.0
  %13264 = vmatpush1.msra.mxu0 0.0
  %13265 = vmatprep.subr.mxu0 0.0
  %13266 = vmatpush1.msra.mxu0 0.0
  %13267 = vmatprep.subr.mxu0 0.0
  %13268 = vmatpush1.msra.mxu0 0.0
  %13269 = vmatprep.subr.mxu0 0.0
  %13270 = vmatpush1.msra.mxu0 0.0
  %13271 = vmatprep.subr.mxu0 0.0
  %13272 = vmatpush1.msra.mxu0 0.0
  %13273 = vmatprep.subr.mxu0 0.0
  %13274 = vmatpush1.msra.mxu0 0.0
  %13275 = vmatprep.subr.mxu0 0.0
  %13276 = vmatpush1.msra.mxu0 0.0
  %13277 = vmatprep.subr.mxu0 0.0
  %13278 = vmatpush1.msra.mxu0 0.0
  %13279 = vmatprep.subr.mxu0 0.0
  %13280 = vmatpush1.msra.mxu0 0.0
  %13281 = vmatprep.subr.mxu0 0.0
  %13282 = vmatpush1.msra.mxu0 0.0
  %13283 = vmatprep.subr.mxu0 0.0
  %13284 = vmatpush1.msra.mxu0 0.0
  %13285 = vmatprep.subr.mxu0 0.0
  %13286 = vmatpush1.msra.mxu0 0.0
  %13287 = vmatprep.subr.mxu0 0.0
  %13288 = vmatpush1.msra.mxu0 0.0
  %13289 = vmatprep.subr.mxu0 0.0
  %13290 = vmatpush1.msra.mxu0 0.0
  %13291 = vmatprep.subr.mxu0 0.0
  %13292 = vmatpush1.msra.mxu0 0.0
  %13293 = vmatprep.subr.mxu0 0.0
  %13294 = vmatpush1.msra.mxu0 0.0
  %13295 = vmatprep.subr.mxu0 0.0
  %13296 = vmatpush1.msra.mxu0 0.0
  %13297 = vmatprep.subr.mxu0 0.0
  %13298 = vmatpush1.msra.mxu0 0.0
  %13299 = vmatprep.subr.mxu0 0.0
  %13300 = vmatpush1.msra.mxu0 0.0
  %13301 = vmatprep.subr.mxu0 0.0
  %13302 = vmatpush1.msra.mxu0 0.0
  %13303 = vmatprep.subr.mxu0 0.0
  %13304 = vmatpush1.msra.mxu0 0.0
  %13305 = vmatprep.subr.mxu0 0.0
  %13306 = vmatpush1.msra.mxu0 0.0
  %13307 = vmatprep.subr.mxu0 0.0
  %13308 = vmatpush1.msra.mxu0 0.0
  %13309 = vmatprep.subr.mxu0 0.0
  %13310 = vmatpush1.msra.mxu0 0.0
  %13311 = vmatprep.mubr.f32.mxu0 0.0
  %13312 = vmatmul.mubr.f32.gmra.mrb[0].mxu0 %v13245
  %v13313 = vpop.f32.mrb[0].mxu0
  %v13314 = vadd.f32 0.0, %v13313
  %v13315 = vpop.f32.mrb[0].mxu0
  %13316 = vdwg.mxu0
  %13317 = vmatprep.subr.mxu0 0.0
  %13318 = vmatpush1.msra.mxu0 %v13221
  %13319 = vmatprep.subr.mxu0 0.0
  %13320 = vmatpush1.msra.mxu0 %v13222
  %13321 = vmatprep.subr.mxu0 0.0
  %13322 = vmatpush1.msra.mxu0 %v13223
  %13323 = vmatprep.subr.mxu0 0.0
  %13324 = vmatpush1.msra.mxu0 %v13224
  %13325 = vmatprep.subr.mxu0 0.0
  %13326 = vmatpush1.msra.mxu0 %v13225
  %13327 = vmatprep.subr.mxu0 0.0
  %13328 = vmatpush1.msra.mxu0 %v13226
  %13329 = vmatprep.subr.mxu0 0.0
  %13330 = vmatpush1.msra.mxu0 %v13227
  %13331 = vmatprep.subr.mxu0 0.0
  %13332 = vmatpush1.msra.mxu0 %v13228
  %13333 = vmatprep.subr.mxu0 0.0
  %13334 = vmatpush1.msra.mxu0 %v13229
  %13335 = vmatprep.subr.mxu0 0.0
  %13336 = vmatpush1.msra.mxu0 %v13230
  %13337 = vmatprep.subr.mxu0 0.0
  %13338 = vmatpush1.msra.mxu0 %v13231
  %13339 = vmatprep.subr.mxu0 0.0
  %13340 = vmatpush1.msra.mxu0 %v13232
  %13341 = vmatprep.subr.mxu0 0.0
  %13342 = vmatpush1.msra.mxu0 %v13233
  %13343 = vmatprep.subr.mxu0 0.0
  %13344 = vmatpush1.msra.mxu0 %v13234
  %13345 = vmatprep.subr.mxu0 0.0
  %13346 = vmatpush1.msra.mxu0 %v13235
  %13347 = vmatprep.subr.mxu0 0.0
  %13348 = vmatpush1.msra.mxu0 %v13236
  %13349 = vmatprep.subr.mxu0 0.0
  %13350 = vmatpush1.msra.mxu0 0.0
  %13351 = vmatprep.subr.mxu0 0.0
  %13352 = vmatpush1.msra.mxu0 0.0
  %13353 = vmatprep.subr.mxu0 0.0
  %13354 = vmatpush1.msra.mxu0 0.0
  %13355 = vmatprep.subr.mxu0 0.0
  %13356 = vmatpush1.msra.mxu0 0.0
  %13357 = vmatprep.subr.mxu0 0.0
  %13358 = vmatpush1.msra.mxu0 0.0
  %13359 = vmatprep.subr.mxu0 0.0
  %13360 = vmatpush1.msra.mxu0 0.0
  %13361 = vmatprep.subr.mxu0 0.0
  %13362 = vmatpush1.msra.mxu0 0.0
  %13363 = vmatprep.subr.mxu0 0.0
  %13364 = vmatpush1.msra.mxu0 0.0
  %13365 = vmatprep.subr.mxu0 0.0
  %13366 = vmatpush1.msra.mxu0 0.0
  %13367 = vmatprep.subr.mxu0 0.0
  %13368 = vmatpush1.msra.mxu0 0.0
  %13369 = vmatprep.subr.mxu0 0.0
  %13370 = vmatpush1.msra.mxu0 0.0
  %13371 = vmatprep.subr.mxu0 0.0
  %13372 = vmatpush1.msra.mxu0 0.0
  %13373 = vmatprep.subr.mxu0 0.0
  %13374 = vmatpush1.msra.mxu0 0.0
  %13375 = vmatprep.subr.mxu0 0.0
  %13376 = vmatpush1.msra.mxu0 0.0
  %13377 = vmatprep.subr.mxu0 0.0
  %13378 = vmatpush1.msra.mxu0 0.0
  %13379 = vmatprep.subr.mxu0 0.0
  %13380 = vmatpush1.msra.mxu0 0.0
  %13381 = vmatprep.mubr.f32.mxu0 0.0
  %13382 = vmatmul.mubr.f32.gmra.mrb[0].mxu0 %v12179
  %v13383 = vpop.f32.mrb[0].mxu0
  %v13384 = vadd.f32 %v13314, %v13383
  %v13385 = vpop.f32.mrb[0].mxu0
  %13386 = vdwg.mxu0
  %v13387 = vld [vmem:[%s16] sm:$0x1]
  %v13389 = vlaneseq
  %v13390 = vshrl.u32 %v13389, 7
  %v13391 = vsub.s32 0, %v13390
  %v13392 = vrot.slane %v13387, %v13391
  %v13394 = vadd.f32 %v13384, %v13392
  %vm13395 = vcmask 443392
  %13396 = vst.msk [vmem:[%s17] sm:$0x3] %vm13395, %v13394
  // Predicated region
  $region70: #{forward.1} parent=0 // pred_check
    _
  $region71: #{forward.1} parent=0 // pred_check_branch
    %13398 = sbr.rel (0) target = $region73
  $region72: #{forward.1} parent=0 // pred_region
    _
  $region73: #{forward.1} parent=0 // pred_fallthru
    _
  // Predicated region
  $region74: #{forward.1} parent=0 // pred_check
    _
  $region75: #{forward.1} parent=0 // pred_check_branch
    %13400 = sbr.rel (0) target = $region77
  $region76: #{forward.1} parent=0 // pred_region
    _
  $region77: #{forward.1} parent=0 // pred_fallthru
    _

</llo_original>
